<compile_context>
chip_gen: v7x
topology: tpu7x:2x2x1
jax: 0.10.0
libtpu: 0.0.40
codegen_flags: <defaults>
</compile_context>

<pallas_src>
import functools
import math

import jax
import jax.numpy as jnp
from jax.experimental import pallas as pl
from jax.experimental.pallas import tpu as pltpu

LN_EPS = 1e-5


def _layer_norm_f32(y, gamma, beta):
    mu = jnp.mean(y, axis=-1, keepdims=True)
    var = jnp.mean((y - mu) ** 2, axis=-1, keepdims=True)
    return (y - mu) * jax.lax.rsqrt(var + LN_EPS) * gamma + beta


def encoder_layer_kernel(x_ref, wq_ref, wk_ref, wv_ref, bq_ref, bk_ref, bv_ref,
                         wo_ref, bo_ref, w1_ref, b1_ref, w2_ref, b2_ref,
                         g1_ref, be1_ref, g2_ref, be2_ref, o_ref, *,
                         nhead, f_chunk):
    Bt, S, D = x_ref.shape
    hd = D // nhead
    F_ = w1_ref.shape[1]
    cdt = wq_ref.dtype                       # matmul input dtype (f32 or bf16)

    x = x_ref[...].astype(jnp.float32)       # (Bt, S, D) residual / LN path in f32
    xr = x.reshape(Bt * S, D)                # leading-dims merge only (cheap)
    xm = xr.astype(cdt)

    # --- Self-attention: head-major weights -> per-head projections at lane 0,
    # --- output projection accumulated per head (no concatenate, no lane-offset slices).
    # TODO(synk): for nhead >= 16, drive this with lax.fori_loop(..., unroll=True)
    # over head-major slabs instead of a full static unroll.
    sa = jnp.zeros((Bt * S, D), jnp.float32)
    for h in range(nhead):                   # static unroll; nhead is small here
        qh = (jnp.dot(xm, wq_ref[h], preferred_element_type=jnp.float32)
              + bq_ref[h]).reshape(Bt, S, hd)            # scale folded into wq/bq
        kh = (jnp.dot(xm, wk_ref[h], preferred_element_type=jnp.float32)
              + bk_ref[h]).reshape(Bt, S, hd)
        vh = (jnp.dot(xm, wv_ref[h], preferred_element_type=jnp.float32)
              + bv_ref[h]).reshape(Bt, S, hd)
        # TODO(synk): for long S, tile over the key axis (online softmax) instead of
        # materializing the full (Bt, S, S) f32 score matrix per head.
        s = jnp.einsum("bqd,bkd->bqk", qh.astype(cdt), kh.astype(cdt),
                       preferred_element_type=jnp.float32)          # (Bt, S, S)
        s = s - jnp.max(s, axis=-1, keepdims=True)
        p = jnp.exp(s)
        p = p * pl.reciprocal(jnp.sum(p, axis=-1, keepdims=True), approx=True)
        ctx = jnp.einsum("bqk,bkd->bqd", p.astype(cdt), vh.astype(cdt),
                         preferred_element_type=jnp.float32)        # (Bt, S, hd)
        sa = sa + jnp.dot(ctx.reshape(Bt * S, hd).astype(cdt), wo_ref[h],
                          preferred_element_type=jnp.float32)
    sa = sa + bo_ref[...]

    # dropout1 -> identity (eval); post-norm residual
    y = _layer_norm_f32(xr + sa, g1_ref[...], be1_ref[...])
    ym = y.astype(cdt)

    # --- Feed-forward block, reduction tiled over F (lane-aligned chunks) so the
    # --- full (M, F) f32 h1 never materializes.  dropout / dropout2 -> identity.
    # TODO(synk): at very large F, stream w1/w2 chunks via a second grid axis /
    # emit_pipeline instead of keeping the full (D,F)+(F,D) weights VMEM-resident.
    ff = jnp.zeros((Bt * S, D), jnp.float32)
    for c in range(F_ // f_chunk):
        lo = c * f_chunk
        h1 = jnp.maximum(
            jnp.dot(ym, w1_ref[:, lo:lo + f_chunk],
                    preferred_element_type=jnp.float32)
            + b1_ref[:, lo:lo + f_chunk], 0.0)
        ff = ff + jnp.dot(h1.astype(cdt), w2_ref[lo:lo + f_chunk, :],
                          preferred_element_type=jnp.float32)
    ff = ff + b2_ref[...]

    z = _layer_norm_f32(y + ff, g2_ref[...], be2_ref[...])
    o_ref[...] = z.reshape(Bt, S, D).astype(o_ref.dtype)


def _ffn_chunk(F_):
    """Lane-aligned chunk size for tiling the FFN reduction over F."""
    if F_ <= 512:
        return F_
    for c in (512, 256, 128):
        if F_ % c == 0:
            return c
    return F_


def _prepare_params(params, nhead, compute_dtype):
    """Host-side weight prep: head-major split, pre-transpose, fold 1/sqrt(hd)."""
    D = params["wo"].shape[0]
    hd = D // nhead
    scale = 1.0 / math.sqrt(hd)
    wqkv = params["wqkv"]                    # (3D, D), rows = output features
    bqkv = params["bqkv"].reshape(-1)        # (3D,)
    cd = compute_dtype
    f32 = jnp.float32

    def head_major_w(w):                     # (D_out, D_in) -> (nhead, D_in, hd)
        return w.T.reshape(D, nhead, hd).transpose(1, 0, 2)

    def head_major_b(b):                     # (D,) -> (nhead, 1, hd)
        return b.reshape(nhead, 1, hd)

    wq, wk, wv = wqkv[:D], wqkv[D:2 * D], wqkv[2 * D:]
    bq, bk, bv = bqkv[:D], bqkv[D:2 * D], bqkv[2 * D:]
    return dict(
        wq=head_major_w(wq * scale).astype(cd),
        wk=head_major_w(wk).astype(cd),
        wv=head_major_w(wv).astype(cd),
        bq=head_major_b(bq * scale).astype(f32),
        bk=head_major_b(bk).astype(f32),
        bv=head_major_b(bv).astype(f32),
        wo=params["wo"].T.reshape(nhead, hd, D).astype(cd),   # (nhead, hd, D)
        bo=params["bo"].reshape(1, D).astype(f32),
        w1=params["w1"].T.astype(cd),                          # (D, F)
        b1=params["b1"].reshape(1, -1).astype(f32),
        w2=params["w2"].T.astype(cd),                          # (F, D)
        b2=params["b2"].reshape(1, D).astype(f32),
        g1=params["g1"].reshape(1, D).astype(f32),
        be1=params["be1"].reshape(1, D).astype(f32),
        g2=params["g2"].reshape(1, D).astype(f32),
        be2=params["be2"].reshape(1, D).astype(f32),
    )


def _const_index_map(nd):
    def idx(b):
        return (0,) * nd
    return idx


def _select_batch_block(B, S, D, nhead, f_chunk, weight_bytes,
                        in_itemsize, out_itemsize, budget, prefer_multi_step):
    """Largest divisor of B whose real per-step VMEM footprint fits the budget."""
    hd = D // nhead

    def footprint(bt):
        M = bt * S
        io = 2 * M * D * (in_itemsize + out_itemsize)          # double-buffered x/out
        act = 4 * M * (4 * D + f_chunk + 4 * hd) + 4 * bt * 2 * S * S
        return weight_bytes + io + act

    candidates = [bt for bt in range(B, 0, -1) if B % bt == 0]
    if prefer_multi_step and B >= 2:
        limited = [bt for bt in candidates if bt <= B // 2]
        candidates = limited or candidates
    fits = [bt for bt in candidates if footprint(bt) <= budget]
    if not fits:
        return candidates[-1]                                   # smallest; let Mosaic try
    # Prefer an M = bt*S aligned to the MXU tile (256 on v6e/v7x, 128 on v5e).
    aligned = ([bt for bt in fits if (bt * S) % 256 == 0]
               or [bt for bt in fits if (bt * S) % 128 == 0])
    return (aligned or fits)[0]


def simple_encoder_layer(x, params, nhead, *, compute_dtype=jnp.float32,
                         batch_block=None, cast_activations=None):
    """x: (S, B, D) float32  ->  (S, B, D) float32 (eval mode, no masks)."""
    S, B, D = x.shape
    F_ = params["w1"].shape[0]
    p = _prepare_params(params, nhead, compute_dtype)
    f_chunk = _ffn_chunk(F_)

    w_names = ["wq", "wk", "wv", "bq", "bk", "bv", "wo", "bo",
               "w1", "b1", "w2", "b2", "g1", "be1", "g2", "be2"]
    w_args = [p[n] for n in w_names]
    weight_bytes = sum(a.size * a.dtype.itemsize for a in w_args)

    # Generation-aware VMEM budget: ~56 MiB on 64 MiB (v7x-class) parts, ~112 MiB
    # on 128 MiB (v5e/v6e) parts; leave headroom for Mosaic internal scratch.
    try:
        vmem_cap = int(getattr(pltpu.get_tpu_info(), "vmem_capacity_bytes", 64 << 20))
    except Exception:
        vmem_cap = 64 << 20
    vmem_limit = max(16 << 20, int(min(vmem_cap - (8 << 20), vmem_cap * 0.875)))
    budget = int(vmem_limit * 0.85)

    # Keep the grid >= 2 steps on 2-TC parts (64 MiB VMEM is the v7x proxy) so
    # dimension_semantics=("parallel",) shards across both TensorCores.
    prefer_multi_step = vmem_cap <= (64 << 20)

    if cast_activations is None:
        cast_activations = compute_dtype != jnp.float32
    x_in_dtype = compute_dtype if cast_activations else x.dtype
    in_itemsize = jnp.dtype(x_in_dtype).itemsize
    out_itemsize = jnp.dtype(x.dtype).itemsize

    if batch_block is None:
        batch_block = _select_batch_block(B, S, D, nhead, f_chunk, weight_bytes,
                                          in_itemsize, out_itemsize, budget,
                                          prefer_multi_step)
    assert B % batch_block == 0

    xb = jnp.transpose(x, (1, 0, 2)).astype(x_in_dtype)        # (B, S, D)

    kernel = functools.partial(encoder_layer_kernel, nhead=nhead, f_chunk=f_chunk)
    x_spec = pl.BlockSpec((batch_block, S, D), lambda b: (b, 0, 0))
    out_spec = pl.BlockSpec((batch_block, S, D), lambda b: (b, 0, 0))
    out_shape = jax.ShapeDtypeStruct((B, S, D), x.dtype)

    last_err = None
    for single_buffer in (True, False):
        try:
            w_specs = []
            for a in w_args:
                kw = {}
                if single_buffer and hasattr(pl, "Buffered"):
                    # Grid-invariant weights: double-buffering buys nothing.
                    kw["pipeline_mode"] = pl.Buffered(1)
                w_specs.append(pl.BlockSpec(a.shape, _const_index_map(a.ndim), **kw))
            out = pl.pallas_call(
                kernel,
                out_shape=out_shape,
                grid=(B // batch_block,),
                in_specs=[x_spec] + w_specs,
                out_specs=out_spec,
                compiler_params=pltpu.CompilerParams(
                    dimension_semantics=("parallel",),
                    vmem_limit_bytes=vmem_limit),
            )(xb, *w_args)
            out = jax.block_until_ready(out)
            return jnp.transpose(out, (1, 0, 2))               # back to (S, B, D)
        except Exception as e:   # fall back to default (double-buffered) weight specs
            last_err = e
    raise last_err


def reference(x, params, nhead):
    """Pure-JAX reference mirroring the PyTorch module (eval mode, f32)."""
    S, B, D = x.shape
    hd = D // nhead
    scale = 1.0 / math.sqrt(hd)

    def ln(y, g, b):
        mu = jnp.mean(y, -1, keepdims=True)
        var = jnp.mean((y - mu) ** 2, -1, keepdims=True)
        return (y - mu) / jnp.sqrt(var + LN_EPS) * g + b

    xb = jnp.transpose(x, (1, 0, 2))                  # (B, S, D)
    qkv = xb @ params["wqkv"].T + params["bqkv"][0]
    q, k, v = qkv[..., :D], qkv[..., D:2 * D], qkv[..., 2 * D:]
    q = q.reshape(B, S, nhead, hd).transpose(0, 2, 1, 3) * scale
    k = k.reshape(B, S, nhead, hd).transpose(0, 2, 1, 3)
    v = v.reshape(B, S, nhead, hd).transpose(0, 2, 1, 3)
    s = jnp.einsum("bhqd,bhkd->bhqk", q, k)
    p = jax.nn.softmax(s, axis=-1)
    a = jnp.einsum("bhqk,bhkd->bhqd", p, v).transpose(0, 2, 1, 3).reshape(B, S, D)
    sa = a @ params["wo"].T + params["bo"][0]
    y = ln(xb + sa, params["g1"][0], params["be1"][0])
    h1 = jax.nn.relu(y @ params["w1"].T + params["b1"][0])
    ff = h1 @ params["w2"].T + params["b2"][0]
    z = ln(y + ff, params["g2"][0], params["be2"][0])
    return jnp.transpose(z, (1, 0, 2))


def make_params(key, d_model, nhead, dim_feedforward):
    ks = jax.random.split(key, 8)
    sc = 0.1
    return {
        "wqkv": jax.random.normal(ks[0], (3 * d_model, d_model), jnp.float32) * sc,
        "bqkv": jax.random.normal(ks[1], (1, 3 * d_model), jnp.float32) * sc,
        "wo": jax.random.normal(ks[2], (d_model, d_model), jnp.float32) * sc,
        "bo": jax.random.normal(ks[3], (1, d_model), jnp.float32) * sc,
        "w1": jax.random.normal(ks[4], (dim_feedforward, d_model), jnp.float32) * sc,
        "b1": jax.random.normal(ks[5], (1, dim_feedforward), jnp.float32) * sc,
        "w2": jax.random.normal(ks[6], (d_model, dim_feedforward), jnp.float32) * sc,
        "b2": jax.random.normal(ks[7], (1, d_model), jnp.float32) * sc,
        "g1": jnp.ones((1, d_model), jnp.float32),
        "be1": jnp.zeros((1, d_model), jnp.float32),
        "g2": jnp.ones((1, d_model), jnp.float32),
        "be2": jnp.zeros((1, d_model), jnp.float32),
    }


if __name__ == "__main__":
    # TODO(synk): src_mask / key_padding_mask and training-mode dropout are not
    # implemented (module's default inference path only).
    S, B, D = 8, 2, 32
    NHEAD, FF, DROPOUT = 4, 64, 0.1  # dropout unused in eval mode

    key = jax.random.PRNGKey(0)
    kx, kp = jax.random.split(key)
    x = jax.random.normal(kx, (S, B, D), jnp.float32)
    params = make_params(kp, D, NHEAD, FF)

    ref = reference(x, params, NHEAD)

    # f32 path (approx reciprocal in softmax -> slightly loosened tolerance).
    out = jax.block_until_ready(simple_encoder_layer(x, params, NHEAD))
    assert out.shape == (S, B, D)
    err = float(jnp.max(jnp.abs(out - ref)))
    assert jnp.allclose(out, ref, atol=5e-3, rtol=5e-3), err

    # bf16 path (bf16 MXU inputs + bf16 activation DMA, f32 accumulation inside).
    out_bf16 = jax.block_until_ready(
        simple_encoder_layer(x, params, NHEAD, compute_dtype=jnp.bfloat16))
    err_bf16 = float(jnp.max(jnp.abs(out_bf16.astype(jnp.float32) - ref)))
    assert err_bf16 < 0.15, err_bf16

    print("KERNEL_OK")
</pallas_src>

<mosaic_0001>
module attributes {stable_mosaic.version = 11 : i64} {
  func.func @encoder_layer_kernel(%arg0: i32, %arg1: memref<1x8x32xf32, #tpu.memory_space<vmem>>, %arg2: memref<4x32x8xf32, #tpu.memory_space<vmem>>, %arg3: memref<4x32x8xf32, #tpu.memory_space<vmem>>, %arg4: memref<4x32x8xf32, #tpu.memory_space<vmem>>, %arg5: memref<4x1x8xf32, #tpu.memory_space<vmem>>, %arg6: memref<4x1x8xf32, #tpu.memory_space<vmem>>, %arg7: memref<4x1x8xf32, #tpu.memory_space<vmem>>, %arg8: memref<4x8x32xf32, #tpu.memory_space<vmem>>, %arg9: memref<1x32xf32, #tpu.memory_space<vmem>>, %arg10: memref<32x64xf32, #tpu.memory_space<vmem>>, %arg11: memref<1x64xf32, #tpu.memory_space<vmem>>, %arg12: memref<64x32xf32, #tpu.memory_space<vmem>>, %arg13: memref<1x32xf32, #tpu.memory_space<vmem>>, %arg14: memref<1x32xf32, #tpu.memory_space<vmem>>, %arg15: memref<1x32xf32, #tpu.memory_space<vmem>>, %arg16: memref<1x32xf32, #tpu.memory_space<vmem>>, %arg17: memref<1x32xf32, #tpu.memory_space<vmem>>, %arg18: memref<1x8x32xf32, #tpu.memory_space<vmem>>) attributes {dimension_semantics = [#tpu.dimension_semantics<parallel>], iteration_bounds = array<i64: 2>, scalar_prefetch = 0 : i64, scratch_operands = 0 : i64, tpu.core_type = #tpu.core_type<tc>, window_params = [{transform_indices = @transform_0, window_bounds = array<i64: 1, 8, 32>}, {pipeline_mode = #tpu.pipeline_mode<synchronous>, transform_indices = @transform_1, window_bounds = array<i64: 4, 32, 8>}, {pipeline_mode = #tpu.pipeline_mode<synchronous>, transform_indices = @transform_2, window_bounds = array<i64: 4, 32, 8>}, {pipeline_mode = #tpu.pipeline_mode<synchronous>, transform_indices = @transform_3, window_bounds = array<i64: 4, 32, 8>}, {pipeline_mode = #tpu.pipeline_mode<synchronous>, transform_indices = @transform_4, window_bounds = array<i64: 4, 1, 8>}, {pipeline_mode = #tpu.pipeline_mode<synchronous>, transform_indices = @transform_5, window_bounds = array<i64: 4, 1, 8>}, {pipeline_mode = #tpu.pipeline_mode<synchronous>, transform_indices = @transform_6, window_bounds = array<i64: 4, 1, 8>}, {pipeline_mode = #tpu.pipeline_mode<synchronous>, transform_indices = @transform_7, window_bounds = array<i64: 4, 8, 32>}, {pipeline_mode = #tpu.pipeline_mode<synchronous>, transform_indices = @transform_8, window_bounds = array<i64: 1, 32>}, {pipeline_mode = #tpu.pipeline_mode<synchronous>, transform_indices = @transform_9, window_bounds = array<i64: 32, 64>}, {pipeline_mode = #tpu.pipeline_mode<synchronous>, transform_indices = @transform_10, window_bounds = array<i64: 1, 64>}, {pipeline_mode = #tpu.pipeline_mode<synchronous>, transform_indices = @transform_11, window_bounds = array<i64: 64, 32>}, {pipeline_mode = #tpu.pipeline_mode<synchronous>, transform_indices = @transform_12, window_bounds = array<i64: 1, 32>}, {pipeline_mode = #tpu.pipeline_mode<synchronous>, transform_indices = @transform_13, window_bounds = array<i64: 1, 32>}, {pipeline_mode = #tpu.pipeline_mode<synchronous>, transform_indices = @transform_14, window_bounds = array<i64: 1, 32>}, {pipeline_mode = #tpu.pipeline_mode<synchronous>, transform_indices = @transform_15, window_bounds = array<i64: 1, 32>}, {pipeline_mode = #tpu.pipeline_mode<synchronous>, transform_indices = @transform_16, window_bounds = array<i64: 1, 32>}, {transform_indices = @transform_17, window_bounds = array<i64: 1, 8, 32>}]} {
    %c0 = arith.constant 0 : index
    %c0_0 = arith.constant 0 : index
    %c0_1 = arith.constant 0 : index
    %0 = vector.load %arg1[%c0, %c0_0, %c0_1] : memref<1x8x32xf32, #tpu.memory_space<vmem>>, vector<1x8x32xf32>
    %1 = vector.shape_cast %0 : vector<1x8x32xf32> to vector<8x32xf32>
    %cst = arith.constant 0.000000e+00 : f32
    %2 = vector.broadcast %cst : f32 to vector<8x32xf32>
    %c0_2 = arith.constant 0 : index
    %c0_3 = arith.constant 0 : index
    %c0_4 = arith.constant 0 : index
    %3 = vector.load %arg2[%c0_2, %c0_3, %c0_4] : memref<4x32x8xf32, #tpu.memory_space<vmem>>, vector<1x32x8xf32>
    %4 = vector.shape_cast %3 : vector<1x32x8xf32> to vector<32x8xf32>
    %cst_5 = arith.constant dense<0.000000e+00> : vector<8x8xf32>
    %5 = tpu.matmul %1, %4, %cst_5 {dimension_numbers = #tpu.dot_dimension_numbers<[1], [0], [0], [1], [0, 0, 1, 1], [], []>} : vector<8x32xf32>, vector<32x8xf32>, vector<8x8xf32> -> vector<8x8xf32>
    %c0_6 = arith.constant 0 : index
    %c0_7 = arith.constant 0 : index
    %c0_8 = arith.constant 0 : index
    %6 = vector.load %arg5[%c0_6, %c0_7, %c0_8] : memref<4x1x8xf32, #tpu.memory_space<vmem>>, vector<1x1x8xf32>
    %7 = vector.shape_cast %6 : vector<1x1x8xf32> to vector<1x8xf32>
    %8 = vector.broadcast %7 : vector<1x8xf32> to vector<8x8xf32>
    %9 = arith.addf %5, %8 : vector<8x8xf32>
    %10 = vector.shape_cast %9 : vector<8x8xf32> to vector<1x8x8xf32>
    %c0_9 = arith.constant 0 : index
    %c0_10 = arith.constant 0 : index
    %c0_11 = arith.constant 0 : index
    %11 = vector.load %arg3[%c0_9, %c0_10, %c0_11] : memref<4x32x8xf32, #tpu.memory_space<vmem>>, vector<1x32x8xf32>
    %12 = vector.shape_cast %11 : vector<1x32x8xf32> to vector<32x8xf32>
    %cst_12 = arith.constant dense<0.000000e+00> : vector<8x8xf32>
    %13 = tpu.matmul %1, %12, %cst_12 {dimension_numbers = #tpu.dot_dimension_numbers<[1], [0], [0], [1], [0, 0, 1, 1], [], []>} : vector<8x32xf32>, vector<32x8xf32>, vector<8x8xf32> -> vector<8x8xf32>
    %c0_13 = arith.constant 0 : index
    %c0_14 = arith.constant 0 : index
    %c0_15 = arith.constant 0 : index
    %14 = vector.load %arg6[%c0_13, %c0_14, %c0_15] : memref<4x1x8xf32, #tpu.memory_space<vmem>>, vector<1x1x8xf32>
    %15 = vector.shape_cast %14 : vector<1x1x8xf32> to vector<1x8xf32>
    %16 = vector.broadcast %15 : vector<1x8xf32> to vector<8x8xf32>
    %17 = arith.addf %13, %16 : vector<8x8xf32>
    %18 = vector.shape_cast %17 : vector<8x8xf32> to vector<1x8x8xf32>
    %c0_16 = arith.constant 0 : index
    %c0_17 = arith.constant 0 : index
    %c0_18 = arith.constant 0 : index
    %19 = vector.load %arg4[%c0_16, %c0_17, %c0_18] : memref<4x32x8xf32, #tpu.memory_space<vmem>>, vector<1x32x8xf32>
    %20 = vector.shape_cast %19 : vector<1x32x8xf32> to vector<32x8xf32>
    %cst_19 = arith.constant dense<0.000000e+00> : vector<8x8xf32>
    %21 = tpu.matmul %1, %20, %cst_19 {dimension_numbers = #tpu.dot_dimension_numbers<[1], [0], [0], [1], [0, 0, 1, 1], [], []>} : vector<8x32xf32>, vector<32x8xf32>, vector<8x8xf32> -> vector<8x8xf32>
    %c0_20 = arith.constant 0 : index
    %c0_21 = arith.constant 0 : index
    %c0_22 = arith.constant 0 : index
    %22 = vector.load %arg7[%c0_20, %c0_21, %c0_22] : memref<4x1x8xf32, #tpu.memory_space<vmem>>, vector<1x1x8xf32>
    %23 = vector.shape_cast %22 : vector<1x1x8xf32> to vector<1x8xf32>
    %24 = vector.broadcast %23 : vector<1x8xf32> to vector<8x8xf32>
    %25 = arith.addf %21, %24 : vector<8x8xf32>
    %26 = vector.shape_cast %25 : vector<8x8xf32> to vector<1x8x8xf32>
    "tpu.trace_start"() <{level = 10 : i32, message = "bqd,bkd->bqk"}> : () -> ()
    %cst_23 = arith.constant dense<0.000000e+00> : vector<1x8x8xf32>
    %27 = tpu.matmul %10, %18, %cst_23 {dimension_numbers = #tpu.dot_dimension_numbers<[2], [2], [1], [1], [0, 0, 0, 1, 1, 1], [0], [0]>} : vector<1x8x8xf32>, vector<1x8x8xf32>, vector<1x8x8xf32> -> vector<1x8x8xf32>
    "tpu.trace_stop"() : () -> ()
    %cst_24 = arith.constant dense<0xFF800000> : vector<1x8xf32>
    %28 = vector.multi_reduction <maximumf>, %27, %cst_24 [2] : vector<1x8x8xf32> to vector<1x8xf32>
    %29 = vector.shape_cast %28 : vector<1x8xf32> to vector<1x8x1xf32>
    %30 = vector.broadcast %29 : vector<1x8x1xf32> to vector<1x8x8xf32>
    %31 = arith.subf %27, %30 : vector<1x8x8xf32>
    %32 = math.exp %31 : vector<1x8x8xf32>
    %cst_25 = arith.constant dense<0.000000e+00> : vector<1x8xf32>
    %33 = vector.multi_reduction <add>, %32, %cst_25 [2] : vector<1x8x8xf32> to vector<1x8xf32>
    %34 = vector.shape_cast %33 : vector<1x8xf32> to vector<1x8x1xf32>
    %35 = tpu.reciprocal %34 {approx = true} : vector<1x8x1xf32> -> vector<1x8x1xf32>
    %36 = vector.broadcast %35 : vector<1x8x1xf32> to vector<1x8x8xf32>
    %37 = arith.mulf %32, %36 : vector<1x8x8xf32>
    "tpu.trace_start"() <{level = 10 : i32, message = "bqk,bkd->bqd"}> : () -> ()
    %cst_26 = arith.constant dense<0.000000e+00> : vector<1x8x8xf32>
    %38 = tpu.matmul %37, %26, %cst_26 {dimension_numbers = #tpu.dot_dimension_numbers<[2], [1], [1], [2], [0, 0, 0, 1, 1, 2], [0], [0]>} : vector<1x8x8xf32>, vector<1x8x8xf32>, vector<1x8x8xf32> -> vector<1x8x8xf32>
    "tpu.trace_stop"() : () -> ()
    %39 = vector.shape_cast %38 : vector<1x8x8xf32> to vector<8x8xf32>
    %c0_27 = arith.constant 0 : index
    %c0_28 = arith.constant 0 : index
    %c0_29 = arith.constant 0 : index
    %40 = vector.load %arg8[%c0_27, %c0_28, %c0_29] : memref<4x8x32xf32, #tpu.memory_space<vmem>>, vector<1x8x32xf32>
    %41 = vector.shape_cast %40 : vector<1x8x32xf32> to vector<8x32xf32>
    %cst_30 = arith.constant dense<0.000000e+00> : vector<8x32xf32>
    %42 = tpu.matmul %39, %41, %cst_30 {dimension_numbers = #tpu.dot_dimension_numbers<[1], [0], [0], [1], [0, 0, 1, 1], [], []>} : vector<8x8xf32>, vector<8x32xf32>, vector<8x32xf32> -> vector<8x32xf32>
    %43 = arith.addf %2, %42 : vector<8x32xf32>
    %c1 = arith.constant 1 : index
    %c0_31 = arith.constant 0 : index
    %c0_32 = arith.constant 0 : index
    %44 = vector.load %arg2[%c1, %c0_31, %c0_32] : memref<4x32x8xf32, #tpu.memory_space<vmem>>, vector<1x32x8xf32>
    %45 = vector.shape_cast %44 : vector<1x32x8xf32> to vector<32x8xf32>
    %cst_33 = arith.constant dense<0.000000e+00> : vector<8x8xf32>
    %46 = tpu.matmul %1, %45, %cst_33 {dimension_numbers = #tpu.dot_dimension_numbers<[1], [0], [0], [1], [0, 0, 1, 1], [], []>} : vector<8x32xf32>, vector<32x8xf32>, vector<8x8xf32> -> vector<8x8xf32>
    %c1_34 = arith.constant 1 : index
    %c0_35 = arith.constant 0 : index
    %c0_36 = arith.constant 0 : index
    %47 = vector.load %arg5[%c1_34, %c0_35, %c0_36] : memref<4x1x8xf32, #tpu.memory_space<vmem>>, vector<1x1x8xf32>
    %48 = vector.shape_cast %47 : vector<1x1x8xf32> to vector<1x8xf32>
    %49 = vector.broadcast %48 : vector<1x8xf32> to vector<8x8xf32>
    %50 = arith.addf %46, %49 : vector<8x8xf32>
    %51 = vector.shape_cast %50 : vector<8x8xf32> to vector<1x8x8xf32>
    %c1_37 = arith.constant 1 : index
    %c0_38 = arith.constant 0 : index
    %c0_39 = arith.constant 0 : index
    %52 = vector.load %arg3[%c1_37, %c0_38, %c0_39] : memref<4x32x8xf32, #tpu.memory_space<vmem>>, vector<1x32x8xf32>
    %53 = vector.shape_cast %52 : vector<1x32x8xf32> to vector<32x8xf32>
    %cst_40 = arith.constant dense<0.000000e+00> : vector<8x8xf32>
    %54 = tpu.matmul %1, %53, %cst_40 {dimension_numbers = #tpu.dot_dimension_numbers<[1], [0], [0], [1], [0, 0, 1, 1], [], []>} : vector<8x32xf32>, vector<32x8xf32>, vector<8x8xf32> -> vector<8x8xf32>
    %c1_41 = arith.constant 1 : index
    %c0_42 = arith.constant 0 : index
    %c0_43 = arith.constant 0 : index
    %55 = vector.load %arg6[%c1_41, %c0_42, %c0_43] : memref<4x1x8xf32, #tpu.memory_space<vmem>>, vector<1x1x8xf32>
    %56 = vector.shape_cast %55 : vector<1x1x8xf32> to vector<1x8xf32>
    %57 = vector.broadcast %56 : vector<1x8xf32> to vector<8x8xf32>
    %58 = arith.addf %54, %57 : vector<8x8xf32>
    %59 = vector.shape_cast %58 : vector<8x8xf32> to vector<1x8x8xf32>
    %c1_44 = arith.constant 1 : index
    %c0_45 = arith.constant 0 : index
    %c0_46 = arith.constant 0 : index
    %60 = vector.load %arg4[%c1_44, %c0_45, %c0_46] : memref<4x32x8xf32, #tpu.memory_space<vmem>>, vector<1x32x8xf32>
    %61 = vector.shape_cast %60 : vector<1x32x8xf32> to vector<32x8xf32>
    %cst_47 = arith.constant dense<0.000000e+00> : vector<8x8xf32>
    %62 = tpu.matmul %1, %61, %cst_47 {dimension_numbers = #tpu.dot_dimension_numbers<[1], [0], [0], [1], [0, 0, 1, 1], [], []>} : vector<8x32xf32>, vector<32x8xf32>, vector<8x8xf32> -> vector<8x8xf32>
    %c1_48 = arith.constant 1 : index
    %c0_49 = arith.constant 0 : index
    %c0_50 = arith.constant 0 : index
    %63 = vector.load %arg7[%c1_48, %c0_49, %c0_50] : memref<4x1x8xf32, #tpu.memory_space<vmem>>, vector<1x1x8xf32>
    %64 = vector.shape_cast %63 : vector<1x1x8xf32> to vector<1x8xf32>
    %65 = vector.broadcast %64 : vector<1x8xf32> to vector<8x8xf32>
    %66 = arith.addf %62, %65 : vector<8x8xf32>
    %67 = vector.shape_cast %66 : vector<8x8xf32> to vector<1x8x8xf32>
    "tpu.trace_start"() <{level = 10 : i32, message = "bqd,bkd->bqk"}> : () -> ()
    %cst_51 = arith.constant dense<0.000000e+00> : vector<1x8x8xf32>
    %68 = tpu.matmul %51, %59, %cst_51 {dimension_numbers = #tpu.dot_dimension_numbers<[2], [2], [1], [1], [0, 0, 0, 1, 1, 1], [0], [0]>} : vector<1x8x8xf32>, vector<1x8x8xf32>, vector<1x8x8xf32> -> vector<1x8x8xf32>
    "tpu.trace_stop"() : () -> ()
    %cst_52 = arith.constant dense<0xFF800000> : vector<1x8xf32>
    %69 = vector.multi_reduction <maximumf>, %68, %cst_52 [2] : vector<1x8x8xf32> to vector<1x8xf32>
    %70 = vector.shape_cast %69 : vector<1x8xf32> to vector<1x8x1xf32>
    %71 = vector.broadcast %70 : vector<1x8x1xf32> to vector<1x8x8xf32>
    %72 = arith.subf %68, %71 : vector<1x8x8xf32>
    %73 = math.exp %72 : vector<1x8x8xf32>
    %cst_53 = arith.constant dense<0.000000e+00> : vector<1x8xf32>
    %74 = vector.multi_reduction <add>, %73, %cst_53 [2] : vector<1x8x8xf32> to vector<1x8xf32>
    %75 = vector.shape_cast %74 : vector<1x8xf32> to vector<1x8x1xf32>
    %76 = tpu.reciprocal %75 {approx = true} : vector<1x8x1xf32> -> vector<1x8x1xf32>
    %77 = vector.broadcast %76 : vector<1x8x1xf32> to vector<1x8x8xf32>
    %78 = arith.mulf %73, %77 : vector<1x8x8xf32>
    "tpu.trace_start"() <{level = 10 : i32, message = "bqk,bkd->bqd"}> : () -> ()
    %cst_54 = arith.constant dense<0.000000e+00> : vector<1x8x8xf32>
    %79 = tpu.matmul %78, %67, %cst_54 {dimension_numbers = #tpu.dot_dimension_numbers<[2], [1], [1], [2], [0, 0, 0, 1, 1, 2], [0], [0]>} : vector<1x8x8xf32>, vector<1x8x8xf32>, vector<1x8x8xf32> -> vector<1x8x8xf32>
    "tpu.trace_stop"() : () -> ()
    %80 = vector.shape_cast %79 : vector<1x8x8xf32> to vector<8x8xf32>
    %c1_55 = arith.constant 1 : index
    %c0_56 = arith.constant 0 : index
    %c0_57 = arith.constant 0 : index
    %81 = vector.load %arg8[%c1_55, %c0_56, %c0_57] : memref<4x8x32xf32, #tpu.memory_space<vmem>>, vector<1x8x32xf32>
    %82 = vector.shape_cast %81 : vector<1x8x32xf32> to vector<8x32xf32>
    %cst_58 = arith.constant dense<0.000000e+00> : vector<8x32xf32>
    %83 = tpu.matmul %80, %82, %cst_58 {dimension_numbers = #tpu.dot_dimension_numbers<[1], [0], [0], [1], [0, 0, 1, 1], [], []>} : vector<8x8xf32>, vector<8x32xf32>, vector<8x32xf32> -> vector<8x32xf32>
    %84 = arith.addf %43, %83 : vector<8x32xf32>
    %c2 = arith.constant 2 : index
    %c0_59 = arith.constant 0 : index
    %c0_60 = arith.constant 0 : index
    %85 = vector.load %arg2[%c2, %c0_59, %c0_60] : memref<4x32x8xf32, #tpu.memory_space<vmem>>, vector<1x32x8xf32>
    %86 = vector.shape_cast %85 : vector<1x32x8xf32> to vector<32x8xf32>
    %cst_61 = arith.constant dense<0.000000e+00> : vector<8x8xf32>
    %87 = tpu.matmul %1, %86, %cst_61 {dimension_numbers = #tpu.dot_dimension_numbers<[1], [0], [0], [1], [0, 0, 1, 1], [], []>} : vector<8x32xf32>, vector<32x8xf32>, vector<8x8xf32> -> vector<8x8xf32>
    %c2_62 = arith.constant 2 : index
    %c0_63 = arith.constant 0 : index
    %c0_64 = arith.constant 0 : index
    %88 = vector.load %arg5[%c2_62, %c0_63, %c0_64] : memref<4x1x8xf32, #tpu.memory_space<vmem>>, vector<1x1x8xf32>
    %89 = vector.shape_cast %88 : vector<1x1x8xf32> to vector<1x8xf32>
    %90 = vector.broadcast %89 : vector<1x8xf32> to vector<8x8xf32>
    %91 = arith.addf %87, %90 : vector<8x8xf32>
    %92 = vector.shape_cast %91 : vector<8x8xf32> to vector<1x8x8xf32>
    %c2_65 = arith.constant 2 : index
    %c0_66 = arith.constant 0 : index
    %c0_67 = arith.constant 0 : index
    %93 = vector.load %arg3[%c2_65, %c0_66, %c0_67] : memref<4x32x8xf32, #tpu.memory_space<vmem>>, vector<1x32x8xf32>
    %94 = vector.shape_cast %93 : vector<1x32x8xf32> to vector<32x8xf32>
    %cst_68 = arith.constant dense<0.000000e+00> : vector<8x8xf32>
    %95 = tpu.matmul %1, %94, %cst_68 {dimension_numbers = #tpu.dot_dimension_numbers<[1], [0], [0], [1], [0, 0, 1, 1], [], []>} : vector<8x32xf32>, vector<32x8xf32>, vector<8x8xf32> -> vector<8x8xf32>
    %c2_69 = arith.constant 2 : index
    %c0_70 = arith.constant 0 : index
    %c0_71 = arith.constant 0 : index
    %96 = vector.load %arg6[%c2_69, %c0_70, %c0_71] : memref<4x1x8xf32, #tpu.memory_space<vmem>>, vector<1x1x8xf32>
    %97 = vector.shape_cast %96 : vector<1x1x8xf32> to vector<1x8xf32>
    %98 = vector.broadcast %97 : vector<1x8xf32> to vector<8x8xf32>
    %99 = arith.addf %95, %98 : vector<8x8xf32>
    %100 = vector.shape_cast %99 : vector<8x8xf32> to vector<1x8x8xf32>
    %c2_72 = arith.constant 2 : index
    %c0_73 = arith.constant 0 : index
    %c0_74 = arith.constant 0 : index
    %101 = vector.load %arg4[%c2_72, %c0_73, %c0_74] : memref<4x32x8xf32, #tpu.memory_space<vmem>>, vector<1x32x8xf32>
    %102 = vector.shape_cast %101 : vector<1x32x8xf32> to vector<32x8xf32>
    %cst_75 = arith.constant dense<0.000000e+00> : vector<8x8xf32>
    %103 = tpu.matmul %1, %102, %cst_75 {dimension_numbers = #tpu.dot_dimension_numbers<[1], [0], [0], [1], [0, 0, 1, 1], [], []>} : vector<8x32xf32>, vector<32x8xf32>, vector<8x8xf32> -> vector<8x8xf32>
    %c2_76 = arith.constant 2 : index
    %c0_77 = arith.constant 0 : index
    %c0_78 = arith.constant 0 : index
    %104 = vector.load %arg7[%c2_76, %c0_77, %c0_78] : memref<4x1x8xf32, #tpu.memory_space<vmem>>, vector<1x1x8xf32>
    %105 = vector.shape_cast %104 : vector<1x1x8xf32> to vector<1x8xf32>
    %106 = vector.broadcast %105 : vector<1x8xf32> to vector<8x8xf32>
    %107 = arith.addf %103, %106 : vector<8x8xf32>
    %108 = vector.shape_cast %107 : vector<8x8xf32> to vector<1x8x8xf32>
    "tpu.trace_start"() <{level = 10 : i32, message = "bqd,bkd->bqk"}> : () -> ()
    %cst_79 = arith.constant dense<0.000000e+00> : vector<1x8x8xf32>
    %109 = tpu.matmul %92, %100, %cst_79 {dimension_numbers = #tpu.dot_dimension_numbers<[2], [2], [1], [1], [0, 0, 0, 1, 1, 1], [0], [0]>} : vector<1x8x8xf32>, vector<1x8x8xf32>, vector<1x8x8xf32> -> vector<1x8x8xf32>
    "tpu.trace_stop"() : () -> ()
    %cst_80 = arith.constant dense<0xFF800000> : vector<1x8xf32>
    %110 = vector.multi_reduction <maximumf>, %109, %cst_80 [2] : vector<1x8x8xf32> to vector<1x8xf32>
    %111 = vector.shape_cast %110 : vector<1x8xf32> to vector<1x8x1xf32>
    %112 = vector.broadcast %111 : vector<1x8x1xf32> to vector<1x8x8xf32>
    %113 = arith.subf %109, %112 : vector<1x8x8xf32>
    %114 = math.exp %113 : vector<1x8x8xf32>
    %cst_81 = arith.constant dense<0.000000e+00> : vector<1x8xf32>
    %115 = vector.multi_reduction <add>, %114, %cst_81 [2] : vector<1x8x8xf32> to vector<1x8xf32>
    %116 = vector.shape_cast %115 : vector<1x8xf32> to vector<1x8x1xf32>
    %117 = tpu.reciprocal %116 {approx = true} : vector<1x8x1xf32> -> vector<1x8x1xf32>
    %118 = vector.broadcast %117 : vector<1x8x1xf32> to vector<1x8x8xf32>
    %119 = arith.mulf %114, %118 : vector<1x8x8xf32>
    "tpu.trace_start"() <{level = 10 : i32, message = "bqk,bkd->bqd"}> : () -> ()
    %cst_82 = arith.constant dense<0.000000e+00> : vector<1x8x8xf32>
    %120 = tpu.matmul %119, %108, %cst_82 {dimension_numbers = #tpu.dot_dimension_numbers<[2], [1], [1], [2], [0, 0, 0, 1, 1, 2], [0], [0]>} : vector<1x8x8xf32>, vector<1x8x8xf32>, vector<1x8x8xf32> -> vector<1x8x8xf32>
    "tpu.trace_stop"() : () -> ()
    %121 = vector.shape_cast %120 : vector<1x8x8xf32> to vector<8x8xf32>
    %c2_83 = arith.constant 2 : index
    %c0_84 = arith.constant 0 : index
    %c0_85 = arith.constant 0 : index
    %122 = vector.load %arg8[%c2_83, %c0_84, %c0_85] : memref<4x8x32xf32, #tpu.memory_space<vmem>>, vector<1x8x32xf32>
    %123 = vector.shape_cast %122 : vector<1x8x32xf32> to vector<8x32xf32>
    %cst_86 = arith.constant dense<0.000000e+00> : vector<8x32xf32>
    %124 = tpu.matmul %121, %123, %cst_86 {dimension_numbers = #tpu.dot_dimension_numbers<[1], [0], [0], [1], [0, 0, 1, 1], [], []>} : vector<8x8xf32>, vector<8x32xf32>, vector<8x32xf32> -> vector<8x32xf32>
    %125 = arith.addf %84, %124 : vector<8x32xf32>
    %c3 = arith.constant 3 : index
    %c0_87 = arith.constant 0 : index
    %c0_88 = arith.constant 0 : index
    %126 = vector.load %arg2[%c3, %c0_87, %c0_88] : memref<4x32x8xf32, #tpu.memory_space<vmem>>, vector<1x32x8xf32>
    %127 = vector.shape_cast %126 : vector<1x32x8xf32> to vector<32x8xf32>
    %cst_89 = arith.constant dense<0.000000e+00> : vector<8x8xf32>
    %128 = tpu.matmul %1, %127, %cst_89 {dimension_numbers = #tpu.dot_dimension_numbers<[1], [0], [0], [1], [0, 0, 1, 1], [], []>} : vector<8x32xf32>, vector<32x8xf32>, vector<8x8xf32> -> vector<8x8xf32>
    %c3_90 = arith.constant 3 : index
    %c0_91 = arith.constant 0 : index
    %c0_92 = arith.constant 0 : index
    %129 = vector.load %arg5[%c3_90, %c0_91, %c0_92] : memref<4x1x8xf32, #tpu.memory_space<vmem>>, vector<1x1x8xf32>
    %130 = vector.shape_cast %129 : vector<1x1x8xf32> to vector<1x8xf32>
    %131 = vector.broadcast %130 : vector<1x8xf32> to vector<8x8xf32>
    %132 = arith.addf %128, %131 : vector<8x8xf32>
    %133 = vector.shape_cast %132 : vector<8x8xf32> to vector<1x8x8xf32>
    %c3_93 = arith.constant 3 : index
    %c0_94 = arith.constant 0 : index
    %c0_95 = arith.constant 0 : index
    %134 = vector.load %arg3[%c3_93, %c0_94, %c0_95] : memref<4x32x8xf32, #tpu.memory_space<vmem>>, vector<1x32x8xf32>
    %135 = vector.shape_cast %134 : vector<1x32x8xf32> to vector<32x8xf32>
    %cst_96 = arith.constant dense<0.000000e+00> : vector<8x8xf32>
    %136 = tpu.matmul %1, %135, %cst_96 {dimension_numbers = #tpu.dot_dimension_numbers<[1], [0], [0], [1], [0, 0, 1, 1], [], []>} : vector<8x32xf32>, vector<32x8xf32>, vector<8x8xf32> -> vector<8x8xf32>
    %c3_97 = arith.constant 3 : index
    %c0_98 = arith.constant 0 : index
    %c0_99 = arith.constant 0 : index
    %137 = vector.load %arg6[%c3_97, %c0_98, %c0_99] : memref<4x1x8xf32, #tpu.memory_space<vmem>>, vector<1x1x8xf32>
    %138 = vector.shape_cast %137 : vector<1x1x8xf32> to vector<1x8xf32>
    %139 = vector.broadcast %138 : vector<1x8xf32> to vector<8x8xf32>
    %140 = arith.addf %136, %139 : vector<8x8xf32>
    %141 = vector.shape_cast %140 : vector<8x8xf32> to vector<1x8x8xf32>
    %c3_100 = arith.constant 3 : index
    %c0_101 = arith.constant 0 : index
    %c0_102 = arith.constant 0 : index
    %142 = vector.load %arg4[%c3_100, %c0_101, %c0_102] : memref<4x32x8xf32, #tpu.memory_space<vmem>>, vector<1x32x8xf32>
    %143 = vector.shape_cast %142 : vector<1x32x8xf32> to vector<32x8xf32>
    %cst_103 = arith.constant dense<0.000000e+00> : vector<8x8xf32>
    %144 = tpu.matmul %1, %143, %cst_103 {dimension_numbers = #tpu.dot_dimension_numbers<[1], [0], [0], [1], [0, 0, 1, 1], [], []>} : vector<8x32xf32>, vector<32x8xf32>, vector<8x8xf32> -> vector<8x8xf32>
    %c3_104 = arith.constant 3 : index
    %c0_105 = arith.constant 0 : index
    %c0_106 = arith.constant 0 : index
    %145 = vector.load %arg7[%c3_104, %c0_105, %c0_106] : memref<4x1x8xf32, #tpu.memory_space<vmem>>, vector<1x1x8xf32>
    %146 = vector.shape_cast %145 : vector<1x1x8xf32> to vector<1x8xf32>
    %147 = vector.broadcast %146 : vector<1x8xf32> to vector<8x8xf32>
    %148 = arith.addf %144, %147 : vector<8x8xf32>
    %149 = vector.shape_cast %148 : vector<8x8xf32> to vector<1x8x8xf32>
    "tpu.trace_start"() <{level = 10 : i32, message = "bqd,bkd->bqk"}> : () -> ()
    %cst_107 = arith.constant dense<0.000000e+00> : vector<1x8x8xf32>
    %150 = tpu.matmul %133, %141, %cst_107 {dimension_numbers = #tpu.dot_dimension_numbers<[2], [2], [1], [1], [0, 0, 0, 1, 1, 1], [0], [0]>} : vector<1x8x8xf32>, vector<1x8x8xf32>, vector<1x8x8xf32> -> vector<1x8x8xf32>
    "tpu.trace_stop"() : () -> ()
    %cst_108 = arith.constant dense<0xFF800000> : vector<1x8xf32>
    %151 = vector.multi_reduction <maximumf>, %150, %cst_108 [2] : vector<1x8x8xf32> to vector<1x8xf32>
    %152 = vector.shape_cast %151 : vector<1x8xf32> to vector<1x8x1xf32>
    %153 = vector.broadcast %152 : vector<1x8x1xf32> to vector<1x8x8xf32>
    %154 = arith.subf %150, %153 : vector<1x8x8xf32>
    %155 = math.exp %154 : vector<1x8x8xf32>
    %cst_109 = arith.constant dense<0.000000e+00> : vector<1x8xf32>
    %156 = vector.multi_reduction <add>, %155, %cst_109 [2] : vector<1x8x8xf32> to vector<1x8xf32>
    %157 = vector.shape_cast %156 : vector<1x8xf32> to vector<1x8x1xf32>
    %158 = tpu.reciprocal %157 {approx = true} : vector<1x8x1xf32> -> vector<1x8x1xf32>
    %159 = vector.broadcast %158 : vector<1x8x1xf32> to vector<1x8x8xf32>
    %160 = arith.mulf %155, %159 : vector<1x8x8xf32>
    "tpu.trace_start"() <{level = 10 : i32, message = "bqk,bkd->bqd"}> : () -> ()
    %cst_110 = arith.constant dense<0.000000e+00> : vector<1x8x8xf32>
    %161 = tpu.matmul %160, %149, %cst_110 {dimension_numbers = #tpu.dot_dimension_numbers<[2], [1], [1], [2], [0, 0, 0, 1, 1, 2], [0], [0]>} : vector<1x8x8xf32>, vector<1x8x8xf32>, vector<1x8x8xf32> -> vector<1x8x8xf32>
    "tpu.trace_stop"() : () -> ()
    %162 = vector.shape_cast %161 : vector<1x8x8xf32> to vector<8x8xf32>
    %c3_111 = arith.constant 3 : index
    %c0_112 = arith.constant 0 : index
    %c0_113 = arith.constant 0 : index
    %163 = vector.load %arg8[%c3_111, %c0_112, %c0_113] : memref<4x8x32xf32, #tpu.memory_space<vmem>>, vector<1x8x32xf32>
    %164 = vector.shape_cast %163 : vector<1x8x32xf32> to vector<8x32xf32>
    %cst_114 = arith.constant dense<0.000000e+00> : vector<8x32xf32>
    %165 = tpu.matmul %162, %164, %cst_114 {dimension_numbers = #tpu.dot_dimension_numbers<[1], [0], [0], [1], [0, 0, 1, 1], [], []>} : vector<8x8xf32>, vector<8x32xf32>, vector<8x32xf32> -> vector<8x32xf32>
    %166 = arith.addf %125, %165 : vector<8x32xf32>
    %c0_115 = arith.constant 0 : index
    %c0_116 = arith.constant 0 : index
    %167 = vector.load %arg9[%c0_115, %c0_116] : memref<1x32xf32, #tpu.memory_space<vmem>>, vector<1x32xf32>
    %168 = vector.broadcast %167 : vector<1x32xf32> to vector<8x32xf32>
    %169 = arith.addf %166, %168 : vector<8x32xf32>
    %170 = arith.addf %1, %169 : vector<8x32xf32>
    %c0_117 = arith.constant 0 : index
    %c0_118 = arith.constant 0 : index
    %171 = vector.load %arg14[%c0_117, %c0_118] : memref<1x32xf32, #tpu.memory_space<vmem>>, vector<1x32xf32>
    %c0_119 = arith.constant 0 : index
    %c0_120 = arith.constant 0 : index
    %172 = vector.load %arg15[%c0_119, %c0_120] : memref<1x32xf32, #tpu.memory_space<vmem>>, vector<1x32xf32>
    %cst_121 = arith.constant dense<0.000000e+00> : vector<8xf32>
    %173 = vector.multi_reduction <add>, %170, %cst_121 [1] : vector<8x32xf32> to vector<8xf32>
    %174 = vector.shape_cast %173 : vector<8xf32> to vector<8x1xf32>
    %cst_122 = arith.constant 3.200000e+01 : f32
    %175 = vector.broadcast %cst_122 : f32 to vector<8x1xf32>
    %176 = arith.divf %174, %175 : vector<8x1xf32>
    %177 = vector.broadcast %176 : vector<8x1xf32> to vector<8x32xf32>
    %178 = arith.subf %170, %177 : vector<8x32xf32>
    %179 = arith.mulf %178, %178 : vector<8x32xf32>
    %cst_123 = arith.constant dense<0.000000e+00> : vector<8xf32>
    %180 = vector.multi_reduction <add>, %179, %cst_123 [1] : vector<8x32xf32> to vector<8xf32>
    %181 = vector.shape_cast %180 : vector<8xf32> to vector<8x1xf32>
    %cst_124 = arith.constant 3.200000e+01 : f32
    %182 = vector.broadcast %cst_124 : f32 to vector<8x1xf32>
    %183 = arith.divf %181, %182 : vector<8x1xf32>
    %184 = vector.broadcast %176 : vector<8x1xf32> to vector<8x32xf32>
    %185 = arith.subf %170, %184 : vector<8x32xf32>
    %cst_125 = arith.constant 9.99999974E-6 : f32
    %186 = vector.broadcast %cst_125 : f32 to vector<8x1xf32>
    %187 = arith.addf %183, %186 : vector<8x1xf32>
    %188 = math.rsqrt %187 : vector<8x1xf32>
    %189 = vector.broadcast %188 : vector<8x1xf32> to vector<8x32xf32>
    %190 = arith.mulf %185, %189 : vector<8x32xf32>
    %191 = vector.broadcast %171 : vector<1x32xf32> to vector<8x32xf32>
    %192 = arith.mulf %190, %191 : vector<8x32xf32>
    %193 = vector.broadcast %172 : vector<1x32xf32> to vector<8x32xf32>
    %194 = arith.addf %192, %193 : vector<8x32xf32>
    %cst_126 = arith.constant 0.000000e+00 : f32
    %195 = vector.broadcast %cst_126 : f32 to vector<8x32xf32>
    %c0_127 = arith.constant 0 : index
    %c0_128 = arith.constant 0 : index
    %196 = vector.load %arg10[%c0_127, %c0_128] : memref<32x64xf32, #tpu.memory_space<vmem>>, vector<32x64xf32>
    %cst_129 = arith.constant dense<0.000000e+00> : vector<8x64xf32>
    %197 = tpu.matmul %194, %196, %cst_129 {dimension_numbers = #tpu.dot_dimension_numbers<[1], [0], [0], [1], [0, 0, 1, 1], [], []>} : vector<8x32xf32>, vector<32x64xf32>, vector<8x64xf32> -> vector<8x64xf32>
    %c0_130 = arith.constant 0 : index
    %c0_131 = arith.constant 0 : index
    %198 = vector.load %arg11[%c0_130, %c0_131] : memref<1x64xf32, #tpu.memory_space<vmem>>, vector<1x64xf32>
    %199 = vector.broadcast %198 : vector<1x64xf32> to vector<8x64xf32>
    %200 = arith.addf %197, %199 : vector<8x64xf32>
    %cst_132 = arith.constant 0.000000e+00 : f32
    %201 = vector.broadcast %cst_132 : f32 to vector<8x64xf32>
    %202 = arith.maximumf %200, %201 : vector<8x64xf32>
    %c0_133 = arith.constant 0 : index
    %c0_134 = arith.constant 0 : index
    %203 = vector.load %arg12[%c0_133, %c0_134] : memref<64x32xf32, #tpu.memory_space<vmem>>, vector<64x32xf32>
    %cst_135 = arith.constant dense<0.000000e+00> : vector<8x32xf32>
    %204 = tpu.matmul %202, %203, %cst_135 {dimension_numbers = #tpu.dot_dimension_numbers<[1], [0], [0], [1], [0, 0, 1, 1], [], []>} : vector<8x64xf32>, vector<64x32xf32>, vector<8x32xf32> -> vector<8x32xf32>
    %205 = arith.addf %195, %204 : vector<8x32xf32>
    %c0_136 = arith.constant 0 : index
    %c0_137 = arith.constant 0 : index
    %206 = vector.load %arg13[%c0_136, %c0_137] : memref<1x32xf32, #tpu.memory_space<vmem>>, vector<1x32xf32>
    %207 = vector.broadcast %206 : vector<1x32xf32> to vector<8x32xf32>
    %208 = arith.addf %205, %207 : vector<8x32xf32>
    %209 = arith.addf %194, %208 : vector<8x32xf32>
    %c0_138 = arith.constant 0 : index
    %c0_139 = arith.constant 0 : index
    %210 = vector.load %arg16[%c0_138, %c0_139] : memref<1x32xf32, #tpu.memory_space<vmem>>, vector<1x32xf32>
    %c0_140 = arith.constant 0 : index
    %c0_141 = arith.constant 0 : index
    %211 = vector.load %arg17[%c0_140, %c0_141] : memref<1x32xf32, #tpu.memory_space<vmem>>, vector<1x32xf32>
    %cst_142 = arith.constant dense<0.000000e+00> : vector<8xf32>
    %212 = vector.multi_reduction <add>, %209, %cst_142 [1] : vector<8x32xf32> to vector<8xf32>
    %213 = vector.shape_cast %212 : vector<8xf32> to vector<8x1xf32>
    %cst_143 = arith.constant 3.200000e+01 : f32
    %214 = vector.broadcast %cst_143 : f32 to vector<8x1xf32>
    %215 = arith.divf %213, %214 : vector<8x1xf32>
    %216 = vector.broadcast %215 : vector<8x1xf32> to vector<8x32xf32>
    %217 = arith.subf %209, %216 : vector<8x32xf32>
    %218 = arith.mulf %217, %217 : vector<8x32xf32>
    %cst_144 = arith.constant dense<0.000000e+00> : vector<8xf32>
    %219 = vector.multi_reduction <add>, %218, %cst_144 [1] : vector<8x32xf32> to vector<8xf32>
    %220 = vector.shape_cast %219 : vector<8xf32> to vector<8x1xf32>
    %cst_145 = arith.constant 3.200000e+01 : f32
    %221 = vector.broadcast %cst_145 : f32 to vector<8x1xf32>
    %222 = arith.divf %220, %221 : vector<8x1xf32>
    %223 = vector.broadcast %215 : vector<8x1xf32> to vector<8x32xf32>
    %224 = arith.subf %209, %223 : vector<8x32xf32>
    %cst_146 = arith.constant 9.99999974E-6 : f32
    %225 = vector.broadcast %cst_146 : f32 to vector<8x1xf32>
    %226 = arith.addf %222, %225 : vector<8x1xf32>
    %227 = math.rsqrt %226 : vector<8x1xf32>
    %228 = vector.broadcast %227 : vector<8x1xf32> to vector<8x32xf32>
    %229 = arith.mulf %224, %228 : vector<8x32xf32>
    %230 = vector.broadcast %210 : vector<1x32xf32> to vector<8x32xf32>
    %231 = arith.mulf %229, %230 : vector<8x32xf32>
    %232 = vector.broadcast %211 : vector<1x32xf32> to vector<8x32xf32>
    %233 = arith.addf %231, %232 : vector<8x32xf32>
    %234 = vector.shape_cast %233 : vector<8x32xf32> to vector<1x8x32xf32>
    %c0_147 = arith.constant 0 : index
    %c0_148 = arith.constant 0 : index
    %c0_149 = arith.constant 0 : index
    %235 = vector.load %arg18[%c0_147, %c0_148, %c0_149] : memref<1x8x32xf32, #tpu.memory_space<vmem>>, vector<1x8x32xf32>
    tpu.vector_store %arg18[%c0_147, %c0_148, %c0_149], %234 {strides = array<i32>} : memref<1x8x32xf32, #tpu.memory_space<vmem>>, vector<1x8x32xf32>,
    return
  }
  func.func @transform_0(%arg0: i32) -> (i32, i32, i32) {
    %c0_i32 = arith.constant 0 : i32
    %c0_i32_0 = arith.constant 0 : i32
    %c0_i32_1 = arith.constant 0 : i32
    return %arg0, %c0_i32, %c0_i32_0 : i32, i32, i32
  }
  func.func @transform_1(%arg0: i32) -> (i32, i32, i32) {
    %c0_i32 = arith.constant 0 : i32
    %c0_i32_0 = arith.constant 0 : i32
    %c0_i32_1 = arith.constant 0 : i32
    %c0_i32_2 = arith.constant 0 : i32
    return %c0_i32, %c0_i32_0, %c0_i32_1 : i32, i32, i32
  }
  func.func @transform_2(%arg0: i32) -> (i32, i32, i32) {
    %c0_i32 = arith.constant 0 : i32
    %c0_i32_0 = arith.constant 0 : i32
    %c0_i32_1 = arith.constant 0 : i32
    %c0_i32_2 = arith.constant 0 : i32
    return %c0_i32, %c0_i32_0, %c0_i32_1 : i32, i32, i32
  }
  func.func @transform_3(%arg0: i32) -> (i32, i32, i32) {
    %c0_i32 = arith.constant 0 : i32
    %c0_i32_0 = arith.constant 0 : i32
    %c0_i32_1 = arith.constant 0 : i32
    %c0_i32_2 = arith.constant 0 : i32
    return %c0_i32, %c0_i32_0, %c0_i32_1 : i32, i32, i32
  }
  func.func @transform_4(%arg0: i32) -> (i32, i32, i32) {
    %c0_i32 = arith.constant 0 : i32
    %c0_i32_0 = arith.constant 0 : i32
    %c0_i32_1 = arith.constant 0 : i32
    %c0_i32_2 = arith.constant 0 : i32
    return %c0_i32, %c0_i32_0, %c0_i32_1 : i32, i32, i32
  }
  func.func @transform_5(%arg0: i32) -> (i32, i32, i32) {
    %c0_i32 = arith.constant 0 : i32
    %c0_i32_0 = arith.constant 0 : i32
    %c0_i32_1 = arith.constant 0 : i32
    %c0_i32_2 = arith.constant 0 : i32
    return %c0_i32, %c0_i32_0, %c0_i32_1 : i32, i32, i32
  }
  func.func @transform_6(%arg0: i32) -> (i32, i32, i32) {
    %c0_i32 = arith.constant 0 : i32
    %c0_i32_0 = arith.constant 0 : i32
    %c0_i32_1 = arith.constant 0 : i32
    %c0_i32_2 = arith.constant 0 : i32
    return %c0_i32, %c0_i32_0, %c0_i32_1 : i32, i32, i32
  }
  func.func @transform_7(%arg0: i32) -> (i32, i32, i32) {
    %c0_i32 = arith.constant 0 : i32
    %c0_i32_0 = arith.constant 0 : i32
    %c0_i32_1 = arith.constant 0 : i32
    %c0_i32_2 = arith.constant 0 : i32
    return %c0_i32, %c0_i32_0, %c0_i32_1 : i32, i32, i32
  }
  func.func @transform_8(%arg0: i32) -> (i32, i32) {
    %c0_i32 = arith.constant 0 : i32
    %c0_i32_0 = arith.constant 0 : i32
    %c0_i32_1 = arith.constant 0 : i32
    return %c0_i32, %c0_i32_0 : i32, i32
  }
  func.func @transform_9(%arg0: i32) -> (i32, i32) {
    %c0_i32 = arith.constant 0 : i32
    %c0_i32_0 = arith.constant 0 : i32
    %c0_i32_1 = arith.constant 0 : i32
    return %c0_i32, %c0_i32_0 : i32, i32
  }
  func.func @transform_10(%arg0: i32) -> (i32, i32) {
    %c0_i32 = arith.constant 0 : i32
    %c0_i32_0 = arith.constant 0 : i32
    %c0_i32_1 = arith.constant 0 : i32
    return %c0_i32, %c0_i32_0 : i32, i32
  }
  func.func @transform_11(%arg0: i32) -> (i32, i32) {
    %c0_i32 = arith.constant 0 : i32
    %c0_i32_0 = arith.constant 0 : i32
    %c0_i32_1 = arith.constant 0 : i32
    return %c0_i32, %c0_i32_0 : i32, i32
  }
  func.func @transform_12(%arg0: i32) -> (i32, i32) {
    %c0_i32 = arith.constant 0 : i32
    %c0_i32_0 = arith.constant 0 : i32
    %c0_i32_1 = arith.constant 0 : i32
    return %c0_i32, %c0_i32_0 : i32, i32
  }
  func.func @transform_13(%arg0: i32) -> (i32, i32) {
    %c0_i32 = arith.constant 0 : i32
    %c0_i32_0 = arith.constant 0 : i32
    %c0_i32_1 = arith.constant 0 : i32
    return %c0_i32, %c0_i32_0 : i32, i32
  }
  func.func @transform_14(%arg0: i32) -> (i32, i32) {
    %c0_i32 = arith.constant 0 : i32
    %c0_i32_0 = arith.constant 0 : i32
    %c0_i32_1 = arith.constant 0 : i32
    return %c0_i32, %c0_i32_0 : i32, i32
  }
  func.func @transform_15(%arg0: i32) -> (i32, i32) {
    %c0_i32 = arith.constant 0 : i32
    %c0_i32_0 = arith.constant 0 : i32
    %c0_i32_1 = arith.constant 0 : i32
    return %c0_i32, %c0_i32_0 : i32, i32
  }
  func.func @transform_16(%arg0: i32) -> (i32, i32) {
    %c0_i32 = arith.constant 0 : i32
    %c0_i32_0 = arith.constant 0 : i32
    %c0_i32_1 = arith.constant 0 : i32
    return %c0_i32, %c0_i32_0 : i32, i32
  }
  func.func @transform_17(%arg0: i32) -> (i32, i32, i32) {
    %c0_i32 = arith.constant 0 : i32
    %c0_i32_0 = arith.constant 0 : i32
    %c0_i32_1 = arith.constant 0 : i32
    return %arg0, %c0_i32, %c0_i32_0 : i32, i32, i32
  }
}

module attributes {stable_mosaic.version = 11 : i64} {
  func.func @encoder_layer_kernel(%arg0: i32, %arg1: memref<1x8x32xf32, #tpu.memory_space<vmem>>, %arg2: memref<4x32x8xf32, #tpu.memory_space<vmem>>, %arg3: memref<4x32x8xf32, #tpu.memory_space<vmem>>, %arg4: memref<4x32x8xf32, #tpu.memory_space<vmem>>, %arg5: memref<4x1x8xf32, #tpu.memory_space<vmem>>, %arg6: memref<4x1x8xf32, #tpu.memory_space<vmem>>, %arg7: memref<4x1x8xf32, #tpu.memory_space<vmem>>, %arg8: memref<4x8x32xf32, #tpu.memory_space<vmem>>, %arg9: memref<1x32xf32, #tpu.memory_space<vmem>>, %arg10: memref<32x64xf32, #tpu.memory_space<vmem>>, %arg11: memref<1x64xf32, #tpu.memory_space<vmem>>, %arg12: memref<64x32xf32, #tpu.memory_space<vmem>>, %arg13: memref<1x32xf32, #tpu.memory_space<vmem>>, %arg14: memref<1x32xf32, #tpu.memory_space<vmem>>, %arg15: memref<1x32xf32, #tpu.memory_space<vmem>>, %arg16: memref<1x32xf32, #tpu.memory_space<vmem>>, %arg17: memref<1x32xf32, #tpu.memory_space<vmem>>, %arg18: memref<1x8x32xf32, #tpu.memory_space<vmem>>) attributes {dimension_semantics = [#tpu.dimension_semantics<parallel>], iteration_bounds = array<i64: 2>, scalar_prefetch = 0 : i64, scratch_operands = 0 : i64, tpu.core_type = #tpu.core_type<tc>, window_params = [{transform_indices = @transform_0, window_bounds = array<i64: 1, 8, 32>}, {pipeline_mode = #tpu.pipeline_mode<synchronous>, transform_indices = @transform_1, window_bounds = array<i64: 4, 32, 8>}, {pipeline_mode = #tpu.pipeline_mode<synchronous>, transform_indices = @transform_2, window_bounds = array<i64: 4, 32, 8>}, {pipeline_mode = #tpu.pipeline_mode<synchronous>, transform_indices = @transform_3, window_bounds = array<i64: 4, 32, 8>}, {pipeline_mode = #tpu.pipeline_mode<synchronous>, transform_indices = @transform_4, window_bounds = array<i64: 4, 1, 8>}, {pipeline_mode = #tpu.pipeline_mode<synchronous>, transform_indices = @transform_5, window_bounds = array<i64: 4, 1, 8>}, {pipeline_mode = #tpu.pipeline_mode<synchronous>, transform_indices = @transform_6, window_bounds = array<i64: 4, 1, 8>}, {pipeline_mode = #tpu.pipeline_mode<synchronous>, transform_indices = @transform_7, window_bounds = array<i64: 4, 8, 32>}, {pipeline_mode = #tpu.pipeline_mode<synchronous>, transform_indices = @transform_8, window_bounds = array<i64: 1, 32>}, {pipeline_mode = #tpu.pipeline_mode<synchronous>, transform_indices = @transform_9, window_bounds = array<i64: 32, 64>}, {pipeline_mode = #tpu.pipeline_mode<synchronous>, transform_indices = @transform_10, window_bounds = array<i64: 1, 64>}, {pipeline_mode = #tpu.pipeline_mode<synchronous>, transform_indices = @transform_11, window_bounds = array<i64: 64, 32>}, {pipeline_mode = #tpu.pipeline_mode<synchronous>, transform_indices = @transform_12, window_bounds = array<i64: 1, 32>}, {pipeline_mode = #tpu.pipeline_mode<synchronous>, transform_indices = @transform_13, window_bounds = array<i64: 1, 32>}, {pipeline_mode = #tpu.pipeline_mode<synchronous>, transform_indices = @transform_14, window_bounds = array<i64: 1, 32>}, {pipeline_mode = #tpu.pipeline_mode<synchronous>, transform_indices = @transform_15, window_bounds = array<i64: 1, 32>}, {pipeline_mode = #tpu.pipeline_mode<synchronous>, transform_indices = @transform_16, window_bounds = array<i64: 1, 32>}, {transform_indices = @transform_17, window_bounds = array<i64: 1, 8, 32>}]} {
    %c0 = arith.constant 0 : index
    %c0_0 = arith.constant 0 : index
    %c0_1 = arith.constant 0 : index
    %0 = vector.load %arg1[%c0, %c0_0, %c0_1] : memref<1x8x32xf32, #tpu.memory_space<vmem>>, vector<1x8x32xf32>
    %1 = vector.shape_cast %0 : vector<1x8x32xf32> to vector<8x32xf32>
    %cst = arith.constant 0.000000e+00 : f32
    %2 = vector.broadcast %cst : f32 to vector<8x32xf32>
    %c0_2 = arith.constant 0 : index
    %c0_3 = arith.constant 0 : index
    %c0_4 = arith.constant 0 : index
    %3 = vector.load %arg2[%c0_2, %c0_3, %c0_4] : memref<4x32x8xf32, #tpu.memory_space<vmem>>, vector<1x32x8xf32>
    %4 = vector.shape_cast %3 : vector<1x32x8xf32> to vector<32x8xf32>
    %cst_5 = arith.constant dense<0.000000e+00> : vector<8x8xf32>
    %5 = tpu.matmul %1, %4, %cst_5 {dimension_numbers = #tpu.dot_dimension_numbers<[1], [0], [0], [1], [0, 0, 1, 1], [], []>} : vector<8x32xf32>, vector<32x8xf32>, vector<8x8xf32> -> vector<8x8xf32>
    %c0_6 = arith.constant 0 : index
    %c0_7 = arith.constant 0 : index
    %c0_8 = arith.constant 0 : index
    %6 = vector.load %arg5[%c0_6, %c0_7, %c0_8] : memref<4x1x8xf32, #tpu.memory_space<vmem>>, vector<1x1x8xf32>
    %7 = vector.shape_cast %6 : vector<1x1x8xf32> to vector<1x8xf32>
    %8 = vector.broadcast %7 : vector<1x8xf32> to vector<8x8xf32>
    %9 = arith.addf %5, %8 : vector<8x8xf32>
    %10 = vector.shape_cast %9 : vector<8x8xf32> to vector<1x8x8xf32>
    %c0_9 = arith.constant 0 : index
    %c0_10 = arith.constant 0 : index
    %c0_11 = arith.constant 0 : index
    %11 = vector.load %arg3[%c0_9, %c0_10, %c0_11] : memref<4x32x8xf32, #tpu.memory_space<vmem>>, vector<1x32x8xf32>
    %12 = vector.shape_cast %11 : vector<1x32x8xf32> to vector<32x8xf32>
    %cst_12 = arith.constant dense<0.000000e+00> : vector<8x8xf32>
    %13 = tpu.matmul %1, %12, %cst_12 {dimension_numbers = #tpu.dot_dimension_numbers<[1], [0], [0], [1], [0, 0, 1, 1], [], []>} : vector<8x32xf32>, vector<32x8xf32>, vector<8x8xf32> -> vector<8x8xf32>
    %c0_13 = arith.constant 0 : index
    %c0_14 = arith.constant 0 : index
    %c0_15 = arith.constant 0 : index
    %14 = vector.load %arg6[%c0_13, %c0_14, %c0_15] : memref<4x1x8xf32, #tpu.memory_space<vmem>>, vector<1x1x8xf32>
    %15 = vector.shape_cast %14 : vector<1x1x8xf32> to vector<1x8xf32>
    %16 = vector.broadcast %15 : vector<1x8xf32> to vector<8x8xf32>
    %17 = arith.addf %13, %16 : vector<8x8xf32>
    %18 = vector.shape_cast %17 : vector<8x8xf32> to vector<1x8x8xf32>
    %c0_16 = arith.constant 0 : index
    %c0_17 = arith.constant 0 : index
    %c0_18 = arith.constant 0 : index
    %19 = vector.load %arg4[%c0_16, %c0_17, %c0_18] : memref<4x32x8xf32, #tpu.memory_space<vmem>>, vector<1x32x8xf32>
    %20 = vector.shape_cast %19 : vector<1x32x8xf32> to vector<32x8xf32>
    %cst_19 = arith.constant dense<0.000000e+00> : vector<8x8xf32>
    %21 = tpu.matmul %1, %20, %cst_19 {dimension_numbers = #tpu.dot_dimension_numbers<[1], [0], [0], [1], [0, 0, 1, 1], [], []>} : vector<8x32xf32>, vector<32x8xf32>, vector<8x8xf32> -> vector<8x8xf32>
    %c0_20 = arith.constant 0 : index
    %c0_21 = arith.constant 0 : index
    %c0_22 = arith.constant 0 : index
    %22 = vector.load %arg7[%c0_20, %c0_21, %c0_22] : memref<4x1x8xf32, #tpu.memory_space<vmem>>, vector<1x1x8xf32>
    %23 = vector.shape_cast %22 : vector<1x1x8xf32> to vector<1x8xf32>
    %24 = vector.broadcast %23 : vector<1x8xf32> to vector<8x8xf32>
    %25 = arith.addf %21, %24 : vector<8x8xf32>
    %26 = vector.shape_cast %25 : vector<8x8xf32> to vector<1x8x8xf32>
    "tpu.trace_start"() <{level = 10 : i32, message = "bqd,bkd->bqk"}> : () -> ()
    %cst_23 = arith.constant dense<0.000000e+00> : vector<1x8x8xf32>
    %27 = tpu.matmul %10, %18, %cst_23 {dimension_numbers = #tpu.dot_dimension_numbers<[2], [2], [1], [1], [0, 0, 0, 1, 1, 1], [0], [0]>} : vector<1x8x8xf32>, vector<1x8x8xf32>, vector<1x8x8xf32> -> vector<1x8x8xf32>
    "tpu.trace_stop"() : () -> ()
    %cst_24 = arith.constant dense<0xFF800000> : vector<1x8xf32>
    %28 = vector.multi_reduction <maximumf>, %27, %cst_24 [2] : vector<1x8x8xf32> to vector<1x8xf32>
    %29 = vector.shape_cast %28 : vector<1x8xf32> to vector<1x8x1xf32>
    %30 = vector.broadcast %29 : vector<1x8x1xf32> to vector<1x8x8xf32>
    %31 = arith.subf %27, %30 : vector<1x8x8xf32>
    %32 = math.exp %31 : vector<1x8x8xf32>
    %cst_25 = arith.constant dense<0.000000e+00> : vector<1x8xf32>
    %33 = vector.multi_reduction <add>, %32, %cst_25 [2] : vector<1x8x8xf32> to vector<1x8xf32>
    %34 = vector.shape_cast %33 : vector<1x8xf32> to vector<1x8x1xf32>
    %35 = tpu.reciprocal %34 {approx = true} : vector<1x8x1xf32> -> vector<1x8x1xf32>
    %36 = vector.broadcast %35 : vector<1x8x1xf32> to vector<1x8x8xf32>
    %37 = arith.mulf %32, %36 : vector<1x8x8xf32>
    "tpu.trace_start"() <{level = 10 : i32, message = "bqk,bkd->bqd"}> : () -> ()
    %cst_26 = arith.constant dense<0.000000e+00> : vector<1x8x8xf32>
    %38 = tpu.matmul %37, %26, %cst_26 {dimension_numbers = #tpu.dot_dimension_numbers<[2], [1], [1], [2], [0, 0, 0, 1, 1, 2], [0], [0]>} : vector<1x8x8xf32>, vector<1x8x8xf32>, vector<1x8x8xf32> -> vector<1x8x8xf32>
    "tpu.trace_stop"() : () -> ()
    %39 = vector.shape_cast %38 : vector<1x8x8xf32> to vector<8x8xf32>
    %c0_27 = arith.constant 0 : index
    %c0_28 = arith.constant 0 : index
    %c0_29 = arith.constant 0 : index
    %40 = vector.load %arg8[%c0_27, %c0_28, %c0_29] : memref<4x8x32xf32, #tpu.memory_space<vmem>>, vector<1x8x32xf32>
    %41 = vector.shape_cast %40 : vector<1x8x32xf32> to vector<8x32xf32>
    %cst_30 = arith.constant dense<0.000000e+00> : vector<8x32xf32>
    %42 = tpu.matmul %39, %41, %cst_30 {dimension_numbers = #tpu.dot_dimension_numbers<[1], [0], [0], [1], [0, 0, 1, 1], [], []>} : vector<8x8xf32>, vector<8x32xf32>, vector<8x32xf32> -> vector<8x32xf32>
    %43 = arith.addf %2, %42 : vector<8x32xf32>
    %c1 = arith.constant 1 : index
    %c0_31 = arith.constant 0 : index
    %c0_32 = arith.constant 0 : index
    %44 = vector.load %arg2[%c1, %c0_31, %c0_32] : memref<4x32x8xf32, #tpu.memory_space<vmem>>, vector<1x32x8xf32>
    %45 = vector.shape_cast %44 : vector<1x32x8xf32> to vector<32x8xf32>
    %cst_33 = arith.constant dense<0.000000e+00> : vector<8x8xf32>
    %46 = tpu.matmul %1, %45, %cst_33 {dimension_numbers = #tpu.dot_dimension_numbers<[1], [0], [0], [1], [0, 0, 1, 1], [], []>} : vector<8x32xf32>, vector<32x8xf32>, vector<8x8xf32> -> vector<8x8xf32>
    %c1_34 = arith.constant 1 : index
    %c0_35 = arith.constant 0 : index
    %c0_36 = arith.constant 0 : index
    %47 = vector.load %arg5[%c1_34, %c0_35, %c0_36] : memref<4x1x8xf32, #tpu.memory_space<vmem>>, vector<1x1x8xf32>
    %48 = vector.shape_cast %47 : vector<1x1x8xf32> to vector<1x8xf32>
    %49 = vector.broadcast %48 : vector<1x8xf32> to vector<8x8xf32>
    %50 = arith.addf %46, %49 : vector<8x8xf32>
    %51 = vector.shape_cast %50 : vector<8x8xf32> to vector<1x8x8xf32>
    %c1_37 = arith.constant 1 : index
    %c0_38 = arith.constant 0 : index
    %c0_39 = arith.constant 0 : index
    %52 = vector.load %arg3[%c1_37, %c0_38, %c0_39] : memref<4x32x8xf32, #tpu.memory_space<vmem>>, vector<1x32x8xf32>
    %53 = vector.shape_cast %52 : vector<1x32x8xf32> to vector<32x8xf32>
    %cst_40 = arith.constant dense<0.000000e+00> : vector<8x8xf32>
    %54 = tpu.matmul %1, %53, %cst_40 {dimension_numbers = #tpu.dot_dimension_numbers<[1], [0], [0], [1], [0, 0, 1, 1], [], []>} : vector<8x32xf32>, vector<32x8xf32>, vector<8x8xf32> -> vector<8x8xf32>
    %c1_41 = arith.constant 1 : index
    %c0_42 = arith.constant 0 : index
    %c0_43 = arith.constant 0 : index
    %55 = vector.load %arg6[%c1_41, %c0_42, %c0_43] : memref<4x1x8xf32, #tpu.memory_space<vmem>>, vector<1x1x8xf32>
    %56 = vector.shape_cast %55 : vector<1x1x8xf32> to vector<1x8xf32>
    %57 = vector.broadcast %56 : vector<1x8xf32> to vector<8x8xf32>
    %58 = arith.addf %54, %57 : vector<8x8xf32>
    %59 = vector.shape_cast %58 : vector<8x8xf32> to vector<1x8x8xf32>
    %c1_44 = arith.constant 1 : index
    %c0_45 = arith.constant 0 : index
    %c0_46 = arith.constant 0 : index
    %60 = vector.load %arg4[%c1_44, %c0_45, %c0_46] : memref<4x32x8xf32, #tpu.memory_space<vmem>>, vector<1x32x8xf32>
    %61 = vector.shape_cast %60 : vector<1x32x8xf32> to vector<32x8xf32>
    %cst_47 = arith.constant dense<0.000000e+00> : vector<8x8xf32>
    %62 = tpu.matmul %1, %61, %cst_47 {dimension_numbers = #tpu.dot_dimension_numbers<[1], [0], [0], [1], [0, 0, 1, 1], [], []>} : vector<8x32xf32>, vector<32x8xf32>, vector<8x8xf32> -> vector<8x8xf32>
    %c1_48 = arith.constant 1 : index
    %c0_49 = arith.constant 0 : index
    %c0_50 = arith.constant 0 : index
    %63 = vector.load %arg7[%c1_48, %c0_49, %c0_50] : memref<4x1x8xf32, #tpu.memory_space<vmem>>, vector<1x1x8xf32>
    %64 = vector.shape_cast %63 : vector<1x1x8xf32> to vector<1x8xf32>
    %65 = vector.broadcast %64 : vector<1x8xf32> to vector<8x8xf32>
    %66 = arith.addf %62, %65 : vector<8x8xf32>
    %67 = vector.shape_cast %66 : vector<8x8xf32> to vector<1x8x8xf32>
    "tpu.trace_start"() <{level = 10 : i32, message = "bqd,bkd->bqk"}> : () -> ()
    %cst_51 = arith.constant dense<0.000000e+00> : vector<1x8x8xf32>
    %68 = tpu.matmul %51, %59, %cst_51 {dimension_numbers = #tpu.dot_dimension_numbers<[2], [2], [1], [1], [0, 0, 0, 1, 1, 1], [0], [0]>} : vector<1x8x8xf32>, vector<1x8x8xf32>, vector<1x8x8xf32> -> vector<1x8x8xf32>
    "tpu.trace_stop"() : () -> ()
    %cst_52 = arith.constant dense<0xFF800000> : vector<1x8xf32>
    %69 = vector.multi_reduction <maximumf>, %68, %cst_52 [2] : vector<1x8x8xf32> to vector<1x8xf32>
    %70 = vector.shape_cast %69 : vector<1x8xf32> to vector<1x8x1xf32>
    %71 = vector.broadcast %70 : vector<1x8x1xf32> to vector<1x8x8xf32>
    %72 = arith.subf %68, %71 : vector<1x8x8xf32>
    %73 = math.exp %72 : vector<1x8x8xf32>
    %cst_53 = arith.constant dense<0.000000e+00> : vector<1x8xf32>
    %74 = vector.multi_reduction <add>, %73, %cst_53 [2] : vector<1x8x8xf32> to vector<1x8xf32>
    %75 = vector.shape_cast %74 : vector<1x8xf32> to vector<1x8x1xf32>
    %76 = tpu.reciprocal %75 {approx = true} : vector<1x8x1xf32> -> vector<1x8x1xf32>
    %77 = vector.broadcast %76 : vector<1x8x1xf32> to vector<1x8x8xf32>
    %78 = arith.mulf %73, %77 : vector<1x8x8xf32>
    "tpu.trace_start"() <{level = 10 : i32, message = "bqk,bkd->bqd"}> : () -> ()
    %cst_54 = arith.constant dense<0.000000e+00> : vector<1x8x8xf32>
    %79 = tpu.matmul %78, %67, %cst_54 {dimension_numbers = #tpu.dot_dimension_numbers<[2], [1], [1], [2], [0, 0, 0, 1, 1, 2], [0], [0]>} : vector<1x8x8xf32>, vector<1x8x8xf32>, vector<1x8x8xf32> -> vector<1x8x8xf32>
    "tpu.trace_stop"() : () -> ()
    %80 = vector.shape_cast %79 : vector<1x8x8xf32> to vector<8x8xf32>
    %c1_55 = arith.constant 1 : index
    %c0_56 = arith.constant 0 : index
    %c0_57 = arith.constant 0 : index
    %81 = vector.load %arg8[%c1_55, %c0_56, %c0_57] : memref<4x8x32xf32, #tpu.memory_space<vmem>>, vector<1x8x32xf32>
    %82 = vector.shape_cast %81 : vector<1x8x32xf32> to vector<8x32xf32>
    %cst_58 = arith.constant dense<0.000000e+00> : vector<8x32xf32>
    %83 = tpu.matmul %80, %82, %cst_58 {dimension_numbers = #tpu.dot_dimension_numbers<[1], [0], [0], [1], [0, 0, 1, 1], [], []>} : vector<8x8xf32>, vector<8x32xf32>, vector<8x32xf32> -> vector<8x32xf32>
    %84 = arith.addf %43, %83 : vector<8x32xf32>
    %c2 = arith.constant 2 : index
    %c0_59 = arith.constant 0 : index
    %c0_60 = arith.constant 0 : index
    %85 = vector.load %arg2[%c2, %c0_59, %c0_60] : memref<4x32x8xf32, #tpu.memory_space<vmem>>, vector<1x32x8xf32>
    %86 = vector.shape_cast %85 : vector<1x32x8xf32> to vector<32x8xf32>
    %cst_61 = arith.constant dense<0.000000e+00> : vector<8x8xf32>
    %87 = tpu.matmul %1, %86, %cst_61 {dimension_numbers = #tpu.dot_dimension_numbers<[1], [0], [0], [1], [0, 0, 1, 1], [], []>} : vector<8x32xf32>, vector<32x8xf32>, vector<8x8xf32> -> vector<8x8xf32>
    %c2_62 = arith.constant 2 : index
    %c0_63 = arith.constant 0 : index
    %c0_64 = arith.constant 0 : index
    %88 = vector.load %arg5[%c2_62, %c0_63, %c0_64] : memref<4x1x8xf32, #tpu.memory_space<vmem>>, vector<1x1x8xf32>
    %89 = vector.shape_cast %88 : vector<1x1x8xf32> to vector<1x8xf32>
    %90 = vector.broadcast %89 : vector<1x8xf32> to vector<8x8xf32>
    %91 = arith.addf %87, %90 : vector<8x8xf32>
    %92 = vector.shape_cast %91 : vector<8x8xf32> to vector<1x8x8xf32>
    %c2_65 = arith.constant 2 : index
    %c0_66 = arith.constant 0 : index
    %c0_67 = arith.constant 0 : index
    %93 = vector.load %arg3[%c2_65, %c0_66, %c0_67] : memref<4x32x8xf32, #tpu.memory_space<vmem>>, vector<1x32x8xf32>
    %94 = vector.shape_cast %93 : vector<1x32x8xf32> to vector<32x8xf32>
    %cst_68 = arith.constant dense<0.000000e+00> : vector<8x8xf32>
    %95 = tpu.matmul %1, %94, %cst_68 {dimension_numbers = #tpu.dot_dimension_numbers<[1], [0], [0], [1], [0, 0, 1, 1], [], []>} : vector<8x32xf32>, vector<32x8xf32>, vector<8x8xf32> -> vector<8x8xf32>
    %c2_69 = arith.constant 2 : index
    %c0_70 = arith.constant 0 : index
    %c0_71 = arith.constant 0 : index
    %96 = vector.load %arg6[%c2_69, %c0_70, %c0_71] : memref<4x1x8xf32, #tpu.memory_space<vmem>>, vector<1x1x8xf32>
    %97 = vector.shape_cast %96 : vector<1x1x8xf32> to vector<1x8xf32>
    %98 = vector.broadcast %97 : vector<1x8xf32> to vector<8x8xf32>
    %99 = arith.addf %95, %98 : vector<8x8xf32>
    %100 = vector.shape_cast %99 : vector<8x8xf32> to vector<1x8x8xf32>
    %c2_72 = arith.constant 2 : index
    %c0_73 = arith.constant 0 : index
    %c0_74 = arith.constant 0 : index
    %101 = vector.load %arg4[%c2_72, %c0_73, %c0_74] : memref<4x32x8xf32, #tpu.memory_space<vmem>>, vector<1x32x8xf32>
    %102 = vector.shape_cast %101 : vector<1x32x8xf32> to vector<32x8xf32>
    %cst_75 = arith.constant dense<0.000000e+00> : vector<8x8xf32>
    %103 = tpu.matmul %1, %102, %cst_75 {dimension_numbers = #tpu.dot_dimension_numbers<[1], [0], [0], [1], [0, 0, 1, 1], [], []>} : vector<8x32xf32>, vector<32x8xf32>, vector<8x8xf32> -> vector<8x8xf32>
    %c2_76 = arith.constant 2 : index
    %c0_77 = arith.constant 0 : index
    %c0_78 = arith.constant 0 : index
    %104 = vector.load %arg7[%c2_76, %c0_77, %c0_78] : memref<4x1x8xf32, #tpu.memory_space<vmem>>, vector<1x1x8xf32>
    %105 = vector.shape_cast %104 : vector<1x1x8xf32> to vector<1x8xf32>
    %106 = vector.broadcast %105 : vector<1x8xf32> to vector<8x8xf32>
    %107 = arith.addf %103, %106 : vector<8x8xf32>
    %108 = vector.shape_cast %107 : vector<8x8xf32> to vector<1x8x8xf32>
    "tpu.trace_start"() <{level = 10 : i32, message = "bqd,bkd->bqk"}> : () -> ()
    %cst_79 = arith.constant dense<0.000000e+00> : vector<1x8x8xf32>
    %109 = tpu.matmul %92, %100, %cst_79 {dimension_numbers = #tpu.dot_dimension_numbers<[2], [2], [1], [1], [0, 0, 0, 1, 1, 1], [0], [0]>} : vector<1x8x8xf32>, vector<1x8x8xf32>, vector<1x8x8xf32> -> vector<1x8x8xf32>
    "tpu.trace_stop"() : () -> ()
    %cst_80 = arith.constant dense<0xFF800000> : vector<1x8xf32>
    %110 = vector.multi_reduction <maximumf>, %109, %cst_80 [2] : vector<1x8x8xf32> to vector<1x8xf32>
    %111 = vector.shape_cast %110 : vector<1x8xf32> to vector<1x8x1xf32>
    %112 = vector.broadcast %111 : vector<1x8x1xf32> to vector<1x8x8xf32>
    %113 = arith.subf %109, %112 : vector<1x8x8xf32>
    %114 = math.exp %113 : vector<1x8x8xf32>
    %cst_81 = arith.constant dense<0.000000e+00> : vector<1x8xf32>
    %115 = vector.multi_reduction <add>, %114, %cst_81 [2] : vector<1x8x8xf32> to vector<1x8xf32>
    %116 = vector.shape_cast %115 : vector<1x8xf32> to vector<1x8x1xf32>
    %117 = tpu.reciprocal %116 {approx = true} : vector<1x8x1xf32> -> vector<1x8x1xf32>
    %118 = vector.broadcast %117 : vector<1x8x1xf32> to vector<1x8x8xf32>
    %119 = arith.mulf %114, %118 : vector<1x8x8xf32>
    "tpu.trace_start"() <{level = 10 : i32, message = "bqk,bkd->bqd"}> : () -> ()
    %cst_82 = arith.constant dense<0.000000e+00> : vector<1x8x8xf32>
    %120 = tpu.matmul %119, %108, %cst_82 {dimension_numbers = #tpu.dot_dimension_numbers<[2], [1], [1], [2], [0, 0, 0, 1, 1, 2], [0], [0]>} : vector<1x8x8xf32>, vector<1x8x8xf32>, vector<1x8x8xf32> -> vector<1x8x8xf32>
    "tpu.trace_stop"() : () -> ()
    %121 = vector.shape_cast %120 : vector<1x8x8xf32> to vector<8x8xf32>
    %c2_83 = arith.constant 2 : index
    %c0_84 = arith.constant 0 : index
    %c0_85 = arith.constant 0 : index
    %122 = vector.load %arg8[%c2_83, %c0_84, %c0_85] : memref<4x8x32xf32, #tpu.memory_space<vmem>>, vector<1x8x32xf32>
    %123 = vector.shape_cast %122 : vector<1x8x32xf32> to vector<8x32xf32>
    %cst_86 = arith.constant dense<0.000000e+00> : vector<8x32xf32>
    %124 = tpu.matmul %121, %123, %cst_86 {dimension_numbers = #tpu.dot_dimension_numbers<[1], [0], [0], [1], [0, 0, 1, 1], [], []>} : vector<8x8xf32>, vector<8x32xf32>, vector<8x32xf32> -> vector<8x32xf32>
    %125 = arith.addf %84, %124 : vector<8x32xf32>
    %c3 = arith.constant 3 : index
    %c0_87 = arith.constant 0 : index
    %c0_88 = arith.constant 0 : index
    %126 = vector.load %arg2[%c3, %c0_87, %c0_88] : memref<4x32x8xf32, #tpu.memory_space<vmem>>, vector<1x32x8xf32>
    %127 = vector.shape_cast %126 : vector<1x32x8xf32> to vector<32x8xf32>
    %cst_89 = arith.constant dense<0.000000e+00> : vector<8x8xf32>
    %128 = tpu.matmul %1, %127, %cst_89 {dimension_numbers = #tpu.dot_dimension_numbers<[1], [0], [0], [1], [0, 0, 1, 1], [], []>} : vector<8x32xf32>, vector<32x8xf32>, vector<8x8xf32> -> vector<8x8xf32>
    %c3_90 = arith.constant 3 : index
    %c0_91 = arith.constant 0 : index
    %c0_92 = arith.constant 0 : index
    %129 = vector.load %arg5[%c3_90, %c0_91, %c0_92] : memref<4x1x8xf32, #tpu.memory_space<vmem>>, vector<1x1x8xf32>
    %130 = vector.shape_cast %129 : vector<1x1x8xf32> to vector<1x8xf32>
    %131 = vector.broadcast %130 : vector<1x8xf32> to vector<8x8xf32>
    %132 = arith.addf %128, %131 : vector<8x8xf32>
    %133 = vector.shape_cast %132 : vector<8x8xf32> to vector<1x8x8xf32>
    %c3_93 = arith.constant 3 : index
    %c0_94 = arith.constant 0 : index
    %c0_95 = arith.constant 0 : index
    %134 = vector.load %arg3[%c3_93, %c0_94, %c0_95] : memref<4x32x8xf32, #tpu.memory_space<vmem>>, vector<1x32x8xf32>
    %135 = vector.shape_cast %134 : vector<1x32x8xf32> to vector<32x8xf32>
    %cst_96 = arith.constant dense<0.000000e+00> : vector<8x8xf32>
    %136 = tpu.matmul %1, %135, %cst_96 {dimension_numbers = #tpu.dot_dimension_numbers<[1], [0], [0], [1], [0, 0, 1, 1], [], []>} : vector<8x32xf32>, vector<32x8xf32>, vector<8x8xf32> -> vector<8x8xf32>
    %c3_97 = arith.constant 3 : index
    %c0_98 = arith.constant 0 : index
    %c0_99 = arith.constant 0 : index
    %137 = vector.load %arg6[%c3_97, %c0_98, %c0_99] : memref<4x1x8xf32, #tpu.memory_space<vmem>>, vector<1x1x8xf32>
    %138 = vector.shape_cast %137 : vector<1x1x8xf32> to vector<1x8xf32>
    %139 = vector.broadcast %138 : vector<1x8xf32> to vector<8x8xf32>
    %140 = arith.addf %136, %139 : vector<8x8xf32>
    %141 = vector.shape_cast %140 : vector<8x8xf32> to vector<1x8x8xf32>
    %c3_100 = arith.constant 3 : index
    %c0_101 = arith.constant 0 : index
    %c0_102 = arith.constant 0 : index
    %142 = vector.load %arg4[%c3_100, %c0_101, %c0_102] : memref<4x32x8xf32, #tpu.memory_space<vmem>>, vector<1x32x8xf32>
    %143 = vector.shape_cast %142 : vector<1x32x8xf32> to vector<32x8xf32>
    %cst_103 = arith.constant dense<0.000000e+00> : vector<8x8xf32>
    %144 = tpu.matmul %1, %143, %cst_103 {dimension_numbers = #tpu.dot_dimension_numbers<[1], [0], [0], [1], [0, 0, 1, 1], [], []>} : vector<8x32xf32>, vector<32x8xf32>, vector<8x8xf32> -> vector<8x8xf32>
    %c3_104 = arith.constant 3 : index
    %c0_105 = arith.constant 0 : index
    %c0_106 = arith.constant 0 : index
    %145 = vector.load %arg7[%c3_104, %c0_105, %c0_106] : memref<4x1x8xf32, #tpu.memory_space<vmem>>, vector<1x1x8xf32>
    %146 = vector.shape_cast %145 : vector<1x1x8xf32> to vector<1x8xf32>
    %147 = vector.broadcast %146 : vector<1x8xf32> to vector<8x8xf32>
    %148 = arith.addf %144, %147 : vector<8x8xf32>
    %149 = vector.shape_cast %148 : vector<8x8xf32> to vector<1x8x8xf32>
    "tpu.trace_start"() <{level = 10 : i32, message = "bqd,bkd->bqk"}> : () -> ()
    %cst_107 = arith.constant dense<0.000000e+00> : vector<1x8x8xf32>
    %150 = tpu.matmul %133, %141, %cst_107 {dimension_numbers = #tpu.dot_dimension_numbers<[2], [2], [1], [1], [0, 0, 0, 1, 1, 1], [0], [0]>} : vector<1x8x8xf32>, vector<1x8x8xf32>, vector<1x8x8xf32> -> vector<1x8x8xf32>
    "tpu.trace_stop"() : () -> ()
    %cst_108 = arith.constant dense<0xFF800000> : vector<1x8xf32>
    %151 = vector.multi_reduction <maximumf>, %150, %cst_108 [2] : vector<1x8x8xf32> to vector<1x8xf32>
    %152 = vector.shape_cast %151 : vector<1x8xf32> to vector<1x8x1xf32>
    %153 = vector.broadcast %152 : vector<1x8x1xf32> to vector<1x8x8xf32>
    %154 = arith.subf %150, %153 : vector<1x8x8xf32>
    %155 = math.exp %154 : vector<1x8x8xf32>
    %cst_109 = arith.constant dense<0.000000e+00> : vector<1x8xf32>
    %156 = vector.multi_reduction <add>, %155, %cst_109 [2] : vector<1x8x8xf32> to vector<1x8xf32>
    %157 = vector.shape_cast %156 : vector<1x8xf32> to vector<1x8x1xf32>
    %158 = tpu.reciprocal %157 {approx = true} : vector<1x8x1xf32> -> vector<1x8x1xf32>
    %159 = vector.broadcast %158 : vector<1x8x1xf32> to vector<1x8x8xf32>
    %160 = arith.mulf %155, %159 : vector<1x8x8xf32>
    "tpu.trace_start"() <{level = 10 : i32, message = "bqk,bkd->bqd"}> : () -> ()
    %cst_110 = arith.constant dense<0.000000e+00> : vector<1x8x8xf32>
    %161 = tpu.matmul %160, %149, %cst_110 {dimension_numbers = #tpu.dot_dimension_numbers<[2], [1], [1], [2], [0, 0, 0, 1, 1, 2], [0], [0]>} : vector<1x8x8xf32>, vector<1x8x8xf32>, vector<1x8x8xf32> -> vector<1x8x8xf32>
    "tpu.trace_stop"() : () -> ()
    %162 = vector.shape_cast %161 : vector<1x8x8xf32> to vector<8x8xf32>
    %c3_111 = arith.constant 3 : index
    %c0_112 = arith.constant 0 : index
    %c0_113 = arith.constant 0 : index
    %163 = vector.load %arg8[%c3_111, %c0_112, %c0_113] : memref<4x8x32xf32, #tpu.memory_space<vmem>>, vector<1x8x32xf32>
    %164 = vector.shape_cast %163 : vector<1x8x32xf32> to vector<8x32xf32>
    %cst_114 = arith.constant dense<0.000000e+00> : vector<8x32xf32>
    %165 = tpu.matmul %162, %164, %cst_114 {dimension_numbers = #tpu.dot_dimension_numbers<[1], [0], [0], [1], [0, 0, 1, 1], [], []>} : vector<8x8xf32>, vector<8x32xf32>, vector<8x32xf32> -> vector<8x32xf32>
    %166 = arith.addf %125, %165 : vector<8x32xf32>
    %c0_115 = arith.constant 0 : index
    %c0_116 = arith.constant 0 : index
    %167 = vector.load %arg9[%c0_115, %c0_116] : memref<1x32xf32, #tpu.memory_space<vmem>>, vector<1x32xf32>
    %168 = vector.broadcast %167 : vector<1x32xf32> to vector<8x32xf32>
    %169 = arith.addf %166, %168 : vector<8x32xf32>
    %170 = arith.addf %1, %169 : vector<8x32xf32>
    %c0_117 = arith.constant 0 : index
    %c0_118 = arith.constant 0 : index
    %171 = vector.load %arg14[%c0_117, %c0_118] : memref<1x32xf32, #tpu.memory_space<vmem>>, vector<1x32xf32>
    %c0_119 = arith.constant 0 : index
    %c0_120 = arith.constant 0 : index
    %172 = vector.load %arg15[%c0_119, %c0_120] : memref<1x32xf32, #tpu.memory_space<vmem>>, vector<1x32xf32>
    %cst_121 = arith.constant dense<0.000000e+00> : vector<8xf32>
    %173 = vector.multi_reduction <add>, %170, %cst_121 [1] : vector<8x32xf32> to vector<8xf32>
    %174 = vector.shape_cast %173 : vector<8xf32> to vector<8x1xf32>
    %cst_122 = arith.constant 3.200000e+01 : f32
    %175 = vector.broadcast %cst_122 : f32 to vector<8x1xf32>
    %176 = arith.divf %174, %175 : vector<8x1xf32>
    %177 = vector.broadcast %176 : vector<8x1xf32> to vector<8x32xf32>
    %178 = arith.subf %170, %177 : vector<8x32xf32>
    %179 = arith.mulf %178, %178 : vector<8x32xf32>
    %cst_123 = arith.constant dense<0.000000e+00> : vector<8xf32>
    %180 = vector.multi_reduction <add>, %179, %cst_123 [1] : vector<8x32xf32> to vector<8xf32>
    %181 = vector.shape_cast %180 : vector<8xf32> to vector<8x1xf32>
    %cst_124 = arith.constant 3.200000e+01 : f32
    %182 = vector.broadcast %cst_124 : f32 to vector<8x1xf32>
    %183 = arith.divf %181, %182 : vector<8x1xf32>
    %184 = vector.broadcast %176 : vector<8x1xf32> to vector<8x32xf32>
    %185 = arith.subf %170, %184 : vector<8x32xf32>
    %cst_125 = arith.constant 9.99999974E-6 : f32
    %186 = vector.broadcast %cst_125 : f32 to vector<8x1xf32>
    %187 = arith.addf %183, %186 : vector<8x1xf32>
    %188 = math.rsqrt %187 : vector<8x1xf32>
    %189 = vector.broadcast %188 : vector<8x1xf32> to vector<8x32xf32>
    %190 = arith.mulf %185, %189 : vector<8x32xf32>
    %191 = vector.broadcast %171 : vector<1x32xf32> to vector<8x32xf32>
    %192 = arith.mulf %190, %191 : vector<8x32xf32>
    %193 = vector.broadcast %172 : vector<1x32xf32> to vector<8x32xf32>
    %194 = arith.addf %192, %193 : vector<8x32xf32>
    %cst_126 = arith.constant 0.000000e+00 : f32
    %195 = vector.broadcast %cst_126 : f32 to vector<8x32xf32>
    %c0_127 = arith.constant 0 : index
    %c0_128 = arith.constant 0 : index
    %196 = vector.load %arg10[%c0_127, %c0_128] : memref<32x64xf32, #tpu.memory_space<vmem>>, vector<32x64xf32>
    %cst_129 = arith.constant dense<0.000000e+00> : vector<8x64xf32>
    %197 = tpu.matmul %194, %196, %cst_129 {dimension_numbers = #tpu.dot_dimension_numbers<[1], [0], [0], [1], [0, 0, 1, 1], [], []>} : vector<8x32xf32>, vector<32x64xf32>, vector<8x64xf32> -> vector<8x64xf32>
    %c0_130 = arith.constant 0 : index
    %c0_131 = arith.constant 0 : index
    %198 = vector.load %arg11[%c0_130, %c0_131] : memref<1x64xf32, #tpu.memory_space<vmem>>, vector<1x64xf32>
    %199 = vector.broadcast %198 : vector<1x64xf32> to vector<8x64xf32>
    %200 = arith.addf %197, %199 : vector<8x64xf32>
    %cst_132 = arith.constant 0.000000e+00 : f32
    %201 = vector.broadcast %cst_132 : f32 to vector<8x64xf32>
    %202 = arith.maximumf %200, %201 : vector<8x64xf32>
    %c0_133 = arith.constant 0 : index
    %c0_134 = arith.constant 0 : index
    %203 = vector.load %arg12[%c0_133, %c0_134] : memref<64x32xf32, #tpu.memory_space<vmem>>, vector<64x32xf32>
    %cst_135 = arith.constant dense<0.000000e+00> : vector<8x32xf32>
    %204 = tpu.matmul %202, %203, %cst_135 {dimension_numbers = #tpu.dot_dimension_numbers<[1], [0], [0], [1], [0, 0, 1, 1], [], []>} : vector<8x64xf32>, vector<64x32xf32>, vector<8x32xf32> -> vector<8x32xf32>
    %205 = arith.addf %195, %204 : vector<8x32xf32>
    %c0_136 = arith.constant 0 : index
    %c0_137 = arith.constant 0 : index
    %206 = vector.load %arg13[%c0_136, %c0_137] : memref<1x32xf32, #tpu.memory_space<vmem>>, vector<1x32xf32>
    %207 = vector.broadcast %206 : vector<1x32xf32> to vector<8x32xf32>
    %208 = arith.addf %205, %207 : vector<8x32xf32>
    %209 = arith.addf %194, %208 : vector<8x32xf32>
    %c0_138 = arith.constant 0 : index
    %c0_139 = arith.constant 0 : index
    %210 = vector.load %arg16[%c0_138, %c0_139] : memref<1x32xf32, #tpu.memory_space<vmem>>, vector<1x32xf32>
    %c0_140 = arith.constant 0 : index
    %c0_141 = arith.constant 0 : index
    %211 = vector.load %arg17[%c0_140, %c0_141] : memref<1x32xf32, #tpu.memory_space<vmem>>, vector<1x32xf32>
    %cst_142 = arith.constant dense<0.000000e+00> : vector<8xf32>
    %212 = vector.multi_reduction <add>, %209, %cst_142 [1] : vector<8x32xf32> to vector<8xf32>
    %213 = vector.shape_cast %212 : vector<8xf32> to vector<8x1xf32>
    %cst_143 = arith.constant 3.200000e+01 : f32
    %214 = vector.broadcast %cst_143 : f32 to vector<8x1xf32>
    %215 = arith.divf %213, %214 : vector<8x1xf32>
    %216 = vector.broadcast %215 : vector<8x1xf32> to vector<8x32xf32>
    %217 = arith.subf %209, %216 : vector<8x32xf32>
    %218 = arith.mulf %217, %217 : vector<8x32xf32>
    %cst_144 = arith.constant dense<0.000000e+00> : vector<8xf32>
    %219 = vector.multi_reduction <add>, %218, %cst_144 [1] : vector<8x32xf32> to vector<8xf32>
    %220 = vector.shape_cast %219 : vector<8xf32> to vector<8x1xf32>
    %cst_145 = arith.constant 3.200000e+01 : f32
    %221 = vector.broadcast %cst_145 : f32 to vector<8x1xf32>
    %222 = arith.divf %220, %221 : vector<8x1xf32>
    %223 = vector.broadcast %215 : vector<8x1xf32> to vector<8x32xf32>
    %224 = arith.subf %209, %223 : vector<8x32xf32>
    %cst_146 = arith.constant 9.99999974E-6 : f32
    %225 = vector.broadcast %cst_146 : f32 to vector<8x1xf32>
    %226 = arith.addf %222, %225 : vector<8x1xf32>
    %227 = math.rsqrt %226 : vector<8x1xf32>
    %228 = vector.broadcast %227 : vector<8x1xf32> to vector<8x32xf32>
    %229 = arith.mulf %224, %228 : vector<8x32xf32>
    %230 = vector.broadcast %210 : vector<1x32xf32> to vector<8x32xf32>
    %231 = arith.mulf %229, %230 : vector<8x32xf32>
    %232 = vector.broadcast %211 : vector<1x32xf32> to vector<8x32xf32>
    %233 = arith.addf %231, %232 : vector<8x32xf32>
    %234 = vector.shape_cast %233 : vector<8x32xf32> to vector<1x8x32xf32>
    %c0_147 = arith.constant 0 : index
    %c0_148 = arith.constant 0 : index
    %c0_149 = arith.constant 0 : index
    %235 = vector.load %arg18[%c0_147, %c0_148, %c0_149] : memref<1x8x32xf32, #tpu.memory_space<vmem>>, vector<1x8x32xf32>
    tpu.vector_store %arg18[%c0_147, %c0_148, %c0_149], %234 {strides = array<i32>} : memref<1x8x32xf32, #tpu.memory_space<vmem>>, vector<1x8x32xf32>,
    return
  }
  func.func @transform_0(%arg0: i32) -> (i32, i32, i32) {
    %c0_i32 = arith.constant 0 : i32
    %c0_i32_0 = arith.constant 0 : i32
    %c0_i32_1 = arith.constant 0 : i32
    return %arg0, %c0_i32, %c0_i32_0 : i32, i32, i32
  }
  func.func @transform_1(%arg0: i32) -> (i32, i32, i32) {
    %c0_i32 = arith.constant 0 : i32
    %c0_i32_0 = arith.constant 0 : i32
    %c0_i32_1 = arith.constant 0 : i32
    %c0_i32_2 = arith.constant 0 : i32
    return %c0_i32, %c0_i32_0, %c0_i32_1 : i32, i32, i32
  }
  func.func @transform_2(%arg0: i32) -> (i32, i32, i32) {
    %c0_i32 = arith.constant 0 : i32
    %c0_i32_0 = arith.constant 0 : i32
    %c0_i32_1 = arith.constant 0 : i32
    %c0_i32_2 = arith.constant 0 : i32
    return %c0_i32, %c0_i32_0, %c0_i32_1 : i32, i32, i32
  }
  func.func @transform_3(%arg0: i32) -> (i32, i32, i32) {
    %c0_i32 = arith.constant 0 : i32
    %c0_i32_0 = arith.constant 0 : i32
    %c0_i32_1 = arith.constant 0 : i32
    %c0_i32_2 = arith.constant 0 : i32
    return %c0_i32, %c0_i32_0, %c0_i32_1 : i32, i32, i32
  }
  func.func @transform_4(%arg0: i32) -> (i32, i32, i32) {
    %c0_i32 = arith.constant 0 : i32
    %c0_i32_0 = arith.constant 0 : i32
    %c0_i32_1 = arith.constant 0 : i32
    %c0_i32_2 = arith.constant 0 : i32
    return %c0_i32, %c0_i32_0, %c0_i32_1 : i32, i32, i32
  }
  func.func @transform_5(%arg0: i32) -> (i32, i32, i32) {
    %c0_i32 = arith.constant 0 : i32
    %c0_i32_0 = arith.constant 0 : i32
    %c0_i32_1 = arith.constant 0 : i32
    %c0_i32_2 = arith.constant 0 : i32
    return %c0_i32, %c0_i32_0, %c0_i32_1 : i32, i32, i32
  }
  func.func @transform_6(%arg0: i32) -> (i32, i32, i32) {
    %c0_i32 = arith.constant 0 : i32
    %c0_i32_0 = arith.constant 0 : i32
    %c0_i32_1 = arith.constant 0 : i32
    %c0_i32_2 = arith.constant 0 : i32
    return %c0_i32, %c0_i32_0, %c0_i32_1 : i32, i32, i32
  }
  func.func @transform_7(%arg0: i32) -> (i32, i32, i32) {
    %c0_i32 = arith.constant 0 : i32
    %c0_i32_0 = arith.constant 0 : i32
    %c0_i32_1 = arith.constant 0 : i32
    %c0_i32_2 = arith.constant 0 : i32
    return %c0_i32, %c0_i32_0, %c0_i32_1 : i32, i32, i32
  }
  func.func @transform_8(%arg0: i32) -> (i32, i32) {
    %c0_i32 = arith.constant 0 : i32
    %c0_i32_0 = arith.constant 0 : i32
    %c0_i32_1 = arith.constant 0 : i32
    return %c0_i32, %c0_i32_0 : i32, i32
  }
  func.func @transform_9(%arg0: i32) -> (i32, i32) {
    %c0_i32 = arith.constant 0 : i32
    %c0_i32_0 = arith.constant 0 : i32
    %c0_i32_1 = arith.constant 0 : i32
    return %c0_i32, %c0_i32_0 : i32, i32
  }
  func.func @transform_10(%arg0: i32) -> (i32, i32) {
    %c0_i32 = arith.constant 0 : i32
    %c0_i32_0 = arith.constant 0 : i32
    %c0_i32_1 = arith.constant 0 : i32
    return %c0_i32, %c0_i32_0 : i32, i32
  }
  func.func @transform_11(%arg0: i32) -> (i32, i32) {
    %c0_i32 = arith.constant 0 : i32
    %c0_i32_0 = arith.constant 0 : i32
    %c0_i32_1 = arith.constant 0 : i32
    return %c0_i32, %c0_i32_0 : i32, i32
  }
  func.func @transform_12(%arg0: i32) -> (i32, i32) {
    %c0_i32 = arith.constant 0 : i32
    %c0_i32_0 = arith.constant 0 : i32
    %c0_i32_1 = arith.constant 0 : i32
    return %c0_i32, %c0_i32_0 : i32, i32
  }
  func.func @transform_13(%arg0: i32) -> (i32, i32) {
    %c0_i32 = arith.constant 0 : i32
    %c0_i32_0 = arith.constant 0 : i32
    %c0_i32_1 = arith.constant 0 : i32
    return %c0_i32, %c0_i32_0 : i32, i32
  }
  func.func @transform_14(%arg0: i32) -> (i32, i32) {
    %c0_i32 = arith.constant 0 : i32
    %c0_i32_0 = arith.constant 0 : i32
    %c0_i32_1 = arith.constant 0 : i32
    return %c0_i32, %c0_i32_0 : i32, i32
  }
  func.func @transform_15(%arg0: i32) -> (i32, i32) {
    %c0_i32 = arith.constant 0 : i32
    %c0_i32_0 = arith.constant 0 : i32
    %c0_i32_1 = arith.constant 0 : i32
    return %c0_i32, %c0_i32_0 : i32, i32
  }
  func.func @transform_16(%arg0: i32) -> (i32, i32) {
    %c0_i32 = arith.constant 0 : i32
    %c0_i32_0 = arith.constant 0 : i32
    %c0_i32_1 = arith.constant 0 : i32
    return %c0_i32, %c0_i32_0 : i32, i32
  }
  func.func @transform_17(%arg0: i32) -> (i32, i32, i32) {
    %c0_i32 = arith.constant 0 : i32
    %c0_i32_0 = arith.constant 0 : i32
    %c0_i32_1 = arith.constant 0 : i32
    return %arg0, %c0_i32, %c0_i32_0 : i32, i32, i32
  }
}

</mosaic_0001>

<llo_original>
// kernel: tpu_custom_call.1
$region0: #{tpu_custom_call.1}
  #allocation0 [shape = 'u32[]', space=smem, size = 0x4, offset = 0x4, fixed_abs, tag = 'smem constant byte address 0x4 - core index']
  #allocation1 [shape = 'u32[144,128]{1,0:T(1,128)}', space=vmem, size = 0x12000, scoped, tag = 'internal scratch']
  %s0 = inlined_call_operand.vmem [shape: f32[2,8,32], index: 0, kind: input, shape index: {}]
  %s1 = inlined_call_operand.vmem [shape: f32[4,32,8], index: 1, kind: input, shape index: {}]
  %s2 = inlined_call_operand.vmem [shape: f32[4,32,8], index: 2, kind: input, shape index: {}]
  %s3 = inlined_call_operand.vmem [shape: f32[4,32,8], index: 3, kind: input, shape index: {}]
  %s4 = inlined_call_operand.vmem [shape: f32[4,1,8], index: 4, kind: input, shape index: {}]
  %s5 = inlined_call_operand.vmem [shape: f32[4,1,8], index: 5, kind: input, shape index: {}]
  %s6 = inlined_call_operand.vmem [shape: f32[4,1,8], index: 6, kind: input, shape index: {}]
  %s7 = inlined_call_operand.vmem [shape: f32[4,8,32], index: 7, kind: input, shape index: {}]
  %s8 = inlined_call_operand.vmem [shape: f32[1,32], index: 8, kind: input, shape index: {}]
  %s9 = inlined_call_operand.vmem [shape: f32[32,64], index: 9, kind: input, shape index: {}]
  %s10 = inlined_call_operand.vmem [shape: f32[1,64], index: 10, kind: input, shape index: {}]
  %s11 = inlined_call_operand.vmem [shape: f32[64,32], index: 11, kind: input, shape index: {}]
  %s12 = inlined_call_operand.vmem [shape: f32[1,32], index: 12, kind: input, shape index: {}]
  %s13 = inlined_call_operand.vmem [shape: f32[1,32], index: 13, kind: input, shape index: {}]
  %s14 = inlined_call_operand.vmem [shape: f32[1,32], index: 14, kind: input, shape index: {}]
  %s15 = inlined_call_operand.vmem [shape: f32[1,32], index: 15, kind: input, shape index: {}]
  %s16 = inlined_call_operand.vmem [shape: f32[1,32], index: 16, kind: input, shape index: {}]
  %s17 = inlined_call_operand.hbm [shape: f32[2,8,32], index: 17, kind: output, shape index: {}]
  %s18 = sld [smem:[#allocation0]]
  $region101: #{tpu_custom_call.1} parent=0
    _
  %s20 = ssub.s32 1, %s18
  %s21 = scalar_select 0, %s20, %s18
  $region1: #{tpu_custom_call.1} parent=0
    #allocation2 [shape = 'u8[8192]{0}', space=vmem, size = 0x2000, scoped, tag = 'output window, operand 0']
    #allocation3 [shape = 's32[2]{0}', space=sflag, size = 0x8, scoped, tag = 'scoped memory for tpu_custom_call.1']
    %22 = vsyncpa [#allocation3], 0
    %s23 = scalar_lea.sflag [#allocation3], 1
    %24 = vsyncpa %s23, 0
    loop: start=0, step=1, limit=4
    $region2: #{tpu_custom_call.1} parent=1 // loop_pre_header
      _
    $region3: #{tpu_custom_call.1} parent=1 // loop_header
      %s26 = sphi 0, %s30
      %p27 = scmp.ge.s32.totalorder %s26, 4
      %s36 = sphi 0, %s38
      %s39 = sphi 0, %s36
      %s40 = sphi 0, %s39
      %s56 = sphi 0, %s40
      %s60 = sphi 0, %s60
      %s62 = sphi 0, %s60
      %s63 = sphi 0, %s62
      %s77 = sphi 0, %s63
      %s81 = sphi 0, %s81
      %s83 = sphi 0, %s81
      %s84 = sphi 0, %s83
      %s98 = sphi 0, %s84
      %s102 = sphi 0, %s102
      %s104 = sphi 0, %s102
      %s105 = sphi 0, %s104
      %s119 = sphi 0, %s105
      %s123 = sphi 0, %s123
      %s125 = sphi 0, %s123
      %s126 = sphi 0, %s125
      %s140 = sphi 0, %s126
      %s144 = sphi 0, %s144
      %s146 = sphi 0, %s144
      %s147 = sphi 0, %s146
      %s161 = sphi 0, %s147
      %s165 = sphi 0, %s165
      %s167 = sphi 0, %s165
      %s168 = sphi 0, %s167
      %s182 = sphi 0, %s168
      %s186 = sphi 0, %s186
      %s188 = sphi 0, %s186
      %s189 = sphi 0, %s188
      %s203 = sphi 0, %s189
      %s207 = sphi 0, %s207
      %s209 = sphi 0, %s207
      %s210 = sphi 0, %s209
      %s224 = sphi 0, %s210
      %s228 = sphi 0, %s228
      %s230 = sphi 0, %s228
      %s231 = sphi 0, %s230
      %s245 = sphi 0, %s231
      %s249 = sphi 0, %s249
      %s251 = sphi 0, %s249
      %s252 = sphi 0, %s251
      %s266 = sphi 0, %s252
      %s270 = sphi 0, %s270
      %s272 = sphi 0, %s270
      %s273 = sphi 0, %s272
      %s287 = sphi 0, %s273
      %s291 = sphi 0, %s291
      %s293 = sphi 0, %s291
      %s294 = sphi 0, %s293
      %s308 = sphi 0, %s294
      %s312 = sphi 0, %s312
      %s314 = sphi 0, %s312
      %s315 = sphi 0, %s314
      %s329 = sphi 0, %s315
      %s333 = sphi 0, %s333
      %s335 = sphi 0, %s333
      %s336 = sphi 0, %s335
      %s350 = sphi 0, %s336
      %s354 = sphi 0, %s354
      %s356 = sphi 0, %s354
      %s357 = sphi 0, %s356
      %s371 = sphi 0, %s357
      %s375 = sphi 0, %s375
      %s377 = sphi 0, %s375
      %s378 = sphi 0, %s377
      %s392 = sphi 0, %s378
      %s398 = sphi 0, %s400
      %s401 = sphi 0, %s398
      %s402 = sphi 0, %s401
      %s418 = sphi 0, %s402
    $region4: #{tpu_custom_call.1} parent=1 // loop_header_branch
      %29 = sbr.rel (%p27) target = $region8
    $region5: #{tpu_custom_call.1} parent=1 // loop_body
      %s31 = ssub.s32 %s26, 1
      %s32 = ssub.s32 %s26, 2
      %s33 = sadd.s32 %s26, 1
      %s34 = ssub.s32 %s26, %s33
      %p35 = scmp.eq.s32.totalorder %s34, 0
      %s37 = sadd.s32 %s36, 1
      %s38 = scalar_select %p35, %s36, %s37
      %p41 = pneg %p35
      %p42 = scmp.eq.s32.totalorder %s26, 1
      %p43 = por %p41, %p42
      %p44 = scmp.ne.s32.totalorder %s36, %s39
      %p45 = scmp.eq.s32.totalorder %s26, 0
      %p46 = por %p44, %p45
      %p47 = scmp.ne.s32.totalorder %s36, %s39
      %p48 = scmp.eq.s32.totalorder %s31, 1
      %p49 = por %p47, %p48
      %p50 = scmp.ne.s32.totalorder %s39, %s40
      %p51 = scmp.eq.s32.totalorder %s31, 0
      %p52 = por %p50, %p51
      %p53 = scmp.ne.s32.totalorder %s39, %s40
      %p54 = scmp.eq.s32.totalorder %s32, 1
      %p55 = por %p53, %p54
      %p57 = scmp.ne.s32.totalorder %s40, %s56
      %p58 = scmp.eq.s32.totalorder %s32, 0
      %p59 = por %p57, %p58
      %s61 = sadd.s32 %s60, 1
      %p64 = scmp.eq.s32.totalorder %s26, 1
      %p65 = scmp.ne.s32.totalorder %s60, %s62
      %p66 = scmp.eq.s32.totalorder %s26, 0
      %p67 = por %p65, %p66
      %p68 = scmp.ne.s32.totalorder %s60, %s62
      %p69 = scmp.eq.s32.totalorder %s31, 1
      %p70 = por %p68, %p69
      %p71 = scmp.ne.s32.totalorder %s62, %s63
      %p72 = scmp.eq.s32.totalorder %s31, 0
      %p73 = por %p71, %p72
      %p74 = scmp.ne.s32.totalorder %s62, %s63
      %p75 = scmp.eq.s32.totalorder %s32, 1
      %p76 = por %p74, %p75
      %p78 = scmp.ne.s32.totalorder %s63, %s77
      %p79 = scmp.eq.s32.totalorder %s32, 0
      %p80 = por %p78, %p79
      %s82 = sadd.s32 %s81, 1
      %p85 = scmp.eq.s32.totalorder %s26, 1
      %p86 = scmp.ne.s32.totalorder %s81, %s83
      %p87 = scmp.eq.s32.totalorder %s26, 0
      %p88 = por %p86, %p87
      %p89 = scmp.ne.s32.totalorder %s81, %s83
      %p90 = scmp.eq.s32.totalorder %s31, 1
      %p91 = por %p89, %p90
      %p92 = scmp.ne.s32.totalorder %s83, %s84
      %p93 = scmp.eq.s32.totalorder %s31, 0
      %p94 = por %p92, %p93
      %p95 = scmp.ne.s32.totalorder %s83, %s84
      %p96 = scmp.eq.s32.totalorder %s32, 1
      %p97 = por %p95, %p96
      %p99 = scmp.ne.s32.totalorder %s84, %s98
      %p100 = scmp.eq.s32.totalorder %s32, 0
      %p101 = por %p99, %p100
      %s103 = sadd.s32 %s102, 1
      %p106 = scmp.eq.s32.totalorder %s26, 1
      %p107 = scmp.ne.s32.totalorder %s102, %s104
      %p108 = scmp.eq.s32.totalorder %s26, 0
      %p109 = por %p107, %p108
      %p110 = scmp.ne.s32.totalorder %s102, %s104
      %p111 = scmp.eq.s32.totalorder %s31, 1
      %p112 = por %p110, %p111
      %p113 = scmp.ne.s32.totalorder %s104, %s105
      %p114 = scmp.eq.s32.totalorder %s31, 0
      %p115 = por %p113, %p114
      %p116 = scmp.ne.s32.totalorder %s104, %s105
      %p117 = scmp.eq.s32.totalorder %s32, 1
      %p118 = por %p116, %p117
      %p120 = scmp.ne.s32.totalorder %s105, %s119
      %p121 = scmp.eq.s32.totalorder %s32, 0
      %p122 = por %p120, %p121
      %s124 = sadd.s32 %s123, 1
      %p127 = scmp.eq.s32.totalorder %s26, 1
      %p128 = scmp.ne.s32.totalorder %s123, %s125
      %p129 = scmp.eq.s32.totalorder %s26, 0
      %p130 = por %p128, %p129
      %p131 = scmp.ne.s32.totalorder %s123, %s125
      %p132 = scmp.eq.s32.totalorder %s31, 1
      %p133 = por %p131, %p132
      %p134 = scmp.ne.s32.totalorder %s125, %s126
      %p135 = scmp.eq.s32.totalorder %s31, 0
      %p136 = por %p134, %p135
      %p137 = scmp.ne.s32.totalorder %s125, %s126
      %p138 = scmp.eq.s32.totalorder %s32, 1
      %p139 = por %p137, %p138
      %p141 = scmp.ne.s32.totalorder %s126, %s140
      %p142 = scmp.eq.s32.totalorder %s32, 0
      %p143 = por %p141, %p142
      %s145 = sadd.s32 %s144, 1
      %p148 = scmp.eq.s32.totalorder %s26, 1
      %p149 = scmp.ne.s32.totalorder %s144, %s146
      %p150 = scmp.eq.s32.totalorder %s26, 0
      %p151 = por %p149, %p150
      %p152 = scmp.ne.s32.totalorder %s144, %s146
      %p153 = scmp.eq.s32.totalorder %s31, 1
      %p154 = por %p152, %p153
      %p155 = scmp.ne.s32.totalorder %s146, %s147
      %p156 = scmp.eq.s32.totalorder %s31, 0
      %p157 = por %p155, %p156
      %p158 = scmp.ne.s32.totalorder %s146, %s147
      %p159 = scmp.eq.s32.totalorder %s32, 1
      %p160 = por %p158, %p159
      %p162 = scmp.ne.s32.totalorder %s147, %s161
      %p163 = scmp.eq.s32.totalorder %s32, 0
      %p164 = por %p162, %p163
      %s166 = sadd.s32 %s165, 1
      %p169 = scmp.eq.s32.totalorder %s26, 1
      %p170 = scmp.ne.s32.totalorder %s165, %s167
      %p171 = scmp.eq.s32.totalorder %s26, 0
      %p172 = por %p170, %p171
      %p173 = scmp.ne.s32.totalorder %s165, %s167
      %p174 = scmp.eq.s32.totalorder %s31, 1
      %p175 = por %p173, %p174
      %p176 = scmp.ne.s32.totalorder %s167, %s168
      %p177 = scmp.eq.s32.totalorder %s31, 0
      %p178 = por %p176, %p177
      %p179 = scmp.ne.s32.totalorder %s167, %s168
      %p180 = scmp.eq.s32.totalorder %s32, 1
      %p181 = por %p179, %p180
      %p183 = scmp.ne.s32.totalorder %s168, %s182
      %p184 = scmp.eq.s32.totalorder %s32, 0
      %p185 = por %p183, %p184
      %s187 = sadd.s32 %s186, 1
      %p190 = scmp.eq.s32.totalorder %s26, 1
      %p191 = scmp.ne.s32.totalorder %s186, %s188
      %p192 = scmp.eq.s32.totalorder %s26, 0
      %p193 = por %p191, %p192
      %p194 = scmp.ne.s32.totalorder %s186, %s188
      %p195 = scmp.eq.s32.totalorder %s31, 1
      %p196 = por %p194, %p195
      %p197 = scmp.ne.s32.totalorder %s188, %s189
      %p198 = scmp.eq.s32.totalorder %s31, 0
      %p199 = por %p197, %p198
      %p200 = scmp.ne.s32.totalorder %s188, %s189
      %p201 = scmp.eq.s32.totalorder %s32, 1
      %p202 = por %p200, %p201
      %p204 = scmp.ne.s32.totalorder %s189, %s203
      %p205 = scmp.eq.s32.totalorder %s32, 0
      %p206 = por %p204, %p205
      %s208 = sadd.s32 %s207, 1
      %p211 = scmp.eq.s32.totalorder %s26, 1
      %p212 = scmp.ne.s32.totalorder %s207, %s209
      %p213 = scmp.eq.s32.totalorder %s26, 0
      %p214 = por %p212, %p213
      %p215 = scmp.ne.s32.totalorder %s207, %s209
      %p216 = scmp.eq.s32.totalorder %s31, 1
      %p217 = por %p215, %p216
      %p218 = scmp.ne.s32.totalorder %s209, %s210
      %p219 = scmp.eq.s32.totalorder %s31, 0
      %p220 = por %p218, %p219
      %p221 = scmp.ne.s32.totalorder %s209, %s210
      %p222 = scmp.eq.s32.totalorder %s32, 1
      %p223 = por %p221, %p222
      %p225 = scmp.ne.s32.totalorder %s210, %s224
      %p226 = scmp.eq.s32.totalorder %s32, 0
      %p227 = por %p225, %p226
      %s229 = sadd.s32 %s228, 1
      %p232 = scmp.eq.s32.totalorder %s26, 1
      %p233 = scmp.ne.s32.totalorder %s228, %s230
      %p234 = scmp.eq.s32.totalorder %s26, 0
      %p235 = por %p233, %p234
      %p236 = scmp.ne.s32.totalorder %s228, %s230
      %p237 = scmp.eq.s32.totalorder %s31, 1
      %p238 = por %p236, %p237
      %p239 = scmp.ne.s32.totalorder %s230, %s231
      %p240 = scmp.eq.s32.totalorder %s31, 0
      %p241 = por %p239, %p240
      %p242 = scmp.ne.s32.totalorder %s230, %s231
      %p243 = scmp.eq.s32.totalorder %s32, 1
      %p244 = por %p242, %p243
      %p246 = scmp.ne.s32.totalorder %s231, %s245
      %p247 = scmp.eq.s32.totalorder %s32, 0
      %p248 = por %p246, %p247
      %s250 = sadd.s32 %s249, 1
      %p253 = scmp.eq.s32.totalorder %s26, 1
      %p254 = scmp.ne.s32.totalorder %s249, %s251
      %p255 = scmp.eq.s32.totalorder %s26, 0
      %p256 = por %p254, %p255
      %p257 = scmp.ne.s32.totalorder %s249, %s251
      %p258 = scmp.eq.s32.totalorder %s31, 1
      %p259 = por %p257, %p258
      %p260 = scmp.ne.s32.totalorder %s251, %s252
      %p261 = scmp.eq.s32.totalorder %s31, 0
      %p262 = por %p260, %p261
      %p263 = scmp.ne.s32.totalorder %s251, %s252
      %p264 = scmp.eq.s32.totalorder %s32, 1
      %p265 = por %p263, %p264
      %p267 = scmp.ne.s32.totalorder %s252, %s266
      %p268 = scmp.eq.s32.totalorder %s32, 0
      %p269 = por %p267, %p268
      %s271 = sadd.s32 %s270, 1
      %p274 = scmp.eq.s32.totalorder %s26, 1
      %p275 = scmp.ne.s32.totalorder %s270, %s272
      %p276 = scmp.eq.s32.totalorder %s26, 0
      %p277 = por %p275, %p276
      %p278 = scmp.ne.s32.totalorder %s270, %s272
      %p279 = scmp.eq.s32.totalorder %s31, 1
      %p280 = por %p278, %p279
      %p281 = scmp.ne.s32.totalorder %s272, %s273
      %p282 = scmp.eq.s32.totalorder %s31, 0
      %p283 = por %p281, %p282
      %p284 = scmp.ne.s32.totalorder %s272, %s273
      %p285 = scmp.eq.s32.totalorder %s32, 1
      %p286 = por %p284, %p285
      %p288 = scmp.ne.s32.totalorder %s273, %s287
      %p289 = scmp.eq.s32.totalorder %s32, 0
      %p290 = por %p288, %p289
      %s292 = sadd.s32 %s291, 1
      %p295 = scmp.eq.s32.totalorder %s26, 1
      %p296 = scmp.ne.s32.totalorder %s291, %s293
      %p297 = scmp.eq.s32.totalorder %s26, 0
      %p298 = por %p296, %p297
      %p299 = scmp.ne.s32.totalorder %s291, %s293
      %p300 = scmp.eq.s32.totalorder %s31, 1
      %p301 = por %p299, %p300
      %p302 = scmp.ne.s32.totalorder %s293, %s294
      %p303 = scmp.eq.s32.totalorder %s31, 0
      %p304 = por %p302, %p303
      %p305 = scmp.ne.s32.totalorder %s293, %s294
      %p306 = scmp.eq.s32.totalorder %s32, 1
      %p307 = por %p305, %p306
      %p309 = scmp.ne.s32.totalorder %s294, %s308
      %p310 = scmp.eq.s32.totalorder %s32, 0
      %p311 = por %p309, %p310
      %s313 = sadd.s32 %s312, 1
      %p316 = scmp.eq.s32.totalorder %s26, 1
      %p317 = scmp.ne.s32.totalorder %s312, %s314
      %p318 = scmp.eq.s32.totalorder %s26, 0
      %p319 = por %p317, %p318
      %p320 = scmp.ne.s32.totalorder %s312, %s314
      %p321 = scmp.eq.s32.totalorder %s31, 1
      %p322 = por %p320, %p321
      %p323 = scmp.ne.s32.totalorder %s314, %s315
      %p324 = scmp.eq.s32.totalorder %s31, 0
      %p325 = por %p323, %p324
      %p326 = scmp.ne.s32.totalorder %s314, %s315
      %p327 = scmp.eq.s32.totalorder %s32, 1
      %p328 = por %p326, %p327
      %p330 = scmp.ne.s32.totalorder %s315, %s329
      %p331 = scmp.eq.s32.totalorder %s32, 0
      %p332 = por %p330, %p331
      %s334 = sadd.s32 %s333, 1
      %p337 = scmp.eq.s32.totalorder %s26, 1
      %p338 = scmp.ne.s32.totalorder %s333, %s335
      %p339 = scmp.eq.s32.totalorder %s26, 0
      %p340 = por %p338, %p339
      %p341 = scmp.ne.s32.totalorder %s333, %s335
      %p342 = scmp.eq.s32.totalorder %s31, 1
      %p343 = por %p341, %p342
      %p344 = scmp.ne.s32.totalorder %s335, %s336
      %p345 = scmp.eq.s32.totalorder %s31, 0
      %p346 = por %p344, %p345
      %p347 = scmp.ne.s32.totalorder %s335, %s336
      %p348 = scmp.eq.s32.totalorder %s32, 1
      %p349 = por %p347, %p348
      %p351 = scmp.ne.s32.totalorder %s336, %s350
      %p352 = scmp.eq.s32.totalorder %s32, 0
      %p353 = por %p351, %p352
      %s355 = sadd.s32 %s354, 1
      %p358 = scmp.eq.s32.totalorder %s26, 1
      %p359 = scmp.ne.s32.totalorder %s354, %s356
      %p360 = scmp.eq.s32.totalorder %s26, 0
      %p361 = por %p359, %p360
      %p362 = scmp.ne.s32.totalorder %s354, %s356
      %p363 = scmp.eq.s32.totalorder %s31, 1
      %p364 = por %p362, %p363
      %p365 = scmp.ne.s32.totalorder %s356, %s357
      %p366 = scmp.eq.s32.totalorder %s31, 0
      %p367 = por %p365, %p366
      %p368 = scmp.ne.s32.totalorder %s356, %s357
      %p369 = scmp.eq.s32.totalorder %s32, 1
      %p370 = por %p368, %p369
      %p372 = scmp.ne.s32.totalorder %s357, %s371
      %p373 = scmp.eq.s32.totalorder %s32, 0
      %p374 = por %p372, %p373
      %s376 = sadd.s32 %s375, 1
      %p379 = scmp.eq.s32.totalorder %s26, 1
      %p380 = scmp.ne.s32.totalorder %s375, %s377
      %p381 = scmp.eq.s32.totalorder %s26, 0
      %p382 = por %p380, %p381
      %p383 = scmp.ne.s32.totalorder %s375, %s377
      %p384 = scmp.eq.s32.totalorder %s31, 1
      %p385 = por %p383, %p384
      %p386 = scmp.ne.s32.totalorder %s377, %s378
      %p387 = scmp.eq.s32.totalorder %s31, 0
      %p388 = por %p386, %p387
      %p389 = scmp.ne.s32.totalorder %s377, %s378
      %p390 = scmp.eq.s32.totalorder %s32, 1
      %p391 = por %p389, %p390
      %p393 = scmp.ne.s32.totalorder %s378, %s392
      %p394 = scmp.eq.s32.totalorder %s32, 0
      %p395 = por %p393, %p394
      %s396 = ssub.s32 %s26, %s33
      %p397 = scmp.eq.s32.totalorder %s396, 0
      %s399 = sadd.s32 %s398, 1
      %s400 = scalar_select %p397, %s398, %s399
      %p403 = pneg %p397
      %p404 = scmp.eq.s32.totalorder %s26, 1
      %p405 = por %p403, %p404
      %p406 = scmp.ne.s32.totalorder %s398, %s401
      %p407 = scmp.eq.s32.totalorder %s26, 0
      %p408 = por %p406, %p407
      %p409 = scmp.ne.s32.totalorder %s398, %s401
      %p410 = scmp.eq.s32.totalorder %s31, 1
      %p411 = por %p409, %p410
      %p412 = scmp.ne.s32.totalorder %s401, %s402
      %p413 = scmp.eq.s32.totalorder %s31, 0
      %p414 = por %p412, %p413
      %p415 = scmp.ne.s32.totalorder %s401, %s402
      %p416 = scmp.eq.s32.totalorder %s32, 1
      %p417 = por %p415, %p416
      %p419 = scmp.ne.s32.totalorder %s402, %s418
      %p420 = scmp.eq.s32.totalorder %s32, 0
      %p421 = por %p419, %p420
      %p422 = scmp.le.s32.totalorder 1, %s26
      %p423 = scmp.lt.s32.totalorder %s26, 3
      %p424 = pnand %p422, %p423
      %p425 = pneg %p424
      // Predicated region
      $region9: #{tpu_custom_call.1} parent=5 // pred_check
        _
      $region10: #{tpu_custom_call.1} parent=5 // pred_check_branch
        %427 = sbr.rel (%p424) target = $region12
      $region11: #{tpu_custom_call.1} parent=5 // pred_region
        %s428 = ssub.s32 %s26, 1
        // Predicated region
        $region13: #{tpu_custom_call.1} parent=11 // pred_check
          %p429 = pneg %p73
        $region14: #{tpu_custom_call.1} parent=11 // pred_check_branch
          %431 = sbr.rel (%p429) target = $region16
        $region15: #{tpu_custom_call.1} parent=11 // pred_region
          _
        $region16: #{tpu_custom_call.1} parent=11 // pred_fallthru
          _
        // Predicated region
        $region17: #{tpu_custom_call.1} parent=11 // pred_check
          %p432 = pneg %p94
        $region18: #{tpu_custom_call.1} parent=11 // pred_check_branch
          %434 = sbr.rel (%p432) target = $region20
        $region19: #{tpu_custom_call.1} parent=11 // pred_region
          _
        $region20: #{tpu_custom_call.1} parent=11 // pred_fallthru
          _
        // Predicated region
        $region21: #{tpu_custom_call.1} parent=11 // pred_check
          %p435 = pneg %p115
        $region22: #{tpu_custom_call.1} parent=11 // pred_check_branch
          %437 = sbr.rel (%p435) target = $region24
        $region23: #{tpu_custom_call.1} parent=11 // pred_region
          _
        $region24: #{tpu_custom_call.1} parent=11 // pred_fallthru
          _
        // Predicated region
        $region25: #{tpu_custom_call.1} parent=11 // pred_check
          %p438 = pneg %p136
        $region26: #{tpu_custom_call.1} parent=11 // pred_check_branch
          %440 = sbr.rel (%p438) target = $region28
        $region27: #{tpu_custom_call.1} parent=11 // pred_region
          _
        $region28: #{tpu_custom_call.1} parent=11 // pred_fallthru
          _
        // Predicated region
        $region29: #{tpu_custom_call.1} parent=11 // pred_check
          %p441 = pneg %p157
        $region30: #{tpu_custom_call.1} parent=11 // pred_check_branch
          %443 = sbr.rel (%p441) target = $region32
        $region31: #{tpu_custom_call.1} parent=11 // pred_region
          _
        $region32: #{tpu_custom_call.1} parent=11 // pred_fallthru
          _
        // Predicated region
        $region33: #{tpu_custom_call.1} parent=11 // pred_check
          %p444 = pneg %p178
        $region34: #{tpu_custom_call.1} parent=11 // pred_check_branch
          %446 = sbr.rel (%p444) target = $region36
        $region35: #{tpu_custom_call.1} parent=11 // pred_region
          _
        $region36: #{tpu_custom_call.1} parent=11 // pred_fallthru
          _
        // Predicated region
        $region37: #{tpu_custom_call.1} parent=11 // pred_check
          %p447 = pneg %p199
        $region38: #{tpu_custom_call.1} parent=11 // pred_check_branch
          %449 = sbr.rel (%p447) target = $region40
        $region39: #{tpu_custom_call.1} parent=11 // pred_region
          _
        $region40: #{tpu_custom_call.1} parent=11 // pred_fallthru
          _
        // Predicated region
        $region41: #{tpu_custom_call.1} parent=11 // pred_check
          %p450 = pneg %p220
        $region42: #{tpu_custom_call.1} parent=11 // pred_check_branch
          %452 = sbr.rel (%p450) target = $region44
        $region43: #{tpu_custom_call.1} parent=11 // pred_region
          _
        $region44: #{tpu_custom_call.1} parent=11 // pred_fallthru
          _
        // Predicated region
        $region45: #{tpu_custom_call.1} parent=11 // pred_check
          %p453 = pneg %p241
        $region46: #{tpu_custom_call.1} parent=11 // pred_check_branch
          %455 = sbr.rel (%p453) target = $region48
        $region47: #{tpu_custom_call.1} parent=11 // pred_region
          _
        $region48: #{tpu_custom_call.1} parent=11 // pred_fallthru
          _
        // Predicated region
        $region49: #{tpu_custom_call.1} parent=11 // pred_check
          %p456 = pneg %p262
        $region50: #{tpu_custom_call.1} parent=11 // pred_check_branch
          %458 = sbr.rel (%p456) target = $region52
        $region51: #{tpu_custom_call.1} parent=11 // pred_region
          _
        $region52: #{tpu_custom_call.1} parent=11 // pred_fallthru
          _
        // Predicated region
        $region53: #{tpu_custom_call.1} parent=11 // pred_check
          %p459 = pneg %p283
        $region54: #{tpu_custom_call.1} parent=11 // pred_check_branch
          %461 = sbr.rel (%p459) target = $region56
        $region55: #{tpu_custom_call.1} parent=11 // pred_region
          _
        $region56: #{tpu_custom_call.1} parent=11 // pred_fallthru
          _
        // Predicated region
        $region57: #{tpu_custom_call.1} parent=11 // pred_check
          %p462 = pneg %p304
        $region58: #{tpu_custom_call.1} parent=11 // pred_check_branch
          %464 = sbr.rel (%p462) target = $region60
        $region59: #{tpu_custom_call.1} parent=11 // pred_region
          _
        $region60: #{tpu_custom_call.1} parent=11 // pred_fallthru
          _
        // Predicated region
        $region61: #{tpu_custom_call.1} parent=11 // pred_check
          %p465 = pneg %p325
        $region62: #{tpu_custom_call.1} parent=11 // pred_check_branch
          %467 = sbr.rel (%p465) target = $region64
        $region63: #{tpu_custom_call.1} parent=11 // pred_region
          _
        $region64: #{tpu_custom_call.1} parent=11 // pred_fallthru
          _
        // Predicated region
        $region65: #{tpu_custom_call.1} parent=11 // pred_check
          %p468 = pneg %p346
        $region66: #{tpu_custom_call.1} parent=11 // pred_check_branch
          %470 = sbr.rel (%p468) target = $region68
        $region67: #{tpu_custom_call.1} parent=11 // pred_region
          _
        $region68: #{tpu_custom_call.1} parent=11 // pred_fallthru
          _
        // Predicated region
        $region69: #{tpu_custom_call.1} parent=11 // pred_check
          %p471 = pneg %p367
        $region70: #{tpu_custom_call.1} parent=11 // pred_check_branch
          %473 = sbr.rel (%p471) target = $region72
        $region71: #{tpu_custom_call.1} parent=11 // pred_region
          _
        $region72: #{tpu_custom_call.1} parent=11 // pred_fallthru
          _
        // Predicated region
        $region73: #{tpu_custom_call.1} parent=11 // pred_check
          %p474 = pneg %p388
        $region74: #{tpu_custom_call.1} parent=11 // pred_check_branch
          %476 = sbr.rel (%p474) target = $region76
        $region75: #{tpu_custom_call.1} parent=11 // pred_region
          _
        $region76: #{tpu_custom_call.1} parent=11 // pred_fallthru
          _
      $region12: #{tpu_custom_call.1} parent=5 // pred_fallthru
        _
      %p477 = scmp.lt.s32.totalorder %s26, 2
      // Predicated region
      $region77: #{tpu_custom_call.1} parent=5 // pred_check
        %p478 = pneg %p477
      $region78: #{tpu_custom_call.1} parent=5 // pred_check_branch
        %480 = sbr.rel (%p478) target = $region80
      $region79: #{tpu_custom_call.1} parent=5 // pred_region
        // Predicated region
        $region81: #{tpu_custom_call.1} parent=79 // pred_check
          %p481 = pneg %p46
        $region82: #{tpu_custom_call.1} parent=79 // pred_check_branch
          %483 = sbr.rel (%p481) target = $region84
        $region83: #{tpu_custom_call.1} parent=79 // pred_region
          %p484 = scmp.lt.s32.totalorder %s26, 1
          %s485 = scalar_select %p484, %s26, 1
          %s486 = smul.addr %s485, 8
          %s487 = scalar_lea.vmem %s0, %s486
        $region84: #{tpu_custom_call.1} parent=79 // pred_fallthru
          _
      $region80: #{tpu_custom_call.1} parent=5 // pred_fallthru
        _
      %p488 = scmp.le.s32.totalorder 1, %s26
      %p489 = scmp.lt.s32.totalorder %s26, 3
      %p490 = pnand %p488, %p489
      %p491 = pneg %p490
      // Predicated region
      $region85: #{tpu_custom_call.1} parent=5 // pred_check
        _
      $region86: #{tpu_custom_call.1} parent=5 // pred_check_branch
        %493 = sbr.rel (%p490) target = $region88
      $region87: #{tpu_custom_call.1} parent=5 // pred_region
        %s494 = ssub.s32 %s26, 1
        %p495 = scmp.lt.s32.totalorder %s31, 1
        %s496 = scalar_select %p495, %s31, 1
        %s497 = smul.addr %s496, 8
        %s498 = scalar_lea.vmem %s0, %s497
        %p499 = pneg %p52
        %p500 = pneg %p49
        %p501 = pneg %p73
        %p502 = pneg %p70
        %p503 = pneg %p94
        %p504 = pneg %p91
        %p505 = pneg %p115
        %p506 = pneg %p112
        %p507 = pneg %p136
        %p508 = pneg %p133
        %p509 = pneg %p157
        %p510 = pneg %p154
        %p511 = pneg %p178
        %p512 = pneg %p175
        %p513 = pneg %p199
        %p514 = pneg %p196
        %p515 = pneg %p220
        %p516 = pneg %p217
        %p517 = pneg %p241
        %p518 = pneg %p238
        %p519 = pneg %p262
        %p520 = pneg %p259
        %p521 = pneg %p283
        %p522 = pneg %p280
        %p523 = pneg %p304
        %p524 = pneg %p301
        %p525 = pneg %p325
        %p526 = pneg %p322
        %p527 = pneg %p346
        %p528 = pneg %p343
        %p529 = pneg %p367
        %p530 = pneg %p364
        %p531 = pneg %p388
        %p532 = pneg %p385
        %p533 = pneg %p414
        %p534 = pneg %p411
        %s535 = sand.u32 %s401, 1
        %s536 = scalar_lea.sflag [#allocation3], %s535
        %s537 = sand.u32 %s401, 1
        %s538 = smul.addr %s537, 8
        %s539 = scalar_lea.vmem [#allocation2], %s538
        %p540 = scmp.lt.s32.totalorder %s31, 1
        %s541 = scalar_select %p540, %s31, 1
        %s542 = smul.addr %s541, 8
        %s543 = scalar_lea.vmem %s0, %s542
        %v544 = vld [vmem:[%s543] sm:$0xff]
        %v545 = vld [vmem:[%s1] sm:$0xff]
        %v546 = vld [vmem:[%s1 + $0x8] sm:$0xff]
        %v547 = vld [vmem:[%s1 + $0x10] sm:$0xff]
        %v548 = vld [vmem:[%s1 + $0x18] sm:$0xff]
        %v549 = vld [vmem:[%s4] sm:$0x1]
        %v551 = vlaneseq
        %v552 = vshrl.u32 %v551, 7
        %v553 = vsub.s32 0, %v552
        %v554 = vrot.slane %v549, %v553
        %vm556 = vcmask 261120
        %v558 = vsel %vm556, %v544, 0
        %560 = vmatprep.subr.mxu0 0.0
        %561 = vmatpush1.msra.mxu0 %v545
        %562 = vmatprep.subr.mxu0 0.0
        %563 = vmatpush1.msra.mxu0 %v546
        %564 = vmatprep.subr.mxu0 0.0
        %565 = vmatpush1.msra.mxu0 %v547
        %566 = vmatprep.subr.mxu0 0.0
        %567 = vmatpush1.msra.mxu0 %v548
        %568 = vmatprep.subr.mxu0 0.0
        %569 = vmatpush1.msra.mxu0 0.0
        %570 = vmatprep.subr.mxu0 0.0
        %571 = vmatpush1.msra.mxu0 0.0
        %572 = vmatprep.subr.mxu0 0.0
        %573 = vmatpush1.msra.mxu0 0.0
        %574 = vmatprep.subr.mxu0 0.0
        %575 = vmatpush1.msra.mxu0 0.0
        %576 = vmatprep.subr.mxu0 0.0
        %577 = vmatpush1.msra.mxu0 0.0
        %578 = vmatprep.subr.mxu0 0.0
        %579 = vmatpush1.msra.mxu0 0.0
        %580 = vmatprep.subr.mxu0 0.0
        %581 = vmatpush1.msra.mxu0 0.0
        %582 = vmatprep.subr.mxu0 0.0
        %583 = vmatpush1.msra.mxu0 0.0
        %584 = vmatprep.subr.mxu0 0.0
        %585 = vmatpush1.msra.mxu0 0.0
        %586 = vmatprep.subr.mxu0 0.0
        %587 = vmatpush1.msra.mxu0 0.0
        %588 = vmatprep.subr.mxu0 0.0
        %589 = vmatpush1.msra.mxu0 0.0
        %590 = vmatprep.subr.mxu0 0.0
        %591 = vmatpush1.msra.mxu0 0.0
        %592 = vmatprep.subr.mxu0 0.0
        %593 = vmatpush1.msra.mxu0 0.0
        %594 = vmatprep.subr.mxu0 0.0
        %595 = vmatpush1.msra.mxu0 0.0
        %596 = vmatprep.subr.mxu0 0.0
        %597 = vmatpush1.msra.mxu0 0.0
        %598 = vmatprep.subr.mxu0 0.0
        %599 = vmatpush1.msra.mxu0 0.0
        %600 = vmatprep.subr.mxu0 0.0
        %601 = vmatpush1.msra.mxu0 0.0
        %602 = vmatprep.subr.mxu0 0.0
        %603 = vmatpush1.msra.mxu0 0.0
        %604 = vmatprep.subr.mxu0 0.0
        %605 = vmatpush1.msra.mxu0 0.0
        %606 = vmatprep.subr.mxu0 0.0
        %607 = vmatpush1.msra.mxu0 0.0
        %608 = vmatprep.subr.mxu0 0.0
        %609 = vmatpush1.msra.mxu0 0.0
        %610 = vmatprep.subr.mxu0 0.0
        %611 = vmatpush1.msra.mxu0 0.0
        %612 = vmatprep.subr.mxu0 0.0
        %613 = vmatpush1.msra.mxu0 0.0
        %614 = vmatprep.subr.mxu0 0.0
        %615 = vmatpush1.msra.mxu0 0.0
        %616 = vmatprep.subr.mxu0 0.0
        %617 = vmatpush1.msra.mxu0 0.0
        %618 = vmatprep.subr.mxu0 0.0
        %619 = vmatpush1.msra.mxu0 0.0
        %620 = vmatprep.subr.mxu0 0.0
        %621 = vmatpush1.msra.mxu0 0.0
        %622 = vmatprep.subr.mxu0 0.0
        %623 = vmatpush1.msra.mxu0 0.0
        %624 = vmatprep.mubr.f32.mxu0 0.0
        %625 = vmatmul.mubr.f32.gmra.mrb[0].mxu0 %v558
        %v626 = vpop.f32.mrb[0].mxu0
        %v627 = vadd.f32 %v554, %v626
        %v628 = vpop.f32.mrb[0].mxu0
        %629 = vdwg.mxu0
        %v630 = vld [vmem:[%s2] sm:$0xff]
        %v631 = vld [vmem:[%s2 + $0x8] sm:$0xff]
        %v632 = vld [vmem:[%s2 + $0x10] sm:$0xff]
        %v633 = vld [vmem:[%s2 + $0x18] sm:$0xff]
        %v634 = vld [vmem:[%s5] sm:$0x1]
        %v636 = vlaneseq
        %v637 = vshrl.u32 %v636, 7
        %v638 = vsub.s32 0, %v637
        %v639 = vrot.slane %v634, %v638
        %641 = vmatprep.subr.mxu0 0.0
        %642 = vmatpush1.msra.mxu0 %v630
        %643 = vmatprep.subr.mxu0 0.0
        %644 = vmatpush1.msra.mxu0 %v631
        %645 = vmatprep.subr.mxu0 0.0
        %646 = vmatpush1.msra.mxu0 %v632
        %647 = vmatprep.subr.mxu0 0.0
        %648 = vmatpush1.msra.mxu0 %v633
        %649 = vmatprep.subr.mxu0 0.0
        %650 = vmatpush1.msra.mxu0 0.0
        %651 = vmatprep.subr.mxu0 0.0
        %652 = vmatpush1.msra.mxu0 0.0
        %653 = vmatprep.subr.mxu0 0.0
        %654 = vmatpush1.msra.mxu0 0.0
        %655 = vmatprep.subr.mxu0 0.0
        %656 = vmatpush1.msra.mxu0 0.0
        %657 = vmatprep.subr.mxu0 0.0
        %658 = vmatpush1.msra.mxu0 0.0
        %659 = vmatprep.subr.mxu0 0.0
        %660 = vmatpush1.msra.mxu0 0.0
        %661 = vmatprep.subr.mxu0 0.0
        %662 = vmatpush1.msra.mxu0 0.0
        %663 = vmatprep.subr.mxu0 0.0
        %664 = vmatpush1.msra.mxu0 0.0
        %665 = vmatprep.subr.mxu0 0.0
        %666 = vmatpush1.msra.mxu0 0.0
        %667 = vmatprep.subr.mxu0 0.0
        %668 = vmatpush1.msra.mxu0 0.0
        %669 = vmatprep.subr.mxu0 0.0
        %670 = vmatpush1.msra.mxu0 0.0
        %671 = vmatprep.subr.mxu0 0.0
        %672 = vmatpush1.msra.mxu0 0.0
        %673 = vmatprep.subr.mxu0 0.0
        %674 = vmatpush1.msra.mxu0 0.0
        %675 = vmatprep.subr.mxu0 0.0
        %676 = vmatpush1.msra.mxu0 0.0
        %677 = vmatprep.subr.mxu0 0.0
        %678 = vmatpush1.msra.mxu0 0.0
        %679 = vmatprep.subr.mxu0 0.0
        %680 = vmatpush1.msra.mxu0 0.0
        %681 = vmatprep.subr.mxu0 0.0
        %682 = vmatpush1.msra.mxu0 0.0
        %683 = vmatprep.subr.mxu0 0.0
        %684 = vmatpush1.msra.mxu0 0.0
        %685 = vmatprep.subr.mxu0 0.0
        %686 = vmatpush1.msra.mxu0 0.0
        %687 = vmatprep.subr.mxu0 0.0
        %688 = vmatpush1.msra.mxu0 0.0
        %689 = vmatprep.subr.mxu0 0.0
        %690 = vmatpush1.msra.mxu0 0.0
        %691 = vmatprep.subr.mxu0 0.0
        %692 = vmatpush1.msra.mxu0 0.0
        %693 = vmatprep.subr.mxu0 0.0
        %694 = vmatpush1.msra.mxu0 0.0
        %695 = vmatprep.subr.mxu0 0.0
        %696 = vmatpush1.msra.mxu0 0.0
        %697 = vmatprep.subr.mxu0 0.0
        %698 = vmatpush1.msra.mxu0 0.0
        %699 = vmatprep.subr.mxu0 0.0
        %700 = vmatpush1.msra.mxu0 0.0
        %701 = vmatprep.subr.mxu0 0.0
        %702 = vmatpush1.msra.mxu0 0.0
        %703 = vmatprep.subr.mxu0 0.0
        %704 = vmatpush1.msra.mxu0 0.0
        %705 = vmatprep.mubr.f32.mxu0 0.0
        %706 = vmatmul.mubr.f32.gmra.mrb[0].mxu0 %v558
        %v707 = vpop.f32.mrb[0].mxu0
        %v708 = vadd.f32 %v639, %v707
        %v709 = vpop.f32.mrb[0].mxu0
        %710 = vdwg.mxu0
        %v711 = vld [vmem:[%s3] sm:$0xff]
        %v712 = vld [vmem:[%s3 + $0x8] sm:$0xff]
        %v713 = vld [vmem:[%s3 + $0x10] sm:$0xff]
        %v714 = vld [vmem:[%s3 + $0x18] sm:$0xff]
        %v715 = vld [vmem:[%s6] sm:$0x1]
        %v717 = vlaneseq
        %v718 = vshrl.u32 %v717, 7
        %v719 = vsub.s32 0, %v718
        %v720 = vrot.slane %v715, %v719
        %722 = vmatprep.subr.mxu0 0.0
        %723 = vmatpush1.msra.mxu0 %v711
        %724 = vmatprep.subr.mxu0 0.0
        %725 = vmatpush1.msra.mxu0 %v712
        %726 = vmatprep.subr.mxu0 0.0
        %727 = vmatpush1.msra.mxu0 %v713
        %728 = vmatprep.subr.mxu0 0.0
        %729 = vmatpush1.msra.mxu0 %v714
        %730 = vmatprep.subr.mxu0 0.0
        %731 = vmatpush1.msra.mxu0 0.0
        %732 = vmatprep.subr.mxu0 0.0
        %733 = vmatpush1.msra.mxu0 0.0
        %734 = vmatprep.subr.mxu0 0.0
        %735 = vmatpush1.msra.mxu0 0.0
        %736 = vmatprep.subr.mxu0 0.0
        %737 = vmatpush1.msra.mxu0 0.0
        %738 = vmatprep.subr.mxu0 0.0
        %739 = vmatpush1.msra.mxu0 0.0
        %740 = vmatprep.subr.mxu0 0.0
        %741 = vmatpush1.msra.mxu0 0.0
        %742 = vmatprep.subr.mxu0 0.0
        %743 = vmatpush1.msra.mxu0 0.0
        %744 = vmatprep.subr.mxu0 0.0
        %745 = vmatpush1.msra.mxu0 0.0
        %746 = vmatprep.subr.mxu0 0.0
        %747 = vmatpush1.msra.mxu0 0.0
        %748 = vmatprep.subr.mxu0 0.0
        %749 = vmatpush1.msra.mxu0 0.0
        %750 = vmatprep.subr.mxu0 0.0
        %751 = vmatpush1.msra.mxu0 0.0
        %752 = vmatprep.subr.mxu0 0.0
        %753 = vmatpush1.msra.mxu0 0.0
        %754 = vmatprep.subr.mxu0 0.0
        %755 = vmatpush1.msra.mxu0 0.0
        %756 = vmatprep.subr.mxu0 0.0
        %757 = vmatpush1.msra.mxu0 0.0
        %758 = vmatprep.subr.mxu0 0.0
        %759 = vmatpush1.msra.mxu0 0.0
        %760 = vmatprep.subr.mxu0 0.0
        %761 = vmatpush1.msra.mxu0 0.0
        %762 = vmatprep.subr.mxu0 0.0
        %763 = vmatpush1.msra.mxu0 0.0
        %764 = vmatprep.subr.mxu0 0.0
        %765 = vmatpush1.msra.mxu0 0.0
        %766 = vmatprep.subr.mxu0 0.0
        %767 = vmatpush1.msra.mxu0 0.0
        %768 = vmatprep.subr.mxu0 0.0
        %769 = vmatpush1.msra.mxu0 0.0
        %770 = vmatprep.subr.mxu0 0.0
        %771 = vmatpush1.msra.mxu0 0.0
        %772 = vmatprep.subr.mxu0 0.0
        %773 = vmatpush1.msra.mxu0 0.0
        %774 = vmatprep.subr.mxu0 0.0
        %775 = vmatpush1.msra.mxu0 0.0
        %776 = vmatprep.subr.mxu0 0.0
        %777 = vmatpush1.msra.mxu0 0.0
        %778 = vmatprep.subr.mxu0 0.0
        %779 = vmatpush1.msra.mxu0 0.0
        %780 = vmatprep.subr.mxu0 0.0
        %781 = vmatpush1.msra.mxu0 0.0
        %782 = vmatprep.subr.mxu0 0.0
        %783 = vmatpush1.msra.mxu0 0.0
        %784 = vmatprep.subr.mxu0 0.0
        %785 = vmatpush1.msra.mxu0 0.0
        %786 = vmatprep.mubr.f32.mxu0 0.0
        %787 = vmatmul.mubr.f32.gmra.mrb[0].mxu0 %v558
        %v788 = vpop.f32.mrb[0].mxu0
        %v789 = vadd.f32 %v720, %v788
        %v790 = vpop.f32.mrb[0].mxu0
        %791 = vdwg.mxu0
        %vm792 = vcmask 64512
        %v794 = vsel %vm792, %v627, 0
        %v797 = vsel %vm792, %v708, 0
        %799 = vmatprep.subr.mxu0 0.0
        %800 = vmatpush1.xpose.msra.mxu0 %v797
        %801 = vmatprep.subr.mxu0 0.0
        %802 = vmatpush1.xpose.msra.mxu0 0.0
        %803 = vmatprep.subr.mxu0 0.0
        %804 = vmatpush1.xpose.msra.mxu0 0.0
        %805 = vmatprep.subr.mxu0 0.0
        %806 = vmatpush1.xpose.msra.mxu0 0.0
        %807 = vmatprep.subr.mxu0 0.0
        %808 = vmatpush1.xpose.msra.mxu0 0.0
        %809 = vmatprep.subr.mxu0 0.0
        %810 = vmatpush1.xpose.msra.mxu0 0.0
        %811 = vmatprep.subr.mxu0 0.0
        %812 = vmatpush1.xpose.msra.mxu0 0.0
        %813 = vmatprep.subr.mxu0 0.0
        %814 = vmatpush1.xpose.msra.mxu0 0.0
        %815 = vmatprep.subr.mxu0 0.0
        %816 = vmatpush1.xpose.msra.mxu0 0.0
        %817 = vmatprep.subr.mxu0 0.0
        %818 = vmatpush1.xpose.msra.mxu0 0.0
        %819 = vmatprep.subr.mxu0 0.0
        %820 = vmatpush1.xpose.msra.mxu0 0.0
        %821 = vmatprep.subr.mxu0 0.0
        %822 = vmatpush1.xpose.msra.mxu0 0.0
        %823 = vmatprep.subr.mxu0 0.0
        %824 = vmatpush1.xpose.msra.mxu0 0.0
        %825 = vmatprep.subr.mxu0 0.0
        %826 = vmatpush1.xpose.msra.mxu0 0.0
        %827 = vmatprep.subr.mxu0 0.0
        %828 = vmatpush1.xpose.msra.mxu0 0.0
        %829 = vmatprep.subr.mxu0 0.0
        %830 = vmatpush1.xpose.msra.mxu0 0.0
        %831 = vmatprep.subr.mxu0 0.0
        %832 = vmatpush1.xpose.msra.mxu0 0.0
        %833 = vmatprep.subr.mxu0 0.0
        %834 = vmatpush1.xpose.msra.mxu0 0.0
        %835 = vmatprep.subr.mxu0 0.0
        %836 = vmatpush1.xpose.msra.mxu0 0.0
        %837 = vmatprep.subr.mxu0 0.0
        %838 = vmatpush1.xpose.msra.mxu0 0.0
        %839 = vmatprep.subr.mxu0 0.0
        %840 = vmatpush1.xpose.msra.mxu0 0.0
        %841 = vmatprep.subr.mxu0 0.0
        %842 = vmatpush1.xpose.msra.mxu0 0.0
        %843 = vmatprep.subr.mxu0 0.0
        %844 = vmatpush1.xpose.msra.mxu0 0.0
        %845 = vmatprep.subr.mxu0 0.0
        %846 = vmatpush1.xpose.msra.mxu0 0.0
        %847 = vmatprep.subr.mxu0 0.0
        %848 = vmatpush1.xpose.msra.mxu0 0.0
        %849 = vmatprep.subr.mxu0 0.0
        %850 = vmatpush1.xpose.msra.mxu0 0.0
        %851 = vmatprep.subr.mxu0 0.0
        %852 = vmatpush1.xpose.msra.mxu0 0.0
        %853 = vmatprep.subr.mxu0 0.0
        %854 = vmatpush1.xpose.msra.mxu0 0.0
        %855 = vmatprep.subr.mxu0 0.0
        %856 = vmatpush1.xpose.msra.mxu0 0.0
        %857 = vmatprep.subr.mxu0 0.0
        %858 = vmatpush1.xpose.msra.mxu0 0.0
        %859 = vmatprep.subr.mxu0 0.0
        %860 = vmatpush1.xpose.msra.mxu0 0.0
        %861 = vmatprep.subr.mxu0 0.0
        %862 = vmatpush1.xpose.msra.mxu0 0.0
        %863 = vmatprep.mubr.f32.mxu0 0.0
        %864 = vmatmul.mubr.f32.gmra.mrb[0].mxu0 %v794
        %v865 = vpop.f32.mrb[0].mxu0
        %v866 = vadd.f32 0.0, %v865
        %v867 = vpop.f32.mrb[0].mxu0
        %868 = vdwg.mxu0
        %v869 = vsel %vm792, %v866, -inf
        %870 = vmax.xlane.f32.xlu0 %v869
        %v871 = vpop.xlane.xlu0 %870
        %v872 = vsub.f32 %v866, %v871
        %v873 = vmul.f32 %v872, 1.442695
        %v874 = vpow.pop %v873
        %v875 = vsel %vm792, %v874, 0.0
        %876 = vadd.xlane.f32.xlu0 %v875
        %v877 = vpop.xlane.xlu0 %876
        %v878 = vrcp.pop %v877
        %v879 = vmul.f32 %v874, %v878
        %v881 = vsel %vm792, %v879, 0
        %883 = vmatprep.subr.mxu0 0.0
        %884 = vmatpush1.msra.mxu0 %v789
        %885 = vmatprep.subr.mxu0 0.0
        %886 = vmatpush1.msra.mxu0 0.0
        %887 = vmatprep.subr.mxu0 0.0
        %888 = vmatpush1.msra.mxu0 0.0
        %889 = vmatprep.subr.mxu0 0.0
        %890 = vmatpush1.msra.mxu0 0.0
        %891 = vmatprep.subr.mxu0 0.0
        %892 = vmatpush1.msra.mxu0 0.0
        %893 = vmatprep.subr.mxu0 0.0
        %894 = vmatpush1.msra.mxu0 0.0
        %895 = vmatprep.subr.mxu0 0.0
        %896 = vmatpush1.msra.mxu0 0.0
        %897 = vmatprep.subr.mxu0 0.0
        %898 = vmatpush1.msra.mxu0 0.0
        %899 = vmatprep.subr.mxu0 0.0
        %900 = vmatpush1.msra.mxu0 0.0
        %901 = vmatprep.subr.mxu0 0.0
        %902 = vmatpush1.msra.mxu0 0.0
        %903 = vmatprep.subr.mxu0 0.0
        %904 = vmatpush1.msra.mxu0 0.0
        %905 = vmatprep.subr.mxu0 0.0
        %906 = vmatpush1.msra.mxu0 0.0
        %907 = vmatprep.subr.mxu0 0.0
        %908 = vmatpush1.msra.mxu0 0.0
        %909 = vmatprep.subr.mxu0 0.0
        %910 = vmatpush1.msra.mxu0 0.0
        %911 = vmatprep.subr.mxu0 0.0
        %912 = vmatpush1.msra.mxu0 0.0
        %913 = vmatprep.subr.mxu0 0.0
        %914 = vmatpush1.msra.mxu0 0.0
        %915 = vmatprep.subr.mxu0 0.0
        %916 = vmatpush1.msra.mxu0 0.0
        %917 = vmatprep.subr.mxu0 0.0
        %918 = vmatpush1.msra.mxu0 0.0
        %919 = vmatprep.subr.mxu0 0.0
        %920 = vmatpush1.msra.mxu0 0.0
        %921 = vmatprep.subr.mxu0 0.0
        %922 = vmatpush1.msra.mxu0 0.0
        %923 = vmatprep.subr.mxu0 0.0
        %924 = vmatpush1.msra.mxu0 0.0
        %925 = vmatprep.subr.mxu0 0.0
        %926 = vmatpush1.msra.mxu0 0.0
        %927 = vmatprep.subr.mxu0 0.0
        %928 = vmatpush1.msra.mxu0 0.0
        %929 = vmatprep.subr.mxu0 0.0
        %930 = vmatpush1.msra.mxu0 0.0
        %931 = vmatprep.subr.mxu0 0.0
        %932 = vmatpush1.msra.mxu0 0.0
        %933 = vmatprep.subr.mxu0 0.0
        %934 = vmatpush1.msra.mxu0 0.0
        %935 = vmatprep.subr.mxu0 0.0
        %936 = vmatpush1.msra.mxu0 0.0
        %937 = vmatprep.subr.mxu0 0.0
        %938 = vmatpush1.msra.mxu0 0.0
        %939 = vmatprep.subr.mxu0 0.0
        %940 = vmatpush1.msra.mxu0 0.0
        %941 = vmatprep.subr.mxu0 0.0
        %942 = vmatpush1.msra.mxu0 0.0
        %943 = vmatprep.subr.mxu0 0.0
        %944 = vmatpush1.msra.mxu0 0.0
        %945 = vmatprep.subr.mxu0 0.0
        %946 = vmatpush1.msra.mxu0 0.0
        %947 = vmatprep.mubr.f32.mxu0 0.0
        %948 = vmatmul.mubr.f32.gmra.mrb[0].mxu0 %v881
        %v949 = vpop.f32.mrb[0].mxu0
        %v950 = vadd.f32 0.0, %v949
        %v951 = vpop.f32.mrb[0].mxu0
        %952 = vdwg.mxu0
        %v953 = vld [vmem:[%s7] sm:$0xff]
        %s954 = scalar_lea.vmem %s1, 32
        %v955 = vld [vmem:[%s954] sm:$0xff]
        %v956 = vld [vmem:[%s954 + $0x8] sm:$0xff]
        %v957 = vld [vmem:[%s954 + $0x10] sm:$0xff]
        %v958 = vld [vmem:[%s954 + $0x18] sm:$0xff]
        %s959 = scalar_lea.vmem %s4, 1
        %v960 = vld [vmem:[%s959] sm:$0x1]
        %v962 = vlaneseq
        %v963 = vshrl.u32 %v962, 7
        %v964 = vsub.s32 0, %v963
        %v965 = vrot.slane %v960, %v964
        %967 = vmatprep.subr.mxu0 0.0
        %968 = vmatpush1.msra.mxu0 %v955
        %969 = vmatprep.subr.mxu0 0.0
        %970 = vmatpush1.msra.mxu0 %v956
        %971 = vmatprep.subr.mxu0 0.0
        %972 = vmatpush1.msra.mxu0 %v957
        %973 = vmatprep.subr.mxu0 0.0
        %974 = vmatpush1.msra.mxu0 %v958
        %975 = vmatprep.subr.mxu0 0.0
        %976 = vmatpush1.msra.mxu0 0.0
        %977 = vmatprep.subr.mxu0 0.0
        %978 = vmatpush1.msra.mxu0 0.0
        %979 = vmatprep.subr.mxu0 0.0
        %980 = vmatpush1.msra.mxu0 0.0
        %981 = vmatprep.subr.mxu0 0.0
        %982 = vmatpush1.msra.mxu0 0.0
        %983 = vmatprep.subr.mxu0 0.0
        %984 = vmatpush1.msra.mxu0 0.0
        %985 = vmatprep.subr.mxu0 0.0
        %986 = vmatpush1.msra.mxu0 0.0
        %987 = vmatprep.subr.mxu0 0.0
        %988 = vmatpush1.msra.mxu0 0.0
        %989 = vmatprep.subr.mxu0 0.0
        %990 = vmatpush1.msra.mxu0 0.0
        %991 = vmatprep.subr.mxu0 0.0
        %992 = vmatpush1.msra.mxu0 0.0
        %993 = vmatprep.subr.mxu0 0.0
        %994 = vmatpush1.msra.mxu0 0.0
        %995 = vmatprep.subr.mxu0 0.0
        %996 = vmatpush1.msra.mxu0 0.0
        %997 = vmatprep.subr.mxu0 0.0
        %998 = vmatpush1.msra.mxu0 0.0
        %999 = vmatprep.subr.mxu0 0.0
        %1000 = vmatpush1.msra.mxu0 0.0
        %1001 = vmatprep.subr.mxu0 0.0
        %1002 = vmatpush1.msra.mxu0 0.0
        %1003 = vmatprep.subr.mxu0 0.0
        %1004 = vmatpush1.msra.mxu0 0.0
        %1005 = vmatprep.subr.mxu0 0.0
        %1006 = vmatpush1.msra.mxu0 0.0
        %1007 = vmatprep.subr.mxu0 0.0
        %1008 = vmatpush1.msra.mxu0 0.0
        %1009 = vmatprep.subr.mxu0 0.0
        %1010 = vmatpush1.msra.mxu0 0.0
        %1011 = vmatprep.subr.mxu0 0.0
        %1012 = vmatpush1.msra.mxu0 0.0
        %1013 = vmatprep.subr.mxu0 0.0
        %1014 = vmatpush1.msra.mxu0 0.0
        %1015 = vmatprep.subr.mxu0 0.0
        %1016 = vmatpush1.msra.mxu0 0.0
        %1017 = vmatprep.subr.mxu0 0.0
        %1018 = vmatpush1.msra.mxu0 0.0
        %1019 = vmatprep.subr.mxu0 0.0
        %1020 = vmatpush1.msra.mxu0 0.0
        %1021 = vmatprep.subr.mxu0 0.0
        %1022 = vmatpush1.msra.mxu0 0.0
        %1023 = vmatprep.subr.mxu0 0.0
        %1024 = vmatpush1.msra.mxu0 0.0
        %1025 = vmatprep.subr.mxu0 0.0
        %1026 = vmatpush1.msra.mxu0 0.0
        %1027 = vmatprep.subr.mxu0 0.0
        %1028 = vmatpush1.msra.mxu0 0.0
        %1029 = vmatprep.subr.mxu0 0.0
        %1030 = vmatpush1.msra.mxu0 0.0
        %1031 = vmatprep.mubr.f32.mxu0 0.0
        %1032 = vmatmul.mubr.f32.gmra.mrb[0].mxu0 %v558
        %v1033 = vpop.f32.mrb[0].mxu0
        %v1034 = vadd.f32 %v965, %v1033
        %v1035 = vpop.f32.mrb[0].mxu0
        %1036 = vdwg.mxu0
        %s1037 = scalar_lea.vmem %s2, 32
        %v1038 = vld [vmem:[%s1037] sm:$0xff]
        %v1039 = vld [vmem:[%s1037 + $0x8] sm:$0xff]
        %v1040 = vld [vmem:[%s1037 + $0x10] sm:$0xff]
        %v1041 = vld [vmem:[%s1037 + $0x18] sm:$0xff]
        %s1042 = scalar_lea.vmem %s5, 1
        %v1043 = vld [vmem:[%s1042] sm:$0x1]
        %v1045 = vlaneseq
        %v1046 = vshrl.u32 %v1045, 7
        %v1047 = vsub.s32 0, %v1046
        %v1048 = vrot.slane %v1043, %v1047
        %1050 = vmatprep.subr.mxu0 0.0
        %1051 = vmatpush1.msra.mxu0 %v1038
        %1052 = vmatprep.subr.mxu0 0.0
        %1053 = vmatpush1.msra.mxu0 %v1039
        %1054 = vmatprep.subr.mxu0 0.0
        %1055 = vmatpush1.msra.mxu0 %v1040
        %1056 = vmatprep.subr.mxu0 0.0
        %1057 = vmatpush1.msra.mxu0 %v1041
        %1058 = vmatprep.subr.mxu0 0.0
        %1059 = vmatpush1.msra.mxu0 0.0
        %1060 = vmatprep.subr.mxu0 0.0
        %1061 = vmatpush1.msra.mxu0 0.0
        %1062 = vmatprep.subr.mxu0 0.0
        %1063 = vmatpush1.msra.mxu0 0.0
        %1064 = vmatprep.subr.mxu0 0.0
        %1065 = vmatpush1.msra.mxu0 0.0
        %1066 = vmatprep.subr.mxu0 0.0
        %1067 = vmatpush1.msra.mxu0 0.0
        %1068 = vmatprep.subr.mxu0 0.0
        %1069 = vmatpush1.msra.mxu0 0.0
        %1070 = vmatprep.subr.mxu0 0.0
        %1071 = vmatpush1.msra.mxu0 0.0
        %1072 = vmatprep.subr.mxu0 0.0
        %1073 = vmatpush1.msra.mxu0 0.0
        %1074 = vmatprep.subr.mxu0 0.0
        %1075 = vmatpush1.msra.mxu0 0.0
        %1076 = vmatprep.subr.mxu0 0.0
        %1077 = vmatpush1.msra.mxu0 0.0
        %1078 = vmatprep.subr.mxu0 0.0
        %1079 = vmatpush1.msra.mxu0 0.0
        %1080 = vmatprep.subr.mxu0 0.0
        %1081 = vmatpush1.msra.mxu0 0.0
        %1082 = vmatprep.subr.mxu0 0.0
        %1083 = vmatpush1.msra.mxu0 0.0
        %1084 = vmatprep.subr.mxu0 0.0
        %1085 = vmatpush1.msra.mxu0 0.0
        %1086 = vmatprep.subr.mxu0 0.0
        %1087 = vmatpush1.msra.mxu0 0.0
        %1088 = vmatprep.subr.mxu0 0.0
        %1089 = vmatpush1.msra.mxu0 0.0
        %1090 = vmatprep.subr.mxu0 0.0
        %1091 = vmatpush1.msra.mxu0 0.0
        %1092 = vmatprep.subr.mxu0 0.0
        %1093 = vmatpush1.msra.mxu0 0.0
        %1094 = vmatprep.subr.mxu0 0.0
        %1095 = vmatpush1.msra.mxu0 0.0
        %1096 = vmatprep.subr.mxu0 0.0
        %1097 = vmatpush1.msra.mxu0 0.0
        %1098 = vmatprep.subr.mxu0 0.0
        %1099 = vmatpush1.msra.mxu0 0.0
        %1100 = vmatprep.subr.mxu0 0.0
        %1101 = vmatpush1.msra.mxu0 0.0
        %1102 = vmatprep.subr.mxu0 0.0
        %1103 = vmatpush1.msra.mxu0 0.0
        %1104 = vmatprep.subr.mxu0 0.0
        %1105 = vmatpush1.msra.mxu0 0.0
        %1106 = vmatprep.subr.mxu0 0.0
        %1107 = vmatpush1.msra.mxu0 0.0
        %1108 = vmatprep.subr.mxu0 0.0
        %1109 = vmatpush1.msra.mxu0 0.0
        %1110 = vmatprep.subr.mxu0 0.0
        %1111 = vmatpush1.msra.mxu0 0.0
        %1112 = vmatprep.subr.mxu0 0.0
        %1113 = vmatpush1.msra.mxu0 0.0
        %1114 = vmatprep.mubr.f32.mxu0 0.0
        %1115 = vmatmul.mubr.f32.gmra.mrb[0].mxu0 %v558
        %v1116 = vpop.f32.mrb[0].mxu0
        %v1117 = vadd.f32 %v1048, %v1116
        %v1118 = vpop.f32.mrb[0].mxu0
        %1119 = vdwg.mxu0
        %s1120 = scalar_lea.vmem %s3, 32
        %v1121 = vld [vmem:[%s1120] sm:$0xff]
        %v1122 = vld [vmem:[%s1120 + $0x8] sm:$0xff]
        %v1123 = vld [vmem:[%s1120 + $0x10] sm:$0xff]
        %v1124 = vld [vmem:[%s1120 + $0x18] sm:$0xff]
        %s1125 = scalar_lea.vmem %s6, 1
        %v1126 = vld [vmem:[%s1125] sm:$0x1]
        %v1128 = vlaneseq
        %v1129 = vshrl.u32 %v1128, 7
        %v1130 = vsub.s32 0, %v1129
        %v1131 = vrot.slane %v1126, %v1130
        %1133 = vmatprep.subr.mxu0 0.0
        %1134 = vmatpush1.msra.mxu0 %v1121
        %1135 = vmatprep.subr.mxu0 0.0
        %1136 = vmatpush1.msra.mxu0 %v1122
        %1137 = vmatprep.subr.mxu0 0.0
        %1138 = vmatpush1.msra.mxu0 %v1123
        %1139 = vmatprep.subr.mxu0 0.0
        %1140 = vmatpush1.msra.mxu0 %v1124
        %1141 = vmatprep.subr.mxu0 0.0
        %1142 = vmatpush1.msra.mxu0 0.0
        %1143 = vmatprep.subr.mxu0 0.0
        %1144 = vmatpush1.msra.mxu0 0.0
        %1145 = vmatprep.subr.mxu0 0.0
        %1146 = vmatpush1.msra.mxu0 0.0
        %1147 = vmatprep.subr.mxu0 0.0
        %1148 = vmatpush1.msra.mxu0 0.0
        %1149 = vmatprep.subr.mxu0 0.0
        %1150 = vmatpush1.msra.mxu0 0.0
        %1151 = vmatprep.subr.mxu0 0.0
        %1152 = vmatpush1.msra.mxu0 0.0
        %1153 = vmatprep.subr.mxu0 0.0
        %1154 = vmatpush1.msra.mxu0 0.0
        %1155 = vmatprep.subr.mxu0 0.0
        %1156 = vmatpush1.msra.mxu0 0.0
        %1157 = vmatprep.subr.mxu0 0.0
        %1158 = vmatpush1.msra.mxu0 0.0
        %1159 = vmatprep.subr.mxu0 0.0
        %1160 = vmatpush1.msra.mxu0 0.0
        %1161 = vmatprep.subr.mxu0 0.0
        %1162 = vmatpush1.msra.mxu0 0.0
        %1163 = vmatprep.subr.mxu0 0.0
        %1164 = vmatpush1.msra.mxu0 0.0
        %1165 = vmatprep.subr.mxu0 0.0
        %1166 = vmatpush1.msra.mxu0 0.0
        %1167 = vmatprep.subr.mxu0 0.0
        %1168 = vmatpush1.msra.mxu0 0.0
        %1169 = vmatprep.subr.mxu0 0.0
        %1170 = vmatpush1.msra.mxu0 0.0
        %1171 = vmatprep.subr.mxu0 0.0
        %1172 = vmatpush1.msra.mxu0 0.0
        %1173 = vmatprep.subr.mxu0 0.0
        %1174 = vmatpush1.msra.mxu0 0.0
        %1175 = vmatprep.subr.mxu0 0.0
        %1176 = vmatpush1.msra.mxu0 0.0
        %1177 = vmatprep.subr.mxu0 0.0
        %1178 = vmatpush1.msra.mxu0 0.0
        %1179 = vmatprep.subr.mxu0 0.0
        %1180 = vmatpush1.msra.mxu0 0.0
        %1181 = vmatprep.subr.mxu0 0.0
        %1182 = vmatpush1.msra.mxu0 0.0
        %1183 = vmatprep.subr.mxu0 0.0
        %1184 = vmatpush1.msra.mxu0 0.0
        %1185 = vmatprep.subr.mxu0 0.0
        %1186 = vmatpush1.msra.mxu0 0.0
        %1187 = vmatprep.subr.mxu0 0.0
        %1188 = vmatpush1.msra.mxu0 0.0
        %1189 = vmatprep.subr.mxu0 0.0
        %1190 = vmatpush1.msra.mxu0 0.0
        %1191 = vmatprep.subr.mxu0 0.0
        %1192 = vmatpush1.msra.mxu0 0.0
        %1193 = vmatprep.subr.mxu0 0.0
        %1194 = vmatpush1.msra.mxu0 0.0
        %1195 = vmatprep.subr.mxu0 0.0
        %1196 = vmatpush1.msra.mxu0 0.0
        %1197 = vmatprep.mubr.f32.mxu0 0.0
        %1198 = vmatmul.mubr.f32.gmra.mrb[0].mxu0 %v558
        %v1199 = vpop.f32.mrb[0].mxu0
        %v1200 = vadd.f32 %v1131, %v1199
        %v1201 = vpop.f32.mrb[0].mxu0
        %1202 = vdwg.mxu0
        %v1204 = vsel %vm792, %v1034, 0
        %v1207 = vsel %vm792, %v1117, 0
        %1209 = vmatprep.subr.mxu0 0.0
        %1210 = vmatpush1.xpose.msra.mxu0 %v1207
        %1211 = vmatprep.subr.mxu0 0.0
        %1212 = vmatpush1.xpose.msra.mxu0 0.0
        %1213 = vmatprep.subr.mxu0 0.0
        %1214 = vmatpush1.xpose.msra.mxu0 0.0
        %1215 = vmatprep.subr.mxu0 0.0
        %1216 = vmatpush1.xpose.msra.mxu0 0.0
        %1217 = vmatprep.subr.mxu0 0.0
        %1218 = vmatpush1.xpose.msra.mxu0 0.0
        %1219 = vmatprep.subr.mxu0 0.0
        %1220 = vmatpush1.xpose.msra.mxu0 0.0
        %1221 = vmatprep.subr.mxu0 0.0
        %1222 = vmatpush1.xpose.msra.mxu0 0.0
        %1223 = vmatprep.subr.mxu0 0.0
        %1224 = vmatpush1.xpose.msra.mxu0 0.0
        %1225 = vmatprep.subr.mxu0 0.0
        %1226 = vmatpush1.xpose.msra.mxu0 0.0
        %1227 = vmatprep.subr.mxu0 0.0
        %1228 = vmatpush1.xpose.msra.mxu0 0.0
        %1229 = vmatprep.subr.mxu0 0.0
        %1230 = vmatpush1.xpose.msra.mxu0 0.0
        %1231 = vmatprep.subr.mxu0 0.0
        %1232 = vmatpush1.xpose.msra.mxu0 0.0
        %1233 = vmatprep.subr.mxu0 0.0
        %1234 = vmatpush1.xpose.msra.mxu0 0.0
        %1235 = vmatprep.subr.mxu0 0.0
        %1236 = vmatpush1.xpose.msra.mxu0 0.0
        %1237 = vmatprep.subr.mxu0 0.0
        %1238 = vmatpush1.xpose.msra.mxu0 0.0
        %1239 = vmatprep.subr.mxu0 0.0
        %1240 = vmatpush1.xpose.msra.mxu0 0.0
        %1241 = vmatprep.subr.mxu0 0.0
        %1242 = vmatpush1.xpose.msra.mxu0 0.0
        %1243 = vmatprep.subr.mxu0 0.0
        %1244 = vmatpush1.xpose.msra.mxu0 0.0
        %1245 = vmatprep.subr.mxu0 0.0
        %1246 = vmatpush1.xpose.msra.mxu0 0.0
        %1247 = vmatprep.subr.mxu0 0.0
        %1248 = vmatpush1.xpose.msra.mxu0 0.0
        %1249 = vmatprep.subr.mxu0 0.0
        %1250 = vmatpush1.xpose.msra.mxu0 0.0
        %1251 = vmatprep.subr.mxu0 0.0
        %1252 = vmatpush1.xpose.msra.mxu0 0.0
        %1253 = vmatprep.subr.mxu0 0.0
        %1254 = vmatpush1.xpose.msra.mxu0 0.0
        %1255 = vmatprep.subr.mxu0 0.0
        %1256 = vmatpush1.xpose.msra.mxu0 0.0
        %1257 = vmatprep.subr.mxu0 0.0
        %1258 = vmatpush1.xpose.msra.mxu0 0.0
        %1259 = vmatprep.subr.mxu0 0.0
        %1260 = vmatpush1.xpose.msra.mxu0 0.0
        %1261 = vmatprep.subr.mxu0 0.0
        %1262 = vmatpush1.xpose.msra.mxu0 0.0
        %1263 = vmatprep.subr.mxu0 0.0
        %1264 = vmatpush1.xpose.msra.mxu0 0.0
        %1265 = vmatprep.subr.mxu0 0.0
        %1266 = vmatpush1.xpose.msra.mxu0 0.0
        %1267 = vmatprep.subr.mxu0 0.0
        %1268 = vmatpush1.xpose.msra.mxu0 0.0
        %1269 = vmatprep.subr.mxu0 0.0
        %1270 = vmatpush1.xpose.msra.mxu0 0.0
        %1271 = vmatprep.subr.mxu0 0.0
        %1272 = vmatpush1.xpose.msra.mxu0 0.0
        %1273 = vmatprep.mubr.f32.mxu0 0.0
        %1274 = vmatmul.mubr.f32.gmra.mrb[0].mxu0 %v1204
        %v1275 = vpop.f32.mrb[0].mxu0
        %v1276 = vadd.f32 0.0, %v1275
        %v1277 = vpop.f32.mrb[0].mxu0
        %1278 = vdwg.mxu0
        %v1279 = vsel %vm792, %v1276, -inf
        %1280 = vmax.xlane.f32.xlu0 %v1279
        %v1281 = vpop.xlane.xlu0 %1280
        %v1282 = vsub.f32 %v1276, %v1281
        %v1283 = vmul.f32 %v1282, 1.442695
        %v1284 = vpow.pop %v1283
        %v1285 = vsel %vm792, %v1284, 0.0
        %1286 = vadd.xlane.f32.xlu0 %v1285
        %v1287 = vpop.xlane.xlu0 %1286
        %v1288 = vrcp.pop %v1287
        %v1289 = vmul.f32 %v1284, %v1288
        %v1291 = vsel %vm792, %v1289, 0
        %1293 = vmatprep.subr.mxu0 0.0
        %1294 = vmatpush1.msra.mxu0 %v1200
        %1295 = vmatprep.subr.mxu0 0.0
        %1296 = vmatpush1.msra.mxu0 0.0
        %1297 = vmatprep.subr.mxu0 0.0
        %1298 = vmatpush1.msra.mxu0 0.0
        %1299 = vmatprep.subr.mxu0 0.0
        %1300 = vmatpush1.msra.mxu0 0.0
        %1301 = vmatprep.subr.mxu0 0.0
        %1302 = vmatpush1.msra.mxu0 0.0
        %1303 = vmatprep.subr.mxu0 0.0
        %1304 = vmatpush1.msra.mxu0 0.0
        %1305 = vmatprep.subr.mxu0 0.0
        %1306 = vmatpush1.msra.mxu0 0.0
        %1307 = vmatprep.subr.mxu0 0.0
        %1308 = vmatpush1.msra.mxu0 0.0
        %1309 = vmatprep.subr.mxu0 0.0
        %1310 = vmatpush1.msra.mxu0 0.0
        %1311 = vmatprep.subr.mxu0 0.0
        %1312 = vmatpush1.msra.mxu0 0.0
        %1313 = vmatprep.subr.mxu0 0.0
        %1314 = vmatpush1.msra.mxu0 0.0
        %1315 = vmatprep.subr.mxu0 0.0
        %1316 = vmatpush1.msra.mxu0 0.0
        %1317 = vmatprep.subr.mxu0 0.0
        %1318 = vmatpush1.msra.mxu0 0.0
        %1319 = vmatprep.subr.mxu0 0.0
        %1320 = vmatpush1.msra.mxu0 0.0
        %1321 = vmatprep.subr.mxu0 0.0
        %1322 = vmatpush1.msra.mxu0 0.0
        %1323 = vmatprep.subr.mxu0 0.0
        %1324 = vmatpush1.msra.mxu0 0.0
        %1325 = vmatprep.subr.mxu0 0.0
        %1326 = vmatpush1.msra.mxu0 0.0
        %1327 = vmatprep.subr.mxu0 0.0
        %1328 = vmatpush1.msra.mxu0 0.0
        %1329 = vmatprep.subr.mxu0 0.0
        %1330 = vmatpush1.msra.mxu0 0.0
        %1331 = vmatprep.subr.mxu0 0.0
        %1332 = vmatpush1.msra.mxu0 0.0
        %1333 = vmatprep.subr.mxu0 0.0
        %1334 = vmatpush1.msra.mxu0 0.0
        %1335 = vmatprep.subr.mxu0 0.0
        %1336 = vmatpush1.msra.mxu0 0.0
        %1337 = vmatprep.subr.mxu0 0.0
        %1338 = vmatpush1.msra.mxu0 0.0
        %1339 = vmatprep.subr.mxu0 0.0
        %1340 = vmatpush1.msra.mxu0 0.0
        %1341 = vmatprep.subr.mxu0 0.0
        %1342 = vmatpush1.msra.mxu0 0.0
        %1343 = vmatprep.subr.mxu0 0.0
        %1344 = vmatpush1.msra.mxu0 0.0
        %1345 = vmatprep.subr.mxu0 0.0
        %1346 = vmatpush1.msra.mxu0 0.0
        %1347 = vmatprep.subr.mxu0 0.0
        %1348 = vmatpush1.msra.mxu0 0.0
        %1349 = vmatprep.subr.mxu0 0.0
        %1350 = vmatpush1.msra.mxu0 0.0
        %1351 = vmatprep.subr.mxu0 0.0
        %1352 = vmatpush1.msra.mxu0 0.0
        %1353 = vmatprep.subr.mxu0 0.0
        %1354 = vmatpush1.msra.mxu0 0.0
        %1355 = vmatprep.subr.mxu0 0.0
        %1356 = vmatpush1.msra.mxu0 0.0
        %1357 = vmatprep.mubr.f32.mxu0 0.0
        %1358 = vmatmul.mubr.f32.gmra.mrb[0].mxu0 %v1291
        %v1359 = vpop.f32.mrb[0].mxu0
        %v1360 = vadd.f32 0.0, %v1359
        %v1361 = vpop.f32.mrb[0].mxu0
        %1362 = vdwg.mxu0
        %s1363 = scalar_lea.vmem %s7, 8
        %v1364 = vld [vmem:[%s1363] sm:$0xff]
        %v1366 = vsel %vm792, %v1360, 0
        %1368 = vmatprep.subr.mxu0 0.0
        %1369 = vmatpush1.msra.mxu0 %v1364
        %1370 = vmatprep.subr.mxu0 0.0
        %1371 = vmatpush1.msra.mxu0 0.0
        %1372 = vmatprep.subr.mxu0 0.0
        %1373 = vmatpush1.msra.mxu0 0.0
        %1374 = vmatprep.subr.mxu0 0.0
        %1375 = vmatpush1.msra.mxu0 0.0
        %1376 = vmatprep.subr.mxu0 0.0
        %1377 = vmatpush1.msra.mxu0 0.0
        %1378 = vmatprep.subr.mxu0 0.0
        %1379 = vmatpush1.msra.mxu0 0.0
        %1380 = vmatprep.subr.mxu0 0.0
        %1381 = vmatpush1.msra.mxu0 0.0
        %1382 = vmatprep.subr.mxu0 0.0
        %1383 = vmatpush1.msra.mxu0 0.0
        %1384 = vmatprep.subr.mxu0 0.0
        %1385 = vmatpush1.msra.mxu0 0.0
        %1386 = vmatprep.subr.mxu0 0.0
        %1387 = vmatpush1.msra.mxu0 0.0
        %1388 = vmatprep.subr.mxu0 0.0
        %1389 = vmatpush1.msra.mxu0 0.0
        %1390 = vmatprep.subr.mxu0 0.0
        %1391 = vmatpush1.msra.mxu0 0.0
        %1392 = vmatprep.subr.mxu0 0.0
        %1393 = vmatpush1.msra.mxu0 0.0
        %1394 = vmatprep.subr.mxu0 0.0
        %1395 = vmatpush1.msra.mxu0 0.0
        %1396 = vmatprep.subr.mxu0 0.0
        %1397 = vmatpush1.msra.mxu0 0.0
        %1398 = vmatprep.subr.mxu0 0.0
        %1399 = vmatpush1.msra.mxu0 0.0
        %1400 = vmatprep.subr.mxu0 0.0
        %1401 = vmatpush1.msra.mxu0 0.0
        %1402 = vmatprep.subr.mxu0 0.0
        %1403 = vmatpush1.msra.mxu0 0.0
        %1404 = vmatprep.subr.mxu0 0.0
        %1405 = vmatpush1.msra.mxu0 0.0
        %1406 = vmatprep.subr.mxu0 0.0
        %1407 = vmatpush1.msra.mxu0 0.0
        %1408 = vmatprep.subr.mxu0 0.0
        %1409 = vmatpush1.msra.mxu0 0.0
        %1410 = vmatprep.subr.mxu0 0.0
        %1411 = vmatpush1.msra.mxu0 0.0
        %1412 = vmatprep.subr.mxu0 0.0
        %1413 = vmatpush1.msra.mxu0 0.0
        %1414 = vmatprep.subr.mxu0 0.0
        %1415 = vmatpush1.msra.mxu0 0.0
        %1416 = vmatprep.subr.mxu0 0.0
        %1417 = vmatpush1.msra.mxu0 0.0
        %1418 = vmatprep.subr.mxu0 0.0
        %1419 = vmatpush1.msra.mxu0 0.0
        %1420 = vmatprep.subr.mxu0 0.0
        %1421 = vmatpush1.msra.mxu0 0.0
        %1422 = vmatprep.subr.mxu0 0.0
        %1423 = vmatpush1.msra.mxu0 0.0
        %1424 = vmatprep.subr.mxu0 0.0
        %1425 = vmatpush1.msra.mxu0 0.0
        %1426 = vmatprep.subr.mxu0 0.0
        %1427 = vmatpush1.msra.mxu0 0.0
        %1428 = vmatprep.subr.mxu0 0.0
        %1429 = vmatpush1.msra.mxu0 0.0
        %1430 = vmatprep.subr.mxu0 0.0
        %1431 = vmatpush1.msra.mxu0 0.0
        %1432 = vmatprep.mubr.f32.mxu0 0.0
        %1433 = vmatmul.mubr.f32.gmra.mrb[0].mxu0 %v1366
        %v1434 = vpop.f32.mrb[0].mxu0
        %v1435 = vadd.f32 0.0, %v1434
        %v1436 = vpop.f32.mrb[0].mxu0
        %1437 = vdwg.mxu0
        %v1439 = vsel %vm792, %v950, 0
        %1441 = vmatprep.subr.mxu0 0.0
        %1442 = vmatpush1.msra.mxu0 %v953
        %1443 = vmatprep.subr.mxu0 0.0
        %1444 = vmatpush1.msra.mxu0 0.0
        %1445 = vmatprep.subr.mxu0 0.0
        %1446 = vmatpush1.msra.mxu0 0.0
        %1447 = vmatprep.subr.mxu0 0.0
        %1448 = vmatpush1.msra.mxu0 0.0
        %1449 = vmatprep.subr.mxu0 0.0
        %1450 = vmatpush1.msra.mxu0 0.0
        %1451 = vmatprep.subr.mxu0 0.0
        %1452 = vmatpush1.msra.mxu0 0.0
        %1453 = vmatprep.subr.mxu0 0.0
        %1454 = vmatpush1.msra.mxu0 0.0
        %1455 = vmatprep.subr.mxu0 0.0
        %1456 = vmatpush1.msra.mxu0 0.0
        %1457 = vmatprep.subr.mxu0 0.0
        %1458 = vmatpush1.msra.mxu0 0.0
        %1459 = vmatprep.subr.mxu0 0.0
        %1460 = vmatpush1.msra.mxu0 0.0
        %1461 = vmatprep.subr.mxu0 0.0
        %1462 = vmatpush1.msra.mxu0 0.0
        %1463 = vmatprep.subr.mxu0 0.0
        %1464 = vmatpush1.msra.mxu0 0.0
        %1465 = vmatprep.subr.mxu0 0.0
        %1466 = vmatpush1.msra.mxu0 0.0
        %1467 = vmatprep.subr.mxu0 0.0
        %1468 = vmatpush1.msra.mxu0 0.0
        %1469 = vmatprep.subr.mxu0 0.0
        %1470 = vmatpush1.msra.mxu0 0.0
        %1471 = vmatprep.subr.mxu0 0.0
        %1472 = vmatpush1.msra.mxu0 0.0
        %1473 = vmatprep.subr.mxu0 0.0
        %1474 = vmatpush1.msra.mxu0 0.0
        %1475 = vmatprep.subr.mxu0 0.0
        %1476 = vmatpush1.msra.mxu0 0.0
        %1477 = vmatprep.subr.mxu0 0.0
        %1478 = vmatpush1.msra.mxu0 0.0
        %1479 = vmatprep.subr.mxu0 0.0
        %1480 = vmatpush1.msra.mxu0 0.0
        %1481 = vmatprep.subr.mxu0 0.0
        %1482 = vmatpush1.msra.mxu0 0.0
        %1483 = vmatprep.subr.mxu0 0.0
        %1484 = vmatpush1.msra.mxu0 0.0
        %1485 = vmatprep.subr.mxu0 0.0
        %1486 = vmatpush1.msra.mxu0 0.0
        %1487 = vmatprep.subr.mxu0 0.0
        %1488 = vmatpush1.msra.mxu0 0.0
        %1489 = vmatprep.subr.mxu0 0.0
        %1490 = vmatpush1.msra.mxu0 0.0
        %1491 = vmatprep.subr.mxu0 0.0
        %1492 = vmatpush1.msra.mxu0 0.0
        %1493 = vmatprep.subr.mxu0 0.0
        %1494 = vmatpush1.msra.mxu0 0.0
        %1495 = vmatprep.subr.mxu0 0.0
        %1496 = vmatpush1.msra.mxu0 0.0
        %1497 = vmatprep.subr.mxu0 0.0
        %1498 = vmatpush1.msra.mxu0 0.0
        %1499 = vmatprep.subr.mxu0 0.0
        %1500 = vmatpush1.msra.mxu0 0.0
        %1501 = vmatprep.subr.mxu0 0.0
        %1502 = vmatpush1.msra.mxu0 0.0
        %1503 = vmatprep.subr.mxu0 0.0
        %1504 = vmatpush1.msra.mxu0 0.0
        %1505 = vmatprep.mubr.f32.mxu0 0.0
        %1506 = vmatmul.mubr.f32.gmra.mrb[0].mxu0 %v1439
        %v1507 = vpop.f32.mrb[0].mxu0
        %v1508 = vadd.f32 %v1435, %v1507
        %v1509 = vpop.f32.mrb[0].mxu0
        %1510 = vdwg.mxu0
        %s1511 = scalar_lea.vmem %s1, 64
        %v1512 = vld [vmem:[%s1511] sm:$0xff]
        %v1513 = vld [vmem:[%s1511 + $0x8] sm:$0xff]
        %v1514 = vld [vmem:[%s1511 + $0x10] sm:$0xff]
        %v1515 = vld [vmem:[%s1511 + $0x18] sm:$0xff]
        %s1516 = scalar_lea.vmem %s4, 2
        %v1517 = vld [vmem:[%s1516] sm:$0x1]
        %v1519 = vlaneseq
        %v1520 = vshrl.u32 %v1519, 7
        %v1521 = vsub.s32 0, %v1520
        %v1522 = vrot.slane %v1517, %v1521
        %1524 = vmatprep.subr.mxu0 0.0
        %1525 = vmatpush1.msra.mxu0 %v1512
        %1526 = vmatprep.subr.mxu0 0.0
        %1527 = vmatpush1.msra.mxu0 %v1513
        %1528 = vmatprep.subr.mxu0 0.0
        %1529 = vmatpush1.msra.mxu0 %v1514
        %1530 = vmatprep.subr.mxu0 0.0
        %1531 = vmatpush1.msra.mxu0 %v1515
        %1532 = vmatprep.subr.mxu0 0.0
        %1533 = vmatpush1.msra.mxu0 0.0
        %1534 = vmatprep.subr.mxu0 0.0
        %1535 = vmatpush1.msra.mxu0 0.0
        %1536 = vmatprep.subr.mxu0 0.0
        %1537 = vmatpush1.msra.mxu0 0.0
        %1538 = vmatprep.subr.mxu0 0.0
        %1539 = vmatpush1.msra.mxu0 0.0
        %1540 = vmatprep.subr.mxu0 0.0
        %1541 = vmatpush1.msra.mxu0 0.0
        %1542 = vmatprep.subr.mxu0 0.0
        %1543 = vmatpush1.msra.mxu0 0.0
        %1544 = vmatprep.subr.mxu0 0.0
        %1545 = vmatpush1.msra.mxu0 0.0
        %1546 = vmatprep.subr.mxu0 0.0
        %1547 = vmatpush1.msra.mxu0 0.0
        %1548 = vmatprep.subr.mxu0 0.0
        %1549 = vmatpush1.msra.mxu0 0.0
        %1550 = vmatprep.subr.mxu0 0.0
        %1551 = vmatpush1.msra.mxu0 0.0
        %1552 = vmatprep.subr.mxu0 0.0
        %1553 = vmatpush1.msra.mxu0 0.0
        %1554 = vmatprep.subr.mxu0 0.0
        %1555 = vmatpush1.msra.mxu0 0.0
        %1556 = vmatprep.subr.mxu0 0.0
        %1557 = vmatpush1.msra.mxu0 0.0
        %1558 = vmatprep.subr.mxu0 0.0
        %1559 = vmatpush1.msra.mxu0 0.0
        %1560 = vmatprep.subr.mxu0 0.0
        %1561 = vmatpush1.msra.mxu0 0.0
        %1562 = vmatprep.subr.mxu0 0.0
        %1563 = vmatpush1.msra.mxu0 0.0
        %1564 = vmatprep.subr.mxu0 0.0
        %1565 = vmatpush1.msra.mxu0 0.0
        %1566 = vmatprep.subr.mxu0 0.0
        %1567 = vmatpush1.msra.mxu0 0.0
        %1568 = vmatprep.subr.mxu0 0.0
        %1569 = vmatpush1.msra.mxu0 0.0
        %1570 = vmatprep.subr.mxu0 0.0
        %1571 = vmatpush1.msra.mxu0 0.0
        %1572 = vmatprep.subr.mxu0 0.0
        %1573 = vmatpush1.msra.mxu0 0.0
        %1574 = vmatprep.subr.mxu0 0.0
        %1575 = vmatpush1.msra.mxu0 0.0
        %1576 = vmatprep.subr.mxu0 0.0
        %1577 = vmatpush1.msra.mxu0 0.0
        %1578 = vmatprep.subr.mxu0 0.0
        %1579 = vmatpush1.msra.mxu0 0.0
        %1580 = vmatprep.subr.mxu0 0.0
        %1581 = vmatpush1.msra.mxu0 0.0
        %1582 = vmatprep.subr.mxu0 0.0
        %1583 = vmatpush1.msra.mxu0 0.0
        %1584 = vmatprep.subr.mxu0 0.0
        %1585 = vmatpush1.msra.mxu0 0.0
        %1586 = vmatprep.subr.mxu0 0.0
        %1587 = vmatpush1.msra.mxu0 0.0
        %1588 = vmatprep.mubr.f32.mxu0 0.0
        %1589 = vmatmul.mubr.f32.gmra.mrb[0].mxu0 %v558
        %v1590 = vpop.f32.mrb[0].mxu0
        %v1591 = vadd.f32 %v1522, %v1590
        %v1592 = vpop.f32.mrb[0].mxu0
        %1593 = vdwg.mxu0
        %s1594 = scalar_lea.vmem %s2, 64
        %v1595 = vld [vmem:[%s1594] sm:$0xff]
        %v1596 = vld [vmem:[%s1594 + $0x8] sm:$0xff]
        %v1597 = vld [vmem:[%s1594 + $0x10] sm:$0xff]
        %v1598 = vld [vmem:[%s1594 + $0x18] sm:$0xff]
        %s1599 = scalar_lea.vmem %s5, 2
        %v1600 = vld [vmem:[%s1599] sm:$0x1]
        %v1602 = vlaneseq
        %v1603 = vshrl.u32 %v1602, 7
        %v1604 = vsub.s32 0, %v1603
        %v1605 = vrot.slane %v1600, %v1604
        %1607 = vmatprep.subr.mxu0 0.0
        %1608 = vmatpush1.msra.mxu0 %v1595
        %1609 = vmatprep.subr.mxu0 0.0
        %1610 = vmatpush1.msra.mxu0 %v1596
        %1611 = vmatprep.subr.mxu0 0.0
        %1612 = vmatpush1.msra.mxu0 %v1597
        %1613 = vmatprep.subr.mxu0 0.0
        %1614 = vmatpush1.msra.mxu0 %v1598
        %1615 = vmatprep.subr.mxu0 0.0
        %1616 = vmatpush1.msra.mxu0 0.0
        %1617 = vmatprep.subr.mxu0 0.0
        %1618 = vmatpush1.msra.mxu0 0.0
        %1619 = vmatprep.subr.mxu0 0.0
        %1620 = vmatpush1.msra.mxu0 0.0
        %1621 = vmatprep.subr.mxu0 0.0
        %1622 = vmatpush1.msra.mxu0 0.0
        %1623 = vmatprep.subr.mxu0 0.0
        %1624 = vmatpush1.msra.mxu0 0.0
        %1625 = vmatprep.subr.mxu0 0.0
        %1626 = vmatpush1.msra.mxu0 0.0
        %1627 = vmatprep.subr.mxu0 0.0
        %1628 = vmatpush1.msra.mxu0 0.0
        %1629 = vmatprep.subr.mxu0 0.0
        %1630 = vmatpush1.msra.mxu0 0.0
        %1631 = vmatprep.subr.mxu0 0.0
        %1632 = vmatpush1.msra.mxu0 0.0
        %1633 = vmatprep.subr.mxu0 0.0
        %1634 = vmatpush1.msra.mxu0 0.0
        %1635 = vmatprep.subr.mxu0 0.0
        %1636 = vmatpush1.msra.mxu0 0.0
        %1637 = vmatprep.subr.mxu0 0.0
        %1638 = vmatpush1.msra.mxu0 0.0
        %1639 = vmatprep.subr.mxu0 0.0
        %1640 = vmatpush1.msra.mxu0 0.0
        %1641 = vmatprep.subr.mxu0 0.0
        %1642 = vmatpush1.msra.mxu0 0.0
        %1643 = vmatprep.subr.mxu0 0.0
        %1644 = vmatpush1.msra.mxu0 0.0
        %1645 = vmatprep.subr.mxu0 0.0
        %1646 = vmatpush1.msra.mxu0 0.0
        %1647 = vmatprep.subr.mxu0 0.0
        %1648 = vmatpush1.msra.mxu0 0.0
        %1649 = vmatprep.subr.mxu0 0.0
        %1650 = vmatpush1.msra.mxu0 0.0
        %1651 = vmatprep.subr.mxu0 0.0
        %1652 = vmatpush1.msra.mxu0 0.0
        %1653 = vmatprep.subr.mxu0 0.0
        %1654 = vmatpush1.msra.mxu0 0.0
        %1655 = vmatprep.subr.mxu0 0.0
        %1656 = vmatpush1.msra.mxu0 0.0
        %1657 = vmatprep.subr.mxu0 0.0
        %1658 = vmatpush1.msra.mxu0 0.0
        %1659 = vmatprep.subr.mxu0 0.0
        %1660 = vmatpush1.msra.mxu0 0.0
        %1661 = vmatprep.subr.mxu0 0.0
        %1662 = vmatpush1.msra.mxu0 0.0
        %1663 = vmatprep.subr.mxu0 0.0
        %1664 = vmatpush1.msra.mxu0 0.0
        %1665 = vmatprep.subr.mxu0 0.0
        %1666 = vmatpush1.msra.mxu0 0.0
        %1667 = vmatprep.subr.mxu0 0.0
        %1668 = vmatpush1.msra.mxu0 0.0
        %1669 = vmatprep.subr.mxu0 0.0
        %1670 = vmatpush1.msra.mxu0 0.0
        %1671 = vmatprep.mubr.f32.mxu0 0.0
        %1672 = vmatmul.mubr.f32.gmra.mrb[0].mxu0 %v558
        %v1673 = vpop.f32.mrb[0].mxu0
        %v1674 = vadd.f32 %v1605, %v1673
        %v1675 = vpop.f32.mrb[0].mxu0
        %1676 = vdwg.mxu0
        %s1677 = scalar_lea.vmem %s3, 64
        %v1678 = vld [vmem:[%s1677] sm:$0xff]
        %v1679 = vld [vmem:[%s1677 + $0x8] sm:$0xff]
        %v1680 = vld [vmem:[%s1677 + $0x10] sm:$0xff]
        %v1681 = vld [vmem:[%s1677 + $0x18] sm:$0xff]
        %s1682 = scalar_lea.vmem %s6, 2
        %v1683 = vld [vmem:[%s1682] sm:$0x1]
        %v1685 = vlaneseq
        %v1686 = vshrl.u32 %v1685, 7
        %v1687 = vsub.s32 0, %v1686
        %v1688 = vrot.slane %v1683, %v1687
        %1690 = vmatprep.subr.mxu0 0.0
        %1691 = vmatpush1.msra.mxu0 %v1678
        %1692 = vmatprep.subr.mxu0 0.0
        %1693 = vmatpush1.msra.mxu0 %v1679
        %1694 = vmatprep.subr.mxu0 0.0
        %1695 = vmatpush1.msra.mxu0 %v1680
        %1696 = vmatprep.subr.mxu0 0.0
        %1697 = vmatpush1.msra.mxu0 %v1681
        %1698 = vmatprep.subr.mxu0 0.0
        %1699 = vmatpush1.msra.mxu0 0.0
        %1700 = vmatprep.subr.mxu0 0.0
        %1701 = vmatpush1.msra.mxu0 0.0
        %1702 = vmatprep.subr.mxu0 0.0
        %1703 = vmatpush1.msra.mxu0 0.0
        %1704 = vmatprep.subr.mxu0 0.0
        %1705 = vmatpush1.msra.mxu0 0.0
        %1706 = vmatprep.subr.mxu0 0.0
        %1707 = vmatpush1.msra.mxu0 0.0
        %1708 = vmatprep.subr.mxu0 0.0
        %1709 = vmatpush1.msra.mxu0 0.0
        %1710 = vmatprep.subr.mxu0 0.0
        %1711 = vmatpush1.msra.mxu0 0.0
        %1712 = vmatprep.subr.mxu0 0.0
        %1713 = vmatpush1.msra.mxu0 0.0
        %1714 = vmatprep.subr.mxu0 0.0
        %1715 = vmatpush1.msra.mxu0 0.0
        %1716 = vmatprep.subr.mxu0 0.0
        %1717 = vmatpush1.msra.mxu0 0.0
        %1718 = vmatprep.subr.mxu0 0.0
        %1719 = vmatpush1.msra.mxu0 0.0
        %1720 = vmatprep.subr.mxu0 0.0
        %1721 = vmatpush1.msra.mxu0 0.0
        %1722 = vmatprep.subr.mxu0 0.0
        %1723 = vmatpush1.msra.mxu0 0.0
        %1724 = vmatprep.subr.mxu0 0.0
        %1725 = vmatpush1.msra.mxu0 0.0
        %1726 = vmatprep.subr.mxu0 0.0
        %1727 = vmatpush1.msra.mxu0 0.0
        %1728 = vmatprep.subr.mxu0 0.0
        %1729 = vmatpush1.msra.mxu0 0.0
        %1730 = vmatprep.subr.mxu0 0.0
        %1731 = vmatpush1.msra.mxu0 0.0
        %1732 = vmatprep.subr.mxu0 0.0
        %1733 = vmatpush1.msra.mxu0 0.0
        %1734 = vmatprep.subr.mxu0 0.0
        %1735 = vmatpush1.msra.mxu0 0.0
        %1736 = vmatprep.subr.mxu0 0.0
        %1737 = vmatpush1.msra.mxu0 0.0
        %1738 = vmatprep.subr.mxu0 0.0
        %1739 = vmatpush1.msra.mxu0 0.0
        %1740 = vmatprep.subr.mxu0 0.0
        %1741 = vmatpush1.msra.mxu0 0.0
        %1742 = vmatprep.subr.mxu0 0.0
        %1743 = vmatpush1.msra.mxu0 0.0
        %1744 = vmatprep.subr.mxu0 0.0
        %1745 = vmatpush1.msra.mxu0 0.0
        %1746 = vmatprep.subr.mxu0 0.0
        %1747 = vmatpush1.msra.mxu0 0.0
        %1748 = vmatprep.subr.mxu0 0.0
        %1749 = vmatpush1.msra.mxu0 0.0
        %1750 = vmatprep.subr.mxu0 0.0
        %1751 = vmatpush1.msra.mxu0 0.0
        %1752 = vmatprep.subr.mxu0 0.0
        %1753 = vmatpush1.msra.mxu0 0.0
        %1754 = vmatprep.mubr.f32.mxu0 0.0
        %1755 = vmatmul.mubr.f32.gmra.mrb[0].mxu0 %v558
        %v1756 = vpop.f32.mrb[0].mxu0
        %v1757 = vadd.f32 %v1688, %v1756
        %v1758 = vpop.f32.mrb[0].mxu0
        %1759 = vdwg.mxu0
        %v1761 = vsel %vm792, %v1591, 0
        %v1764 = vsel %vm792, %v1674, 0
        %1766 = vmatprep.subr.mxu0 0.0
        %1767 = vmatpush1.xpose.msra.mxu0 %v1764
        %1768 = vmatprep.subr.mxu0 0.0
        %1769 = vmatpush1.xpose.msra.mxu0 0.0
        %1770 = vmatprep.subr.mxu0 0.0
        %1771 = vmatpush1.xpose.msra.mxu0 0.0
        %1772 = vmatprep.subr.mxu0 0.0
        %1773 = vmatpush1.xpose.msra.mxu0 0.0
        %1774 = vmatprep.subr.mxu0 0.0
        %1775 = vmatpush1.xpose.msra.mxu0 0.0
        %1776 = vmatprep.subr.mxu0 0.0
        %1777 = vmatpush1.xpose.msra.mxu0 0.0
        %1778 = vmatprep.subr.mxu0 0.0
        %1779 = vmatpush1.xpose.msra.mxu0 0.0
        %1780 = vmatprep.subr.mxu0 0.0
        %1781 = vmatpush1.xpose.msra.mxu0 0.0
        %1782 = vmatprep.subr.mxu0 0.0
        %1783 = vmatpush1.xpose.msra.mxu0 0.0
        %1784 = vmatprep.subr.mxu0 0.0
        %1785 = vmatpush1.xpose.msra.mxu0 0.0
        %1786 = vmatprep.subr.mxu0 0.0
        %1787 = vmatpush1.xpose.msra.mxu0 0.0
        %1788 = vmatprep.subr.mxu0 0.0
        %1789 = vmatpush1.xpose.msra.mxu0 0.0
        %1790 = vmatprep.subr.mxu0 0.0
        %1791 = vmatpush1.xpose.msra.mxu0 0.0
        %1792 = vmatprep.subr.mxu0 0.0
        %1793 = vmatpush1.xpose.msra.mxu0 0.0
        %1794 = vmatprep.subr.mxu0 0.0
        %1795 = vmatpush1.xpose.msra.mxu0 0.0
        %1796 = vmatprep.subr.mxu0 0.0
        %1797 = vmatpush1.xpose.msra.mxu0 0.0
        %1798 = vmatprep.subr.mxu0 0.0
        %1799 = vmatpush1.xpose.msra.mxu0 0.0
        %1800 = vmatprep.subr.mxu0 0.0
        %1801 = vmatpush1.xpose.msra.mxu0 0.0
        %1802 = vmatprep.subr.mxu0 0.0
        %1803 = vmatpush1.xpose.msra.mxu0 0.0
        %1804 = vmatprep.subr.mxu0 0.0
        %1805 = vmatpush1.xpose.msra.mxu0 0.0
        %1806 = vmatprep.subr.mxu0 0.0
        %1807 = vmatpush1.xpose.msra.mxu0 0.0
        %1808 = vmatprep.subr.mxu0 0.0
        %1809 = vmatpush1.xpose.msra.mxu0 0.0
        %1810 = vmatprep.subr.mxu0 0.0
        %1811 = vmatpush1.xpose.msra.mxu0 0.0
        %1812 = vmatprep.subr.mxu0 0.0
        %1813 = vmatpush1.xpose.msra.mxu0 0.0
        %1814 = vmatprep.subr.mxu0 0.0
        %1815 = vmatpush1.xpose.msra.mxu0 0.0
        %1816 = vmatprep.subr.mxu0 0.0
        %1817 = vmatpush1.xpose.msra.mxu0 0.0
        %1818 = vmatprep.subr.mxu0 0.0
        %1819 = vmatpush1.xpose.msra.mxu0 0.0
        %1820 = vmatprep.subr.mxu0 0.0
        %1821 = vmatpush1.xpose.msra.mxu0 0.0
        %1822 = vmatprep.subr.mxu0 0.0
        %1823 = vmatpush1.xpose.msra.mxu0 0.0
        %1824 = vmatprep.subr.mxu0 0.0
        %1825 = vmatpush1.xpose.msra.mxu0 0.0
        %1826 = vmatprep.subr.mxu0 0.0
        %1827 = vmatpush1.xpose.msra.mxu0 0.0
        %1828 = vmatprep.subr.mxu0 0.0
        %1829 = vmatpush1.xpose.msra.mxu0 0.0
        %1830 = vmatprep.mubr.f32.mxu0 0.0
        %1831 = vmatmul.mubr.f32.gmra.mrb[0].mxu0 %v1761
        %v1832 = vpop.f32.mrb[0].mxu0
        %v1833 = vadd.f32 0.0, %v1832
        %v1834 = vpop.f32.mrb[0].mxu0
        %1835 = vdwg.mxu0
        %v1836 = vsel %vm792, %v1833, -inf
        %1837 = vmax.xlane.f32.xlu0 %v1836
        %v1838 = vpop.xlane.xlu0 %1837
        %v1839 = vsub.f32 %v1833, %v1838
        %v1840 = vmul.f32 %v1839, 1.442695
        %v1841 = vpow.pop %v1840
        %v1842 = vsel %vm792, %v1841, 0.0
        %1843 = vadd.xlane.f32.xlu0 %v1842
        %v1844 = vpop.xlane.xlu0 %1843
        %v1845 = vrcp.pop %v1844
        %v1846 = vmul.f32 %v1841, %v1845
        %v1848 = vsel %vm792, %v1846, 0
        %1850 = vmatprep.subr.mxu0 0.0
        %1851 = vmatpush1.msra.mxu0 %v1757
        %1852 = vmatprep.subr.mxu0 0.0
        %1853 = vmatpush1.msra.mxu0 0.0
        %1854 = vmatprep.subr.mxu0 0.0
        %1855 = vmatpush1.msra.mxu0 0.0
        %1856 = vmatprep.subr.mxu0 0.0
        %1857 = vmatpush1.msra.mxu0 0.0
        %1858 = vmatprep.subr.mxu0 0.0
        %1859 = vmatpush1.msra.mxu0 0.0
        %1860 = vmatprep.subr.mxu0 0.0
        %1861 = vmatpush1.msra.mxu0 0.0
        %1862 = vmatprep.subr.mxu0 0.0
        %1863 = vmatpush1.msra.mxu0 0.0
        %1864 = vmatprep.subr.mxu0 0.0
        %1865 = vmatpush1.msra.mxu0 0.0
        %1866 = vmatprep.subr.mxu0 0.0
        %1867 = vmatpush1.msra.mxu0 0.0
        %1868 = vmatprep.subr.mxu0 0.0
        %1869 = vmatpush1.msra.mxu0 0.0
        %1870 = vmatprep.subr.mxu0 0.0
        %1871 = vmatpush1.msra.mxu0 0.0
        %1872 = vmatprep.subr.mxu0 0.0
        %1873 = vmatpush1.msra.mxu0 0.0
        %1874 = vmatprep.subr.mxu0 0.0
        %1875 = vmatpush1.msra.mxu0 0.0
        %1876 = vmatprep.subr.mxu0 0.0
        %1877 = vmatpush1.msra.mxu0 0.0
        %1878 = vmatprep.subr.mxu0 0.0
        %1879 = vmatpush1.msra.mxu0 0.0
        %1880 = vmatprep.subr.mxu0 0.0
        %1881 = vmatpush1.msra.mxu0 0.0
        %1882 = vmatprep.subr.mxu0 0.0
        %1883 = vmatpush1.msra.mxu0 0.0
        %1884 = vmatprep.subr.mxu0 0.0
        %1885 = vmatpush1.msra.mxu0 0.0
        %1886 = vmatprep.subr.mxu0 0.0
        %1887 = vmatpush1.msra.mxu0 0.0
        %1888 = vmatprep.subr.mxu0 0.0
        %1889 = vmatpush1.msra.mxu0 0.0
        %1890 = vmatprep.subr.mxu0 0.0
        %1891 = vmatpush1.msra.mxu0 0.0
        %1892 = vmatprep.subr.mxu0 0.0
        %1893 = vmatpush1.msra.mxu0 0.0
        %1894 = vmatprep.subr.mxu0 0.0
        %1895 = vmatpush1.msra.mxu0 0.0
        %1896 = vmatprep.subr.mxu0 0.0
        %1897 = vmatpush1.msra.mxu0 0.0
        %1898 = vmatprep.subr.mxu0 0.0
        %1899 = vmatpush1.msra.mxu0 0.0
        %1900 = vmatprep.subr.mxu0 0.0
        %1901 = vmatpush1.msra.mxu0 0.0
        %1902 = vmatprep.subr.mxu0 0.0
        %1903 = vmatpush1.msra.mxu0 0.0
        %1904 = vmatprep.subr.mxu0 0.0
        %1905 = vmatpush1.msra.mxu0 0.0
        %1906 = vmatprep.subr.mxu0 0.0
        %1907 = vmatpush1.msra.mxu0 0.0
        %1908 = vmatprep.subr.mxu0 0.0
        %1909 = vmatpush1.msra.mxu0 0.0
        %1910 = vmatprep.subr.mxu0 0.0
        %1911 = vmatpush1.msra.mxu0 0.0
        %1912 = vmatprep.subr.mxu0 0.0
        %1913 = vmatpush1.msra.mxu0 0.0
        %1914 = vmatprep.mubr.f32.mxu0 0.0
        %1915 = vmatmul.mubr.f32.gmra.mrb[0].mxu0 %v1848
        %v1916 = vpop.f32.mrb[0].mxu0
        %v1917 = vadd.f32 0.0, %v1916
        %v1918 = vpop.f32.mrb[0].mxu0
        %1919 = vdwg.mxu0
        %s1920 = scalar_lea.vmem %s7, 16
        %v1921 = vld [vmem:[%s1920] sm:$0xff]
        %v1923 = vsel %vm792, %v1917, 0
        %1925 = vmatprep.subr.mxu0 0.0
        %1926 = vmatpush1.msra.mxu0 %v1921
        %1927 = vmatprep.subr.mxu0 0.0
        %1928 = vmatpush1.msra.mxu0 0.0
        %1929 = vmatprep.subr.mxu0 0.0
        %1930 = vmatpush1.msra.mxu0 0.0
        %1931 = vmatprep.subr.mxu0 0.0
        %1932 = vmatpush1.msra.mxu0 0.0
        %1933 = vmatprep.subr.mxu0 0.0
        %1934 = vmatpush1.msra.mxu0 0.0
        %1935 = vmatprep.subr.mxu0 0.0
        %1936 = vmatpush1.msra.mxu0 0.0
        %1937 = vmatprep.subr.mxu0 0.0
        %1938 = vmatpush1.msra.mxu0 0.0
        %1939 = vmatprep.subr.mxu0 0.0
        %1940 = vmatpush1.msra.mxu0 0.0
        %1941 = vmatprep.subr.mxu0 0.0
        %1942 = vmatpush1.msra.mxu0 0.0
        %1943 = vmatprep.subr.mxu0 0.0
        %1944 = vmatpush1.msra.mxu0 0.0
        %1945 = vmatprep.subr.mxu0 0.0
        %1946 = vmatpush1.msra.mxu0 0.0
        %1947 = vmatprep.subr.mxu0 0.0
        %1948 = vmatpush1.msra.mxu0 0.0
        %1949 = vmatprep.subr.mxu0 0.0
        %1950 = vmatpush1.msra.mxu0 0.0
        %1951 = vmatprep.subr.mxu0 0.0
        %1952 = vmatpush1.msra.mxu0 0.0
        %1953 = vmatprep.subr.mxu0 0.0
        %1954 = vmatpush1.msra.mxu0 0.0
        %1955 = vmatprep.subr.mxu0 0.0
        %1956 = vmatpush1.msra.mxu0 0.0
        %1957 = vmatprep.subr.mxu0 0.0
        %1958 = vmatpush1.msra.mxu0 0.0
        %1959 = vmatprep.subr.mxu0 0.0
        %1960 = vmatpush1.msra.mxu0 0.0
        %1961 = vmatprep.subr.mxu0 0.0
        %1962 = vmatpush1.msra.mxu0 0.0
        %1963 = vmatprep.subr.mxu0 0.0
        %1964 = vmatpush1.msra.mxu0 0.0
        %1965 = vmatprep.subr.mxu0 0.0
        %1966 = vmatpush1.msra.mxu0 0.0
        %1967 = vmatprep.subr.mxu0 0.0
        %1968 = vmatpush1.msra.mxu0 0.0
        %1969 = vmatprep.subr.mxu0 0.0
        %1970 = vmatpush1.msra.mxu0 0.0
        %1971 = vmatprep.subr.mxu0 0.0
        %1972 = vmatpush1.msra.mxu0 0.0
        %1973 = vmatprep.subr.mxu0 0.0
        %1974 = vmatpush1.msra.mxu0 0.0
        %1975 = vmatprep.subr.mxu0 0.0
        %1976 = vmatpush1.msra.mxu0 0.0
        %1977 = vmatprep.subr.mxu0 0.0
        %1978 = vmatpush1.msra.mxu0 0.0
        %1979 = vmatprep.subr.mxu0 0.0
        %1980 = vmatpush1.msra.mxu0 0.0
        %1981 = vmatprep.subr.mxu0 0.0
        %1982 = vmatpush1.msra.mxu0 0.0
        %1983 = vmatprep.subr.mxu0 0.0
        %1984 = vmatpush1.msra.mxu0 0.0
        %1985 = vmatprep.subr.mxu0 0.0
        %1986 = vmatpush1.msra.mxu0 0.0
        %1987 = vmatprep.subr.mxu0 0.0
        %1988 = vmatpush1.msra.mxu0 0.0
        %1989 = vmatprep.mubr.f32.mxu0 0.0
        %1990 = vmatmul.mubr.f32.gmra.mrb[0].mxu0 %v1923
        %v1991 = vpop.f32.mrb[0].mxu0
        %v1992 = vadd.f32 0.0, %v1991
        %v1993 = vpop.f32.mrb[0].mxu0
        %1994 = vdwg.mxu0
        %v1995 = vadd.f32 %v1508, %v1992
        %s1996 = scalar_lea.vmem %s1, 96
        %v1997 = vld [vmem:[%s1996] sm:$0xff]
        %v1998 = vld [vmem:[%s1996 + $0x8] sm:$0xff]
        %v1999 = vld [vmem:[%s1996 + $0x10] sm:$0xff]
        %v2000 = vld [vmem:[%s1996 + $0x18] sm:$0xff]
        %s2001 = scalar_lea.vmem %s4, 3
        %v2002 = vld [vmem:[%s2001] sm:$0x1]
        %v2004 = vlaneseq
        %v2005 = vshrl.u32 %v2004, 7
        %v2006 = vsub.s32 0, %v2005
        %v2007 = vrot.slane %v2002, %v2006
        %2009 = vmatprep.subr.mxu0 0.0
        %2010 = vmatpush1.msra.mxu0 %v1997
        %2011 = vmatprep.subr.mxu0 0.0
        %2012 = vmatpush1.msra.mxu0 %v1998
        %2013 = vmatprep.subr.mxu0 0.0
        %2014 = vmatpush1.msra.mxu0 %v1999
        %2015 = vmatprep.subr.mxu0 0.0
        %2016 = vmatpush1.msra.mxu0 %v2000
        %2017 = vmatprep.subr.mxu0 0.0
        %2018 = vmatpush1.msra.mxu0 0.0
        %2019 = vmatprep.subr.mxu0 0.0
        %2020 = vmatpush1.msra.mxu0 0.0
        %2021 = vmatprep.subr.mxu0 0.0
        %2022 = vmatpush1.msra.mxu0 0.0
        %2023 = vmatprep.subr.mxu0 0.0
        %2024 = vmatpush1.msra.mxu0 0.0
        %2025 = vmatprep.subr.mxu0 0.0
        %2026 = vmatpush1.msra.mxu0 0.0
        %2027 = vmatprep.subr.mxu0 0.0
        %2028 = vmatpush1.msra.mxu0 0.0
        %2029 = vmatprep.subr.mxu0 0.0
        %2030 = vmatpush1.msra.mxu0 0.0
        %2031 = vmatprep.subr.mxu0 0.0
        %2032 = vmatpush1.msra.mxu0 0.0
        %2033 = vmatprep.subr.mxu0 0.0
        %2034 = vmatpush1.msra.mxu0 0.0
        %2035 = vmatprep.subr.mxu0 0.0
        %2036 = vmatpush1.msra.mxu0 0.0
        %2037 = vmatprep.subr.mxu0 0.0
        %2038 = vmatpush1.msra.mxu0 0.0
        %2039 = vmatprep.subr.mxu0 0.0
        %2040 = vmatpush1.msra.mxu0 0.0
        %2041 = vmatprep.subr.mxu0 0.0
        %2042 = vmatpush1.msra.mxu0 0.0
        %2043 = vmatprep.subr.mxu0 0.0
        %2044 = vmatpush1.msra.mxu0 0.0
        %2045 = vmatprep.subr.mxu0 0.0
        %2046 = vmatpush1.msra.mxu0 0.0
        %2047 = vmatprep.subr.mxu0 0.0
        %2048 = vmatpush1.msra.mxu0 0.0
        %2049 = vmatprep.subr.mxu0 0.0
        %2050 = vmatpush1.msra.mxu0 0.0
        %2051 = vmatprep.subr.mxu0 0.0
        %2052 = vmatpush1.msra.mxu0 0.0
        %2053 = vmatprep.subr.mxu0 0.0
        %2054 = vmatpush1.msra.mxu0 0.0
        %2055 = vmatprep.subr.mxu0 0.0
        %2056 = vmatpush1.msra.mxu0 0.0
        %2057 = vmatprep.subr.mxu0 0.0
        %2058 = vmatpush1.msra.mxu0 0.0
        %2059 = vmatprep.subr.mxu0 0.0
        %2060 = vmatpush1.msra.mxu0 0.0
        %2061 = vmatprep.subr.mxu0 0.0
        %2062 = vmatpush1.msra.mxu0 0.0
        %2063 = vmatprep.subr.mxu0 0.0
        %2064 = vmatpush1.msra.mxu0 0.0
        %2065 = vmatprep.subr.mxu0 0.0
        %2066 = vmatpush1.msra.mxu0 0.0
        %2067 = vmatprep.subr.mxu0 0.0
        %2068 = vmatpush1.msra.mxu0 0.0
        %2069 = vmatprep.subr.mxu0 0.0
        %2070 = vmatpush1.msra.mxu0 0.0
        %2071 = vmatprep.subr.mxu0 0.0
        %2072 = vmatpush1.msra.mxu0 0.0
        %2073 = vmatprep.mubr.f32.mxu0 0.0
        %2074 = vmatmul.mubr.f32.gmra.mrb[0].mxu0 %v558
        %v2075 = vpop.f32.mrb[0].mxu0
        %v2076 = vadd.f32 %v2007, %v2075
        %v2077 = vpop.f32.mrb[0].mxu0
        %2078 = vdwg.mxu0
        %s2079 = scalar_lea.vmem %s2, 96
        %v2080 = vld [vmem:[%s2079] sm:$0xff]
        %v2081 = vld [vmem:[%s2079 + $0x8] sm:$0xff]
        %v2082 = vld [vmem:[%s2079 + $0x10] sm:$0xff]
        %v2083 = vld [vmem:[%s2079 + $0x18] sm:$0xff]
        %s2084 = scalar_lea.vmem %s5, 3
        %v2085 = vld [vmem:[%s2084] sm:$0x1]
        %v2087 = vlaneseq
        %v2088 = vshrl.u32 %v2087, 7
        %v2089 = vsub.s32 0, %v2088
        %v2090 = vrot.slane %v2085, %v2089
        %2092 = vmatprep.subr.mxu0 0.0
        %2093 = vmatpush1.msra.mxu0 %v2080
        %2094 = vmatprep.subr.mxu0 0.0
        %2095 = vmatpush1.msra.mxu0 %v2081
        %2096 = vmatprep.subr.mxu0 0.0
        %2097 = vmatpush1.msra.mxu0 %v2082
        %2098 = vmatprep.subr.mxu0 0.0
        %2099 = vmatpush1.msra.mxu0 %v2083
        %2100 = vmatprep.subr.mxu0 0.0
        %2101 = vmatpush1.msra.mxu0 0.0
        %2102 = vmatprep.subr.mxu0 0.0
        %2103 = vmatpush1.msra.mxu0 0.0
        %2104 = vmatprep.subr.mxu0 0.0
        %2105 = vmatpush1.msra.mxu0 0.0
        %2106 = vmatprep.subr.mxu0 0.0
        %2107 = vmatpush1.msra.mxu0 0.0
        %2108 = vmatprep.subr.mxu0 0.0
        %2109 = vmatpush1.msra.mxu0 0.0
        %2110 = vmatprep.subr.mxu0 0.0
        %2111 = vmatpush1.msra.mxu0 0.0
        %2112 = vmatprep.subr.mxu0 0.0
        %2113 = vmatpush1.msra.mxu0 0.0
        %2114 = vmatprep.subr.mxu0 0.0
        %2115 = vmatpush1.msra.mxu0 0.0
        %2116 = vmatprep.subr.mxu0 0.0
        %2117 = vmatpush1.msra.mxu0 0.0
        %2118 = vmatprep.subr.mxu0 0.0
        %2119 = vmatpush1.msra.mxu0 0.0
        %2120 = vmatprep.subr.mxu0 0.0
        %2121 = vmatpush1.msra.mxu0 0.0
        %2122 = vmatprep.subr.mxu0 0.0
        %2123 = vmatpush1.msra.mxu0 0.0
        %2124 = vmatprep.subr.mxu0 0.0
        %2125 = vmatpush1.msra.mxu0 0.0
        %2126 = vmatprep.subr.mxu0 0.0
        %2127 = vmatpush1.msra.mxu0 0.0
        %2128 = vmatprep.subr.mxu0 0.0
        %2129 = vmatpush1.msra.mxu0 0.0
        %2130 = vmatprep.subr.mxu0 0.0
        %2131 = vmatpush1.msra.mxu0 0.0
        %2132 = vmatprep.subr.mxu0 0.0
        %2133 = vmatpush1.msra.mxu0 0.0
        %2134 = vmatprep.subr.mxu0 0.0
        %2135 = vmatpush1.msra.mxu0 0.0
        %2136 = vmatprep.subr.mxu0 0.0
        %2137 = vmatpush1.msra.mxu0 0.0
        %2138 = vmatprep.subr.mxu0 0.0
        %2139 = vmatpush1.msra.mxu0 0.0
        %2140 = vmatprep.subr.mxu0 0.0
        %2141 = vmatpush1.msra.mxu0 0.0
        %2142 = vmatprep.subr.mxu0 0.0
        %2143 = vmatpush1.msra.mxu0 0.0
        %2144 = vmatprep.subr.mxu0 0.0
        %2145 = vmatpush1.msra.mxu0 0.0
        %2146 = vmatprep.subr.mxu0 0.0
        %2147 = vmatpush1.msra.mxu0 0.0
        %2148 = vmatprep.subr.mxu0 0.0
        %2149 = vmatpush1.msra.mxu0 0.0
        %2150 = vmatprep.subr.mxu0 0.0
        %2151 = vmatpush1.msra.mxu0 0.0
        %2152 = vmatprep.subr.mxu0 0.0
        %2153 = vmatpush1.msra.mxu0 0.0
        %2154 = vmatprep.subr.mxu0 0.0
        %2155 = vmatpush1.msra.mxu0 0.0
        %2156 = vmatprep.mubr.f32.mxu0 0.0
        %2157 = vmatmul.mubr.f32.gmra.mrb[0].mxu0 %v558
        %v2158 = vpop.f32.mrb[0].mxu0
        %v2159 = vadd.f32 %v2090, %v2158
        %v2160 = vpop.f32.mrb[0].mxu0
        %2161 = vdwg.mxu0
        %s2162 = scalar_lea.vmem %s3, 96
        %v2163 = vld [vmem:[%s2162] sm:$0xff]
        %v2164 = vld [vmem:[%s2162 + $0x8] sm:$0xff]
        %v2165 = vld [vmem:[%s2162 + $0x10] sm:$0xff]
        %v2166 = vld [vmem:[%s2162 + $0x18] sm:$0xff]
        %s2167 = scalar_lea.vmem %s6, 3
        %v2168 = vld [vmem:[%s2167] sm:$0x1]
        %v2170 = vlaneseq
        %v2171 = vshrl.u32 %v2170, 7
        %v2172 = vsub.s32 0, %v2171
        %v2173 = vrot.slane %v2168, %v2172
        %2175 = vmatprep.subr.mxu0 0.0
        %2176 = vmatpush1.msra.mxu0 %v2163
        %2177 = vmatprep.subr.mxu0 0.0
        %2178 = vmatpush1.msra.mxu0 %v2164
        %2179 = vmatprep.subr.mxu0 0.0
        %2180 = vmatpush1.msra.mxu0 %v2165
        %2181 = vmatprep.subr.mxu0 0.0
        %2182 = vmatpush1.msra.mxu0 %v2166
        %2183 = vmatprep.subr.mxu0 0.0
        %2184 = vmatpush1.msra.mxu0 0.0
        %2185 = vmatprep.subr.mxu0 0.0
        %2186 = vmatpush1.msra.mxu0 0.0
        %2187 = vmatprep.subr.mxu0 0.0
        %2188 = vmatpush1.msra.mxu0 0.0
        %2189 = vmatprep.subr.mxu0 0.0
        %2190 = vmatpush1.msra.mxu0 0.0
        %2191 = vmatprep.subr.mxu0 0.0
        %2192 = vmatpush1.msra.mxu0 0.0
        %2193 = vmatprep.subr.mxu0 0.0
        %2194 = vmatpush1.msra.mxu0 0.0
        %2195 = vmatprep.subr.mxu0 0.0
        %2196 = vmatpush1.msra.mxu0 0.0
        %2197 = vmatprep.subr.mxu0 0.0
        %2198 = vmatpush1.msra.mxu0 0.0
        %2199 = vmatprep.subr.mxu0 0.0
        %2200 = vmatpush1.msra.mxu0 0.0
        %2201 = vmatprep.subr.mxu0 0.0
        %2202 = vmatpush1.msra.mxu0 0.0
        %2203 = vmatprep.subr.mxu0 0.0
        %2204 = vmatpush1.msra.mxu0 0.0
        %2205 = vmatprep.subr.mxu0 0.0
        %2206 = vmatpush1.msra.mxu0 0.0
        %2207 = vmatprep.subr.mxu0 0.0
        %2208 = vmatpush1.msra.mxu0 0.0
        %2209 = vmatprep.subr.mxu0 0.0
        %2210 = vmatpush1.msra.mxu0 0.0
        %2211 = vmatprep.subr.mxu0 0.0
        %2212 = vmatpush1.msra.mxu0 0.0
        %2213 = vmatprep.subr.mxu0 0.0
        %2214 = vmatpush1.msra.mxu0 0.0
        %2215 = vmatprep.subr.mxu0 0.0
        %2216 = vmatpush1.msra.mxu0 0.0
        %2217 = vmatprep.subr.mxu0 0.0
        %2218 = vmatpush1.msra.mxu0 0.0
        %2219 = vmatprep.subr.mxu0 0.0
        %2220 = vmatpush1.msra.mxu0 0.0
        %2221 = vmatprep.subr.mxu0 0.0
        %2222 = vmatpush1.msra.mxu0 0.0
        %2223 = vmatprep.subr.mxu0 0.0
        %2224 = vmatpush1.msra.mxu0 0.0
        %2225 = vmatprep.subr.mxu0 0.0
        %2226 = vmatpush1.msra.mxu0 0.0
        %2227 = vmatprep.subr.mxu0 0.0
        %2228 = vmatpush1.msra.mxu0 0.0
        %2229 = vmatprep.subr.mxu0 0.0
        %2230 = vmatpush1.msra.mxu0 0.0
        %2231 = vmatprep.subr.mxu0 0.0
        %2232 = vmatpush1.msra.mxu0 0.0
        %2233 = vmatprep.subr.mxu0 0.0
        %2234 = vmatpush1.msra.mxu0 0.0
        %2235 = vmatprep.subr.mxu0 0.0
        %2236 = vmatpush1.msra.mxu0 0.0
        %2237 = vmatprep.subr.mxu0 0.0
        %2238 = vmatpush1.msra.mxu0 0.0
        %2239 = vmatprep.mubr.f32.mxu0 0.0
        %2240 = vmatmul.mubr.f32.gmra.mrb[0].mxu0 %v558
        %v2241 = vpop.f32.mrb[0].mxu0
        %v2242 = vadd.f32 %v2173, %v2241
        %v2243 = vpop.f32.mrb[0].mxu0
        %2244 = vdwg.mxu0
        %v2246 = vsel %vm792, %v2076, 0
        %v2249 = vsel %vm792, %v2159, 0
        %2251 = vmatprep.subr.mxu0 0.0
        %2252 = vmatpush1.xpose.msra.mxu0 %v2249
        %2253 = vmatprep.subr.mxu0 0.0
        %2254 = vmatpush1.xpose.msra.mxu0 0.0
        %2255 = vmatprep.subr.mxu0 0.0
        %2256 = vmatpush1.xpose.msra.mxu0 0.0
        %2257 = vmatprep.subr.mxu0 0.0
        %2258 = vmatpush1.xpose.msra.mxu0 0.0
        %2259 = vmatprep.subr.mxu0 0.0
        %2260 = vmatpush1.xpose.msra.mxu0 0.0
        %2261 = vmatprep.subr.mxu0 0.0
        %2262 = vmatpush1.xpose.msra.mxu0 0.0
        %2263 = vmatprep.subr.mxu0 0.0
        %2264 = vmatpush1.xpose.msra.mxu0 0.0
        %2265 = vmatprep.subr.mxu0 0.0
        %2266 = vmatpush1.xpose.msra.mxu0 0.0
        %2267 = vmatprep.subr.mxu0 0.0
        %2268 = vmatpush1.xpose.msra.mxu0 0.0
        %2269 = vmatprep.subr.mxu0 0.0
        %2270 = vmatpush1.xpose.msra.mxu0 0.0
        %2271 = vmatprep.subr.mxu0 0.0
        %2272 = vmatpush1.xpose.msra.mxu0 0.0
        %2273 = vmatprep.subr.mxu0 0.0
        %2274 = vmatpush1.xpose.msra.mxu0 0.0
        %2275 = vmatprep.subr.mxu0 0.0
        %2276 = vmatpush1.xpose.msra.mxu0 0.0
        %2277 = vmatprep.subr.mxu0 0.0
        %2278 = vmatpush1.xpose.msra.mxu0 0.0
        %2279 = vmatprep.subr.mxu0 0.0
        %2280 = vmatpush1.xpose.msra.mxu0 0.0
        %2281 = vmatprep.subr.mxu0 0.0
        %2282 = vmatpush1.xpose.msra.mxu0 0.0
        %2283 = vmatprep.subr.mxu0 0.0
        %2284 = vmatpush1.xpose.msra.mxu0 0.0
        %2285 = vmatprep.subr.mxu0 0.0
        %2286 = vmatpush1.xpose.msra.mxu0 0.0
        %2287 = vmatprep.subr.mxu0 0.0
        %2288 = vmatpush1.xpose.msra.mxu0 0.0
        %2289 = vmatprep.subr.mxu0 0.0
        %2290 = vmatpush1.xpose.msra.mxu0 0.0
        %2291 = vmatprep.subr.mxu0 0.0
        %2292 = vmatpush1.xpose.msra.mxu0 0.0
        %2293 = vmatprep.subr.mxu0 0.0
        %2294 = vmatpush1.xpose.msra.mxu0 0.0
        %2295 = vmatprep.subr.mxu0 0.0
        %2296 = vmatpush1.xpose.msra.mxu0 0.0
        %2297 = vmatprep.subr.mxu0 0.0
        %2298 = vmatpush1.xpose.msra.mxu0 0.0
        %2299 = vmatprep.subr.mxu0 0.0
        %2300 = vmatpush1.xpose.msra.mxu0 0.0
        %2301 = vmatprep.subr.mxu0 0.0
        %2302 = vmatpush1.xpose.msra.mxu0 0.0
        %2303 = vmatprep.subr.mxu0 0.0
        %2304 = vmatpush1.xpose.msra.mxu0 0.0
        %2305 = vmatprep.subr.mxu0 0.0
        %2306 = vmatpush1.xpose.msra.mxu0 0.0
        %2307 = vmatprep.subr.mxu0 0.0
        %2308 = vmatpush1.xpose.msra.mxu0 0.0
        %2309 = vmatprep.subr.mxu0 0.0
        %2310 = vmatpush1.xpose.msra.mxu0 0.0
        %2311 = vmatprep.subr.mxu0 0.0
        %2312 = vmatpush1.xpose.msra.mxu0 0.0
        %2313 = vmatprep.subr.mxu0 0.0
        %2314 = vmatpush1.xpose.msra.mxu0 0.0
        %2315 = vmatprep.mubr.f32.mxu0 0.0
        %2316 = vmatmul.mubr.f32.gmra.mrb[0].mxu0 %v2246
        %v2317 = vpop.f32.mrb[0].mxu0
        %v2318 = vadd.f32 0.0, %v2317
        %v2319 = vpop.f32.mrb[0].mxu0
        %2320 = vdwg.mxu0
        %v2321 = vsel %vm792, %v2318, -inf
        %2322 = vmax.xlane.f32.xlu0 %v2321
        %v2323 = vpop.xlane.xlu0 %2322
        %v2324 = vsub.f32 %v2318, %v2323
        %v2325 = vmul.f32 %v2324, 1.442695
        %v2326 = vpow.pop %v2325
        %v2327 = vsel %vm792, %v2326, 0.0
        %2328 = vadd.xlane.f32.xlu0 %v2327
        %v2329 = vpop.xlane.xlu0 %2328
        %v2330 = vrcp.pop %v2329
        %v2331 = vmul.f32 %v2326, %v2330
        %v2333 = vsel %vm792, %v2331, 0
        %2335 = vmatprep.subr.mxu0 0.0
        %2336 = vmatpush1.msra.mxu0 %v2242
        %2337 = vmatprep.subr.mxu0 0.0
        %2338 = vmatpush1.msra.mxu0 0.0
        %2339 = vmatprep.subr.mxu0 0.0
        %2340 = vmatpush1.msra.mxu0 0.0
        %2341 = vmatprep.subr.mxu0 0.0
        %2342 = vmatpush1.msra.mxu0 0.0
        %2343 = vmatprep.subr.mxu0 0.0
        %2344 = vmatpush1.msra.mxu0 0.0
        %2345 = vmatprep.subr.mxu0 0.0
        %2346 = vmatpush1.msra.mxu0 0.0
        %2347 = vmatprep.subr.mxu0 0.0
        %2348 = vmatpush1.msra.mxu0 0.0
        %2349 = vmatprep.subr.mxu0 0.0
        %2350 = vmatpush1.msra.mxu0 0.0
        %2351 = vmatprep.subr.mxu0 0.0
        %2352 = vmatpush1.msra.mxu0 0.0
        %2353 = vmatprep.subr.mxu0 0.0
        %2354 = vmatpush1.msra.mxu0 0.0
        %2355 = vmatprep.subr.mxu0 0.0
        %2356 = vmatpush1.msra.mxu0 0.0
        %2357 = vmatprep.subr.mxu0 0.0
        %2358 = vmatpush1.msra.mxu0 0.0
        %2359 = vmatprep.subr.mxu0 0.0
        %2360 = vmatpush1.msra.mxu0 0.0
        %2361 = vmatprep.subr.mxu0 0.0
        %2362 = vmatpush1.msra.mxu0 0.0
        %2363 = vmatprep.subr.mxu0 0.0
        %2364 = vmatpush1.msra.mxu0 0.0
        %2365 = vmatprep.subr.mxu0 0.0
        %2366 = vmatpush1.msra.mxu0 0.0
        %2367 = vmatprep.subr.mxu0 0.0
        %2368 = vmatpush1.msra.mxu0 0.0
        %2369 = vmatprep.subr.mxu0 0.0
        %2370 = vmatpush1.msra.mxu0 0.0
        %2371 = vmatprep.subr.mxu0 0.0
        %2372 = vmatpush1.msra.mxu0 0.0
        %2373 = vmatprep.subr.mxu0 0.0
        %2374 = vmatpush1.msra.mxu0 0.0
        %2375 = vmatprep.subr.mxu0 0.0
        %2376 = vmatpush1.msra.mxu0 0.0
        %2377 = vmatprep.subr.mxu0 0.0
        %2378 = vmatpush1.msra.mxu0 0.0
        %2379 = vmatprep.subr.mxu0 0.0
        %2380 = vmatpush1.msra.mxu0 0.0
        %2381 = vmatprep.subr.mxu0 0.0
        %2382 = vmatpush1.msra.mxu0 0.0
        %2383 = vmatprep.subr.mxu0 0.0
        %2384 = vmatpush1.msra.mxu0 0.0
        %2385 = vmatprep.subr.mxu0 0.0
        %2386 = vmatpush1.msra.mxu0 0.0
        %2387 = vmatprep.subr.mxu0 0.0
        %2388 = vmatpush1.msra.mxu0 0.0
        %2389 = vmatprep.subr.mxu0 0.0
        %2390 = vmatpush1.msra.mxu0 0.0
        %2391 = vmatprep.subr.mxu0 0.0
        %2392 = vmatpush1.msra.mxu0 0.0
        %2393 = vmatprep.subr.mxu0 0.0
        %2394 = vmatpush1.msra.mxu0 0.0
        %2395 = vmatprep.subr.mxu0 0.0
        %2396 = vmatpush1.msra.mxu0 0.0
        %2397 = vmatprep.subr.mxu0 0.0
        %2398 = vmatpush1.msra.mxu0 0.0
        %2399 = vmatprep.mubr.f32.mxu0 0.0
        %2400 = vmatmul.mubr.f32.gmra.mrb[0].mxu0 %v2333
        %v2401 = vpop.f32.mrb[0].mxu0
        %v2402 = vadd.f32 0.0, %v2401
        %v2403 = vpop.f32.mrb[0].mxu0
        %2404 = vdwg.mxu0
        %s2405 = scalar_lea.vmem %s7, 24
        %v2406 = vld [vmem:[%s2405] sm:$0xff]
        %v2408 = vsel %vm792, %v2402, 0
        %2410 = vmatprep.subr.mxu0 0.0
        %2411 = vmatpush1.msra.mxu0 %v2406
        %2412 = vmatprep.subr.mxu0 0.0
        %2413 = vmatpush1.msra.mxu0 0.0
        %2414 = vmatprep.subr.mxu0 0.0
        %2415 = vmatpush1.msra.mxu0 0.0
        %2416 = vmatprep.subr.mxu0 0.0
        %2417 = vmatpush1.msra.mxu0 0.0
        %2418 = vmatprep.subr.mxu0 0.0
        %2419 = vmatpush1.msra.mxu0 0.0
        %2420 = vmatprep.subr.mxu0 0.0
        %2421 = vmatpush1.msra.mxu0 0.0
        %2422 = vmatprep.subr.mxu0 0.0
        %2423 = vmatpush1.msra.mxu0 0.0
        %2424 = vmatprep.subr.mxu0 0.0
        %2425 = vmatpush1.msra.mxu0 0.0
        %2426 = vmatprep.subr.mxu0 0.0
        %2427 = vmatpush1.msra.mxu0 0.0
        %2428 = vmatprep.subr.mxu0 0.0
        %2429 = vmatpush1.msra.mxu0 0.0
        %2430 = vmatprep.subr.mxu0 0.0
        %2431 = vmatpush1.msra.mxu0 0.0
        %2432 = vmatprep.subr.mxu0 0.0
        %2433 = vmatpush1.msra.mxu0 0.0
        %2434 = vmatprep.subr.mxu0 0.0
        %2435 = vmatpush1.msra.mxu0 0.0
        %2436 = vmatprep.subr.mxu0 0.0
        %2437 = vmatpush1.msra.mxu0 0.0
        %2438 = vmatprep.subr.mxu0 0.0
        %2439 = vmatpush1.msra.mxu0 0.0
        %2440 = vmatprep.subr.mxu0 0.0
        %2441 = vmatpush1.msra.mxu0 0.0
        %2442 = vmatprep.subr.mxu0 0.0
        %2443 = vmatpush1.msra.mxu0 0.0
        %2444 = vmatprep.subr.mxu0 0.0
        %2445 = vmatpush1.msra.mxu0 0.0
        %2446 = vmatprep.subr.mxu0 0.0
        %2447 = vmatpush1.msra.mxu0 0.0
        %2448 = vmatprep.subr.mxu0 0.0
        %2449 = vmatpush1.msra.mxu0 0.0
        %2450 = vmatprep.subr.mxu0 0.0
        %2451 = vmatpush1.msra.mxu0 0.0
        %2452 = vmatprep.subr.mxu0 0.0
        %2453 = vmatpush1.msra.mxu0 0.0
        %2454 = vmatprep.subr.mxu0 0.0
        %2455 = vmatpush1.msra.mxu0 0.0
        %2456 = vmatprep.subr.mxu0 0.0
        %2457 = vmatpush1.msra.mxu0 0.0
        %2458 = vmatprep.subr.mxu0 0.0
        %2459 = vmatpush1.msra.mxu0 0.0
        %2460 = vmatprep.subr.mxu0 0.0
        %2461 = vmatpush1.msra.mxu0 0.0
        %2462 = vmatprep.subr.mxu0 0.0
        %2463 = vmatpush1.msra.mxu0 0.0
        %2464 = vmatprep.subr.mxu0 0.0
        %2465 = vmatpush1.msra.mxu0 0.0
        %2466 = vmatprep.subr.mxu0 0.0
        %2467 = vmatpush1.msra.mxu0 0.0
        %2468 = vmatprep.subr.mxu0 0.0
        %2469 = vmatpush1.msra.mxu0 0.0
        %2470 = vmatprep.subr.mxu0 0.0
        %2471 = vmatpush1.msra.mxu0 0.0
        %2472 = vmatprep.subr.mxu0 0.0
        %2473 = vmatpush1.msra.mxu0 0.0
        %2474 = vmatprep.mubr.f32.mxu0 0.0
        %2475 = vmatmul.mubr.f32.gmra.mrb[0].mxu0 %v2408
        %v2476 = vpop.f32.mrb[0].mxu0
        %v2477 = vadd.f32 0.0, %v2476
        %v2478 = vpop.f32.mrb[0].mxu0
        %2479 = vdwg.mxu0
        %v2480 = vadd.f32 %v1995, %v2477
        %v2481 = vld [vmem:[%s8] sm:$0x1]
        %v2483 = vlaneseq
        %v2484 = vshrl.u32 %v2483, 7
        %v2485 = vsub.s32 0, %v2484
        %v2486 = vrot.slane %v2481, %v2485
        %v2488 = vadd.f32 %v2480, %v2486
        %v2489 = vadd.f32 %v544, %v2488
        %v2490 = vld [vmem:[%s13] sm:$0x1]
        %v2491 = vld [vmem:[%s14] sm:$0x1]
        %v2492 = vsel %vm556, %v2489, 0.0
        %2493 = vadd.xlane.f32.xlu0 %v2492
        %v2494 = vpop.xlane.xlu0 %2493
        %v2495 = vrcp.pop 32.0
        %v2496 = vmul.f32 %v2494, %v2495
        %v2497 = vsub.f32 %v2489, %v2496
        %v2498 = vmul.f32 %v2497, %v2497
        %v2499 = vsel %vm556, %v2498, 0.0
        %2500 = vadd.xlane.f32.xlu0 %v2499
        %v2501 = vpop.xlane.xlu0 %2500
        %v2502 = vmul.f32 %v2501, %v2495
        %v2503 = vadd.f32 %v2502, 1e-05
        %v2504 = vrsqrt.pop %v2503
        %v2505 = vmul.f32 %v2497, %v2504
        %v2507 = vlaneseq
        %v2508 = vshrl.u32 %v2507, 7
        %v2509 = vsub.s32 0, %v2508
        %v2510 = vrot.slane %v2490, %v2509
        %v2512 = vmul.f32 %v2505, %v2510
        %v2514 = vlaneseq
        %v2515 = vshrl.u32 %v2514, 7
        %v2516 = vsub.s32 0, %v2515
        %v2517 = vrot.slane %v2491, %v2516
        %v2519 = vadd.f32 %v2512, %v2517
        %v2520 = vld [vmem:[%s9] sm:$0xff]
        %v2521 = vld [vmem:[%s9 + $0x8] sm:$0xff]
        %v2522 = vld [vmem:[%s9 + $0x10] sm:$0xff]
        %v2523 = vld [vmem:[%s9 + $0x18] sm:$0xff]
        %v2524 = vld [vmem:[%s10] sm:$0x1]
        %v2526 = vlaneseq
        %v2527 = vshrl.u32 %v2526, 7
        %v2528 = vsub.s32 0, %v2527
        %v2529 = vrot.slane %v2524, %v2528
        %v2532 = vsel %vm556, %v2519, 0
        %2534 = vmatprep.subr.mxu0 0.0
        %2535 = vmatpush1.msra.mxu0 %v2520
        %2536 = vmatprep.subr.mxu0 0.0
        %2537 = vmatpush1.msra.mxu0 %v2521
        %2538 = vmatprep.subr.mxu0 0.0
        %2539 = vmatpush1.msra.mxu0 %v2522
        %2540 = vmatprep.subr.mxu0 0.0
        %2541 = vmatpush1.msra.mxu0 %v2523
        %2542 = vmatprep.subr.mxu0 0.0
        %2543 = vmatpush1.msra.mxu0 0.0
        %2544 = vmatprep.subr.mxu0 0.0
        %2545 = vmatpush1.msra.mxu0 0.0
        %2546 = vmatprep.subr.mxu0 0.0
        %2547 = vmatpush1.msra.mxu0 0.0
        %2548 = vmatprep.subr.mxu0 0.0
        %2549 = vmatpush1.msra.mxu0 0.0
        %2550 = vmatprep.subr.mxu0 0.0
        %2551 = vmatpush1.msra.mxu0 0.0
        %2552 = vmatprep.subr.mxu0 0.0
        %2553 = vmatpush1.msra.mxu0 0.0
        %2554 = vmatprep.subr.mxu0 0.0
        %2555 = vmatpush1.msra.mxu0 0.0
        %2556 = vmatprep.subr.mxu0 0.0
        %2557 = vmatpush1.msra.mxu0 0.0
        %2558 = vmatprep.subr.mxu0 0.0
        %2559 = vmatpush1.msra.mxu0 0.0
        %2560 = vmatprep.subr.mxu0 0.0
        %2561 = vmatpush1.msra.mxu0 0.0
        %2562 = vmatprep.subr.mxu0 0.0
        %2563 = vmatpush1.msra.mxu0 0.0
        %2564 = vmatprep.subr.mxu0 0.0
        %2565 = vmatpush1.msra.mxu0 0.0
        %2566 = vmatprep.subr.mxu0 0.0
        %2567 = vmatpush1.msra.mxu0 0.0
        %2568 = vmatprep.subr.mxu0 0.0
        %2569 = vmatpush1.msra.mxu0 0.0
        %2570 = vmatprep.subr.mxu0 0.0
        %2571 = vmatpush1.msra.mxu0 0.0
        %2572 = vmatprep.subr.mxu0 0.0
        %2573 = vmatpush1.msra.mxu0 0.0
        %2574 = vmatprep.subr.mxu0 0.0
        %2575 = vmatpush1.msra.mxu0 0.0
        %2576 = vmatprep.subr.mxu0 0.0
        %2577 = vmatpush1.msra.mxu0 0.0
        %2578 = vmatprep.subr.mxu0 0.0
        %2579 = vmatpush1.msra.mxu0 0.0
        %2580 = vmatprep.subr.mxu0 0.0
        %2581 = vmatpush1.msra.mxu0 0.0
        %2582 = vmatprep.subr.mxu0 0.0
        %2583 = vmatpush1.msra.mxu0 0.0
        %2584 = vmatprep.subr.mxu0 0.0
        %2585 = vmatpush1.msra.mxu0 0.0
        %2586 = vmatprep.subr.mxu0 0.0
        %2587 = vmatpush1.msra.mxu0 0.0
        %2588 = vmatprep.subr.mxu0 0.0
        %2589 = vmatpush1.msra.mxu0 0.0
        %2590 = vmatprep.subr.mxu0 0.0
        %2591 = vmatpush1.msra.mxu0 0.0
        %2592 = vmatprep.subr.mxu0 0.0
        %2593 = vmatpush1.msra.mxu0 0.0
        %2594 = vmatprep.subr.mxu0 0.0
        %2595 = vmatpush1.msra.mxu0 0.0
        %2596 = vmatprep.subr.mxu0 0.0
        %2597 = vmatpush1.msra.mxu0 0.0
        %2598 = vmatprep.mubr.f32.mxu0 0.0
        %2599 = vmatmul.mubr.f32.gmra.mrb[0].mxu0 %v2532
        %v2600 = vpop.f32.mrb[0].mxu0
        %v2601 = vadd.f32 %v2529, %v2600
        %v2602 = vpop.f32.mrb[0].mxu0
        %2603 = vdwg.mxu0
        %v2604 = vmax.f32 %v2601, 0.0
        %v2605 = vld [vmem:[%s11] sm:$0xff]
        %v2606 = vld [vmem:[%s11 + $0x8] sm:$0xff]
        %v2607 = vld [vmem:[%s11 + $0x10] sm:$0xff]
        %v2608 = vld [vmem:[%s11 + $0x18] sm:$0xff]
        %v2609 = vld [vmem:[%s11 + $0x20] sm:$0xff]
        %v2610 = vld [vmem:[%s11 + $0x28] sm:$0xff]
        %v2611 = vld [vmem:[%s11 + $0x30] sm:$0xff]
        %v2612 = vld [vmem:[%s11 + $0x38] sm:$0xff]
        %v2613 = vld [vmem:[%s12] sm:$0x1]
        %v2615 = vlaneseq
        %v2616 = vshrl.u32 %v2615, 7
        %v2617 = vsub.s32 0, %v2616
        %v2618 = vrot.slane %v2613, %v2617
        %vm2620 = vcmask 523264
        %v2622 = vsel %vm2620, %v2604, 0
        %2624 = vmatprep.subr.mxu0 0.0
        %2625 = vmatpush1.msra.mxu0 %v2605
        %2626 = vmatprep.subr.mxu0 0.0
        %2627 = vmatpush1.msra.mxu0 %v2606
        %2628 = vmatprep.subr.mxu0 0.0
        %2629 = vmatpush1.msra.mxu0 %v2607
        %2630 = vmatprep.subr.mxu0 0.0
        %2631 = vmatpush1.msra.mxu0 %v2608
        %2632 = vmatprep.subr.mxu0 0.0
        %2633 = vmatpush1.msra.mxu0 %v2609
        %2634 = vmatprep.subr.mxu0 0.0
        %2635 = vmatpush1.msra.mxu0 %v2610
        %2636 = vmatprep.subr.mxu0 0.0
        %2637 = vmatpush1.msra.mxu0 %v2611
        %2638 = vmatprep.subr.mxu0 0.0
        %2639 = vmatpush1.msra.mxu0 %v2612
        %2640 = vmatprep.subr.mxu0 0.0
        %2641 = vmatpush1.msra.mxu0 0.0
        %2642 = vmatprep.subr.mxu0 0.0
        %2643 = vmatpush1.msra.mxu0 0.0
        %2644 = vmatprep.subr.mxu0 0.0
        %2645 = vmatpush1.msra.mxu0 0.0
        %2646 = vmatprep.subr.mxu0 0.0
        %2647 = vmatpush1.msra.mxu0 0.0
        %2648 = vmatprep.subr.mxu0 0.0
        %2649 = vmatpush1.msra.mxu0 0.0
        %2650 = vmatprep.subr.mxu0 0.0
        %2651 = vmatpush1.msra.mxu0 0.0
        %2652 = vmatprep.subr.mxu0 0.0
        %2653 = vmatpush1.msra.mxu0 0.0
        %2654 = vmatprep.subr.mxu0 0.0
        %2655 = vmatpush1.msra.mxu0 0.0
        %2656 = vmatprep.subr.mxu0 0.0
        %2657 = vmatpush1.msra.mxu0 0.0
        %2658 = vmatprep.subr.mxu0 0.0
        %2659 = vmatpush1.msra.mxu0 0.0
        %2660 = vmatprep.subr.mxu0 0.0
        %2661 = vmatpush1.msra.mxu0 0.0
        %2662 = vmatprep.subr.mxu0 0.0
        %2663 = vmatpush1.msra.mxu0 0.0
        %2664 = vmatprep.subr.mxu0 0.0
        %2665 = vmatpush1.msra.mxu0 0.0
        %2666 = vmatprep.subr.mxu0 0.0
        %2667 = vmatpush1.msra.mxu0 0.0
        %2668 = vmatprep.subr.mxu0 0.0
        %2669 = vmatpush1.msra.mxu0 0.0
        %2670 = vmatprep.subr.mxu0 0.0
        %2671 = vmatpush1.msra.mxu0 0.0
        %2672 = vmatprep.subr.mxu0 0.0
        %2673 = vmatpush1.msra.mxu0 0.0
        %2674 = vmatprep.subr.mxu0 0.0
        %2675 = vmatpush1.msra.mxu0 0.0
        %2676 = vmatprep.subr.mxu0 0.0
        %2677 = vmatpush1.msra.mxu0 0.0
        %2678 = vmatprep.subr.mxu0 0.0
        %2679 = vmatpush1.msra.mxu0 0.0
        %2680 = vmatprep.subr.mxu0 0.0
        %2681 = vmatpush1.msra.mxu0 0.0
        %2682 = vmatprep.subr.mxu0 0.0
        %2683 = vmatpush1.msra.mxu0 0.0
        %2684 = vmatprep.subr.mxu0 0.0
        %2685 = vmatpush1.msra.mxu0 0.0
        %2686 = vmatprep.subr.mxu0 0.0
        %2687 = vmatpush1.msra.mxu0 0.0
        %2688 = vmatprep.mubr.f32.mxu0 0.0
        %2689 = vmatmul.mubr.f32.gmra.mrb[0].mxu0 %v2622
        %v2690 = vpop.f32.mrb[0].mxu0
        %v2691 = vadd.f32 %v2618, %v2690
        %v2692 = vpop.f32.mrb[0].mxu0
        %2693 = vdwg.mxu0
        %v2694 = vadd.f32 %v2519, %v2691
        %v2695 = vld [vmem:[%s15] sm:$0x1]
        %v2696 = vld [vmem:[%s16] sm:$0x1]
        %v2697 = vsel %vm556, %v2694, 0.0
        %2698 = vadd.xlane.f32.xlu0 %v2697
        %v2699 = vpop.xlane.xlu0 %2698
        %v2700 = vmul.f32 %v2699, %v2495
        %v2701 = vsub.f32 %v2694, %v2700
        %v2702 = vmul.f32 %v2701, %v2701
        %v2703 = vsel %vm556, %v2702, 0.0
        %2704 = vadd.xlane.f32.xlu0 %v2703
        %v2705 = vpop.xlane.xlu0 %2704
        %v2706 = vmul.f32 %v2705, %v2495
        %v2707 = vadd.f32 %v2706, 1e-05
        %v2708 = vrsqrt.pop %v2707
        %v2709 = vmul.f32 %v2701, %v2708
        %v2711 = vlaneseq
        %v2712 = vshrl.u32 %v2711, 7
        %v2713 = vsub.s32 0, %v2712
        %v2714 = vrot.slane %v2695, %v2713
        %v2716 = vmul.f32 %v2709, %v2714
        %v2718 = vlaneseq
        %v2719 = vshrl.u32 %v2718, 7
        %v2720 = vsub.s32 0, %v2719
        %v2721 = vrot.slane %v2696, %v2720
        %v2723 = vadd.f32 %v2716, %v2721
        %2724 = vst.msk [vmem:[%s539] sm:$0xff] %vm556, %v2723
        %s2725 = sand.u32 %s401, 1
        %s2726 = scalar_lea.sflag [#allocation3], %s2725
        %s2727 = sand.u32 %s401, 1
        %s2728 = smul.addr %s2727, 8
        %s2729 = scalar_lea.vmem [#allocation2], %s2728
        // Predicated region
        $region89: #{tpu_custom_call.1} parent=87 // pred_check
          %p2730 = pneg %p411
        $region90: #{tpu_custom_call.1} parent=87 // pred_check_branch
          %2732 = sbr.rel (%p2730) target = $region92
        $region91: #{tpu_custom_call.1} parent=87 // pred_region
          %s2734 = ssub.s32 128, 128
          %2735 = vsyncadd %s2726, %s2734
          %s2736 = smul.addr %s31, 128
          %s2737 = scalar_lea.hbm %s17, %s2736
          %s2739 = sshll.u32 %s2729, 4
          %s2740 = int_to_ptr.vmem [resolvable:$true] %s2739
          %2742 = dma.vmem_to_hbm [thread:$0]  %s2740, 128, %s2737, %s2726
        $region92: #{tpu_custom_call.1} parent=87 // pred_fallthru
          _
      $region88: #{tpu_custom_call.1} parent=5 // pred_fallthru
        _
      %p2743 = scmp.le.s32.totalorder 2, %s26
      // Predicated region
      $region93: #{tpu_custom_call.1} parent=5 // pred_check
        %p2744 = pneg %p2743
      $region94: #{tpu_custom_call.1} parent=5 // pred_check_branch
        %2746 = sbr.rel (%p2744) target = $region96
      $region95: #{tpu_custom_call.1} parent=5 // pred_region
        %s2747 = ssub.s32 %s26, 2
        // Predicated region
        $region97: #{tpu_custom_call.1} parent=95 // pred_check
          %p2748 = pneg %p417
        $region98: #{tpu_custom_call.1} parent=95 // pred_check_branch
          %2750 = sbr.rel (%p2748) target = $region100
        $region99: #{tpu_custom_call.1} parent=95 // pred_region
          %s2751 = sand.u32 %s402, 1
          %s2752 = scalar_lea.sflag [#allocation3], %s2751
          %s2753 = sand.u32 %s402, 1
          %s2754 = smul.addr %s2753, 8
          %s2755 = scalar_lea.vmem [#allocation2], %s2754
          %2756 = dma.done %s2752, 128
        $region100: #{tpu_custom_call.1} parent=95 // pred_fallthru
          _
      $region96: #{tpu_custom_call.1} parent=5 // pred_fallthru
        _
    $region6: #{tpu_custom_call.1} parent=1 // loop_footer
      %s30 = sadd.s32 1, %s26
    $region7: #{tpu_custom_call.1} parent=1 // loop_footer_branch
      %25 = sbr.rel target = $region3
    $region8: #{tpu_custom_call.1} parent=1 // loop_exit
      _
    %2757 = vsyncpa [#allocation3], 1
    %s2758 = scalar_lea.sflag [#allocation3], 1
    %2759 = vsyncpa %s2758, 1

// kernel: tpu_custom_call.1
$region0: #{tpu_custom_call.1}
  #allocation0 [shape = 'u32[]', space=smem, size = 0x4, offset = 0x4, fixed_abs, tag = 'smem constant byte address 0x4 - core index']
  #allocation1 [shape = 'u32[144,128]{1,0:T(1,128)}', space=vmem, size = 0x12000, scoped, tag = 'internal scratch']
  %s0 = inlined_call_operand.vmem [shape: f32[2,8,32], index: 0, kind: input, shape index: {}]
  %s1 = inlined_call_operand.vmem [shape: f32[4,32,8], index: 1, kind: input, shape index: {}]
  %s2 = inlined_call_operand.vmem [shape: f32[4,32,8], index: 2, kind: input, shape index: {}]
  %s3 = inlined_call_operand.vmem [shape: f32[4,32,8], index: 3, kind: input, shape index: {}]
  %s4 = inlined_call_operand.vmem [shape: f32[4,1,8], index: 4, kind: input, shape index: {}]
  %s5 = inlined_call_operand.vmem [shape: f32[4,1,8], index: 5, kind: input, shape index: {}]
  %s6 = inlined_call_operand.vmem [shape: f32[4,1,8], index: 6, kind: input, shape index: {}]
  %s7 = inlined_call_operand.vmem [shape: f32[4,8,32], index: 7, kind: input, shape index: {}]
  %s8 = inlined_call_operand.vmem [shape: f32[1,32], index: 8, kind: input, shape index: {}]
  %s9 = inlined_call_operand.vmem [shape: f32[32,64], index: 9, kind: input, shape index: {}]
  %s10 = inlined_call_operand.vmem [shape: f32[1,64], index: 10, kind: input, shape index: {}]
  %s11 = inlined_call_operand.vmem [shape: f32[64,32], index: 11, kind: input, shape index: {}]
  %s12 = inlined_call_operand.vmem [shape: f32[1,32], index: 12, kind: input, shape index: {}]
  %s13 = inlined_call_operand.vmem [shape: f32[1,32], index: 13, kind: input, shape index: {}]
  %s14 = inlined_call_operand.vmem [shape: f32[1,32], index: 14, kind: input, shape index: {}]
  %s15 = inlined_call_operand.vmem [shape: f32[1,32], index: 15, kind: input, shape index: {}]
  %s16 = inlined_call_operand.vmem [shape: f32[1,32], index: 16, kind: input, shape index: {}]
  %s17 = inlined_call_operand.hbm [shape: f32[2,8,32], index: 17, kind: output, shape index: {}]
  %s18 = sld [smem:[#allocation0]]
  $region101: #{tpu_custom_call.1} parent=0
    _
  %s20 = ssub.s32 1, %s18
  %s21 = scalar_select 0, %s20, %s18
  $region1: #{tpu_custom_call.1} parent=0
    #allocation2 [shape = 'u8[8192]{0}', space=vmem, size = 0x2000, scoped, tag = 'output window, operand 0']
    #allocation3 [shape = 's32[2]{0}', space=sflag, size = 0x8, scoped, tag = 'scoped memory for tpu_custom_call.1']
    %22 = vsyncpa [#allocation3], 0
    %s23 = scalar_lea.sflag [#allocation3], 1
    %24 = vsyncpa %s23, 0
    loop: start=0, step=1, limit=4
    $region2: #{tpu_custom_call.1} parent=1 // loop_pre_header
      _
    $region3: #{tpu_custom_call.1} parent=1 // loop_header
      %s26 = sphi 0, %s30
      %p27 = scmp.ge.s32.totalorder %s26, 4
      %s36 = sphi 0, %s38
      %s39 = sphi 0, %s36
      %s40 = sphi 0, %s39
      %s56 = sphi 0, %s40
      %s60 = sphi 0, %s60
      %s62 = sphi 0, %s60
      %s63 = sphi 0, %s62
      %s77 = sphi 0, %s63
      %s81 = sphi 0, %s81
      %s83 = sphi 0, %s81
      %s84 = sphi 0, %s83
      %s98 = sphi 0, %s84
      %s102 = sphi 0, %s102
      %s104 = sphi 0, %s102
      %s105 = sphi 0, %s104
      %s119 = sphi 0, %s105
      %s123 = sphi 0, %s123
      %s125 = sphi 0, %s123
      %s126 = sphi 0, %s125
      %s140 = sphi 0, %s126
      %s144 = sphi 0, %s144
      %s146 = sphi 0, %s144
      %s147 = sphi 0, %s146
      %s161 = sphi 0, %s147
      %s165 = sphi 0, %s165
      %s167 = sphi 0, %s165
      %s168 = sphi 0, %s167
      %s182 = sphi 0, %s168
      %s186 = sphi 0, %s186
      %s188 = sphi 0, %s186
      %s189 = sphi 0, %s188
      %s203 = sphi 0, %s189
      %s207 = sphi 0, %s207
      %s209 = sphi 0, %s207
      %s210 = sphi 0, %s209
      %s224 = sphi 0, %s210
      %s228 = sphi 0, %s228
      %s230 = sphi 0, %s228
      %s231 = sphi 0, %s230
      %s245 = sphi 0, %s231
      %s249 = sphi 0, %s249
      %s251 = sphi 0, %s249
      %s252 = sphi 0, %s251
      %s266 = sphi 0, %s252
      %s270 = sphi 0, %s270
      %s272 = sphi 0, %s270
      %s273 = sphi 0, %s272
      %s287 = sphi 0, %s273
      %s291 = sphi 0, %s291
      %s293 = sphi 0, %s291
      %s294 = sphi 0, %s293
      %s308 = sphi 0, %s294
      %s312 = sphi 0, %s312
      %s314 = sphi 0, %s312
      %s315 = sphi 0, %s314
      %s329 = sphi 0, %s315
      %s333 = sphi 0, %s333
      %s335 = sphi 0, %s333
      %s336 = sphi 0, %s335
      %s350 = sphi 0, %s336
      %s354 = sphi 0, %s354
      %s356 = sphi 0, %s354
      %s357 = sphi 0, %s356
      %s371 = sphi 0, %s357
      %s375 = sphi 0, %s375
      %s377 = sphi 0, %s375
      %s378 = sphi 0, %s377
      %s392 = sphi 0, %s378
      %s398 = sphi 0, %s400
      %s401 = sphi 0, %s398
      %s402 = sphi 0, %s401
      %s418 = sphi 0, %s402
    $region4: #{tpu_custom_call.1} parent=1 // loop_header_branch
      %29 = sbr.rel (%p27) target = $region8
    $region5: #{tpu_custom_call.1} parent=1 // loop_body
      %s31 = ssub.s32 %s26, 1
      %s32 = ssub.s32 %s26, 2
      %s33 = sadd.s32 %s26, 1
      %s34 = ssub.s32 %s26, %s33
      %p35 = scmp.eq.s32.totalorder %s34, 0
      %s37 = sadd.s32 %s36, 1
      %s38 = scalar_select %p35, %s36, %s37
      %p41 = pneg %p35
      %p42 = scmp.eq.s32.totalorder %s26, 1
      %p43 = por %p41, %p42
      %p44 = scmp.ne.s32.totalorder %s36, %s39
      %p45 = scmp.eq.s32.totalorder %s26, 0
      %p46 = por %p44, %p45
      %p47 = scmp.ne.s32.totalorder %s36, %s39
      %p48 = scmp.eq.s32.totalorder %s31, 1
      %p49 = por %p47, %p48
      %p50 = scmp.ne.s32.totalorder %s39, %s40
      %p51 = scmp.eq.s32.totalorder %s31, 0
      %p52 = por %p50, %p51
      %p53 = scmp.ne.s32.totalorder %s39, %s40
      %p54 = scmp.eq.s32.totalorder %s32, 1
      %p55 = por %p53, %p54
      %p57 = scmp.ne.s32.totalorder %s40, %s56
      %p58 = scmp.eq.s32.totalorder %s32, 0
      %p59 = por %p57, %p58
      %s61 = sadd.s32 %s60, 1
      %p64 = scmp.eq.s32.totalorder %s26, 1
      %p65 = scmp.ne.s32.totalorder %s60, %s62
      %p66 = scmp.eq.s32.totalorder %s26, 0
      %p67 = por %p65, %p66
      %p68 = scmp.ne.s32.totalorder %s60, %s62
      %p69 = scmp.eq.s32.totalorder %s31, 1
      %p70 = por %p68, %p69
      %p71 = scmp.ne.s32.totalorder %s62, %s63
      %p72 = scmp.eq.s32.totalorder %s31, 0
      %p73 = por %p71, %p72
      %p74 = scmp.ne.s32.totalorder %s62, %s63
      %p75 = scmp.eq.s32.totalorder %s32, 1
      %p76 = por %p74, %p75
      %p78 = scmp.ne.s32.totalorder %s63, %s77
      %p79 = scmp.eq.s32.totalorder %s32, 0
      %p80 = por %p78, %p79
      %s82 = sadd.s32 %s81, 1
      %p85 = scmp.eq.s32.totalorder %s26, 1
      %p86 = scmp.ne.s32.totalorder %s81, %s83
      %p87 = scmp.eq.s32.totalorder %s26, 0
      %p88 = por %p86, %p87
      %p89 = scmp.ne.s32.totalorder %s81, %s83
      %p90 = scmp.eq.s32.totalorder %s31, 1
      %p91 = por %p89, %p90
      %p92 = scmp.ne.s32.totalorder %s83, %s84
      %p93 = scmp.eq.s32.totalorder %s31, 0
      %p94 = por %p92, %p93
      %p95 = scmp.ne.s32.totalorder %s83, %s84
      %p96 = scmp.eq.s32.totalorder %s32, 1
      %p97 = por %p95, %p96
      %p99 = scmp.ne.s32.totalorder %s84, %s98
      %p100 = scmp.eq.s32.totalorder %s32, 0
      %p101 = por %p99, %p100
      %s103 = sadd.s32 %s102, 1
      %p106 = scmp.eq.s32.totalorder %s26, 1
      %p107 = scmp.ne.s32.totalorder %s102, %s104
      %p108 = scmp.eq.s32.totalorder %s26, 0
      %p109 = por %p107, %p108
      %p110 = scmp.ne.s32.totalorder %s102, %s104
      %p111 = scmp.eq.s32.totalorder %s31, 1
      %p112 = por %p110, %p111
      %p113 = scmp.ne.s32.totalorder %s104, %s105
      %p114 = scmp.eq.s32.totalorder %s31, 0
      %p115 = por %p113, %p114
      %p116 = scmp.ne.s32.totalorder %s104, %s105
      %p117 = scmp.eq.s32.totalorder %s32, 1
      %p118 = por %p116, %p117
      %p120 = scmp.ne.s32.totalorder %s105, %s119
      %p121 = scmp.eq.s32.totalorder %s32, 0
      %p122 = por %p120, %p121
      %s124 = sadd.s32 %s123, 1
      %p127 = scmp.eq.s32.totalorder %s26, 1
      %p128 = scmp.ne.s32.totalorder %s123, %s125
      %p129 = scmp.eq.s32.totalorder %s26, 0
      %p130 = por %p128, %p129
      %p131 = scmp.ne.s32.totalorder %s123, %s125
      %p132 = scmp.eq.s32.totalorder %s31, 1
      %p133 = por %p131, %p132
      %p134 = scmp.ne.s32.totalorder %s125, %s126
      %p135 = scmp.eq.s32.totalorder %s31, 0
      %p136 = por %p134, %p135
      %p137 = scmp.ne.s32.totalorder %s125, %s126
      %p138 = scmp.eq.s32.totalorder %s32, 1
      %p139 = por %p137, %p138
      %p141 = scmp.ne.s32.totalorder %s126, %s140
      %p142 = scmp.eq.s32.totalorder %s32, 0
      %p143 = por %p141, %p142
      %s145 = sadd.s32 %s144, 1
      %p148 = scmp.eq.s32.totalorder %s26, 1
      %p149 = scmp.ne.s32.totalorder %s144, %s146
      %p150 = scmp.eq.s32.totalorder %s26, 0
      %p151 = por %p149, %p150
      %p152 = scmp.ne.s32.totalorder %s144, %s146
      %p153 = scmp.eq.s32.totalorder %s31, 1
      %p154 = por %p152, %p153
      %p155 = scmp.ne.s32.totalorder %s146, %s147
      %p156 = scmp.eq.s32.totalorder %s31, 0
      %p157 = por %p155, %p156
      %p158 = scmp.ne.s32.totalorder %s146, %s147
      %p159 = scmp.eq.s32.totalorder %s32, 1
      %p160 = por %p158, %p159
      %p162 = scmp.ne.s32.totalorder %s147, %s161
      %p163 = scmp.eq.s32.totalorder %s32, 0
      %p164 = por %p162, %p163
      %s166 = sadd.s32 %s165, 1
      %p169 = scmp.eq.s32.totalorder %s26, 1
      %p170 = scmp.ne.s32.totalorder %s165, %s167
      %p171 = scmp.eq.s32.totalorder %s26, 0
      %p172 = por %p170, %p171
      %p173 = scmp.ne.s32.totalorder %s165, %s167
      %p174 = scmp.eq.s32.totalorder %s31, 1
      %p175 = por %p173, %p174
      %p176 = scmp.ne.s32.totalorder %s167, %s168
      %p177 = scmp.eq.s32.totalorder %s31, 0
      %p178 = por %p176, %p177
      %p179 = scmp.ne.s32.totalorder %s167, %s168
      %p180 = scmp.eq.s32.totalorder %s32, 1
      %p181 = por %p179, %p180
      %p183 = scmp.ne.s32.totalorder %s168, %s182
      %p184 = scmp.eq.s32.totalorder %s32, 0
      %p185 = por %p183, %p184
      %s187 = sadd.s32 %s186, 1
      %p190 = scmp.eq.s32.totalorder %s26, 1
      %p191 = scmp.ne.s32.totalorder %s186, %s188
      %p192 = scmp.eq.s32.totalorder %s26, 0
      %p193 = por %p191, %p192
      %p194 = scmp.ne.s32.totalorder %s186, %s188
      %p195 = scmp.eq.s32.totalorder %s31, 1
      %p196 = por %p194, %p195
      %p197 = scmp.ne.s32.totalorder %s188, %s189
      %p198 = scmp.eq.s32.totalorder %s31, 0
      %p199 = por %p197, %p198
      %p200 = scmp.ne.s32.totalorder %s188, %s189
      %p201 = scmp.eq.s32.totalorder %s32, 1
      %p202 = por %p200, %p201
      %p204 = scmp.ne.s32.totalorder %s189, %s203
      %p205 = scmp.eq.s32.totalorder %s32, 0
      %p206 = por %p204, %p205
      %s208 = sadd.s32 %s207, 1
      %p211 = scmp.eq.s32.totalorder %s26, 1
      %p212 = scmp.ne.s32.totalorder %s207, %s209
      %p213 = scmp.eq.s32.totalorder %s26, 0
      %p214 = por %p212, %p213
      %p215 = scmp.ne.s32.totalorder %s207, %s209
      %p216 = scmp.eq.s32.totalorder %s31, 1
      %p217 = por %p215, %p216
      %p218 = scmp.ne.s32.totalorder %s209, %s210
      %p219 = scmp.eq.s32.totalorder %s31, 0
      %p220 = por %p218, %p219
      %p221 = scmp.ne.s32.totalorder %s209, %s210
      %p222 = scmp.eq.s32.totalorder %s32, 1
      %p223 = por %p221, %p222
      %p225 = scmp.ne.s32.totalorder %s210, %s224
      %p226 = scmp.eq.s32.totalorder %s32, 0
      %p227 = por %p225, %p226
      %s229 = sadd.s32 %s228, 1
      %p232 = scmp.eq.s32.totalorder %s26, 1
      %p233 = scmp.ne.s32.totalorder %s228, %s230
      %p234 = scmp.eq.s32.totalorder %s26, 0
      %p235 = por %p233, %p234
      %p236 = scmp.ne.s32.totalorder %s228, %s230
      %p237 = scmp.eq.s32.totalorder %s31, 1
      %p238 = por %p236, %p237
      %p239 = scmp.ne.s32.totalorder %s230, %s231
      %p240 = scmp.eq.s32.totalorder %s31, 0
      %p241 = por %p239, %p240
      %p242 = scmp.ne.s32.totalorder %s230, %s231
      %p243 = scmp.eq.s32.totalorder %s32, 1
      %p244 = por %p242, %p243
      %p246 = scmp.ne.s32.totalorder %s231, %s245
      %p247 = scmp.eq.s32.totalorder %s32, 0
      %p248 = por %p246, %p247
      %s250 = sadd.s32 %s249, 1
      %p253 = scmp.eq.s32.totalorder %s26, 1
      %p254 = scmp.ne.s32.totalorder %s249, %s251
      %p255 = scmp.eq.s32.totalorder %s26, 0
      %p256 = por %p254, %p255
      %p257 = scmp.ne.s32.totalorder %s249, %s251
      %p258 = scmp.eq.s32.totalorder %s31, 1
      %p259 = por %p257, %p258
      %p260 = scmp.ne.s32.totalorder %s251, %s252
      %p261 = scmp.eq.s32.totalorder %s31, 0
      %p262 = por %p260, %p261
      %p263 = scmp.ne.s32.totalorder %s251, %s252
      %p264 = scmp.eq.s32.totalorder %s32, 1
      %p265 = por %p263, %p264
      %p267 = scmp.ne.s32.totalorder %s252, %s266
      %p268 = scmp.eq.s32.totalorder %s32, 0
      %p269 = por %p267, %p268
      %s271 = sadd.s32 %s270, 1
      %p274 = scmp.eq.s32.totalorder %s26, 1
      %p275 = scmp.ne.s32.totalorder %s270, %s272
      %p276 = scmp.eq.s32.totalorder %s26, 0
      %p277 = por %p275, %p276
      %p278 = scmp.ne.s32.totalorder %s270, %s272
      %p279 = scmp.eq.s32.totalorder %s31, 1
      %p280 = por %p278, %p279
      %p281 = scmp.ne.s32.totalorder %s272, %s273
      %p282 = scmp.eq.s32.totalorder %s31, 0
      %p283 = por %p281, %p282
      %p284 = scmp.ne.s32.totalorder %s272, %s273
      %p285 = scmp.eq.s32.totalorder %s32, 1
      %p286 = por %p284, %p285
      %p288 = scmp.ne.s32.totalorder %s273, %s287
      %p289 = scmp.eq.s32.totalorder %s32, 0
      %p290 = por %p288, %p289
      %s292 = sadd.s32 %s291, 1
      %p295 = scmp.eq.s32.totalorder %s26, 1
      %p296 = scmp.ne.s32.totalorder %s291, %s293
      %p297 = scmp.eq.s32.totalorder %s26, 0
      %p298 = por %p296, %p297
      %p299 = scmp.ne.s32.totalorder %s291, %s293
      %p300 = scmp.eq.s32.totalorder %s31, 1
      %p301 = por %p299, %p300
      %p302 = scmp.ne.s32.totalorder %s293, %s294
      %p303 = scmp.eq.s32.totalorder %s31, 0
      %p304 = por %p302, %p303
      %p305 = scmp.ne.s32.totalorder %s293, %s294
      %p306 = scmp.eq.s32.totalorder %s32, 1
      %p307 = por %p305, %p306
      %p309 = scmp.ne.s32.totalorder %s294, %s308
      %p310 = scmp.eq.s32.totalorder %s32, 0
      %p311 = por %p309, %p310
      %s313 = sadd.s32 %s312, 1
      %p316 = scmp.eq.s32.totalorder %s26, 1
      %p317 = scmp.ne.s32.totalorder %s312, %s314
      %p318 = scmp.eq.s32.totalorder %s26, 0
      %p319 = por %p317, %p318
      %p320 = scmp.ne.s32.totalorder %s312, %s314
      %p321 = scmp.eq.s32.totalorder %s31, 1
      %p322 = por %p320, %p321
      %p323 = scmp.ne.s32.totalorder %s314, %s315
      %p324 = scmp.eq.s32.totalorder %s31, 0
      %p325 = por %p323, %p324
      %p326 = scmp.ne.s32.totalorder %s314, %s315
      %p327 = scmp.eq.s32.totalorder %s32, 1
      %p328 = por %p326, %p327
      %p330 = scmp.ne.s32.totalorder %s315, %s329
      %p331 = scmp.eq.s32.totalorder %s32, 0
      %p332 = por %p330, %p331
      %s334 = sadd.s32 %s333, 1
      %p337 = scmp.eq.s32.totalorder %s26, 1
      %p338 = scmp.ne.s32.totalorder %s333, %s335
      %p339 = scmp.eq.s32.totalorder %s26, 0
      %p340 = por %p338, %p339
      %p341 = scmp.ne.s32.totalorder %s333, %s335
      %p342 = scmp.eq.s32.totalorder %s31, 1
      %p343 = por %p341, %p342
      %p344 = scmp.ne.s32.totalorder %s335, %s336
      %p345 = scmp.eq.s32.totalorder %s31, 0
      %p346 = por %p344, %p345
      %p347 = scmp.ne.s32.totalorder %s335, %s336
      %p348 = scmp.eq.s32.totalorder %s32, 1
      %p349 = por %p347, %p348
      %p351 = scmp.ne.s32.totalorder %s336, %s350
      %p352 = scmp.eq.s32.totalorder %s32, 0
      %p353 = por %p351, %p352
      %s355 = sadd.s32 %s354, 1
      %p358 = scmp.eq.s32.totalorder %s26, 1
      %p359 = scmp.ne.s32.totalorder %s354, %s356
      %p360 = scmp.eq.s32.totalorder %s26, 0
      %p361 = por %p359, %p360
      %p362 = scmp.ne.s32.totalorder %s354, %s356
      %p363 = scmp.eq.s32.totalorder %s31, 1
      %p364 = por %p362, %p363
      %p365 = scmp.ne.s32.totalorder %s356, %s357
      %p366 = scmp.eq.s32.totalorder %s31, 0
      %p367 = por %p365, %p366
      %p368 = scmp.ne.s32.totalorder %s356, %s357
      %p369 = scmp.eq.s32.totalorder %s32, 1
      %p370 = por %p368, %p369
      %p372 = scmp.ne.s32.totalorder %s357, %s371
      %p373 = scmp.eq.s32.totalorder %s32, 0
      %p374 = por %p372, %p373
      %s376 = sadd.s32 %s375, 1
      %p379 = scmp.eq.s32.totalorder %s26, 1
      %p380 = scmp.ne.s32.totalorder %s375, %s377
      %p381 = scmp.eq.s32.totalorder %s26, 0
      %p382 = por %p380, %p381
      %p383 = scmp.ne.s32.totalorder %s375, %s377
      %p384 = scmp.eq.s32.totalorder %s31, 1
      %p385 = por %p383, %p384
      %p386 = scmp.ne.s32.totalorder %s377, %s378
      %p387 = scmp.eq.s32.totalorder %s31, 0
      %p388 = por %p386, %p387
      %p389 = scmp.ne.s32.totalorder %s377, %s378
      %p390 = scmp.eq.s32.totalorder %s32, 1
      %p391 = por %p389, %p390
      %p393 = scmp.ne.s32.totalorder %s378, %s392
      %p394 = scmp.eq.s32.totalorder %s32, 0
      %p395 = por %p393, %p394
      %s396 = ssub.s32 %s26, %s33
      %p397 = scmp.eq.s32.totalorder %s396, 0
      %s399 = sadd.s32 %s398, 1
      %s400 = scalar_select %p397, %s398, %s399
      %p403 = pneg %p397
      %p404 = scmp.eq.s32.totalorder %s26, 1
      %p405 = por %p403, %p404
      %p406 = scmp.ne.s32.totalorder %s398, %s401
      %p407 = scmp.eq.s32.totalorder %s26, 0
      %p408 = por %p406, %p407
      %p409 = scmp.ne.s32.totalorder %s398, %s401
      %p410 = scmp.eq.s32.totalorder %s31, 1
      %p411 = por %p409, %p410
      %p412 = scmp.ne.s32.totalorder %s401, %s402
      %p413 = scmp.eq.s32.totalorder %s31, 0
      %p414 = por %p412, %p413
      %p415 = scmp.ne.s32.totalorder %s401, %s402
      %p416 = scmp.eq.s32.totalorder %s32, 1
      %p417 = por %p415, %p416
      %p419 = scmp.ne.s32.totalorder %s402, %s418
      %p420 = scmp.eq.s32.totalorder %s32, 0
      %p421 = por %p419, %p420
      %p422 = scmp.le.s32.totalorder 1, %s26
      %p423 = scmp.lt.s32.totalorder %s26, 3
      %p424 = pnand %p422, %p423
      %p425 = pneg %p424
      // Predicated region
      $region9: #{tpu_custom_call.1} parent=5 // pred_check
        _
      $region10: #{tpu_custom_call.1} parent=5 // pred_check_branch
        %427 = sbr.rel (%p424) target = $region12
      $region11: #{tpu_custom_call.1} parent=5 // pred_region
        %s428 = ssub.s32 %s26, 1
        // Predicated region
        $region13: #{tpu_custom_call.1} parent=11 // pred_check
          %p429 = pneg %p73
        $region14: #{tpu_custom_call.1} parent=11 // pred_check_branch
          %431 = sbr.rel (%p429) target = $region16
        $region15: #{tpu_custom_call.1} parent=11 // pred_region
          _
        $region16: #{tpu_custom_call.1} parent=11 // pred_fallthru
          _
        // Predicated region
        $region17: #{tpu_custom_call.1} parent=11 // pred_check
          %p432 = pneg %p94
        $region18: #{tpu_custom_call.1} parent=11 // pred_check_branch
          %434 = sbr.rel (%p432) target = $region20
        $region19: #{tpu_custom_call.1} parent=11 // pred_region
          _
        $region20: #{tpu_custom_call.1} parent=11 // pred_fallthru
          _
        // Predicated region
        $region21: #{tpu_custom_call.1} parent=11 // pred_check
          %p435 = pneg %p115
        $region22: #{tpu_custom_call.1} parent=11 // pred_check_branch
          %437 = sbr.rel (%p435) target = $region24
        $region23: #{tpu_custom_call.1} parent=11 // pred_region
          _
        $region24: #{tpu_custom_call.1} parent=11 // pred_fallthru
          _
        // Predicated region
        $region25: #{tpu_custom_call.1} parent=11 // pred_check
          %p438 = pneg %p136
        $region26: #{tpu_custom_call.1} parent=11 // pred_check_branch
          %440 = sbr.rel (%p438) target = $region28
        $region27: #{tpu_custom_call.1} parent=11 // pred_region
          _
        $region28: #{tpu_custom_call.1} parent=11 // pred_fallthru
          _
        // Predicated region
        $region29: #{tpu_custom_call.1} parent=11 // pred_check
          %p441 = pneg %p157
        $region30: #{tpu_custom_call.1} parent=11 // pred_check_branch
          %443 = sbr.rel (%p441) target = $region32
        $region31: #{tpu_custom_call.1} parent=11 // pred_region
          _
        $region32: #{tpu_custom_call.1} parent=11 // pred_fallthru
          _
        // Predicated region
        $region33: #{tpu_custom_call.1} parent=11 // pred_check
          %p444 = pneg %p178
        $region34: #{tpu_custom_call.1} parent=11 // pred_check_branch
          %446 = sbr.rel (%p444) target = $region36
        $region35: #{tpu_custom_call.1} parent=11 // pred_region
          _
        $region36: #{tpu_custom_call.1} parent=11 // pred_fallthru
          _
        // Predicated region
        $region37: #{tpu_custom_call.1} parent=11 // pred_check
          %p447 = pneg %p199
        $region38: #{tpu_custom_call.1} parent=11 // pred_check_branch
          %449 = sbr.rel (%p447) target = $region40
        $region39: #{tpu_custom_call.1} parent=11 // pred_region
          _
        $region40: #{tpu_custom_call.1} parent=11 // pred_fallthru
          _
        // Predicated region
        $region41: #{tpu_custom_call.1} parent=11 // pred_check
          %p450 = pneg %p220
        $region42: #{tpu_custom_call.1} parent=11 // pred_check_branch
          %452 = sbr.rel (%p450) target = $region44
        $region43: #{tpu_custom_call.1} parent=11 // pred_region
          _
        $region44: #{tpu_custom_call.1} parent=11 // pred_fallthru
          _
        // Predicated region
        $region45: #{tpu_custom_call.1} parent=11 // pred_check
          %p453 = pneg %p241
        $region46: #{tpu_custom_call.1} parent=11 // pred_check_branch
          %455 = sbr.rel (%p453) target = $region48
        $region47: #{tpu_custom_call.1} parent=11 // pred_region
          _
        $region48: #{tpu_custom_call.1} parent=11 // pred_fallthru
          _
        // Predicated region
        $region49: #{tpu_custom_call.1} parent=11 // pred_check
          %p456 = pneg %p262
        $region50: #{tpu_custom_call.1} parent=11 // pred_check_branch
          %458 = sbr.rel (%p456) target = $region52
        $region51: #{tpu_custom_call.1} parent=11 // pred_region
          _
        $region52: #{tpu_custom_call.1} parent=11 // pred_fallthru
          _
        // Predicated region
        $region53: #{tpu_custom_call.1} parent=11 // pred_check
          %p459 = pneg %p283
        $region54: #{tpu_custom_call.1} parent=11 // pred_check_branch
          %461 = sbr.rel (%p459) target = $region56
        $region55: #{tpu_custom_call.1} parent=11 // pred_region
          _
        $region56: #{tpu_custom_call.1} parent=11 // pred_fallthru
          _
        // Predicated region
        $region57: #{tpu_custom_call.1} parent=11 // pred_check
          %p462 = pneg %p304
        $region58: #{tpu_custom_call.1} parent=11 // pred_check_branch
          %464 = sbr.rel (%p462) target = $region60
        $region59: #{tpu_custom_call.1} parent=11 // pred_region
          _
        $region60: #{tpu_custom_call.1} parent=11 // pred_fallthru
          _
        // Predicated region
        $region61: #{tpu_custom_call.1} parent=11 // pred_check
          %p465 = pneg %p325
        $region62: #{tpu_custom_call.1} parent=11 // pred_check_branch
          %467 = sbr.rel (%p465) target = $region64
        $region63: #{tpu_custom_call.1} parent=11 // pred_region
          _
        $region64: #{tpu_custom_call.1} parent=11 // pred_fallthru
          _
        // Predicated region
        $region65: #{tpu_custom_call.1} parent=11 // pred_check
          %p468 = pneg %p346
        $region66: #{tpu_custom_call.1} parent=11 // pred_check_branch
          %470 = sbr.rel (%p468) target = $region68
        $region67: #{tpu_custom_call.1} parent=11 // pred_region
          _
        $region68: #{tpu_custom_call.1} parent=11 // pred_fallthru
          _
        // Predicated region
        $region69: #{tpu_custom_call.1} parent=11 // pred_check
          %p471 = pneg %p367
        $region70: #{tpu_custom_call.1} parent=11 // pred_check_branch
          %473 = sbr.rel (%p471) target = $region72
        $region71: #{tpu_custom_call.1} parent=11 // pred_region
          _
        $region72: #{tpu_custom_call.1} parent=11 // pred_fallthru
          _
        // Predicated region
        $region73: #{tpu_custom_call.1} parent=11 // pred_check
          %p474 = pneg %p388
        $region74: #{tpu_custom_call.1} parent=11 // pred_check_branch
          %476 = sbr.rel (%p474) target = $region76
        $region75: #{tpu_custom_call.1} parent=11 // pred_region
          _
        $region76: #{tpu_custom_call.1} parent=11 // pred_fallthru
          _
      $region12: #{tpu_custom_call.1} parent=5 // pred_fallthru
        _
      %p477 = scmp.lt.s32.totalorder %s26, 2
      // Predicated region
      $region77: #{tpu_custom_call.1} parent=5 // pred_check
        %p478 = pneg %p477
      $region78: #{tpu_custom_call.1} parent=5 // pred_check_branch
        %480 = sbr.rel (%p478) target = $region80
      $region79: #{tpu_custom_call.1} parent=5 // pred_region
        // Predicated region
        $region81: #{tpu_custom_call.1} parent=79 // pred_check
          %p481 = pneg %p46
        $region82: #{tpu_custom_call.1} parent=79 // pred_check_branch
          %483 = sbr.rel (%p481) target = $region84
        $region83: #{tpu_custom_call.1} parent=79 // pred_region
          %p484 = scmp.lt.s32.totalorder %s26, 1
          %s485 = scalar_select %p484, %s26, 1
          %s486 = smul.addr %s485, 8
          %s487 = scalar_lea.vmem %s0, %s486
        $region84: #{tpu_custom_call.1} parent=79 // pred_fallthru
          _
      $region80: #{tpu_custom_call.1} parent=5 // pred_fallthru
        _
      %p488 = scmp.le.s32.totalorder 1, %s26
      %p489 = scmp.lt.s32.totalorder %s26, 3
      %p490 = pnand %p488, %p489
      %p491 = pneg %p490
      // Predicated region
      $region85: #{tpu_custom_call.1} parent=5 // pred_check
        _
      $region86: #{tpu_custom_call.1} parent=5 // pred_check_branch
        %493 = sbr.rel (%p490) target = $region88
      $region87: #{tpu_custom_call.1} parent=5 // pred_region
        %s494 = ssub.s32 %s26, 1
        %p495 = scmp.lt.s32.totalorder %s31, 1
        %s496 = scalar_select %p495, %s31, 1
        %s497 = smul.addr %s496, 8
        %s498 = scalar_lea.vmem %s0, %s497
        %p499 = pneg %p52
        %p500 = pneg %p49
        %p501 = pneg %p73
        %p502 = pneg %p70
        %p503 = pneg %p94
        %p504 = pneg %p91
        %p505 = pneg %p115
        %p506 = pneg %p112
        %p507 = pneg %p136
        %p508 = pneg %p133
        %p509 = pneg %p157
        %p510 = pneg %p154
        %p511 = pneg %p178
        %p512 = pneg %p175
        %p513 = pneg %p199
        %p514 = pneg %p196
        %p515 = pneg %p220
        %p516 = pneg %p217
        %p517 = pneg %p241
        %p518 = pneg %p238
        %p519 = pneg %p262
        %p520 = pneg %p259
        %p521 = pneg %p283
        %p522 = pneg %p280
        %p523 = pneg %p304
        %p524 = pneg %p301
        %p525 = pneg %p325
        %p526 = pneg %p322
        %p527 = pneg %p346
        %p528 = pneg %p343
        %p529 = pneg %p367
        %p530 = pneg %p364
        %p531 = pneg %p388
        %p532 = pneg %p385
        %p533 = pneg %p414
        %p534 = pneg %p411
        %s535 = sand.u32 %s401, 1
        %s536 = scalar_lea.sflag [#allocation3], %s535
        %s537 = sand.u32 %s401, 1
        %s538 = smul.addr %s537, 8
        %s539 = scalar_lea.vmem [#allocation2], %s538
        %p540 = scmp.lt.s32.totalorder %s31, 1
        %s541 = scalar_select %p540, %s31, 1
        %s542 = smul.addr %s541, 8
        %s543 = scalar_lea.vmem %s0, %s542
        %v544 = vld [vmem:[%s543] sm:$0xff]
        %v545 = vld [vmem:[%s1] sm:$0xff]
        %v546 = vld [vmem:[%s1 + $0x8] sm:$0xff]
        %v547 = vld [vmem:[%s1 + $0x10] sm:$0xff]
        %v548 = vld [vmem:[%s1 + $0x18] sm:$0xff]
        %v549 = vld [vmem:[%s4] sm:$0x1]
        %v551 = vlaneseq
        %v552 = vshrl.u32 %v551, 7
        %v553 = vsub.s32 0, %v552
        %v554 = vrot.slane %v549, %v553
        %vm556 = vcmask 261120
        %v558 = vsel %vm556, %v544, 0
        %560 = vmatprep.subr.mxu0 0.0
        %561 = vmatpush1.msra.mxu0 %v545
        %562 = vmatprep.subr.mxu0 0.0
        %563 = vmatpush1.msra.mxu0 %v546
        %564 = vmatprep.subr.mxu0 0.0
        %565 = vmatpush1.msra.mxu0 %v547
        %566 = vmatprep.subr.mxu0 0.0
        %567 = vmatpush1.msra.mxu0 %v548
        %568 = vmatprep.subr.mxu0 0.0
        %569 = vmatpush1.msra.mxu0 0.0
        %570 = vmatprep.subr.mxu0 0.0
        %571 = vmatpush1.msra.mxu0 0.0
        %572 = vmatprep.subr.mxu0 0.0
        %573 = vmatpush1.msra.mxu0 0.0
        %574 = vmatprep.subr.mxu0 0.0
        %575 = vmatpush1.msra.mxu0 0.0
        %576 = vmatprep.subr.mxu0 0.0
        %577 = vmatpush1.msra.mxu0 0.0
        %578 = vmatprep.subr.mxu0 0.0
        %579 = vmatpush1.msra.mxu0 0.0
        %580 = vmatprep.subr.mxu0 0.0
        %581 = vmatpush1.msra.mxu0 0.0
        %582 = vmatprep.subr.mxu0 0.0
        %583 = vmatpush1.msra.mxu0 0.0
        %584 = vmatprep.subr.mxu0 0.0
        %585 = vmatpush1.msra.mxu0 0.0
        %586 = vmatprep.subr.mxu0 0.0
        %587 = vmatpush1.msra.mxu0 0.0
        %588 = vmatprep.subr.mxu0 0.0
        %589 = vmatpush1.msra.mxu0 0.0
        %590 = vmatprep.subr.mxu0 0.0
        %591 = vmatpush1.msra.mxu0 0.0
        %592 = vmatprep.subr.mxu0 0.0
        %593 = vmatpush1.msra.mxu0 0.0
        %594 = vmatprep.subr.mxu0 0.0
        %595 = vmatpush1.msra.mxu0 0.0
        %596 = vmatprep.subr.mxu0 0.0
        %597 = vmatpush1.msra.mxu0 0.0
        %598 = vmatprep.subr.mxu0 0.0
        %599 = vmatpush1.msra.mxu0 0.0
        %600 = vmatprep.subr.mxu0 0.0
        %601 = vmatpush1.msra.mxu0 0.0
        %602 = vmatprep.subr.mxu0 0.0
        %603 = vmatpush1.msra.mxu0 0.0
        %604 = vmatprep.subr.mxu0 0.0
        %605 = vmatpush1.msra.mxu0 0.0
        %606 = vmatprep.subr.mxu0 0.0
        %607 = vmatpush1.msra.mxu0 0.0
        %608 = vmatprep.subr.mxu0 0.0
        %609 = vmatpush1.msra.mxu0 0.0
        %610 = vmatprep.subr.mxu0 0.0
        %611 = vmatpush1.msra.mxu0 0.0
        %612 = vmatprep.subr.mxu0 0.0
        %613 = vmatpush1.msra.mxu0 0.0
        %614 = vmatprep.subr.mxu0 0.0
        %615 = vmatpush1.msra.mxu0 0.0
        %616 = vmatprep.subr.mxu0 0.0
        %617 = vmatpush1.msra.mxu0 0.0
        %618 = vmatprep.subr.mxu0 0.0
        %619 = vmatpush1.msra.mxu0 0.0
        %620 = vmatprep.subr.mxu0 0.0
        %621 = vmatpush1.msra.mxu0 0.0
        %622 = vmatprep.subr.mxu0 0.0
        %623 = vmatpush1.msra.mxu0 0.0
        %624 = vmatprep.mubr.f32.mxu0 0.0
        %625 = vmatmul.mubr.f32.gmra.mrb[0].mxu0 %v558
        %v626 = vpop.f32.mrb[0].mxu0
        %v627 = vadd.f32 %v554, %v626
        %v628 = vpop.f32.mrb[0].mxu0
        %629 = vdwg.mxu0
        %v630 = vld [vmem:[%s2] sm:$0xff]
        %v631 = vld [vmem:[%s2 + $0x8] sm:$0xff]
        %v632 = vld [vmem:[%s2 + $0x10] sm:$0xff]
        %v633 = vld [vmem:[%s2 + $0x18] sm:$0xff]
        %v634 = vld [vmem:[%s5] sm:$0x1]
        %v636 = vlaneseq
        %v637 = vshrl.u32 %v636, 7
        %v638 = vsub.s32 0, %v637
        %v639 = vrot.slane %v634, %v638
        %641 = vmatprep.subr.mxu0 0.0
        %642 = vmatpush1.msra.mxu0 %v630
        %643 = vmatprep.subr.mxu0 0.0
        %644 = vmatpush1.msra.mxu0 %v631
        %645 = vmatprep.subr.mxu0 0.0
        %646 = vmatpush1.msra.mxu0 %v632
        %647 = vmatprep.subr.mxu0 0.0
        %648 = vmatpush1.msra.mxu0 %v633
        %649 = vmatprep.subr.mxu0 0.0
        %650 = vmatpush1.msra.mxu0 0.0
        %651 = vmatprep.subr.mxu0 0.0
        %652 = vmatpush1.msra.mxu0 0.0
        %653 = vmatprep.subr.mxu0 0.0
        %654 = vmatpush1.msra.mxu0 0.0
        %655 = vmatprep.subr.mxu0 0.0
        %656 = vmatpush1.msra.mxu0 0.0
        %657 = vmatprep.subr.mxu0 0.0
        %658 = vmatpush1.msra.mxu0 0.0
        %659 = vmatprep.subr.mxu0 0.0
        %660 = vmatpush1.msra.mxu0 0.0
        %661 = vmatprep.subr.mxu0 0.0
        %662 = vmatpush1.msra.mxu0 0.0
        %663 = vmatprep.subr.mxu0 0.0
        %664 = vmatpush1.msra.mxu0 0.0
        %665 = vmatprep.subr.mxu0 0.0
        %666 = vmatpush1.msra.mxu0 0.0
        %667 = vmatprep.subr.mxu0 0.0
        %668 = vmatpush1.msra.mxu0 0.0
        %669 = vmatprep.subr.mxu0 0.0
        %670 = vmatpush1.msra.mxu0 0.0
        %671 = vmatprep.subr.mxu0 0.0
        %672 = vmatpush1.msra.mxu0 0.0
        %673 = vmatprep.subr.mxu0 0.0
        %674 = vmatpush1.msra.mxu0 0.0
        %675 = vmatprep.subr.mxu0 0.0
        %676 = vmatpush1.msra.mxu0 0.0
        %677 = vmatprep.subr.mxu0 0.0
        %678 = vmatpush1.msra.mxu0 0.0
        %679 = vmatprep.subr.mxu0 0.0
        %680 = vmatpush1.msra.mxu0 0.0
        %681 = vmatprep.subr.mxu0 0.0
        %682 = vmatpush1.msra.mxu0 0.0
        %683 = vmatprep.subr.mxu0 0.0
        %684 = vmatpush1.msra.mxu0 0.0
        %685 = vmatprep.subr.mxu0 0.0
        %686 = vmatpush1.msra.mxu0 0.0
        %687 = vmatprep.subr.mxu0 0.0
        %688 = vmatpush1.msra.mxu0 0.0
        %689 = vmatprep.subr.mxu0 0.0
        %690 = vmatpush1.msra.mxu0 0.0
        %691 = vmatprep.subr.mxu0 0.0
        %692 = vmatpush1.msra.mxu0 0.0
        %693 = vmatprep.subr.mxu0 0.0
        %694 = vmatpush1.msra.mxu0 0.0
        %695 = vmatprep.subr.mxu0 0.0
        %696 = vmatpush1.msra.mxu0 0.0
        %697 = vmatprep.subr.mxu0 0.0
        %698 = vmatpush1.msra.mxu0 0.0
        %699 = vmatprep.subr.mxu0 0.0
        %700 = vmatpush1.msra.mxu0 0.0
        %701 = vmatprep.subr.mxu0 0.0
        %702 = vmatpush1.msra.mxu0 0.0
        %703 = vmatprep.subr.mxu0 0.0
        %704 = vmatpush1.msra.mxu0 0.0
        %705 = vmatprep.mubr.f32.mxu0 0.0
        %706 = vmatmul.mubr.f32.gmra.mrb[0].mxu0 %v558
        %v707 = vpop.f32.mrb[0].mxu0
        %v708 = vadd.f32 %v639, %v707
        %v709 = vpop.f32.mrb[0].mxu0
        %710 = vdwg.mxu0
        %v711 = vld [vmem:[%s3] sm:$0xff]
        %v712 = vld [vmem:[%s3 + $0x8] sm:$0xff]
        %v713 = vld [vmem:[%s3 + $0x10] sm:$0xff]
        %v714 = vld [vmem:[%s3 + $0x18] sm:$0xff]
        %v715 = vld [vmem:[%s6] sm:$0x1]
        %v717 = vlaneseq
        %v718 = vshrl.u32 %v717, 7
        %v719 = vsub.s32 0, %v718
        %v720 = vrot.slane %v715, %v719
        %722 = vmatprep.subr.mxu0 0.0
        %723 = vmatpush1.msra.mxu0 %v711
        %724 = vmatprep.subr.mxu0 0.0
        %725 = vmatpush1.msra.mxu0 %v712
        %726 = vmatprep.subr.mxu0 0.0
        %727 = vmatpush1.msra.mxu0 %v713
        %728 = vmatprep.subr.mxu0 0.0
        %729 = vmatpush1.msra.mxu0 %v714
        %730 = vmatprep.subr.mxu0 0.0
        %731 = vmatpush1.msra.mxu0 0.0
        %732 = vmatprep.subr.mxu0 0.0
        %733 = vmatpush1.msra.mxu0 0.0
        %734 = vmatprep.subr.mxu0 0.0
        %735 = vmatpush1.msra.mxu0 0.0
        %736 = vmatprep.subr.mxu0 0.0
        %737 = vmatpush1.msra.mxu0 0.0
        %738 = vmatprep.subr.mxu0 0.0
        %739 = vmatpush1.msra.mxu0 0.0
        %740 = vmatprep.subr.mxu0 0.0
        %741 = vmatpush1.msra.mxu0 0.0
        %742 = vmatprep.subr.mxu0 0.0
        %743 = vmatpush1.msra.mxu0 0.0
        %744 = vmatprep.subr.mxu0 0.0
        %745 = vmatpush1.msra.mxu0 0.0
        %746 = vmatprep.subr.mxu0 0.0
        %747 = vmatpush1.msra.mxu0 0.0
        %748 = vmatprep.subr.mxu0 0.0
        %749 = vmatpush1.msra.mxu0 0.0
        %750 = vmatprep.subr.mxu0 0.0
        %751 = vmatpush1.msra.mxu0 0.0
        %752 = vmatprep.subr.mxu0 0.0
        %753 = vmatpush1.msra.mxu0 0.0
        %754 = vmatprep.subr.mxu0 0.0
        %755 = vmatpush1.msra.mxu0 0.0
        %756 = vmatprep.subr.mxu0 0.0
        %757 = vmatpush1.msra.mxu0 0.0
        %758 = vmatprep.subr.mxu0 0.0
        %759 = vmatpush1.msra.mxu0 0.0
        %760 = vmatprep.subr.mxu0 0.0
        %761 = vmatpush1.msra.mxu0 0.0
        %762 = vmatprep.subr.mxu0 0.0
        %763 = vmatpush1.msra.mxu0 0.0
        %764 = vmatprep.subr.mxu0 0.0
        %765 = vmatpush1.msra.mxu0 0.0
        %766 = vmatprep.subr.mxu0 0.0
        %767 = vmatpush1.msra.mxu0 0.0
        %768 = vmatprep.subr.mxu0 0.0
        %769 = vmatpush1.msra.mxu0 0.0
        %770 = vmatprep.subr.mxu0 0.0
        %771 = vmatpush1.msra.mxu0 0.0
        %772 = vmatprep.subr.mxu0 0.0
        %773 = vmatpush1.msra.mxu0 0.0
        %774 = vmatprep.subr.mxu0 0.0
        %775 = vmatpush1.msra.mxu0 0.0
        %776 = vmatprep.subr.mxu0 0.0
        %777 = vmatpush1.msra.mxu0 0.0
        %778 = vmatprep.subr.mxu0 0.0
        %779 = vmatpush1.msra.mxu0 0.0
        %780 = vmatprep.subr.mxu0 0.0
        %781 = vmatpush1.msra.mxu0 0.0
        %782 = vmatprep.subr.mxu0 0.0
        %783 = vmatpush1.msra.mxu0 0.0
        %784 = vmatprep.subr.mxu0 0.0
        %785 = vmatpush1.msra.mxu0 0.0
        %786 = vmatprep.mubr.f32.mxu0 0.0
        %787 = vmatmul.mubr.f32.gmra.mrb[0].mxu0 %v558
        %v788 = vpop.f32.mrb[0].mxu0
        %v789 = vadd.f32 %v720, %v788
        %v790 = vpop.f32.mrb[0].mxu0
        %791 = vdwg.mxu0
        %vm792 = vcmask 64512
        %v794 = vsel %vm792, %v627, 0
        %v797 = vsel %vm792, %v708, 0
        %799 = vmatprep.subr.mxu0 0.0
        %800 = vmatpush1.xpose.msra.mxu0 %v797
        %801 = vmatprep.subr.mxu0 0.0
        %802 = vmatpush1.xpose.msra.mxu0 0.0
        %803 = vmatprep.subr.mxu0 0.0
        %804 = vmatpush1.xpose.msra.mxu0 0.0
        %805 = vmatprep.subr.mxu0 0.0
        %806 = vmatpush1.xpose.msra.mxu0 0.0
        %807 = vmatprep.subr.mxu0 0.0
        %808 = vmatpush1.xpose.msra.mxu0 0.0
        %809 = vmatprep.subr.mxu0 0.0
        %810 = vmatpush1.xpose.msra.mxu0 0.0
        %811 = vmatprep.subr.mxu0 0.0
        %812 = vmatpush1.xpose.msra.mxu0 0.0
        %813 = vmatprep.subr.mxu0 0.0
        %814 = vmatpush1.xpose.msra.mxu0 0.0
        %815 = vmatprep.subr.mxu0 0.0
        %816 = vmatpush1.xpose.msra.mxu0 0.0
        %817 = vmatprep.subr.mxu0 0.0
        %818 = vmatpush1.xpose.msra.mxu0 0.0
        %819 = vmatprep.subr.mxu0 0.0
        %820 = vmatpush1.xpose.msra.mxu0 0.0
        %821 = vmatprep.subr.mxu0 0.0
        %822 = vmatpush1.xpose.msra.mxu0 0.0
        %823 = vmatprep.subr.mxu0 0.0
        %824 = vmatpush1.xpose.msra.mxu0 0.0
        %825 = vmatprep.subr.mxu0 0.0
        %826 = vmatpush1.xpose.msra.mxu0 0.0
        %827 = vmatprep.subr.mxu0 0.0
        %828 = vmatpush1.xpose.msra.mxu0 0.0
        %829 = vmatprep.subr.mxu0 0.0
        %830 = vmatpush1.xpose.msra.mxu0 0.0
        %831 = vmatprep.subr.mxu0 0.0
        %832 = vmatpush1.xpose.msra.mxu0 0.0
        %833 = vmatprep.subr.mxu0 0.0
        %834 = vmatpush1.xpose.msra.mxu0 0.0
        %835 = vmatprep.subr.mxu0 0.0
        %836 = vmatpush1.xpose.msra.mxu0 0.0
        %837 = vmatprep.subr.mxu0 0.0
        %838 = vmatpush1.xpose.msra.mxu0 0.0
        %839 = vmatprep.subr.mxu0 0.0
        %840 = vmatpush1.xpose.msra.mxu0 0.0
        %841 = vmatprep.subr.mxu0 0.0
        %842 = vmatpush1.xpose.msra.mxu0 0.0
        %843 = vmatprep.subr.mxu0 0.0
        %844 = vmatpush1.xpose.msra.mxu0 0.0
        %845 = vmatprep.subr.mxu0 0.0
        %846 = vmatpush1.xpose.msra.mxu0 0.0
        %847 = vmatprep.subr.mxu0 0.0
        %848 = vmatpush1.xpose.msra.mxu0 0.0
        %849 = vmatprep.subr.mxu0 0.0
        %850 = vmatpush1.xpose.msra.mxu0 0.0
        %851 = vmatprep.subr.mxu0 0.0
        %852 = vmatpush1.xpose.msra.mxu0 0.0
        %853 = vmatprep.subr.mxu0 0.0
        %854 = vmatpush1.xpose.msra.mxu0 0.0
        %855 = vmatprep.subr.mxu0 0.0
        %856 = vmatpush1.xpose.msra.mxu0 0.0
        %857 = vmatprep.subr.mxu0 0.0
        %858 = vmatpush1.xpose.msra.mxu0 0.0
        %859 = vmatprep.subr.mxu0 0.0
        %860 = vmatpush1.xpose.msra.mxu0 0.0
        %861 = vmatprep.subr.mxu0 0.0
        %862 = vmatpush1.xpose.msra.mxu0 0.0
        %863 = vmatprep.mubr.f32.mxu0 0.0
        %864 = vmatmul.mubr.f32.gmra.mrb[0].mxu0 %v794
        %v865 = vpop.f32.mrb[0].mxu0
        %v866 = vadd.f32 0.0, %v865
        %v867 = vpop.f32.mrb[0].mxu0
        %868 = vdwg.mxu0
        %v869 = vsel %vm792, %v866, -inf
        %870 = vmax.xlane.f32.xlu0 %v869
        %v871 = vpop.xlane.xlu0 %870
        %v872 = vsub.f32 %v866, %v871
        %v873 = vmul.f32 %v872, 1.442695
        %v874 = vpow.pop %v873
        %v875 = vsel %vm792, %v874, 0.0
        %876 = vadd.xlane.f32.xlu0 %v875
        %v877 = vpop.xlane.xlu0 %876
        %v878 = vrcp.pop %v877
        %v879 = vmul.f32 %v874, %v878
        %v881 = vsel %vm792, %v879, 0
        %883 = vmatprep.subr.mxu0 0.0
        %884 = vmatpush1.msra.mxu0 %v789
        %885 = vmatprep.subr.mxu0 0.0
        %886 = vmatpush1.msra.mxu0 0.0
        %887 = vmatprep.subr.mxu0 0.0
        %888 = vmatpush1.msra.mxu0 0.0
        %889 = vmatprep.subr.mxu0 0.0
        %890 = vmatpush1.msra.mxu0 0.0
        %891 = vmatprep.subr.mxu0 0.0
        %892 = vmatpush1.msra.mxu0 0.0
        %893 = vmatprep.subr.mxu0 0.0
        %894 = vmatpush1.msra.mxu0 0.0
        %895 = vmatprep.subr.mxu0 0.0
        %896 = vmatpush1.msra.mxu0 0.0
        %897 = vmatprep.subr.mxu0 0.0
        %898 = vmatpush1.msra.mxu0 0.0
        %899 = vmatprep.subr.mxu0 0.0
        %900 = vmatpush1.msra.mxu0 0.0
        %901 = vmatprep.subr.mxu0 0.0
        %902 = vmatpush1.msra.mxu0 0.0
        %903 = vmatprep.subr.mxu0 0.0
        %904 = vmatpush1.msra.mxu0 0.0
        %905 = vmatprep.subr.mxu0 0.0
        %906 = vmatpush1.msra.mxu0 0.0
        %907 = vmatprep.subr.mxu0 0.0
        %908 = vmatpush1.msra.mxu0 0.0
        %909 = vmatprep.subr.mxu0 0.0
        %910 = vmatpush1.msra.mxu0 0.0
        %911 = vmatprep.subr.mxu0 0.0
        %912 = vmatpush1.msra.mxu0 0.0
        %913 = vmatprep.subr.mxu0 0.0
        %914 = vmatpush1.msra.mxu0 0.0
        %915 = vmatprep.subr.mxu0 0.0
        %916 = vmatpush1.msra.mxu0 0.0
        %917 = vmatprep.subr.mxu0 0.0
        %918 = vmatpush1.msra.mxu0 0.0
        %919 = vmatprep.subr.mxu0 0.0
        %920 = vmatpush1.msra.mxu0 0.0
        %921 = vmatprep.subr.mxu0 0.0
        %922 = vmatpush1.msra.mxu0 0.0
        %923 = vmatprep.subr.mxu0 0.0
        %924 = vmatpush1.msra.mxu0 0.0
        %925 = vmatprep.subr.mxu0 0.0
        %926 = vmatpush1.msra.mxu0 0.0
        %927 = vmatprep.subr.mxu0 0.0
        %928 = vmatpush1.msra.mxu0 0.0
        %929 = vmatprep.subr.mxu0 0.0
        %930 = vmatpush1.msra.mxu0 0.0
        %931 = vmatprep.subr.mxu0 0.0
        %932 = vmatpush1.msra.mxu0 0.0
        %933 = vmatprep.subr.mxu0 0.0
        %934 = vmatpush1.msra.mxu0 0.0
        %935 = vmatprep.subr.mxu0 0.0
        %936 = vmatpush1.msra.mxu0 0.0
        %937 = vmatprep.subr.mxu0 0.0
        %938 = vmatpush1.msra.mxu0 0.0
        %939 = vmatprep.subr.mxu0 0.0
        %940 = vmatpush1.msra.mxu0 0.0
        %941 = vmatprep.subr.mxu0 0.0
        %942 = vmatpush1.msra.mxu0 0.0
        %943 = vmatprep.subr.mxu0 0.0
        %944 = vmatpush1.msra.mxu0 0.0
        %945 = vmatprep.subr.mxu0 0.0
        %946 = vmatpush1.msra.mxu0 0.0
        %947 = vmatprep.mubr.f32.mxu0 0.0
        %948 = vmatmul.mubr.f32.gmra.mrb[0].mxu0 %v881
        %v949 = vpop.f32.mrb[0].mxu0
        %v950 = vadd.f32 0.0, %v949
        %v951 = vpop.f32.mrb[0].mxu0
        %952 = vdwg.mxu0
        %v953 = vld [vmem:[%s7] sm:$0xff]
        %s954 = scalar_lea.vmem %s1, 32
        %v955 = vld [vmem:[%s954] sm:$0xff]
        %v956 = vld [vmem:[%s954 + $0x8] sm:$0xff]
        %v957 = vld [vmem:[%s954 + $0x10] sm:$0xff]
        %v958 = vld [vmem:[%s954 + $0x18] sm:$0xff]
        %s959 = scalar_lea.vmem %s4, 1
        %v960 = vld [vmem:[%s959] sm:$0x1]
        %v962 = vlaneseq
        %v963 = vshrl.u32 %v962, 7
        %v964 = vsub.s32 0, %v963
        %v965 = vrot.slane %v960, %v964
        %967 = vmatprep.subr.mxu0 0.0
        %968 = vmatpush1.msra.mxu0 %v955
        %969 = vmatprep.subr.mxu0 0.0
        %970 = vmatpush1.msra.mxu0 %v956
        %971 = vmatprep.subr.mxu0 0.0
        %972 = vmatpush1.msra.mxu0 %v957
        %973 = vmatprep.subr.mxu0 0.0
        %974 = vmatpush1.msra.mxu0 %v958
        %975 = vmatprep.subr.mxu0 0.0
        %976 = vmatpush1.msra.mxu0 0.0
        %977 = vmatprep.subr.mxu0 0.0
        %978 = vmatpush1.msra.mxu0 0.0
        %979 = vmatprep.subr.mxu0 0.0
        %980 = vmatpush1.msra.mxu0 0.0
        %981 = vmatprep.subr.mxu0 0.0
        %982 = vmatpush1.msra.mxu0 0.0
        %983 = vmatprep.subr.mxu0 0.0
        %984 = vmatpush1.msra.mxu0 0.0
        %985 = vmatprep.subr.mxu0 0.0
        %986 = vmatpush1.msra.mxu0 0.0
        %987 = vmatprep.subr.mxu0 0.0
        %988 = vmatpush1.msra.mxu0 0.0
        %989 = vmatprep.subr.mxu0 0.0
        %990 = vmatpush1.msra.mxu0 0.0
        %991 = vmatprep.subr.mxu0 0.0
        %992 = vmatpush1.msra.mxu0 0.0
        %993 = vmatprep.subr.mxu0 0.0
        %994 = vmatpush1.msra.mxu0 0.0
        %995 = vmatprep.subr.mxu0 0.0
        %996 = vmatpush1.msra.mxu0 0.0
        %997 = vmatprep.subr.mxu0 0.0
        %998 = vmatpush1.msra.mxu0 0.0
        %999 = vmatprep.subr.mxu0 0.0
        %1000 = vmatpush1.msra.mxu0 0.0
        %1001 = vmatprep.subr.mxu0 0.0
        %1002 = vmatpush1.msra.mxu0 0.0
        %1003 = vmatprep.subr.mxu0 0.0
        %1004 = vmatpush1.msra.mxu0 0.0
        %1005 = vmatprep.subr.mxu0 0.0
        %1006 = vmatpush1.msra.mxu0 0.0
        %1007 = vmatprep.subr.mxu0 0.0
        %1008 = vmatpush1.msra.mxu0 0.0
        %1009 = vmatprep.subr.mxu0 0.0
        %1010 = vmatpush1.msra.mxu0 0.0
        %1011 = vmatprep.subr.mxu0 0.0
        %1012 = vmatpush1.msra.mxu0 0.0
        %1013 = vmatprep.subr.mxu0 0.0
        %1014 = vmatpush1.msra.mxu0 0.0
        %1015 = vmatprep.subr.mxu0 0.0
        %1016 = vmatpush1.msra.mxu0 0.0
        %1017 = vmatprep.subr.mxu0 0.0
        %1018 = vmatpush1.msra.mxu0 0.0
        %1019 = vmatprep.subr.mxu0 0.0
        %1020 = vmatpush1.msra.mxu0 0.0
        %1021 = vmatprep.subr.mxu0 0.0
        %1022 = vmatpush1.msra.mxu0 0.0
        %1023 = vmatprep.subr.mxu0 0.0
        %1024 = vmatpush1.msra.mxu0 0.0
        %1025 = vmatprep.subr.mxu0 0.0
        %1026 = vmatpush1.msra.mxu0 0.0
        %1027 = vmatprep.subr.mxu0 0.0
        %1028 = vmatpush1.msra.mxu0 0.0
        %1029 = vmatprep.subr.mxu0 0.0
        %1030 = vmatpush1.msra.mxu0 0.0
        %1031 = vmatprep.mubr.f32.mxu0 0.0
        %1032 = vmatmul.mubr.f32.gmra.mrb[0].mxu0 %v558
        %v1033 = vpop.f32.mrb[0].mxu0
        %v1034 = vadd.f32 %v965, %v1033
        %v1035 = vpop.f32.mrb[0].mxu0
        %1036 = vdwg.mxu0
        %s1037 = scalar_lea.vmem %s2, 32
        %v1038 = vld [vmem:[%s1037] sm:$0xff]
        %v1039 = vld [vmem:[%s1037 + $0x8] sm:$0xff]
        %v1040 = vld [vmem:[%s1037 + $0x10] sm:$0xff]
        %v1041 = vld [vmem:[%s1037 + $0x18] sm:$0xff]
        %s1042 = scalar_lea.vmem %s5, 1
        %v1043 = vld [vmem:[%s1042] sm:$0x1]
        %v1045 = vlaneseq
        %v1046 = vshrl.u32 %v1045, 7
        %v1047 = vsub.s32 0, %v1046
        %v1048 = vrot.slane %v1043, %v1047
        %1050 = vmatprep.subr.mxu0 0.0
        %1051 = vmatpush1.msra.mxu0 %v1038
        %1052 = vmatprep.subr.mxu0 0.0
        %1053 = vmatpush1.msra.mxu0 %v1039
        %1054 = vmatprep.subr.mxu0 0.0
        %1055 = vmatpush1.msra.mxu0 %v1040
        %1056 = vmatprep.subr.mxu0 0.0
        %1057 = vmatpush1.msra.mxu0 %v1041
        %1058 = vmatprep.subr.mxu0 0.0
        %1059 = vmatpush1.msra.mxu0 0.0
        %1060 = vmatprep.subr.mxu0 0.0
        %1061 = vmatpush1.msra.mxu0 0.0
        %1062 = vmatprep.subr.mxu0 0.0
        %1063 = vmatpush1.msra.mxu0 0.0
        %1064 = vmatprep.subr.mxu0 0.0
        %1065 = vmatpush1.msra.mxu0 0.0
        %1066 = vmatprep.subr.mxu0 0.0
        %1067 = vmatpush1.msra.mxu0 0.0
        %1068 = vmatprep.subr.mxu0 0.0
        %1069 = vmatpush1.msra.mxu0 0.0
        %1070 = vmatprep.subr.mxu0 0.0
        %1071 = vmatpush1.msra.mxu0 0.0
        %1072 = vmatprep.subr.mxu0 0.0
        %1073 = vmatpush1.msra.mxu0 0.0
        %1074 = vmatprep.subr.mxu0 0.0
        %1075 = vmatpush1.msra.mxu0 0.0
        %1076 = vmatprep.subr.mxu0 0.0
        %1077 = vmatpush1.msra.mxu0 0.0
        %1078 = vmatprep.subr.mxu0 0.0
        %1079 = vmatpush1.msra.mxu0 0.0
        %1080 = vmatprep.subr.mxu0 0.0
        %1081 = vmatpush1.msra.mxu0 0.0
        %1082 = vmatprep.subr.mxu0 0.0
        %1083 = vmatpush1.msra.mxu0 0.0
        %1084 = vmatprep.subr.mxu0 0.0
        %1085 = vmatpush1.msra.mxu0 0.0
        %1086 = vmatprep.subr.mxu0 0.0
        %1087 = vmatpush1.msra.mxu0 0.0
        %1088 = vmatprep.subr.mxu0 0.0
        %1089 = vmatpush1.msra.mxu0 0.0
        %1090 = vmatprep.subr.mxu0 0.0
        %1091 = vmatpush1.msra.mxu0 0.0
        %1092 = vmatprep.subr.mxu0 0.0
        %1093 = vmatpush1.msra.mxu0 0.0
        %1094 = vmatprep.subr.mxu0 0.0
        %1095 = vmatpush1.msra.mxu0 0.0
        %1096 = vmatprep.subr.mxu0 0.0
        %1097 = vmatpush1.msra.mxu0 0.0
        %1098 = vmatprep.subr.mxu0 0.0
        %1099 = vmatpush1.msra.mxu0 0.0
        %1100 = vmatprep.subr.mxu0 0.0
        %1101 = vmatpush1.msra.mxu0 0.0
        %1102 = vmatprep.subr.mxu0 0.0
        %1103 = vmatpush1.msra.mxu0 0.0
        %1104 = vmatprep.subr.mxu0 0.0
        %1105 = vmatpush1.msra.mxu0 0.0
        %1106 = vmatprep.subr.mxu0 0.0
        %1107 = vmatpush1.msra.mxu0 0.0
        %1108 = vmatprep.subr.mxu0 0.0
        %1109 = vmatpush1.msra.mxu0 0.0
        %1110 = vmatprep.subr.mxu0 0.0
        %1111 = vmatpush1.msra.mxu0 0.0
        %1112 = vmatprep.subr.mxu0 0.0
        %1113 = vmatpush1.msra.mxu0 0.0
        %1114 = vmatprep.mubr.f32.mxu0 0.0
        %1115 = vmatmul.mubr.f32.gmra.mrb[0].mxu0 %v558
        %v1116 = vpop.f32.mrb[0].mxu0
        %v1117 = vadd.f32 %v1048, %v1116
        %v1118 = vpop.f32.mrb[0].mxu0
        %1119 = vdwg.mxu0
        %s1120 = scalar_lea.vmem %s3, 32
        %v1121 = vld [vmem:[%s1120] sm:$0xff]
        %v1122 = vld [vmem:[%s1120 + $0x8] sm:$0xff]
        %v1123 = vld [vmem:[%s1120 + $0x10] sm:$0xff]
        %v1124 = vld [vmem:[%s1120 + $0x18] sm:$0xff]
        %s1125 = scalar_lea.vmem %s6, 1
        %v1126 = vld [vmem:[%s1125] sm:$0x1]
        %v1128 = vlaneseq
        %v1129 = vshrl.u32 %v1128, 7
        %v1130 = vsub.s32 0, %v1129
        %v1131 = vrot.slane %v1126, %v1130
        %1133 = vmatprep.subr.mxu0 0.0
        %1134 = vmatpush1.msra.mxu0 %v1121
        %1135 = vmatprep.subr.mxu0 0.0
        %1136 = vmatpush1.msra.mxu0 %v1122
        %1137 = vmatprep.subr.mxu0 0.0
        %1138 = vmatpush1.msra.mxu0 %v1123
        %1139 = vmatprep.subr.mxu0 0.0
        %1140 = vmatpush1.msra.mxu0 %v1124
        %1141 = vmatprep.subr.mxu0 0.0
        %1142 = vmatpush1.msra.mxu0 0.0
        %1143 = vmatprep.subr.mxu0 0.0
        %1144 = vmatpush1.msra.mxu0 0.0
        %1145 = vmatprep.subr.mxu0 0.0
        %1146 = vmatpush1.msra.mxu0 0.0
        %1147 = vmatprep.subr.mxu0 0.0
        %1148 = vmatpush1.msra.mxu0 0.0
        %1149 = vmatprep.subr.mxu0 0.0
        %1150 = vmatpush1.msra.mxu0 0.0
        %1151 = vmatprep.subr.mxu0 0.0
        %1152 = vmatpush1.msra.mxu0 0.0
        %1153 = vmatprep.subr.mxu0 0.0
        %1154 = vmatpush1.msra.mxu0 0.0
        %1155 = vmatprep.subr.mxu0 0.0
        %1156 = vmatpush1.msra.mxu0 0.0
        %1157 = vmatprep.subr.mxu0 0.0
        %1158 = vmatpush1.msra.mxu0 0.0
        %1159 = vmatprep.subr.mxu0 0.0
        %1160 = vmatpush1.msra.mxu0 0.0
        %1161 = vmatprep.subr.mxu0 0.0
        %1162 = vmatpush1.msra.mxu0 0.0
        %1163 = vmatprep.subr.mxu0 0.0
        %1164 = vmatpush1.msra.mxu0 0.0
        %1165 = vmatprep.subr.mxu0 0.0
        %1166 = vmatpush1.msra.mxu0 0.0
        %1167 = vmatprep.subr.mxu0 0.0
        %1168 = vmatpush1.msra.mxu0 0.0
        %1169 = vmatprep.subr.mxu0 0.0
        %1170 = vmatpush1.msra.mxu0 0.0
        %1171 = vmatprep.subr.mxu0 0.0
        %1172 = vmatpush1.msra.mxu0 0.0
        %1173 = vmatprep.subr.mxu0 0.0
        %1174 = vmatpush1.msra.mxu0 0.0
        %1175 = vmatprep.subr.mxu0 0.0
        %1176 = vmatpush1.msra.mxu0 0.0
        %1177 = vmatprep.subr.mxu0 0.0
        %1178 = vmatpush1.msra.mxu0 0.0
        %1179 = vmatprep.subr.mxu0 0.0
        %1180 = vmatpush1.msra.mxu0 0.0
        %1181 = vmatprep.subr.mxu0 0.0
        %1182 = vmatpush1.msra.mxu0 0.0
        %1183 = vmatprep.subr.mxu0 0.0
        %1184 = vmatpush1.msra.mxu0 0.0
        %1185 = vmatprep.subr.mxu0 0.0
        %1186 = vmatpush1.msra.mxu0 0.0
        %1187 = vmatprep.subr.mxu0 0.0
        %1188 = vmatpush1.msra.mxu0 0.0
        %1189 = vmatprep.subr.mxu0 0.0
        %1190 = vmatpush1.msra.mxu0 0.0
        %1191 = vmatprep.subr.mxu0 0.0
        %1192 = vmatpush1.msra.mxu0 0.0
        %1193 = vmatprep.subr.mxu0 0.0
        %1194 = vmatpush1.msra.mxu0 0.0
        %1195 = vmatprep.subr.mxu0 0.0
        %1196 = vmatpush1.msra.mxu0 0.0
        %1197 = vmatprep.mubr.f32.mxu0 0.0
        %1198 = vmatmul.mubr.f32.gmra.mrb[0].mxu0 %v558
        %v1199 = vpop.f32.mrb[0].mxu0
        %v1200 = vadd.f32 %v1131, %v1199
        %v1201 = vpop.f32.mrb[0].mxu0
        %1202 = vdwg.mxu0
        %v1204 = vsel %vm792, %v1034, 0
        %v1207 = vsel %vm792, %v1117, 0
        %1209 = vmatprep.subr.mxu0 0.0
        %1210 = vmatpush1.xpose.msra.mxu0 %v1207
        %1211 = vmatprep.subr.mxu0 0.0
        %1212 = vmatpush1.xpose.msra.mxu0 0.0
        %1213 = vmatprep.subr.mxu0 0.0
        %1214 = vmatpush1.xpose.msra.mxu0 0.0
        %1215 = vmatprep.subr.mxu0 0.0
        %1216 = vmatpush1.xpose.msra.mxu0 0.0
        %1217 = vmatprep.subr.mxu0 0.0
        %1218 = vmatpush1.xpose.msra.mxu0 0.0
        %1219 = vmatprep.subr.mxu0 0.0
        %1220 = vmatpush1.xpose.msra.mxu0 0.0
        %1221 = vmatprep.subr.mxu0 0.0
        %1222 = vmatpush1.xpose.msra.mxu0 0.0
        %1223 = vmatprep.subr.mxu0 0.0
        %1224 = vmatpush1.xpose.msra.mxu0 0.0
        %1225 = vmatprep.subr.mxu0 0.0
        %1226 = vmatpush1.xpose.msra.mxu0 0.0
        %1227 = vmatprep.subr.mxu0 0.0
        %1228 = vmatpush1.xpose.msra.mxu0 0.0
        %1229 = vmatprep.subr.mxu0 0.0
        %1230 = vmatpush1.xpose.msra.mxu0 0.0
        %1231 = vmatprep.subr.mxu0 0.0
        %1232 = vmatpush1.xpose.msra.mxu0 0.0
        %1233 = vmatprep.subr.mxu0 0.0
        %1234 = vmatpush1.xpose.msra.mxu0 0.0
        %1235 = vmatprep.subr.mxu0 0.0
        %1236 = vmatpush1.xpose.msra.mxu0 0.0
        %1237 = vmatprep.subr.mxu0 0.0
        %1238 = vmatpush1.xpose.msra.mxu0 0.0
        %1239 = vmatprep.subr.mxu0 0.0
        %1240 = vmatpush1.xpose.msra.mxu0 0.0
        %1241 = vmatprep.subr.mxu0 0.0
        %1242 = vmatpush1.xpose.msra.mxu0 0.0
        %1243 = vmatprep.subr.mxu0 0.0
        %1244 = vmatpush1.xpose.msra.mxu0 0.0
        %1245 = vmatprep.subr.mxu0 0.0
        %1246 = vmatpush1.xpose.msra.mxu0 0.0
        %1247 = vmatprep.subr.mxu0 0.0
        %1248 = vmatpush1.xpose.msra.mxu0 0.0
        %1249 = vmatprep.subr.mxu0 0.0
        %1250 = vmatpush1.xpose.msra.mxu0 0.0
        %1251 = vmatprep.subr.mxu0 0.0
        %1252 = vmatpush1.xpose.msra.mxu0 0.0
        %1253 = vmatprep.subr.mxu0 0.0
        %1254 = vmatpush1.xpose.msra.mxu0 0.0
        %1255 = vmatprep.subr.mxu0 0.0
        %1256 = vmatpush1.xpose.msra.mxu0 0.0
        %1257 = vmatprep.subr.mxu0 0.0
        %1258 = vmatpush1.xpose.msra.mxu0 0.0
        %1259 = vmatprep.subr.mxu0 0.0
        %1260 = vmatpush1.xpose.msra.mxu0 0.0
        %1261 = vmatprep.subr.mxu0 0.0
        %1262 = vmatpush1.xpose.msra.mxu0 0.0
        %1263 = vmatprep.subr.mxu0 0.0
        %1264 = vmatpush1.xpose.msra.mxu0 0.0
        %1265 = vmatprep.subr.mxu0 0.0
        %1266 = vmatpush1.xpose.msra.mxu0 0.0
        %1267 = vmatprep.subr.mxu0 0.0
        %1268 = vmatpush1.xpose.msra.mxu0 0.0
        %1269 = vmatprep.subr.mxu0 0.0
        %1270 = vmatpush1.xpose.msra.mxu0 0.0
        %1271 = vmatprep.subr.mxu0 0.0
        %1272 = vmatpush1.xpose.msra.mxu0 0.0
        %1273 = vmatprep.mubr.f32.mxu0 0.0
        %1274 = vmatmul.mubr.f32.gmra.mrb[0].mxu0 %v1204
        %v1275 = vpop.f32.mrb[0].mxu0
        %v1276 = vadd.f32 0.0, %v1275
        %v1277 = vpop.f32.mrb[0].mxu0
        %1278 = vdwg.mxu0
        %v1279 = vsel %vm792, %v1276, -inf
        %1280 = vmax.xlane.f32.xlu0 %v1279
        %v1281 = vpop.xlane.xlu0 %1280
        %v1282 = vsub.f32 %v1276, %v1281
        %v1283 = vmul.f32 %v1282, 1.442695
        %v1284 = vpow.pop %v1283
        %v1285 = vsel %vm792, %v1284, 0.0
        %1286 = vadd.xlane.f32.xlu0 %v1285
        %v1287 = vpop.xlane.xlu0 %1286
        %v1288 = vrcp.pop %v1287
        %v1289 = vmul.f32 %v1284, %v1288
        %v1291 = vsel %vm792, %v1289, 0
        %1293 = vmatprep.subr.mxu0 0.0
        %1294 = vmatpush1.msra.mxu0 %v1200
        %1295 = vmatprep.subr.mxu0 0.0
        %1296 = vmatpush1.msra.mxu0 0.0
        %1297 = vmatprep.subr.mxu0 0.0
        %1298 = vmatpush1.msra.mxu0 0.0
        %1299 = vmatprep.subr.mxu0 0.0
        %1300 = vmatpush1.msra.mxu0 0.0
        %1301 = vmatprep.subr.mxu0 0.0
        %1302 = vmatpush1.msra.mxu0 0.0
        %1303 = vmatprep.subr.mxu0 0.0
        %1304 = vmatpush1.msra.mxu0 0.0
        %1305 = vmatprep.subr.mxu0 0.0
        %1306 = vmatpush1.msra.mxu0 0.0
        %1307 = vmatprep.subr.mxu0 0.0
        %1308 = vmatpush1.msra.mxu0 0.0
        %1309 = vmatprep.subr.mxu0 0.0
        %1310 = vmatpush1.msra.mxu0 0.0
        %1311 = vmatprep.subr.mxu0 0.0
        %1312 = vmatpush1.msra.mxu0 0.0
        %1313 = vmatprep.subr.mxu0 0.0
        %1314 = vmatpush1.msra.mxu0 0.0
        %1315 = vmatprep.subr.mxu0 0.0
        %1316 = vmatpush1.msra.mxu0 0.0
        %1317 = vmatprep.subr.mxu0 0.0
        %1318 = vmatpush1.msra.mxu0 0.0
        %1319 = vmatprep.subr.mxu0 0.0
        %1320 = vmatpush1.msra.mxu0 0.0
        %1321 = vmatprep.subr.mxu0 0.0
        %1322 = vmatpush1.msra.mxu0 0.0
        %1323 = vmatprep.subr.mxu0 0.0
        %1324 = vmatpush1.msra.mxu0 0.0
        %1325 = vmatprep.subr.mxu0 0.0
        %1326 = vmatpush1.msra.mxu0 0.0
        %1327 = vmatprep.subr.mxu0 0.0
        %1328 = vmatpush1.msra.mxu0 0.0
        %1329 = vmatprep.subr.mxu0 0.0
        %1330 = vmatpush1.msra.mxu0 0.0
        %1331 = vmatprep.subr.mxu0 0.0
        %1332 = vmatpush1.msra.mxu0 0.0
        %1333 = vmatprep.subr.mxu0 0.0
        %1334 = vmatpush1.msra.mxu0 0.0
        %1335 = vmatprep.subr.mxu0 0.0
        %1336 = vmatpush1.msra.mxu0 0.0
        %1337 = vmatprep.subr.mxu0 0.0
        %1338 = vmatpush1.msra.mxu0 0.0
        %1339 = vmatprep.subr.mxu0 0.0
        %1340 = vmatpush1.msra.mxu0 0.0
        %1341 = vmatprep.subr.mxu0 0.0
        %1342 = vmatpush1.msra.mxu0 0.0
        %1343 = vmatprep.subr.mxu0 0.0
        %1344 = vmatpush1.msra.mxu0 0.0
        %1345 = vmatprep.subr.mxu0 0.0
        %1346 = vmatpush1.msra.mxu0 0.0
        %1347 = vmatprep.subr.mxu0 0.0
        %1348 = vmatpush1.msra.mxu0 0.0
        %1349 = vmatprep.subr.mxu0 0.0
        %1350 = vmatpush1.msra.mxu0 0.0
        %1351 = vmatprep.subr.mxu0 0.0
        %1352 = vmatpush1.msra.mxu0 0.0
        %1353 = vmatprep.subr.mxu0 0.0
        %1354 = vmatpush1.msra.mxu0 0.0
        %1355 = vmatprep.subr.mxu0 0.0
        %1356 = vmatpush1.msra.mxu0 0.0
        %1357 = vmatprep.mubr.f32.mxu0 0.0
        %1358 = vmatmul.mubr.f32.gmra.mrb[0].mxu0 %v1291
        %v1359 = vpop.f32.mrb[0].mxu0
        %v1360 = vadd.f32 0.0, %v1359
        %v1361 = vpop.f32.mrb[0].mxu0
        %1362 = vdwg.mxu0
        %s1363 = scalar_lea.vmem %s7, 8
        %v1364 = vld [vmem:[%s1363] sm:$0xff]
        %v1366 = vsel %vm792, %v1360, 0
        %1368 = vmatprep.subr.mxu0 0.0
        %1369 = vmatpush1.msra.mxu0 %v1364
        %1370 = vmatprep.subr.mxu0 0.0
        %1371 = vmatpush1.msra.mxu0 0.0
        %1372 = vmatprep.subr.mxu0 0.0
        %1373 = vmatpush1.msra.mxu0 0.0
        %1374 = vmatprep.subr.mxu0 0.0
        %1375 = vmatpush1.msra.mxu0 0.0
        %1376 = vmatprep.subr.mxu0 0.0
        %1377 = vmatpush1.msra.mxu0 0.0
        %1378 = vmatprep.subr.mxu0 0.0
        %1379 = vmatpush1.msra.mxu0 0.0
        %1380 = vmatprep.subr.mxu0 0.0
        %1381 = vmatpush1.msra.mxu0 0.0
        %1382 = vmatprep.subr.mxu0 0.0
        %1383 = vmatpush1.msra.mxu0 0.0
        %1384 = vmatprep.subr.mxu0 0.0
        %1385 = vmatpush1.msra.mxu0 0.0
        %1386 = vmatprep.subr.mxu0 0.0
        %1387 = vmatpush1.msra.mxu0 0.0
        %1388 = vmatprep.subr.mxu0 0.0
        %1389 = vmatpush1.msra.mxu0 0.0
        %1390 = vmatprep.subr.mxu0 0.0
        %1391 = vmatpush1.msra.mxu0 0.0
        %1392 = vmatprep.subr.mxu0 0.0
        %1393 = vmatpush1.msra.mxu0 0.0
        %1394 = vmatprep.subr.mxu0 0.0
        %1395 = vmatpush1.msra.mxu0 0.0
        %1396 = vmatprep.subr.mxu0 0.0
        %1397 = vmatpush1.msra.mxu0 0.0
        %1398 = vmatprep.subr.mxu0 0.0
        %1399 = vmatpush1.msra.mxu0 0.0
        %1400 = vmatprep.subr.mxu0 0.0
        %1401 = vmatpush1.msra.mxu0 0.0
        %1402 = vmatprep.subr.mxu0 0.0
        %1403 = vmatpush1.msra.mxu0 0.0
        %1404 = vmatprep.subr.mxu0 0.0
        %1405 = vmatpush1.msra.mxu0 0.0
        %1406 = vmatprep.subr.mxu0 0.0
        %1407 = vmatpush1.msra.mxu0 0.0
        %1408 = vmatprep.subr.mxu0 0.0
        %1409 = vmatpush1.msra.mxu0 0.0
        %1410 = vmatprep.subr.mxu0 0.0
        %1411 = vmatpush1.msra.mxu0 0.0
        %1412 = vmatprep.subr.mxu0 0.0
        %1413 = vmatpush1.msra.mxu0 0.0
        %1414 = vmatprep.subr.mxu0 0.0
        %1415 = vmatpush1.msra.mxu0 0.0
        %1416 = vmatprep.subr.mxu0 0.0
        %1417 = vmatpush1.msra.mxu0 0.0
        %1418 = vmatprep.subr.mxu0 0.0
        %1419 = vmatpush1.msra.mxu0 0.0
        %1420 = vmatprep.subr.mxu0 0.0
        %1421 = vmatpush1.msra.mxu0 0.0
        %1422 = vmatprep.subr.mxu0 0.0
        %1423 = vmatpush1.msra.mxu0 0.0
        %1424 = vmatprep.subr.mxu0 0.0
        %1425 = vmatpush1.msra.mxu0 0.0
        %1426 = vmatprep.subr.mxu0 0.0
        %1427 = vmatpush1.msra.mxu0 0.0
        %1428 = vmatprep.subr.mxu0 0.0
        %1429 = vmatpush1.msra.mxu0 0.0
        %1430 = vmatprep.subr.mxu0 0.0
        %1431 = vmatpush1.msra.mxu0 0.0
        %1432 = vmatprep.mubr.f32.mxu0 0.0
        %1433 = vmatmul.mubr.f32.gmra.mrb[0].mxu0 %v1366
        %v1434 = vpop.f32.mrb[0].mxu0
        %v1435 = vadd.f32 0.0, %v1434
        %v1436 = vpop.f32.mrb[0].mxu0
        %1437 = vdwg.mxu0
        %v1439 = vsel %vm792, %v950, 0
        %1441 = vmatprep.subr.mxu0 0.0
        %1442 = vmatpush1.msra.mxu0 %v953
        %1443 = vmatprep.subr.mxu0 0.0
        %1444 = vmatpush1.msra.mxu0 0.0
        %1445 = vmatprep.subr.mxu0 0.0
        %1446 = vmatpush1.msra.mxu0 0.0
        %1447 = vmatprep.subr.mxu0 0.0
        %1448 = vmatpush1.msra.mxu0 0.0
        %1449 = vmatprep.subr.mxu0 0.0
        %1450 = vmatpush1.msra.mxu0 0.0
        %1451 = vmatprep.subr.mxu0 0.0
        %1452 = vmatpush1.msra.mxu0 0.0
        %1453 = vmatprep.subr.mxu0 0.0
        %1454 = vmatpush1.msra.mxu0 0.0
        %1455 = vmatprep.subr.mxu0 0.0
        %1456 = vmatpush1.msra.mxu0 0.0
        %1457 = vmatprep.subr.mxu0 0.0
        %1458 = vmatpush1.msra.mxu0 0.0
        %1459 = vmatprep.subr.mxu0 0.0
        %1460 = vmatpush1.msra.mxu0 0.0
        %1461 = vmatprep.subr.mxu0 0.0
        %1462 = vmatpush1.msra.mxu0 0.0
        %1463 = vmatprep.subr.mxu0 0.0
        %1464 = vmatpush1.msra.mxu0 0.0
        %1465 = vmatprep.subr.mxu0 0.0
        %1466 = vmatpush1.msra.mxu0 0.0
        %1467 = vmatprep.subr.mxu0 0.0
        %1468 = vmatpush1.msra.mxu0 0.0
        %1469 = vmatprep.subr.mxu0 0.0
        %1470 = vmatpush1.msra.mxu0 0.0
        %1471 = vmatprep.subr.mxu0 0.0
        %1472 = vmatpush1.msra.mxu0 0.0
        %1473 = vmatprep.subr.mxu0 0.0
        %1474 = vmatpush1.msra.mxu0 0.0
        %1475 = vmatprep.subr.mxu0 0.0
        %1476 = vmatpush1.msra.mxu0 0.0
        %1477 = vmatprep.subr.mxu0 0.0
        %1478 = vmatpush1.msra.mxu0 0.0
        %1479 = vmatprep.subr.mxu0 0.0
        %1480 = vmatpush1.msra.mxu0 0.0
        %1481 = vmatprep.subr.mxu0 0.0
        %1482 = vmatpush1.msra.mxu0 0.0
        %1483 = vmatprep.subr.mxu0 0.0
        %1484 = vmatpush1.msra.mxu0 0.0
        %1485 = vmatprep.subr.mxu0 0.0
        %1486 = vmatpush1.msra.mxu0 0.0
        %1487 = vmatprep.subr.mxu0 0.0
        %1488 = vmatpush1.msra.mxu0 0.0
        %1489 = vmatprep.subr.mxu0 0.0
        %1490 = vmatpush1.msra.mxu0 0.0
        %1491 = vmatprep.subr.mxu0 0.0
        %1492 = vmatpush1.msra.mxu0 0.0
        %1493 = vmatprep.subr.mxu0 0.0
        %1494 = vmatpush1.msra.mxu0 0.0
        %1495 = vmatprep.subr.mxu0 0.0
        %1496 = vmatpush1.msra.mxu0 0.0
        %1497 = vmatprep.subr.mxu0 0.0
        %1498 = vmatpush1.msra.mxu0 0.0
        %1499 = vmatprep.subr.mxu0 0.0
        %1500 = vmatpush1.msra.mxu0 0.0
        %1501 = vmatprep.subr.mxu0 0.0
        %1502 = vmatpush1.msra.mxu0 0.0
        %1503 = vmatprep.subr.mxu0 0.0
        %1504 = vmatpush1.msra.mxu0 0.0
        %1505 = vmatprep.mubr.f32.mxu0 0.0
        %1506 = vmatmul.mubr.f32.gmra.mrb[0].mxu0 %v1439
        %v1507 = vpop.f32.mrb[0].mxu0
        %v1508 = vadd.f32 %v1435, %v1507
        %v1509 = vpop.f32.mrb[0].mxu0
        %1510 = vdwg.mxu0
        %s1511 = scalar_lea.vmem %s1, 64
        %v1512 = vld [vmem:[%s1511] sm:$0xff]
        %v1513 = vld [vmem:[%s1511 + $0x8] sm:$0xff]
        %v1514 = vld [vmem:[%s1511 + $0x10] sm:$0xff]
        %v1515 = vld [vmem:[%s1511 + $0x18] sm:$0xff]
        %s1516 = scalar_lea.vmem %s4, 2
        %v1517 = vld [vmem:[%s1516] sm:$0x1]
        %v1519 = vlaneseq
        %v1520 = vshrl.u32 %v1519, 7
        %v1521 = vsub.s32 0, %v1520
        %v1522 = vrot.slane %v1517, %v1521
        %1524 = vmatprep.subr.mxu0 0.0
        %1525 = vmatpush1.msra.mxu0 %v1512
        %1526 = vmatprep.subr.mxu0 0.0
        %1527 = vmatpush1.msra.mxu0 %v1513
        %1528 = vmatprep.subr.mxu0 0.0
        %1529 = vmatpush1.msra.mxu0 %v1514
        %1530 = vmatprep.subr.mxu0 0.0
        %1531 = vmatpush1.msra.mxu0 %v1515
        %1532 = vmatprep.subr.mxu0 0.0
        %1533 = vmatpush1.msra.mxu0 0.0
        %1534 = vmatprep.subr.mxu0 0.0
        %1535 = vmatpush1.msra.mxu0 0.0
        %1536 = vmatprep.subr.mxu0 0.0
        %1537 = vmatpush1.msra.mxu0 0.0
        %1538 = vmatprep.subr.mxu0 0.0
        %1539 = vmatpush1.msra.mxu0 0.0
        %1540 = vmatprep.subr.mxu0 0.0
        %1541 = vmatpush1.msra.mxu0 0.0
        %1542 = vmatprep.subr.mxu0 0.0
        %1543 = vmatpush1.msra.mxu0 0.0
        %1544 = vmatprep.subr.mxu0 0.0
        %1545 = vmatpush1.msra.mxu0 0.0
        %1546 = vmatprep.subr.mxu0 0.0
        %1547 = vmatpush1.msra.mxu0 0.0
        %1548 = vmatprep.subr.mxu0 0.0
        %1549 = vmatpush1.msra.mxu0 0.0
        %1550 = vmatprep.subr.mxu0 0.0
        %1551 = vmatpush1.msra.mxu0 0.0
        %1552 = vmatprep.subr.mxu0 0.0
        %1553 = vmatpush1.msra.mxu0 0.0
        %1554 = vmatprep.subr.mxu0 0.0
        %1555 = vmatpush1.msra.mxu0 0.0
        %1556 = vmatprep.subr.mxu0 0.0
        %1557 = vmatpush1.msra.mxu0 0.0
        %1558 = vmatprep.subr.mxu0 0.0
        %1559 = vmatpush1.msra.mxu0 0.0
        %1560 = vmatprep.subr.mxu0 0.0
        %1561 = vmatpush1.msra.mxu0 0.0
        %1562 = vmatprep.subr.mxu0 0.0
        %1563 = vmatpush1.msra.mxu0 0.0
        %1564 = vmatprep.subr.mxu0 0.0
        %1565 = vmatpush1.msra.mxu0 0.0
        %1566 = vmatprep.subr.mxu0 0.0
        %1567 = vmatpush1.msra.mxu0 0.0
        %1568 = vmatprep.subr.mxu0 0.0
        %1569 = vmatpush1.msra.mxu0 0.0
        %1570 = vmatprep.subr.mxu0 0.0
        %1571 = vmatpush1.msra.mxu0 0.0
        %1572 = vmatprep.subr.mxu0 0.0
        %1573 = vmatpush1.msra.mxu0 0.0
        %1574 = vmatprep.subr.mxu0 0.0
        %1575 = vmatpush1.msra.mxu0 0.0
        %1576 = vmatprep.subr.mxu0 0.0
        %1577 = vmatpush1.msra.mxu0 0.0
        %1578 = vmatprep.subr.mxu0 0.0
        %1579 = vmatpush1.msra.mxu0 0.0
        %1580 = vmatprep.subr.mxu0 0.0
        %1581 = vmatpush1.msra.mxu0 0.0
        %1582 = vmatprep.subr.mxu0 0.0
        %1583 = vmatpush1.msra.mxu0 0.0
        %1584 = vmatprep.subr.mxu0 0.0
        %1585 = vmatpush1.msra.mxu0 0.0
        %1586 = vmatprep.subr.mxu0 0.0
        %1587 = vmatpush1.msra.mxu0 0.0
        %1588 = vmatprep.mubr.f32.mxu0 0.0
        %1589 = vmatmul.mubr.f32.gmra.mrb[0].mxu0 %v558
        %v1590 = vpop.f32.mrb[0].mxu0
        %v1591 = vadd.f32 %v1522, %v1590
        %v1592 = vpop.f32.mrb[0].mxu0
        %1593 = vdwg.mxu0
        %s1594 = scalar_lea.vmem %s2, 64
        %v1595 = vld [vmem:[%s1594] sm:$0xff]
        %v1596 = vld [vmem:[%s1594 + $0x8] sm:$0xff]
        %v1597 = vld [vmem:[%s1594 + $0x10] sm:$0xff]
        %v1598 = vld [vmem:[%s1594 + $0x18] sm:$0xff]
        %s1599 = scalar_lea.vmem %s5, 2
        %v1600 = vld [vmem:[%s1599] sm:$0x1]
        %v1602 = vlaneseq
        %v1603 = vshrl.u32 %v1602, 7
        %v1604 = vsub.s32 0, %v1603
        %v1605 = vrot.slane %v1600, %v1604
        %1607 = vmatprep.subr.mxu0 0.0
        %1608 = vmatpush1.msra.mxu0 %v1595
        %1609 = vmatprep.subr.mxu0 0.0
        %1610 = vmatpush1.msra.mxu0 %v1596
        %1611 = vmatprep.subr.mxu0 0.0
        %1612 = vmatpush1.msra.mxu0 %v1597
        %1613 = vmatprep.subr.mxu0 0.0
        %1614 = vmatpush1.msra.mxu0 %v1598
        %1615 = vmatprep.subr.mxu0 0.0
        %1616 = vmatpush1.msra.mxu0 0.0
        %1617 = vmatprep.subr.mxu0 0.0
        %1618 = vmatpush1.msra.mxu0 0.0
        %1619 = vmatprep.subr.mxu0 0.0
        %1620 = vmatpush1.msra.mxu0 0.0
        %1621 = vmatprep.subr.mxu0 0.0
        %1622 = vmatpush1.msra.mxu0 0.0
        %1623 = vmatprep.subr.mxu0 0.0
        %1624 = vmatpush1.msra.mxu0 0.0
        %1625 = vmatprep.subr.mxu0 0.0
        %1626 = vmatpush1.msra.mxu0 0.0
        %1627 = vmatprep.subr.mxu0 0.0
        %1628 = vmatpush1.msra.mxu0 0.0
        %1629 = vmatprep.subr.mxu0 0.0
        %1630 = vmatpush1.msra.mxu0 0.0
        %1631 = vmatprep.subr.mxu0 0.0
        %1632 = vmatpush1.msra.mxu0 0.0
        %1633 = vmatprep.subr.mxu0 0.0
        %1634 = vmatpush1.msra.mxu0 0.0
        %1635 = vmatprep.subr.mxu0 0.0
        %1636 = vmatpush1.msra.mxu0 0.0
        %1637 = vmatprep.subr.mxu0 0.0
        %1638 = vmatpush1.msra.mxu0 0.0
        %1639 = vmatprep.subr.mxu0 0.0
        %1640 = vmatpush1.msra.mxu0 0.0
        %1641 = vmatprep.subr.mxu0 0.0
        %1642 = vmatpush1.msra.mxu0 0.0
        %1643 = vmatprep.subr.mxu0 0.0
        %1644 = vmatpush1.msra.mxu0 0.0
        %1645 = vmatprep.subr.mxu0 0.0
        %1646 = vmatpush1.msra.mxu0 0.0
        %1647 = vmatprep.subr.mxu0 0.0
        %1648 = vmatpush1.msra.mxu0 0.0
        %1649 = vmatprep.subr.mxu0 0.0
        %1650 = vmatpush1.msra.mxu0 0.0
        %1651 = vmatprep.subr.mxu0 0.0
        %1652 = vmatpush1.msra.mxu0 0.0
        %1653 = vmatprep.subr.mxu0 0.0
        %1654 = vmatpush1.msra.mxu0 0.0
        %1655 = vmatprep.subr.mxu0 0.0
        %1656 = vmatpush1.msra.mxu0 0.0
        %1657 = vmatprep.subr.mxu0 0.0
        %1658 = vmatpush1.msra.mxu0 0.0
        %1659 = vmatprep.subr.mxu0 0.0
        %1660 = vmatpush1.msra.mxu0 0.0
        %1661 = vmatprep.subr.mxu0 0.0
        %1662 = vmatpush1.msra.mxu0 0.0
        %1663 = vmatprep.subr.mxu0 0.0
        %1664 = vmatpush1.msra.mxu0 0.0
        %1665 = vmatprep.subr.mxu0 0.0
        %1666 = vmatpush1.msra.mxu0 0.0
        %1667 = vmatprep.subr.mxu0 0.0
        %1668 = vmatpush1.msra.mxu0 0.0
        %1669 = vmatprep.subr.mxu0 0.0
        %1670 = vmatpush1.msra.mxu0 0.0
        %1671 = vmatprep.mubr.f32.mxu0 0.0
        %1672 = vmatmul.mubr.f32.gmra.mrb[0].mxu0 %v558
        %v1673 = vpop.f32.mrb[0].mxu0
        %v1674 = vadd.f32 %v1605, %v1673
        %v1675 = vpop.f32.mrb[0].mxu0
        %1676 = vdwg.mxu0
        %s1677 = scalar_lea.vmem %s3, 64
        %v1678 = vld [vmem:[%s1677] sm:$0xff]
        %v1679 = vld [vmem:[%s1677 + $0x8] sm:$0xff]
        %v1680 = vld [vmem:[%s1677 + $0x10] sm:$0xff]
        %v1681 = vld [vmem:[%s1677 + $0x18] sm:$0xff]
        %s1682 = scalar_lea.vmem %s6, 2
        %v1683 = vld [vmem:[%s1682] sm:$0x1]
        %v1685 = vlaneseq
        %v1686 = vshrl.u32 %v1685, 7
        %v1687 = vsub.s32 0, %v1686
        %v1688 = vrot.slane %v1683, %v1687
        %1690 = vmatprep.subr.mxu0 0.0
        %1691 = vmatpush1.msra.mxu0 %v1678
        %1692 = vmatprep.subr.mxu0 0.0
        %1693 = vmatpush1.msra.mxu0 %v1679
        %1694 = vmatprep.subr.mxu0 0.0
        %1695 = vmatpush1.msra.mxu0 %v1680
        %1696 = vmatprep.subr.mxu0 0.0
        %1697 = vmatpush1.msra.mxu0 %v1681
        %1698 = vmatprep.subr.mxu0 0.0
        %1699 = vmatpush1.msra.mxu0 0.0
        %1700 = vmatprep.subr.mxu0 0.0
        %1701 = vmatpush1.msra.mxu0 0.0
        %1702 = vmatprep.subr.mxu0 0.0
        %1703 = vmatpush1.msra.mxu0 0.0
        %1704 = vmatprep.subr.mxu0 0.0
        %1705 = vmatpush1.msra.mxu0 0.0
        %1706 = vmatprep.subr.mxu0 0.0
        %1707 = vmatpush1.msra.mxu0 0.0
        %1708 = vmatprep.subr.mxu0 0.0
        %1709 = vmatpush1.msra.mxu0 0.0
        %1710 = vmatprep.subr.mxu0 0.0
        %1711 = vmatpush1.msra.mxu0 0.0
        %1712 = vmatprep.subr.mxu0 0.0
        %1713 = vmatpush1.msra.mxu0 0.0
        %1714 = vmatprep.subr.mxu0 0.0
        %1715 = vmatpush1.msra.mxu0 0.0
        %1716 = vmatprep.subr.mxu0 0.0
        %1717 = vmatpush1.msra.mxu0 0.0
        %1718 = vmatprep.subr.mxu0 0.0
        %1719 = vmatpush1.msra.mxu0 0.0
        %1720 = vmatprep.subr.mxu0 0.0
        %1721 = vmatpush1.msra.mxu0 0.0
        %1722 = vmatprep.subr.mxu0 0.0
        %1723 = vmatpush1.msra.mxu0 0.0
        %1724 = vmatprep.subr.mxu0 0.0
        %1725 = vmatpush1.msra.mxu0 0.0
        %1726 = vmatprep.subr.mxu0 0.0
        %1727 = vmatpush1.msra.mxu0 0.0
        %1728 = vmatprep.subr.mxu0 0.0
        %1729 = vmatpush1.msra.mxu0 0.0
        %1730 = vmatprep.subr.mxu0 0.0
        %1731 = vmatpush1.msra.mxu0 0.0
        %1732 = vmatprep.subr.mxu0 0.0
        %1733 = vmatpush1.msra.mxu0 0.0
        %1734 = vmatprep.subr.mxu0 0.0
        %1735 = vmatpush1.msra.mxu0 0.0
        %1736 = vmatprep.subr.mxu0 0.0
        %1737 = vmatpush1.msra.mxu0 0.0
        %1738 = vmatprep.subr.mxu0 0.0
        %1739 = vmatpush1.msra.mxu0 0.0
        %1740 = vmatprep.subr.mxu0 0.0
        %1741 = vmatpush1.msra.mxu0 0.0
        %1742 = vmatprep.subr.mxu0 0.0
        %1743 = vmatpush1.msra.mxu0 0.0
        %1744 = vmatprep.subr.mxu0 0.0
        %1745 = vmatpush1.msra.mxu0 0.0
        %1746 = vmatprep.subr.mxu0 0.0
        %1747 = vmatpush1.msra.mxu0 0.0
        %1748 = vmatprep.subr.mxu0 0.0
        %1749 = vmatpush1.msra.mxu0 0.0
        %1750 = vmatprep.subr.mxu0 0.0
        %1751 = vmatpush1.msra.mxu0 0.0
        %1752 = vmatprep.subr.mxu0 0.0
        %1753 = vmatpush1.msra.mxu0 0.0
        %1754 = vmatprep.mubr.f32.mxu0 0.0
        %1755 = vmatmul.mubr.f32.gmra.mrb[0].mxu0 %v558
        %v1756 = vpop.f32.mrb[0].mxu0
        %v1757 = vadd.f32 %v1688, %v1756
        %v1758 = vpop.f32.mrb[0].mxu0
        %1759 = vdwg.mxu0
        %v1761 = vsel %vm792, %v1591, 0
        %v1764 = vsel %vm792, %v1674, 0
        %1766 = vmatprep.subr.mxu0 0.0
        %1767 = vmatpush1.xpose.msra.mxu0 %v1764
        %1768 = vmatprep.subr.mxu0 0.0
        %1769 = vmatpush1.xpose.msra.mxu0 0.0
        %1770 = vmatprep.subr.mxu0 0.0
        %1771 = vmatpush1.xpose.msra.mxu0 0.0
        %1772 = vmatprep.subr.mxu0 0.0
        %1773 = vmatpush1.xpose.msra.mxu0 0.0
        %1774 = vmatprep.subr.mxu0 0.0
        %1775 = vmatpush1.xpose.msra.mxu0 0.0
        %1776 = vmatprep.subr.mxu0 0.0
        %1777 = vmatpush1.xpose.msra.mxu0 0.0
        %1778 = vmatprep.subr.mxu0 0.0
        %1779 = vmatpush1.xpose.msra.mxu0 0.0
        %1780 = vmatprep.subr.mxu0 0.0
        %1781 = vmatpush1.xpose.msra.mxu0 0.0
        %1782 = vmatprep.subr.mxu0 0.0
        %1783 = vmatpush1.xpose.msra.mxu0 0.0
        %1784 = vmatprep.subr.mxu0 0.0
        %1785 = vmatpush1.xpose.msra.mxu0 0.0
        %1786 = vmatprep.subr.mxu0 0.0
        %1787 = vmatpush1.xpose.msra.mxu0 0.0
        %1788 = vmatprep.subr.mxu0 0.0
        %1789 = vmatpush1.xpose.msra.mxu0 0.0
        %1790 = vmatprep.subr.mxu0 0.0
        %1791 = vmatpush1.xpose.msra.mxu0 0.0
        %1792 = vmatprep.subr.mxu0 0.0
        %1793 = vmatpush1.xpose.msra.mxu0 0.0
        %1794 = vmatprep.subr.mxu0 0.0
        %1795 = vmatpush1.xpose.msra.mxu0 0.0
        %1796 = vmatprep.subr.mxu0 0.0
        %1797 = vmatpush1.xpose.msra.mxu0 0.0
        %1798 = vmatprep.subr.mxu0 0.0
        %1799 = vmatpush1.xpose.msra.mxu0 0.0
        %1800 = vmatprep.subr.mxu0 0.0
        %1801 = vmatpush1.xpose.msra.mxu0 0.0
        %1802 = vmatprep.subr.mxu0 0.0
        %1803 = vmatpush1.xpose.msra.mxu0 0.0
        %1804 = vmatprep.subr.mxu0 0.0
        %1805 = vmatpush1.xpose.msra.mxu0 0.0
        %1806 = vmatprep.subr.mxu0 0.0
        %1807 = vmatpush1.xpose.msra.mxu0 0.0
        %1808 = vmatprep.subr.mxu0 0.0
        %1809 = vmatpush1.xpose.msra.mxu0 0.0
        %1810 = vmatprep.subr.mxu0 0.0
        %1811 = vmatpush1.xpose.msra.mxu0 0.0
        %1812 = vmatprep.subr.mxu0 0.0
        %1813 = vmatpush1.xpose.msra.mxu0 0.0
        %1814 = vmatprep.subr.mxu0 0.0
        %1815 = vmatpush1.xpose.msra.mxu0 0.0
        %1816 = vmatprep.subr.mxu0 0.0
        %1817 = vmatpush1.xpose.msra.mxu0 0.0
        %1818 = vmatprep.subr.mxu0 0.0
        %1819 = vmatpush1.xpose.msra.mxu0 0.0
        %1820 = vmatprep.subr.mxu0 0.0
        %1821 = vmatpush1.xpose.msra.mxu0 0.0
        %1822 = vmatprep.subr.mxu0 0.0
        %1823 = vmatpush1.xpose.msra.mxu0 0.0
        %1824 = vmatprep.subr.mxu0 0.0
        %1825 = vmatpush1.xpose.msra.mxu0 0.0
        %1826 = vmatprep.subr.mxu0 0.0
        %1827 = vmatpush1.xpose.msra.mxu0 0.0
        %1828 = vmatprep.subr.mxu0 0.0
        %1829 = vmatpush1.xpose.msra.mxu0 0.0
        %1830 = vmatprep.mubr.f32.mxu0 0.0
        %1831 = vmatmul.mubr.f32.gmra.mrb[0].mxu0 %v1761
        %v1832 = vpop.f32.mrb[0].mxu0
        %v1833 = vadd.f32 0.0, %v1832
        %v1834 = vpop.f32.mrb[0].mxu0
        %1835 = vdwg.mxu0
        %v1836 = vsel %vm792, %v1833, -inf
        %1837 = vmax.xlane.f32.xlu0 %v1836
        %v1838 = vpop.xlane.xlu0 %1837
        %v1839 = vsub.f32 %v1833, %v1838
        %v1840 = vmul.f32 %v1839, 1.442695
        %v1841 = vpow.pop %v1840
        %v1842 = vsel %vm792, %v1841, 0.0
        %1843 = vadd.xlane.f32.xlu0 %v1842
        %v1844 = vpop.xlane.xlu0 %1843
        %v1845 = vrcp.pop %v1844
        %v1846 = vmul.f32 %v1841, %v1845
        %v1848 = vsel %vm792, %v1846, 0
        %1850 = vmatprep.subr.mxu0 0.0
        %1851 = vmatpush1.msra.mxu0 %v1757
        %1852 = vmatprep.subr.mxu0 0.0
        %1853 = vmatpush1.msra.mxu0 0.0
        %1854 = vmatprep.subr.mxu0 0.0
        %1855 = vmatpush1.msra.mxu0 0.0
        %1856 = vmatprep.subr.mxu0 0.0
        %1857 = vmatpush1.msra.mxu0 0.0
        %1858 = vmatprep.subr.mxu0 0.0
        %1859 = vmatpush1.msra.mxu0 0.0
        %1860 = vmatprep.subr.mxu0 0.0
        %1861 = vmatpush1.msra.mxu0 0.0
        %1862 = vmatprep.subr.mxu0 0.0
        %1863 = vmatpush1.msra.mxu0 0.0
        %1864 = vmatprep.subr.mxu0 0.0
        %1865 = vmatpush1.msra.mxu0 0.0
        %1866 = vmatprep.subr.mxu0 0.0
        %1867 = vmatpush1.msra.mxu0 0.0
        %1868 = vmatprep.subr.mxu0 0.0
        %1869 = vmatpush1.msra.mxu0 0.0
        %1870 = vmatprep.subr.mxu0 0.0
        %1871 = vmatpush1.msra.mxu0 0.0
        %1872 = vmatprep.subr.mxu0 0.0
        %1873 = vmatpush1.msra.mxu0 0.0
        %1874 = vmatprep.subr.mxu0 0.0
        %1875 = vmatpush1.msra.mxu0 0.0
        %1876 = vmatprep.subr.mxu0 0.0
        %1877 = vmatpush1.msra.mxu0 0.0
        %1878 = vmatprep.subr.mxu0 0.0
        %1879 = vmatpush1.msra.mxu0 0.0
        %1880 = vmatprep.subr.mxu0 0.0
        %1881 = vmatpush1.msra.mxu0 0.0
        %1882 = vmatprep.subr.mxu0 0.0
        %1883 = vmatpush1.msra.mxu0 0.0
        %1884 = vmatprep.subr.mxu0 0.0
        %1885 = vmatpush1.msra.mxu0 0.0
        %1886 = vmatprep.subr.mxu0 0.0
        %1887 = vmatpush1.msra.mxu0 0.0
        %1888 = vmatprep.subr.mxu0 0.0
        %1889 = vmatpush1.msra.mxu0 0.0
        %1890 = vmatprep.subr.mxu0 0.0
        %1891 = vmatpush1.msra.mxu0 0.0
        %1892 = vmatprep.subr.mxu0 0.0
        %1893 = vmatpush1.msra.mxu0 0.0
        %1894 = vmatprep.subr.mxu0 0.0
        %1895 = vmatpush1.msra.mxu0 0.0
        %1896 = vmatprep.subr.mxu0 0.0
        %1897 = vmatpush1.msra.mxu0 0.0
        %1898 = vmatprep.subr.mxu0 0.0
        %1899 = vmatpush1.msra.mxu0 0.0
        %1900 = vmatprep.subr.mxu0 0.0
        %1901 = vmatpush1.msra.mxu0 0.0
        %1902 = vmatprep.subr.mxu0 0.0
        %1903 = vmatpush1.msra.mxu0 0.0
        %1904 = vmatprep.subr.mxu0 0.0
        %1905 = vmatpush1.msra.mxu0 0.0
        %1906 = vmatprep.subr.mxu0 0.0
        %1907 = vmatpush1.msra.mxu0 0.0
        %1908 = vmatprep.subr.mxu0 0.0
        %1909 = vmatpush1.msra.mxu0 0.0
        %1910 = vmatprep.subr.mxu0 0.0
        %1911 = vmatpush1.msra.mxu0 0.0
        %1912 = vmatprep.subr.mxu0 0.0
        %1913 = vmatpush1.msra.mxu0 0.0
        %1914 = vmatprep.mubr.f32.mxu0 0.0
        %1915 = vmatmul.mubr.f32.gmra.mrb[0].mxu0 %v1848
        %v1916 = vpop.f32.mrb[0].mxu0
        %v1917 = vadd.f32 0.0, %v1916
        %v1918 = vpop.f32.mrb[0].mxu0
        %1919 = vdwg.mxu0
        %s1920 = scalar_lea.vmem %s7, 16
        %v1921 = vld [vmem:[%s1920] sm:$0xff]
        %v1923 = vsel %vm792, %v1917, 0
        %1925 = vmatprep.subr.mxu0 0.0
        %1926 = vmatpush1.msra.mxu0 %v1921
        %1927 = vmatprep.subr.mxu0 0.0
        %1928 = vmatpush1.msra.mxu0 0.0
        %1929 = vmatprep.subr.mxu0 0.0
        %1930 = vmatpush1.msra.mxu0 0.0
        %1931 = vmatprep.subr.mxu0 0.0
        %1932 = vmatpush1.msra.mxu0 0.0
        %1933 = vmatprep.subr.mxu0 0.0
        %1934 = vmatpush1.msra.mxu0 0.0
        %1935 = vmatprep.subr.mxu0 0.0
        %1936 = vmatpush1.msra.mxu0 0.0
        %1937 = vmatprep.subr.mxu0 0.0
        %1938 = vmatpush1.msra.mxu0 0.0
        %1939 = vmatprep.subr.mxu0 0.0
        %1940 = vmatpush1.msra.mxu0 0.0
        %1941 = vmatprep.subr.mxu0 0.0
        %1942 = vmatpush1.msra.mxu0 0.0
        %1943 = vmatprep.subr.mxu0 0.0
        %1944 = vmatpush1.msra.mxu0 0.0
        %1945 = vmatprep.subr.mxu0 0.0
        %1946 = vmatpush1.msra.mxu0 0.0
        %1947 = vmatprep.subr.mxu0 0.0
        %1948 = vmatpush1.msra.mxu0 0.0
        %1949 = vmatprep.subr.mxu0 0.0
        %1950 = vmatpush1.msra.mxu0 0.0
        %1951 = vmatprep.subr.mxu0 0.0
        %1952 = vmatpush1.msra.mxu0 0.0
        %1953 = vmatprep.subr.mxu0 0.0
        %1954 = vmatpush1.msra.mxu0 0.0
        %1955 = vmatprep.subr.mxu0 0.0
        %1956 = vmatpush1.msra.mxu0 0.0
        %1957 = vmatprep.subr.mxu0 0.0
        %1958 = vmatpush1.msra.mxu0 0.0
        %1959 = vmatprep.subr.mxu0 0.0
        %1960 = vmatpush1.msra.mxu0 0.0
        %1961 = vmatprep.subr.mxu0 0.0
        %1962 = vmatpush1.msra.mxu0 0.0
        %1963 = vmatprep.subr.mxu0 0.0
        %1964 = vmatpush1.msra.mxu0 0.0
        %1965 = vmatprep.subr.mxu0 0.0
        %1966 = vmatpush1.msra.mxu0 0.0
        %1967 = vmatprep.subr.mxu0 0.0
        %1968 = vmatpush1.msra.mxu0 0.0
        %1969 = vmatprep.subr.mxu0 0.0
        %1970 = vmatpush1.msra.mxu0 0.0
        %1971 = vmatprep.subr.mxu0 0.0
        %1972 = vmatpush1.msra.mxu0 0.0
        %1973 = vmatprep.subr.mxu0 0.0
        %1974 = vmatpush1.msra.mxu0 0.0
        %1975 = vmatprep.subr.mxu0 0.0
        %1976 = vmatpush1.msra.mxu0 0.0
        %1977 = vmatprep.subr.mxu0 0.0
        %1978 = vmatpush1.msra.mxu0 0.0
        %1979 = vmatprep.subr.mxu0 0.0
        %1980 = vmatpush1.msra.mxu0 0.0
        %1981 = vmatprep.subr.mxu0 0.0
        %1982 = vmatpush1.msra.mxu0 0.0
        %1983 = vmatprep.subr.mxu0 0.0
        %1984 = vmatpush1.msra.mxu0 0.0
        %1985 = vmatprep.subr.mxu0 0.0
        %1986 = vmatpush1.msra.mxu0 0.0
        %1987 = vmatprep.subr.mxu0 0.0
        %1988 = vmatpush1.msra.mxu0 0.0
        %1989 = vmatprep.mubr.f32.mxu0 0.0
        %1990 = vmatmul.mubr.f32.gmra.mrb[0].mxu0 %v1923
        %v1991 = vpop.f32.mrb[0].mxu0
        %v1992 = vadd.f32 0.0, %v1991
        %v1993 = vpop.f32.mrb[0].mxu0
        %1994 = vdwg.mxu0
        %v1995 = vadd.f32 %v1508, %v1992
        %s1996 = scalar_lea.vmem %s1, 96
        %v1997 = vld [vmem:[%s1996] sm:$0xff]
        %v1998 = vld [vmem:[%s1996 + $0x8] sm:$0xff]
        %v1999 = vld [vmem:[%s1996 + $0x10] sm:$0xff]
        %v2000 = vld [vmem:[%s1996 + $0x18] sm:$0xff]
        %s2001 = scalar_lea.vmem %s4, 3
        %v2002 = vld [vmem:[%s2001] sm:$0x1]
        %v2004 = vlaneseq
        %v2005 = vshrl.u32 %v2004, 7
        %v2006 = vsub.s32 0, %v2005
        %v2007 = vrot.slane %v2002, %v2006
        %2009 = vmatprep.subr.mxu0 0.0
        %2010 = vmatpush1.msra.mxu0 %v1997
        %2011 = vmatprep.subr.mxu0 0.0
        %2012 = vmatpush1.msra.mxu0 %v1998
        %2013 = vmatprep.subr.mxu0 0.0
        %2014 = vmatpush1.msra.mxu0 %v1999
        %2015 = vmatprep.subr.mxu0 0.0
        %2016 = vmatpush1.msra.mxu0 %v2000
        %2017 = vmatprep.subr.mxu0 0.0
        %2018 = vmatpush1.msra.mxu0 0.0
        %2019 = vmatprep.subr.mxu0 0.0
        %2020 = vmatpush1.msra.mxu0 0.0
        %2021 = vmatprep.subr.mxu0 0.0
        %2022 = vmatpush1.msra.mxu0 0.0
        %2023 = vmatprep.subr.mxu0 0.0
        %2024 = vmatpush1.msra.mxu0 0.0
        %2025 = vmatprep.subr.mxu0 0.0
        %2026 = vmatpush1.msra.mxu0 0.0
        %2027 = vmatprep.subr.mxu0 0.0
        %2028 = vmatpush1.msra.mxu0 0.0
        %2029 = vmatprep.subr.mxu0 0.0
        %2030 = vmatpush1.msra.mxu0 0.0
        %2031 = vmatprep.subr.mxu0 0.0
        %2032 = vmatpush1.msra.mxu0 0.0
        %2033 = vmatprep.subr.mxu0 0.0
        %2034 = vmatpush1.msra.mxu0 0.0
        %2035 = vmatprep.subr.mxu0 0.0
        %2036 = vmatpush1.msra.mxu0 0.0
        %2037 = vmatprep.subr.mxu0 0.0
        %2038 = vmatpush1.msra.mxu0 0.0
        %2039 = vmatprep.subr.mxu0 0.0
        %2040 = vmatpush1.msra.mxu0 0.0
        %2041 = vmatprep.subr.mxu0 0.0
        %2042 = vmatpush1.msra.mxu0 0.0
        %2043 = vmatprep.subr.mxu0 0.0
        %2044 = vmatpush1.msra.mxu0 0.0
        %2045 = vmatprep.subr.mxu0 0.0
        %2046 = vmatpush1.msra.mxu0 0.0
        %2047 = vmatprep.subr.mxu0 0.0
        %2048 = vmatpush1.msra.mxu0 0.0
        %2049 = vmatprep.subr.mxu0 0.0
        %2050 = vmatpush1.msra.mxu0 0.0
        %2051 = vmatprep.subr.mxu0 0.0
        %2052 = vmatpush1.msra.mxu0 0.0
        %2053 = vmatprep.subr.mxu0 0.0
        %2054 = vmatpush1.msra.mxu0 0.0
        %2055 = vmatprep.subr.mxu0 0.0
        %2056 = vmatpush1.msra.mxu0 0.0
        %2057 = vmatprep.subr.mxu0 0.0
        %2058 = vmatpush1.msra.mxu0 0.0
        %2059 = vmatprep.subr.mxu0 0.0
        %2060 = vmatpush1.msra.mxu0 0.0
        %2061 = vmatprep.subr.mxu0 0.0
        %2062 = vmatpush1.msra.mxu0 0.0
        %2063 = vmatprep.subr.mxu0 0.0
        %2064 = vmatpush1.msra.mxu0 0.0
        %2065 = vmatprep.subr.mxu0 0.0
        %2066 = vmatpush1.msra.mxu0 0.0
        %2067 = vmatprep.subr.mxu0 0.0
        %2068 = vmatpush1.msra.mxu0 0.0
        %2069 = vmatprep.subr.mxu0 0.0
        %2070 = vmatpush1.msra.mxu0 0.0
        %2071 = vmatprep.subr.mxu0 0.0
        %2072 = vmatpush1.msra.mxu0 0.0
        %2073 = vmatprep.mubr.f32.mxu0 0.0
        %2074 = vmatmul.mubr.f32.gmra.mrb[0].mxu0 %v558
        %v2075 = vpop.f32.mrb[0].mxu0
        %v2076 = vadd.f32 %v2007, %v2075
        %v2077 = vpop.f32.mrb[0].mxu0
        %2078 = vdwg.mxu0
        %s2079 = scalar_lea.vmem %s2, 96
        %v2080 = vld [vmem:[%s2079] sm:$0xff]
        %v2081 = vld [vmem:[%s2079 + $0x8] sm:$0xff]
        %v2082 = vld [vmem:[%s2079 + $0x10] sm:$0xff]
        %v2083 = vld [vmem:[%s2079 + $0x18] sm:$0xff]
        %s2084 = scalar_lea.vmem %s5, 3
        %v2085 = vld [vmem:[%s2084] sm:$0x1]
        %v2087 = vlaneseq
        %v2088 = vshrl.u32 %v2087, 7
        %v2089 = vsub.s32 0, %v2088
        %v2090 = vrot.slane %v2085, %v2089
        %2092 = vmatprep.subr.mxu0 0.0
        %2093 = vmatpush1.msra.mxu0 %v2080
        %2094 = vmatprep.subr.mxu0 0.0
        %2095 = vmatpush1.msra.mxu0 %v2081
        %2096 = vmatprep.subr.mxu0 0.0
        %2097 = vmatpush1.msra.mxu0 %v2082
        %2098 = vmatprep.subr.mxu0 0.0
        %2099 = vmatpush1.msra.mxu0 %v2083
        %2100 = vmatprep.subr.mxu0 0.0
        %2101 = vmatpush1.msra.mxu0 0.0
        %2102 = vmatprep.subr.mxu0 0.0
        %2103 = vmatpush1.msra.mxu0 0.0
        %2104 = vmatprep.subr.mxu0 0.0
        %2105 = vmatpush1.msra.mxu0 0.0
        %2106 = vmatprep.subr.mxu0 0.0
        %2107 = vmatpush1.msra.mxu0 0.0
        %2108 = vmatprep.subr.mxu0 0.0
        %2109 = vmatpush1.msra.mxu0 0.0
        %2110 = vmatprep.subr.mxu0 0.0
        %2111 = vmatpush1.msra.mxu0 0.0
        %2112 = vmatprep.subr.mxu0 0.0
        %2113 = vmatpush1.msra.mxu0 0.0
        %2114 = vmatprep.subr.mxu0 0.0
        %2115 = vmatpush1.msra.mxu0 0.0
        %2116 = vmatprep.subr.mxu0 0.0
        %2117 = vmatpush1.msra.mxu0 0.0
        %2118 = vmatprep.subr.mxu0 0.0
        %2119 = vmatpush1.msra.mxu0 0.0
        %2120 = vmatprep.subr.mxu0 0.0
        %2121 = vmatpush1.msra.mxu0 0.0
        %2122 = vmatprep.subr.mxu0 0.0
        %2123 = vmatpush1.msra.mxu0 0.0
        %2124 = vmatprep.subr.mxu0 0.0
        %2125 = vmatpush1.msra.mxu0 0.0
        %2126 = vmatprep.subr.mxu0 0.0
        %2127 = vmatpush1.msra.mxu0 0.0
        %2128 = vmatprep.subr.mxu0 0.0
        %2129 = vmatpush1.msra.mxu0 0.0
        %2130 = vmatprep.subr.mxu0 0.0
        %2131 = vmatpush1.msra.mxu0 0.0
        %2132 = vmatprep.subr.mxu0 0.0
        %2133 = vmatpush1.msra.mxu0 0.0
        %2134 = vmatprep.subr.mxu0 0.0
        %2135 = vmatpush1.msra.mxu0 0.0
        %2136 = vmatprep.subr.mxu0 0.0
        %2137 = vmatpush1.msra.mxu0 0.0
        %2138 = vmatprep.subr.mxu0 0.0
        %2139 = vmatpush1.msra.mxu0 0.0
        %2140 = vmatprep.subr.mxu0 0.0
        %2141 = vmatpush1.msra.mxu0 0.0
        %2142 = vmatprep.subr.mxu0 0.0
        %2143 = vmatpush1.msra.mxu0 0.0
        %2144 = vmatprep.subr.mxu0 0.0
        %2145 = vmatpush1.msra.mxu0 0.0
        %2146 = vmatprep.subr.mxu0 0.0
        %2147 = vmatpush1.msra.mxu0 0.0
        %2148 = vmatprep.subr.mxu0 0.0
        %2149 = vmatpush1.msra.mxu0 0.0
        %2150 = vmatprep.subr.mxu0 0.0
        %2151 = vmatpush1.msra.mxu0 0.0
        %2152 = vmatprep.subr.mxu0 0.0
        %2153 = vmatpush1.msra.mxu0 0.0
        %2154 = vmatprep.subr.mxu0 0.0
        %2155 = vmatpush1.msra.mxu0 0.0
        %2156 = vmatprep.mubr.f32.mxu0 0.0
        %2157 = vmatmul.mubr.f32.gmra.mrb[0].mxu0 %v558
        %v2158 = vpop.f32.mrb[0].mxu0
        %v2159 = vadd.f32 %v2090, %v2158
        %v2160 = vpop.f32.mrb[0].mxu0
        %2161 = vdwg.mxu0
        %s2162 = scalar_lea.vmem %s3, 96
        %v2163 = vld [vmem:[%s2162] sm:$0xff]
        %v2164 = vld [vmem:[%s2162 + $0x8] sm:$0xff]
        %v2165 = vld [vmem:[%s2162 + $0x10] sm:$0xff]
        %v2166 = vld [vmem:[%s2162 + $0x18] sm:$0xff]
        %s2167 = scalar_lea.vmem %s6, 3
        %v2168 = vld [vmem:[%s2167] sm:$0x1]
        %v2170 = vlaneseq
        %v2171 = vshrl.u32 %v2170, 7
        %v2172 = vsub.s32 0, %v2171
        %v2173 = vrot.slane %v2168, %v2172
        %2175 = vmatprep.subr.mxu0 0.0
        %2176 = vmatpush1.msra.mxu0 %v2163
        %2177 = vmatprep.subr.mxu0 0.0
        %2178 = vmatpush1.msra.mxu0 %v2164
        %2179 = vmatprep.subr.mxu0 0.0
        %2180 = vmatpush1.msra.mxu0 %v2165
        %2181 = vmatprep.subr.mxu0 0.0
        %2182 = vmatpush1.msra.mxu0 %v2166
        %2183 = vmatprep.subr.mxu0 0.0
        %2184 = vmatpush1.msra.mxu0 0.0
        %2185 = vmatprep.subr.mxu0 0.0
        %2186 = vmatpush1.msra.mxu0 0.0
        %2187 = vmatprep.subr.mxu0 0.0
        %2188 = vmatpush1.msra.mxu0 0.0
        %2189 = vmatprep.subr.mxu0 0.0
        %2190 = vmatpush1.msra.mxu0 0.0
        %2191 = vmatprep.subr.mxu0 0.0
        %2192 = vmatpush1.msra.mxu0 0.0
        %2193 = vmatprep.subr.mxu0 0.0
        %2194 = vmatpush1.msra.mxu0 0.0
        %2195 = vmatprep.subr.mxu0 0.0
        %2196 = vmatpush1.msra.mxu0 0.0
        %2197 = vmatprep.subr.mxu0 0.0
        %2198 = vmatpush1.msra.mxu0 0.0
        %2199 = vmatprep.subr.mxu0 0.0
        %2200 = vmatpush1.msra.mxu0 0.0
        %2201 = vmatprep.subr.mxu0 0.0
        %2202 = vmatpush1.msra.mxu0 0.0
        %2203 = vmatprep.subr.mxu0 0.0
        %2204 = vmatpush1.msra.mxu0 0.0
        %2205 = vmatprep.subr.mxu0 0.0
        %2206 = vmatpush1.msra.mxu0 0.0
        %2207 = vmatprep.subr.mxu0 0.0
        %2208 = vmatpush1.msra.mxu0 0.0
        %2209 = vmatprep.subr.mxu0 0.0
        %2210 = vmatpush1.msra.mxu0 0.0
        %2211 = vmatprep.subr.mxu0 0.0
        %2212 = vmatpush1.msra.mxu0 0.0
        %2213 = vmatprep.subr.mxu0 0.0
        %2214 = vmatpush1.msra.mxu0 0.0
        %2215 = vmatprep.subr.mxu0 0.0
        %2216 = vmatpush1.msra.mxu0 0.0
        %2217 = vmatprep.subr.mxu0 0.0
        %2218 = vmatpush1.msra.mxu0 0.0
        %2219 = vmatprep.subr.mxu0 0.0
        %2220 = vmatpush1.msra.mxu0 0.0
        %2221 = vmatprep.subr.mxu0 0.0
        %2222 = vmatpush1.msra.mxu0 0.0
        %2223 = vmatprep.subr.mxu0 0.0
        %2224 = vmatpush1.msra.mxu0 0.0
        %2225 = vmatprep.subr.mxu0 0.0
        %2226 = vmatpush1.msra.mxu0 0.0
        %2227 = vmatprep.subr.mxu0 0.0
        %2228 = vmatpush1.msra.mxu0 0.0
        %2229 = vmatprep.subr.mxu0 0.0
        %2230 = vmatpush1.msra.mxu0 0.0
        %2231 = vmatprep.subr.mxu0 0.0
        %2232 = vmatpush1.msra.mxu0 0.0
        %2233 = vmatprep.subr.mxu0 0.0
        %2234 = vmatpush1.msra.mxu0 0.0
        %2235 = vmatprep.subr.mxu0 0.0
        %2236 = vmatpush1.msra.mxu0 0.0
        %2237 = vmatprep.subr.mxu0 0.0
        %2238 = vmatpush1.msra.mxu0 0.0
        %2239 = vmatprep.mubr.f32.mxu0 0.0
        %2240 = vmatmul.mubr.f32.gmra.mrb[0].mxu0 %v558
        %v2241 = vpop.f32.mrb[0].mxu0
        %v2242 = vadd.f32 %v2173, %v2241
        %v2243 = vpop.f32.mrb[0].mxu0
        %2244 = vdwg.mxu0
        %v2246 = vsel %vm792, %v2076, 0
        %v2249 = vsel %vm792, %v2159, 0
        %2251 = vmatprep.subr.mxu0 0.0
        %2252 = vmatpush1.xpose.msra.mxu0 %v2249
        %2253 = vmatprep.subr.mxu0 0.0
        %2254 = vmatpush1.xpose.msra.mxu0 0.0
        %2255 = vmatprep.subr.mxu0 0.0
        %2256 = vmatpush1.xpose.msra.mxu0 0.0
        %2257 = vmatprep.subr.mxu0 0.0
        %2258 = vmatpush1.xpose.msra.mxu0 0.0
        %2259 = vmatprep.subr.mxu0 0.0
        %2260 = vmatpush1.xpose.msra.mxu0 0.0
        %2261 = vmatprep.subr.mxu0 0.0
        %2262 = vmatpush1.xpose.msra.mxu0 0.0
        %2263 = vmatprep.subr.mxu0 0.0
        %2264 = vmatpush1.xpose.msra.mxu0 0.0
        %2265 = vmatprep.subr.mxu0 0.0
        %2266 = vmatpush1.xpose.msra.mxu0 0.0
        %2267 = vmatprep.subr.mxu0 0.0
        %2268 = vmatpush1.xpose.msra.mxu0 0.0
        %2269 = vmatprep.subr.mxu0 0.0
        %2270 = vmatpush1.xpose.msra.mxu0 0.0
        %2271 = vmatprep.subr.mxu0 0.0
        %2272 = vmatpush1.xpose.msra.mxu0 0.0
        %2273 = vmatprep.subr.mxu0 0.0
        %2274 = vmatpush1.xpose.msra.mxu0 0.0
        %2275 = vmatprep.subr.mxu0 0.0
        %2276 = vmatpush1.xpose.msra.mxu0 0.0
        %2277 = vmatprep.subr.mxu0 0.0
        %2278 = vmatpush1.xpose.msra.mxu0 0.0
        %2279 = vmatprep.subr.mxu0 0.0
        %2280 = vmatpush1.xpose.msra.mxu0 0.0
        %2281 = vmatprep.subr.mxu0 0.0
        %2282 = vmatpush1.xpose.msra.mxu0 0.0
        %2283 = vmatprep.subr.mxu0 0.0
        %2284 = vmatpush1.xpose.msra.mxu0 0.0
        %2285 = vmatprep.subr.mxu0 0.0
        %2286 = vmatpush1.xpose.msra.mxu0 0.0
        %2287 = vmatprep.subr.mxu0 0.0
        %2288 = vmatpush1.xpose.msra.mxu0 0.0
        %2289 = vmatprep.subr.mxu0 0.0
        %2290 = vmatpush1.xpose.msra.mxu0 0.0
        %2291 = vmatprep.subr.mxu0 0.0
        %2292 = vmatpush1.xpose.msra.mxu0 0.0
        %2293 = vmatprep.subr.mxu0 0.0
        %2294 = vmatpush1.xpose.msra.mxu0 0.0
        %2295 = vmatprep.subr.mxu0 0.0
        %2296 = vmatpush1.xpose.msra.mxu0 0.0
        %2297 = vmatprep.subr.mxu0 0.0
        %2298 = vmatpush1.xpose.msra.mxu0 0.0
        %2299 = vmatprep.subr.mxu0 0.0
        %2300 = vmatpush1.xpose.msra.mxu0 0.0
        %2301 = vmatprep.subr.mxu0 0.0
        %2302 = vmatpush1.xpose.msra.mxu0 0.0
        %2303 = vmatprep.subr.mxu0 0.0
        %2304 = vmatpush1.xpose.msra.mxu0 0.0
        %2305 = vmatprep.subr.mxu0 0.0
        %2306 = vmatpush1.xpose.msra.mxu0 0.0
        %2307 = vmatprep.subr.mxu0 0.0
        %2308 = vmatpush1.xpose.msra.mxu0 0.0
        %2309 = vmatprep.subr.mxu0 0.0
        %2310 = vmatpush1.xpose.msra.mxu0 0.0
        %2311 = vmatprep.subr.mxu0 0.0
        %2312 = vmatpush1.xpose.msra.mxu0 0.0
        %2313 = vmatprep.subr.mxu0 0.0
        %2314 = vmatpush1.xpose.msra.mxu0 0.0
        %2315 = vmatprep.mubr.f32.mxu0 0.0
        %2316 = vmatmul.mubr.f32.gmra.mrb[0].mxu0 %v2246
        %v2317 = vpop.f32.mrb[0].mxu0
        %v2318 = vadd.f32 0.0, %v2317
        %v2319 = vpop.f32.mrb[0].mxu0
        %2320 = vdwg.mxu0
        %v2321 = vsel %vm792, %v2318, -inf
        %2322 = vmax.xlane.f32.xlu0 %v2321
        %v2323 = vpop.xlane.xlu0 %2322
        %v2324 = vsub.f32 %v2318, %v2323
        %v2325 = vmul.f32 %v2324, 1.442695
        %v2326 = vpow.pop %v2325
        %v2327 = vsel %vm792, %v2326, 0.0
        %2328 = vadd.xlane.f32.xlu0 %v2327
        %v2329 = vpop.xlane.xlu0 %2328
        %v2330 = vrcp.pop %v2329
        %v2331 = vmul.f32 %v2326, %v2330
        %v2333 = vsel %vm792, %v2331, 0
        %2335 = vmatprep.subr.mxu0 0.0
        %2336 = vmatpush1.msra.mxu0 %v2242
        %2337 = vmatprep.subr.mxu0 0.0
        %2338 = vmatpush1.msra.mxu0 0.0
        %2339 = vmatprep.subr.mxu0 0.0
        %2340 = vmatpush1.msra.mxu0 0.0
        %2341 = vmatprep.subr.mxu0 0.0
        %2342 = vmatpush1.msra.mxu0 0.0
        %2343 = vmatprep.subr.mxu0 0.0
        %2344 = vmatpush1.msra.mxu0 0.0
        %2345 = vmatprep.subr.mxu0 0.0
        %2346 = vmatpush1.msra.mxu0 0.0
        %2347 = vmatprep.subr.mxu0 0.0
        %2348 = vmatpush1.msra.mxu0 0.0
        %2349 = vmatprep.subr.mxu0 0.0
        %2350 = vmatpush1.msra.mxu0 0.0
        %2351 = vmatprep.subr.mxu0 0.0
        %2352 = vmatpush1.msra.mxu0 0.0
        %2353 = vmatprep.subr.mxu0 0.0
        %2354 = vmatpush1.msra.mxu0 0.0
        %2355 = vmatprep.subr.mxu0 0.0
        %2356 = vmatpush1.msra.mxu0 0.0
        %2357 = vmatprep.subr.mxu0 0.0
        %2358 = vmatpush1.msra.mxu0 0.0
        %2359 = vmatprep.subr.mxu0 0.0
        %2360 = vmatpush1.msra.mxu0 0.0
        %2361 = vmatprep.subr.mxu0 0.0
        %2362 = vmatpush1.msra.mxu0 0.0
        %2363 = vmatprep.subr.mxu0 0.0
        %2364 = vmatpush1.msra.mxu0 0.0
        %2365 = vmatprep.subr.mxu0 0.0
        %2366 = vmatpush1.msra.mxu0 0.0
        %2367 = vmatprep.subr.mxu0 0.0
        %2368 = vmatpush1.msra.mxu0 0.0
        %2369 = vmatprep.subr.mxu0 0.0
        %2370 = vmatpush1.msra.mxu0 0.0
        %2371 = vmatprep.subr.mxu0 0.0
        %2372 = vmatpush1.msra.mxu0 0.0
        %2373 = vmatprep.subr.mxu0 0.0
        %2374 = vmatpush1.msra.mxu0 0.0
        %2375 = vmatprep.subr.mxu0 0.0
        %2376 = vmatpush1.msra.mxu0 0.0
        %2377 = vmatprep.subr.mxu0 0.0
        %2378 = vmatpush1.msra.mxu0 0.0
        %2379 = vmatprep.subr.mxu0 0.0
        %2380 = vmatpush1.msra.mxu0 0.0
        %2381 = vmatprep.subr.mxu0 0.0
        %2382 = vmatpush1.msra.mxu0 0.0
        %2383 = vmatprep.subr.mxu0 0.0
        %2384 = vmatpush1.msra.mxu0 0.0
        %2385 = vmatprep.subr.mxu0 0.0
        %2386 = vmatpush1.msra.mxu0 0.0
        %2387 = vmatprep.subr.mxu0 0.0
        %2388 = vmatpush1.msra.mxu0 0.0
        %2389 = vmatprep.subr.mxu0 0.0
        %2390 = vmatpush1.msra.mxu0 0.0
        %2391 = vmatprep.subr.mxu0 0.0
        %2392 = vmatpush1.msra.mxu0 0.0
        %2393 = vmatprep.subr.mxu0 0.0
        %2394 = vmatpush1.msra.mxu0 0.0
        %2395 = vmatprep.subr.mxu0 0.0
        %2396 = vmatpush1.msra.mxu0 0.0
        %2397 = vmatprep.subr.mxu0 0.0
        %2398 = vmatpush1.msra.mxu0 0.0
        %2399 = vmatprep.mubr.f32.mxu0 0.0
        %2400 = vmatmul.mubr.f32.gmra.mrb[0].mxu0 %v2333
        %v2401 = vpop.f32.mrb[0].mxu0
        %v2402 = vadd.f32 0.0, %v2401
        %v2403 = vpop.f32.mrb[0].mxu0
        %2404 = vdwg.mxu0
        %s2405 = scalar_lea.vmem %s7, 24
        %v2406 = vld [vmem:[%s2405] sm:$0xff]
        %v2408 = vsel %vm792, %v2402, 0
        %2410 = vmatprep.subr.mxu0 0.0
        %2411 = vmatpush1.msra.mxu0 %v2406
        %2412 = vmatprep.subr.mxu0 0.0
        %2413 = vmatpush1.msra.mxu0 0.0
        %2414 = vmatprep.subr.mxu0 0.0
        %2415 = vmatpush1.msra.mxu0 0.0
        %2416 = vmatprep.subr.mxu0 0.0
        %2417 = vmatpush1.msra.mxu0 0.0
        %2418 = vmatprep.subr.mxu0 0.0
        %2419 = vmatpush1.msra.mxu0 0.0
        %2420 = vmatprep.subr.mxu0 0.0
        %2421 = vmatpush1.msra.mxu0 0.0
        %2422 = vmatprep.subr.mxu0 0.0
        %2423 = vmatpush1.msra.mxu0 0.0
        %2424 = vmatprep.subr.mxu0 0.0
        %2425 = vmatpush1.msra.mxu0 0.0
        %2426 = vmatprep.subr.mxu0 0.0
        %2427 = vmatpush1.msra.mxu0 0.0
        %2428 = vmatprep.subr.mxu0 0.0
        %2429 = vmatpush1.msra.mxu0 0.0
        %2430 = vmatprep.subr.mxu0 0.0
        %2431 = vmatpush1.msra.mxu0 0.0
        %2432 = vmatprep.subr.mxu0 0.0
        %2433 = vmatpush1.msra.mxu0 0.0
        %2434 = vmatprep.subr.mxu0 0.0
        %2435 = vmatpush1.msra.mxu0 0.0
        %2436 = vmatprep.subr.mxu0 0.0
        %2437 = vmatpush1.msra.mxu0 0.0
        %2438 = vmatprep.subr.mxu0 0.0
        %2439 = vmatpush1.msra.mxu0 0.0
        %2440 = vmatprep.subr.mxu0 0.0
        %2441 = vmatpush1.msra.mxu0 0.0
        %2442 = vmatprep.subr.mxu0 0.0
        %2443 = vmatpush1.msra.mxu0 0.0
        %2444 = vmatprep.subr.mxu0 0.0
        %2445 = vmatpush1.msra.mxu0 0.0
        %2446 = vmatprep.subr.mxu0 0.0
        %2447 = vmatpush1.msra.mxu0 0.0
        %2448 = vmatprep.subr.mxu0 0.0
        %2449 = vmatpush1.msra.mxu0 0.0
        %2450 = vmatprep.subr.mxu0 0.0
        %2451 = vmatpush1.msra.mxu0 0.0
        %2452 = vmatprep.subr.mxu0 0.0
        %2453 = vmatpush1.msra.mxu0 0.0
        %2454 = vmatprep.subr.mxu0 0.0
        %2455 = vmatpush1.msra.mxu0 0.0
        %2456 = vmatprep.subr.mxu0 0.0
        %2457 = vmatpush1.msra.mxu0 0.0
        %2458 = vmatprep.subr.mxu0 0.0
        %2459 = vmatpush1.msra.mxu0 0.0
        %2460 = vmatprep.subr.mxu0 0.0
        %2461 = vmatpush1.msra.mxu0 0.0
        %2462 = vmatprep.subr.mxu0 0.0
        %2463 = vmatpush1.msra.mxu0 0.0
        %2464 = vmatprep.subr.mxu0 0.0
        %2465 = vmatpush1.msra.mxu0 0.0
        %2466 = vmatprep.subr.mxu0 0.0
        %2467 = vmatpush1.msra.mxu0 0.0
        %2468 = vmatprep.subr.mxu0 0.0
        %2469 = vmatpush1.msra.mxu0 0.0
        %2470 = vmatprep.subr.mxu0 0.0
        %2471 = vmatpush1.msra.mxu0 0.0
        %2472 = vmatprep.subr.mxu0 0.0
        %2473 = vmatpush1.msra.mxu0 0.0
        %2474 = vmatprep.mubr.f32.mxu0 0.0
        %2475 = vmatmul.mubr.f32.gmra.mrb[0].mxu0 %v2408
        %v2476 = vpop.f32.mrb[0].mxu0
        %v2477 = vadd.f32 0.0, %v2476
        %v2478 = vpop.f32.mrb[0].mxu0
        %2479 = vdwg.mxu0
        %v2480 = vadd.f32 %v1995, %v2477
        %v2481 = vld [vmem:[%s8] sm:$0x1]
        %v2483 = vlaneseq
        %v2484 = vshrl.u32 %v2483, 7
        %v2485 = vsub.s32 0, %v2484
        %v2486 = vrot.slane %v2481, %v2485
        %v2488 = vadd.f32 %v2480, %v2486
        %v2489 = vadd.f32 %v544, %v2488
        %v2490 = vld [vmem:[%s13] sm:$0x1]
        %v2491 = vld [vmem:[%s14] sm:$0x1]
        %v2492 = vsel %vm556, %v2489, 0.0
        %2493 = vadd.xlane.f32.xlu0 %v2492
        %v2494 = vpop.xlane.xlu0 %2493
        %v2495 = vrcp.pop 32.0
        %v2496 = vmul.f32 %v2494, %v2495
        %v2497 = vsub.f32 %v2489, %v2496
        %v2498 = vmul.f32 %v2497, %v2497
        %v2499 = vsel %vm556, %v2498, 0.0
        %2500 = vadd.xlane.f32.xlu0 %v2499
        %v2501 = vpop.xlane.xlu0 %2500
        %v2502 = vmul.f32 %v2501, %v2495
        %v2503 = vadd.f32 %v2502, 1e-05
        %v2504 = vrsqrt.pop %v2503
        %v2505 = vmul.f32 %v2497, %v2504
        %v2507 = vlaneseq
        %v2508 = vshrl.u32 %v2507, 7
        %v2509 = vsub.s32 0, %v2508
        %v2510 = vrot.slane %v2490, %v2509
        %v2512 = vmul.f32 %v2505, %v2510
        %v2514 = vlaneseq
        %v2515 = vshrl.u32 %v2514, 7
        %v2516 = vsub.s32 0, %v2515
        %v2517 = vrot.slane %v2491, %v2516
        %v2519 = vadd.f32 %v2512, %v2517
        %v2520 = vld [vmem:[%s9] sm:$0xff]
        %v2521 = vld [vmem:[%s9 + $0x8] sm:$0xff]
        %v2522 = vld [vmem:[%s9 + $0x10] sm:$0xff]
        %v2523 = vld [vmem:[%s9 + $0x18] sm:$0xff]
        %v2524 = vld [vmem:[%s10] sm:$0x1]
        %v2526 = vlaneseq
        %v2527 = vshrl.u32 %v2526, 7
        %v2528 = vsub.s32 0, %v2527
        %v2529 = vrot.slane %v2524, %v2528
        %v2532 = vsel %vm556, %v2519, 0
        %2534 = vmatprep.subr.mxu0 0.0
        %2535 = vmatpush1.msra.mxu0 %v2520
        %2536 = vmatprep.subr.mxu0 0.0
        %2537 = vmatpush1.msra.mxu0 %v2521
        %2538 = vmatprep.subr.mxu0 0.0
        %2539 = vmatpush1.msra.mxu0 %v2522
        %2540 = vmatprep.subr.mxu0 0.0
        %2541 = vmatpush1.msra.mxu0 %v2523
        %2542 = vmatprep.subr.mxu0 0.0
        %2543 = vmatpush1.msra.mxu0 0.0
        %2544 = vmatprep.subr.mxu0 0.0
        %2545 = vmatpush1.msra.mxu0 0.0
        %2546 = vmatprep.subr.mxu0 0.0
        %2547 = vmatpush1.msra.mxu0 0.0
        %2548 = vmatprep.subr.mxu0 0.0
        %2549 = vmatpush1.msra.mxu0 0.0
        %2550 = vmatprep.subr.mxu0 0.0
        %2551 = vmatpush1.msra.mxu0 0.0
        %2552 = vmatprep.subr.mxu0 0.0
        %2553 = vmatpush1.msra.mxu0 0.0
        %2554 = vmatprep.subr.mxu0 0.0
        %2555 = vmatpush1.msra.mxu0 0.0
        %2556 = vmatprep.subr.mxu0 0.0
        %2557 = vmatpush1.msra.mxu0 0.0
        %2558 = vmatprep.subr.mxu0 0.0
        %2559 = vmatpush1.msra.mxu0 0.0
        %2560 = vmatprep.subr.mxu0 0.0
        %2561 = vmatpush1.msra.mxu0 0.0
        %2562 = vmatprep.subr.mxu0 0.0
        %2563 = vmatpush1.msra.mxu0 0.0
        %2564 = vmatprep.subr.mxu0 0.0
        %2565 = vmatpush1.msra.mxu0 0.0
        %2566 = vmatprep.subr.mxu0 0.0
        %2567 = vmatpush1.msra.mxu0 0.0
        %2568 = vmatprep.subr.mxu0 0.0
        %2569 = vmatpush1.msra.mxu0 0.0
        %2570 = vmatprep.subr.mxu0 0.0
        %2571 = vmatpush1.msra.mxu0 0.0
        %2572 = vmatprep.subr.mxu0 0.0
        %2573 = vmatpush1.msra.mxu0 0.0
        %2574 = vmatprep.subr.mxu0 0.0
        %2575 = vmatpush1.msra.mxu0 0.0
        %2576 = vmatprep.subr.mxu0 0.0
        %2577 = vmatpush1.msra.mxu0 0.0
        %2578 = vmatprep.subr.mxu0 0.0
        %2579 = vmatpush1.msra.mxu0 0.0
        %2580 = vmatprep.subr.mxu0 0.0
        %2581 = vmatpush1.msra.mxu0 0.0
        %2582 = vmatprep.subr.mxu0 0.0
        %2583 = vmatpush1.msra.mxu0 0.0
        %2584 = vmatprep.subr.mxu0 0.0
        %2585 = vmatpush1.msra.mxu0 0.0
        %2586 = vmatprep.subr.mxu0 0.0
        %2587 = vmatpush1.msra.mxu0 0.0
        %2588 = vmatprep.subr.mxu0 0.0
        %2589 = vmatpush1.msra.mxu0 0.0
        %2590 = vmatprep.subr.mxu0 0.0
        %2591 = vmatpush1.msra.mxu0 0.0
        %2592 = vmatprep.subr.mxu0 0.0
        %2593 = vmatpush1.msra.mxu0 0.0
        %2594 = vmatprep.subr.mxu0 0.0
        %2595 = vmatpush1.msra.mxu0 0.0
        %2596 = vmatprep.subr.mxu0 0.0
        %2597 = vmatpush1.msra.mxu0 0.0
        %2598 = vmatprep.mubr.f32.mxu0 0.0
        %2599 = vmatmul.mubr.f32.gmra.mrb[0].mxu0 %v2532
        %v2600 = vpop.f32.mrb[0].mxu0
        %v2601 = vadd.f32 %v2529, %v2600
        %v2602 = vpop.f32.mrb[0].mxu0
        %2603 = vdwg.mxu0
        %v2604 = vmax.f32 %v2601, 0.0
        %v2605 = vld [vmem:[%s11] sm:$0xff]
        %v2606 = vld [vmem:[%s11 + $0x8] sm:$0xff]
        %v2607 = vld [vmem:[%s11 + $0x10] sm:$0xff]
        %v2608 = vld [vmem:[%s11 + $0x18] sm:$0xff]
        %v2609 = vld [vmem:[%s11 + $0x20] sm:$0xff]
        %v2610 = vld [vmem:[%s11 + $0x28] sm:$0xff]
        %v2611 = vld [vmem:[%s11 + $0x30] sm:$0xff]
        %v2612 = vld [vmem:[%s11 + $0x38] sm:$0xff]
        %v2613 = vld [vmem:[%s12] sm:$0x1]
        %v2615 = vlaneseq
        %v2616 = vshrl.u32 %v2615, 7
        %v2617 = vsub.s32 0, %v2616
        %v2618 = vrot.slane %v2613, %v2617
        %vm2620 = vcmask 523264
        %v2622 = vsel %vm2620, %v2604, 0
        %2624 = vmatprep.subr.mxu0 0.0
        %2625 = vmatpush1.msra.mxu0 %v2605
        %2626 = vmatprep.subr.mxu0 0.0
        %2627 = vmatpush1.msra.mxu0 %v2606
        %2628 = vmatprep.subr.mxu0 0.0
        %2629 = vmatpush1.msra.mxu0 %v2607
        %2630 = vmatprep.subr.mxu0 0.0
        %2631 = vmatpush1.msra.mxu0 %v2608
        %2632 = vmatprep.subr.mxu0 0.0
        %2633 = vmatpush1.msra.mxu0 %v2609
        %2634 = vmatprep.subr.mxu0 0.0
        %2635 = vmatpush1.msra.mxu0 %v2610
        %2636 = vmatprep.subr.mxu0 0.0
        %2637 = vmatpush1.msra.mxu0 %v2611
        %2638 = vmatprep.subr.mxu0 0.0
        %2639 = vmatpush1.msra.mxu0 %v2612
        %2640 = vmatprep.subr.mxu0 0.0
        %2641 = vmatpush1.msra.mxu0 0.0
        %2642 = vmatprep.subr.mxu0 0.0
        %2643 = vmatpush1.msra.mxu0 0.0
        %2644 = vmatprep.subr.mxu0 0.0
        %2645 = vmatpush1.msra.mxu0 0.0
        %2646 = vmatprep.subr.mxu0 0.0
        %2647 = vmatpush1.msra.mxu0 0.0
        %2648 = vmatprep.subr.mxu0 0.0
        %2649 = vmatpush1.msra.mxu0 0.0
        %2650 = vmatprep.subr.mxu0 0.0
        %2651 = vmatpush1.msra.mxu0 0.0
        %2652 = vmatprep.subr.mxu0 0.0
        %2653 = vmatpush1.msra.mxu0 0.0
        %2654 = vmatprep.subr.mxu0 0.0
        %2655 = vmatpush1.msra.mxu0 0.0
        %2656 = vmatprep.subr.mxu0 0.0
        %2657 = vmatpush1.msra.mxu0 0.0
        %2658 = vmatprep.subr.mxu0 0.0
        %2659 = vmatpush1.msra.mxu0 0.0
        %2660 = vmatprep.subr.mxu0 0.0
        %2661 = vmatpush1.msra.mxu0 0.0
        %2662 = vmatprep.subr.mxu0 0.0
        %2663 = vmatpush1.msra.mxu0 0.0
        %2664 = vmatprep.subr.mxu0 0.0
        %2665 = vmatpush1.msra.mxu0 0.0
        %2666 = vmatprep.subr.mxu0 0.0
        %2667 = vmatpush1.msra.mxu0 0.0
        %2668 = vmatprep.subr.mxu0 0.0
        %2669 = vmatpush1.msra.mxu0 0.0
        %2670 = vmatprep.subr.mxu0 0.0
        %2671 = vmatpush1.msra.mxu0 0.0
        %2672 = vmatprep.subr.mxu0 0.0
        %2673 = vmatpush1.msra.mxu0 0.0
        %2674 = vmatprep.subr.mxu0 0.0
        %2675 = vmatpush1.msra.mxu0 0.0
        %2676 = vmatprep.subr.mxu0 0.0
        %2677 = vmatpush1.msra.mxu0 0.0
        %2678 = vmatprep.subr.mxu0 0.0
        %2679 = vmatpush1.msra.mxu0 0.0
        %2680 = vmatprep.subr.mxu0 0.0
        %2681 = vmatpush1.msra.mxu0 0.0
        %2682 = vmatprep.subr.mxu0 0.0
        %2683 = vmatpush1.msra.mxu0 0.0
        %2684 = vmatprep.subr.mxu0 0.0
        %2685 = vmatpush1.msra.mxu0 0.0
        %2686 = vmatprep.subr.mxu0 0.0
        %2687 = vmatpush1.msra.mxu0 0.0
        %2688 = vmatprep.mubr.f32.mxu0 0.0
        %2689 = vmatmul.mubr.f32.gmra.mrb[0].mxu0 %v2622
        %v2690 = vpop.f32.mrb[0].mxu0
        %v2691 = vadd.f32 %v2618, %v2690
        %v2692 = vpop.f32.mrb[0].mxu0
        %2693 = vdwg.mxu0
        %v2694 = vadd.f32 %v2519, %v2691
        %v2695 = vld [vmem:[%s15] sm:$0x1]
        %v2696 = vld [vmem:[%s16] sm:$0x1]
        %v2697 = vsel %vm556, %v2694, 0.0
        %2698 = vadd.xlane.f32.xlu0 %v2697
        %v2699 = vpop.xlane.xlu0 %2698
        %v2700 = vmul.f32 %v2699, %v2495
        %v2701 = vsub.f32 %v2694, %v2700
        %v2702 = vmul.f32 %v2701, %v2701
        %v2703 = vsel %vm556, %v2702, 0.0
        %2704 = vadd.xlane.f32.xlu0 %v2703
        %v2705 = vpop.xlane.xlu0 %2704
        %v2706 = vmul.f32 %v2705, %v2495
        %v2707 = vadd.f32 %v2706, 1e-05
        %v2708 = vrsqrt.pop %v2707
        %v2709 = vmul.f32 %v2701, %v2708
        %v2711 = vlaneseq
        %v2712 = vshrl.u32 %v2711, 7
        %v2713 = vsub.s32 0, %v2712
        %v2714 = vrot.slane %v2695, %v2713
        %v2716 = vmul.f32 %v2709, %v2714
        %v2718 = vlaneseq
        %v2719 = vshrl.u32 %v2718, 7
        %v2720 = vsub.s32 0, %v2719
        %v2721 = vrot.slane %v2696, %v2720
        %v2723 = vadd.f32 %v2716, %v2721
        %2724 = vst.msk [vmem:[%s539] sm:$0xff] %vm556, %v2723
        %s2725 = sand.u32 %s401, 1
        %s2726 = scalar_lea.sflag [#allocation3], %s2725
        %s2727 = sand.u32 %s401, 1
        %s2728 = smul.addr %s2727, 8
        %s2729 = scalar_lea.vmem [#allocation2], %s2728
        // Predicated region
        $region89: #{tpu_custom_call.1} parent=87 // pred_check
          %p2730 = pneg %p411
        $region90: #{tpu_custom_call.1} parent=87 // pred_check_branch
          %2732 = sbr.rel (%p2730) target = $region92
        $region91: #{tpu_custom_call.1} parent=87 // pred_region
          %s2734 = ssub.s32 128, 128
          %2735 = vsyncadd %s2726, %s2734
          %s2736 = smul.addr %s31, 128
          %s2737 = scalar_lea.hbm %s17, %s2736
          %s2739 = sshll.u32 %s2729, 4
          %s2740 = int_to_ptr.vmem [resolvable:$true] %s2739
          %2742 = dma.vmem_to_hbm [thread:$0]  %s2740, 128, %s2737, %s2726
        $region92: #{tpu_custom_call.1} parent=87 // pred_fallthru
          _
      $region88: #{tpu_custom_call.1} parent=5 // pred_fallthru
        _
      %p2743 = scmp.le.s32.totalorder 2, %s26
      // Predicated region
      $region93: #{tpu_custom_call.1} parent=5 // pred_check
        %p2744 = pneg %p2743
      $region94: #{tpu_custom_call.1} parent=5 // pred_check_branch
        %2746 = sbr.rel (%p2744) target = $region96
      $region95: #{tpu_custom_call.1} parent=5 // pred_region
        %s2747 = ssub.s32 %s26, 2
        // Predicated region
        $region97: #{tpu_custom_call.1} parent=95 // pred_check
          %p2748 = pneg %p417
        $region98: #{tpu_custom_call.1} parent=95 // pred_check_branch
          %2750 = sbr.rel (%p2748) target = $region100
        $region99: #{tpu_custom_call.1} parent=95 // pred_region
          %s2751 = sand.u32 %s402, 1
          %s2752 = scalar_lea.sflag [#allocation3], %s2751
          %s2753 = sand.u32 %s402, 1
          %s2754 = smul.addr %s2753, 8
          %s2755 = scalar_lea.vmem [#allocation2], %s2754
          %2756 = dma.done %s2752, 128
        $region100: #{tpu_custom_call.1} parent=95 // pred_fallthru
          _
      $region96: #{tpu_custom_call.1} parent=5 // pred_fallthru
        _
    $region6: #{tpu_custom_call.1} parent=1 // loop_footer
      %s30 = sadd.s32 1, %s26
    $region7: #{tpu_custom_call.1} parent=1 // loop_footer_branch
      %25 = sbr.rel target = $region3
    $region8: #{tpu_custom_call.1} parent=1 // loop_exit
      _
    %2757 = vsyncpa [#allocation3], 1
    %s2758 = scalar_lea.sflag [#allocation3], 1
    %2759 = vsyncpa %s2758, 1

</llo_original>
